<compile_context>
chip_gen: v7x
topology: tpu7x:2x2x1
jax: 0.10.0
libtpu: 0.0.40
codegen_flags: <defaults>
</compile_context>

<pallas_src>
import jax
import jax.numpy as jnp
import numpy as np
from jax.experimental import pallas as pl
from jax.experimental.pallas import tpu as pltpu


def _round_up(x, m):
    return (x + m - 1) // m * m


def _make_kernel(H, W, Cin, Cout, CPAD, pad_h, pad_w, branch_taps):
    """branch_taps: per dilated branch, a tuple of (oy, ox, is_center) static taps."""
    HW = H * W

    def kernel(x_ref, w1_ref, b1_ref, w2_ref, b2_ref, w3_ref, b3_ref,
               w4_ref, b4_ref, w5_ref, b5_ref, wcat_ref, bcat_ref,
               out_ref, xpad_ref):
        # Build the zero-padded image in VMEM; the HBM input stays unpadded.
        xpad_ref[...] = jnp.zeros(xpad_ref.shape, xpad_ref.dtype)
        xc = x_ref[0]                                       # (H, W, Cin) bf16
        xpad_ref[pad_h:pad_h + H, pad_w:pad_w + W, :] = xc
        xc2 = xc.reshape(HW, Cin)                           # shared center tap

        wcat = wcat_ref[...]                                # (5*Cout, CPAD) f32

        # branch5: global avg pool -> 1x1 conv -> relu. Bilinear upsample of a
        # 1x1 map with align_corners=True is a broadcast, so its conv_cat
        # contribution folds into one effective bias row.
        gm = jnp.mean(xc2.astype(jnp.float32), axis=0, keepdims=True)   # (1, Cin)
        y5 = jnp.maximum(
            jnp.dot(gm, w5_ref[...], preferred_element_type=jnp.float32)
            + b5_ref[...], 0.0)                             # (1, Cout)
        bias_eff = bcat_ref[...] + jnp.dot(
            y5, wcat[4 * Cout:5 * Cout], preferred_element_type=jnp.float32)

        # branch1 (1x1 conv); its conv_cat contribution goes straight into the
        # lane-dense output block, which doubles as the accumulator.
        y1 = jnp.maximum(
            jnp.dot(xc2, w1_ref[...], preferred_element_type=jnp.float32)
            + b1_ref[...], 0.0)                             # (HW, Cout) f32
        out_ref[0] = bias_eff + jnp.dot(
            y1, wcat[0 * Cout:1 * Cout], preferred_element_type=jnp.float32)

        # branches 2-4: 3x3 dilated convs as shifted 1x1 matmuls. Taps fully
        # inside the zero halo were dropped statically; the center tap reuses
        # xc2. The branch result is consumed immediately by conv_cat.
        def dilated_contrib(w_ref, b_ref, wcat_blk, taps):
            acc = jnp.zeros((HW, Cout), jnp.float32)
            for t, (oy, ox, is_center) in enumerate(taps):
                if is_center:
                    tap = xc2
                else:
                    tap = xpad_ref[oy:oy + H, ox:ox + W, :].reshape(HW, Cin)
                acc = acc + jnp.dot(tap, w_ref[t * Cin:(t + 1) * Cin, :],
                                    preferred_element_type=jnp.float32)
            y = jnp.maximum(acc + b_ref[...], 0.0)
            return jnp.dot(y, wcat_blk, preferred_element_type=jnp.float32)

        out_ref[0] = out_ref[0] + dilated_contrib(
            w2_ref, b2_ref, wcat[1 * Cout:2 * Cout], branch_taps[0])
        out_ref[0] = out_ref[0] + dilated_contrib(
            w3_ref, b3_ref, wcat[2 * Cout:3 * Cout], branch_taps[1])
        out_ref[0] = out_ref[0] + dilated_contrib(
            w4_ref, b4_ref, wcat[3 * Cout:4 * Cout], branch_taps[2])
        out_ref[0] = jnp.maximum(out_ref[0], 0.0)

    return kernel


def aspp_forward(x_nhwc, params, rate=1):
    B, H, W, Cin = x_nhwc.shape
    Cout = params["b1"].shape[-1]
    CPAD = _round_up(Cout, 128)        # lane-dense (unmasked) output stores
    HW = H * W
    dils = (6 * rate, 12 * rate, 18 * rate)

    # Halo size = largest dilation whose off-center taps still touch the image.
    ph = max([d for d in dils if d < H] + [0])
    pw = max([d for d in dils if d < W] + [0])
    pad_h, pad_w = _round_up(ph, 8), _round_up(pw, 8)
    HP, WP = H + 2 * pad_h, W + 2 * pad_w

    # Static dead-tap elimination + per-branch weight packing (kept taps only).
    branch_taps, packed_ws = [], []
    for d, wkey in zip(dils, ("w2", "w3", "w4")):
        w = params[wkey]                                   # (3, 3, Cin, Cout)
        taps, rows = [], []
        for ky in range(3):
            for kx in range(3):
                dy, dx = (ky - 1) * d, (kx - 1) * d
                if abs(dy) >= H or abs(dx) >= W:
                    continue                               # window is all zeros
                taps.append((pad_h + dy, pad_w + dx, ky == 1 and kx == 1))
                rows.append(w[ky, kx])                     # (Cin, Cout)
        branch_taps.append(tuple(taps))
        packed_ws.append(jnp.concatenate(rows, axis=0))    # (n_taps*Cin, Cout)

    # bf16 image & branch conv weights (half the DMA/VMEM), f32 accumulation.
    bf16 = jnp.bfloat16
    x_bf = x_nhwc.astype(bf16)
    w1 = params["w1"].astype(bf16)
    w2, w3, w4 = (w.astype(bf16) for w in packed_ws)
    # conv_cat weight/bias zero-padded to CPAD output lanes (sliced off later).
    wcat = jnp.pad(params["wcat"], ((0, 0), (0, CPAD - Cout)))
    bcat = jnp.pad(params["bcat"], ((0, 0), (0, CPAD - Cout)))

    kernel = _make_kernel(H, W, Cin, Cout, CPAD, pad_h, pad_w,
                          tuple(branch_taps))

    def full(shape):
        return pl.BlockSpec(shape, lambda b, n=len(shape): (0,) * n)

    out_pad = pl.pallas_call(
        kernel,
        out_shape=jax.ShapeDtypeStruct((B, HW, CPAD), jnp.float32),
        grid=(B,),
        in_specs=[
            pl.BlockSpec((1, H, W, Cin), lambda b: (b, 0, 0, 0)),
            full(w1.shape), full(params["b1"].shape),
            full(w2.shape), full(params["b2"].shape),
            full(w3.shape), full(params["b3"].shape),
            full(w4.shape), full(params["b4"].shape),
            full(params["w5"].shape), full(params["b5"].shape),
            full(wcat.shape), full(bcat.shape),
        ],
        out_specs=pl.BlockSpec((1, HW, CPAD), lambda b: (b, 0, 0)),
        scratch_shapes=[pltpu.VMEM((HP, WP, Cin), bf16)],
        compiler_params=pltpu.CompilerParams(
            dimension_semantics=("parallel",)),
    )(x_bf, w1, params["b1"], w2, params["b2"], w3, params["b3"],
      w4, params["b4"], params["w5"], params["b5"], wcat, bcat)

    # Drop the lane padding and restore (B, H, W, Cout).
    return out_pad[:, :, :Cout].reshape(B, H, W, Cout)


def init_params(key, cin, cout, eps=1e-5):
    keys = jax.random.split(key, 12)

    def conv_init(kw, kb, kh, kwd, ci, co):
        # PyTorch Conv2d default (kaiming-uniform-style bound)
        fan_in = ci * kh * kwd
        bound = 1.0 / np.sqrt(fan_in)
        w = jax.random.uniform(kw, (kh, kwd, ci, co), jnp.float32, -bound, bound)
        b = jax.random.uniform(kb, (co,), jnp.float32, -bound, bound)
        return w, b

    def fold_bn(w, b):
        co = w.shape[-1]
        gamma = jnp.ones((co,), jnp.float32)
        beta = jnp.zeros((co,), jnp.float32)
        mean = jnp.zeros((co,), jnp.float32)
        var = jnp.ones((co,), jnp.float32)
        scale = gamma / jnp.sqrt(var + eps)
        return w * scale, (b - mean) * scale + beta

    w1, b1 = fold_bn(*conv_init(keys[0], keys[1], 1, 1, cin, cout))
    w2, b2 = fold_bn(*conv_init(keys[2], keys[3], 3, 3, cin, cout))
    w3, b3 = fold_bn(*conv_init(keys[4], keys[5], 3, 3, cin, cout))
    w4, b4 = fold_bn(*conv_init(keys[6], keys[7], 3, 3, cin, cout))
    w5, b5 = fold_bn(*conv_init(keys[8], keys[9], 1, 1, cin, cout))
    wc, bc = fold_bn(*conv_init(keys[10], keys[11], 1, 1, 5 * cout, cout))
    return dict(
        w1=w1.reshape(cin, cout), b1=b1.reshape(1, cout),
        w2=w2, b2=b2.reshape(1, cout),
        w3=w3, b3=b3.reshape(1, cout),
        w4=w4, b4=b4.reshape(1, cout),
        w5=w5.reshape(cin, cout), b5=b5.reshape(1, cout),
        wcat=wc.reshape(5 * cout, cout), bcat=bc.reshape(1, cout),
    )


def ref_forward(x_nhwc, params, rate=1):
    """Pure-JAX reference with lax.conv, mirroring the PyTorch forward."""
    B, H, W, Cin = x_nhwc.shape
    Cout = params["b1"].shape[-1]
    relu = jax.nn.relu

    def conv(x, w_hwio, b, pad, dil):
        y = jax.lax.conv_general_dilated(
            x, w_hwio, (1, 1), ((pad, pad), (pad, pad)),
            rhs_dilation=(dil, dil),
            dimension_numbers=("NHWC", "HWIO", "NHWC"))
        return y + b.reshape(1, 1, 1, -1)

    y1 = relu(conv(x_nhwc, params["w1"].reshape(1, 1, Cin, Cout), params["b1"][0], 0, 1))
    y2 = relu(conv(x_nhwc, params["w2"], params["b2"][0], 6 * rate, 6 * rate))
    y3 = relu(conv(x_nhwc, params["w3"], params["b3"][0], 12 * rate, 12 * rate))
    y4 = relu(conv(x_nhwc, params["w4"], params["b4"][0], 18 * rate, 18 * rate))
    gm = jnp.mean(x_nhwc, axis=(1, 2), keepdims=True)
    y5 = relu(conv(gm, params["w5"].reshape(1, 1, Cin, Cout), params["b5"][0], 0, 1))
    y5 = jnp.broadcast_to(y5, (B, H, W, Cout))
    cat = jnp.concatenate([y1, y2, y3, y4, y5], axis=-1)
    out = relu(conv(cat, params["wcat"].reshape(1, 1, 5 * Cout, Cout),
                    params["bcat"][0], 0, 1))
    return out


if __name__ == "__main__":
    B, Cin, H, W = 2, 8, 16, 16
    Cout = 8

    key = jax.random.PRNGKey(0)
    kx, kp = jax.random.split(key)
    x_nchw = jax.random.normal(kx, (B, Cin, H, W), jnp.float32)   # PyTorch layout
    x_nhwc = jnp.transpose(x_nchw, (0, 2, 3, 1))                  # kernel layout
    params = init_params(kp, Cin, Cout)

    # Pre-round the operands that the kernel casts to bf16 so the f32 reference
    # consumes the exact same values (keeps the comparison tight).
    def bf16_round(a):
        return a.astype(jnp.bfloat16).astype(jnp.float32)

    x_nhwc = bf16_round(x_nhwc)
    for k in ("w1", "w2", "w3", "w4"):
        params[k] = bf16_round(params[k])

    out = jax.block_until_ready(aspp_forward(x_nhwc, params))
    ref = jax.block_until_ready(ref_forward(x_nhwc, params))
    np.testing.assert_allclose(np.asarray(out), np.asarray(ref),
                               atol=2e-4, rtol=2e-4)
    print("KERNEL_OK")
</pallas_src>

<mosaic_0001>
module attributes {stable_mosaic.version = 11 : i64} {
  func.func @kernel(%arg0: i32, %arg1: memref<1x16x16x8xbf16, #tpu.memory_space<vmem>>, %arg2: memref<8x8xbf16, #tpu.memory_space<vmem>>, %arg3: memref<1x8xf32, #tpu.memory_space<vmem>>, %arg4: memref<72x8xbf16, #tpu.memory_space<vmem>>, %arg5: memref<1x8xf32, #tpu.memory_space<vmem>>, %arg6: memref<72x8xbf16, #tpu.memory_space<vmem>>, %arg7: memref<1x8xf32, #tpu.memory_space<vmem>>, %arg8: memref<8x8xbf16, #tpu.memory_space<vmem>>, %arg9: memref<1x8xf32, #tpu.memory_space<vmem>>, %arg10: memref<8x8xf32, #tpu.memory_space<vmem>>, %arg11: memref<1x8xf32, #tpu.memory_space<vmem>>, %arg12: memref<40x128xf32, #tpu.memory_space<vmem>>, %arg13: memref<1x128xf32, #tpu.memory_space<vmem>>, %arg14: memref<1x256x128xf32, #tpu.memory_space<vmem>>, %arg15: memref<48x48x8xbf16, #tpu.memory_space<vmem>>) attributes {dimension_semantics = [#tpu.dimension_semantics<parallel>], iteration_bounds = array<i64: 2>, scalar_prefetch = 0 : i64, scratch_operands = 1 : i64, tpu.core_type = #tpu.core_type<tc>, window_params = [{transform_indices = @transform_0, window_bounds = array<i64: 1, 16, 16, 8>}, {pipeline_mode = #tpu.pipeline_mode<synchronous>, transform_indices = @transform_1, window_bounds = array<i64: 8, 8>}, {pipeline_mode = #tpu.pipeline_mode<synchronous>, transform_indices = @transform_2, window_bounds = array<i64: 1, 8>}, {pipeline_mode = #tpu.pipeline_mode<synchronous>, transform_indices = @transform_3, window_bounds = array<i64: 72, 8>}, {pipeline_mode = #tpu.pipeline_mode<synchronous>, transform_indices = @transform_4, window_bounds = array<i64: 1, 8>}, {pipeline_mode = #tpu.pipeline_mode<synchronous>, transform_indices = @transform_5, window_bounds = array<i64: 72, 8>}, {pipeline_mode = #tpu.pipeline_mode<synchronous>, transform_indices = @transform_6, window_bounds = array<i64: 1, 8>}, {pipeline_mode = #tpu.pipeline_mode<synchronous>, transform_indices = @transform_7, window_bounds = array<i64: 8, 8>}, {pipeline_mode = #tpu.pipeline_mode<synchronous>, transform_indices = @transform_8, window_bounds = array<i64: 1, 8>}, {pipeline_mode = #tpu.pipeline_mode<synchronous>, transform_indices = @transform_9, window_bounds = array<i64: 8, 8>}, {pipeline_mode = #tpu.pipeline_mode<synchronous>, transform_indices = @transform_10, window_bounds = array<i64: 1, 8>}, {pipeline_mode = #tpu.pipeline_mode<synchronous>, transform_indices = @transform_11, window_bounds = array<i64: 40, 128>}, {pipeline_mode = #tpu.pipeline_mode<synchronous>, transform_indices = @transform_12, window_bounds = array<i64: 1, 128>}, {transform_indices = @transform_13, window_bounds = array<i64: 1, 256, 128>}]} {
    %cst = arith.constant 0.000000e+00 : bf16
    %0 = vector.broadcast %cst : bf16 to vector<48x48x8xbf16>
    %c0 = arith.constant 0 : index
    %c0_0 = arith.constant 0 : index
    %c0_1 = arith.constant 0 : index
    %1 = vector.load %arg15[%c0, %c0_0, %c0_1] : memref<48x48x8xbf16, #tpu.memory_space<vmem>>, vector<48x48x8xbf16>
    tpu.vector_store %arg15[%c0, %c0_0, %c0_1], %0 {strides = array<i32>} : memref<48x48x8xbf16, #tpu.memory_space<vmem>>, vector<48x48x8xbf16>,
    %c0_2 = arith.constant 0 : index
    %c0_3 = arith.constant 0 : index
    %c0_4 = arith.constant 0 : index
    %c0_5 = arith.constant 0 : index
    %2 = vector.load %arg1[%c0_2, %c0_3, %c0_4, %c0_5] : memref<1x16x16x8xbf16, #tpu.memory_space<vmem>>, vector<1x16x16x8xbf16>
    %3 = vector.shape_cast %2 : vector<1x16x16x8xbf16> to vector<16x16x8xbf16>
    %c16 = arith.constant 16 : index
    %c16_6 = arith.constant 16 : index
    %c0_7 = arith.constant 0 : index
    %4 = vector.load %arg15[%c16, %c16_6, %c0_7] : memref<48x48x8xbf16, #tpu.memory_space<vmem>>, vector<16x16x8xbf16>
    tpu.vector_store %arg15[%c16, %c16_6, %c0_7], %3 {strides = array<i32>} : memref<48x48x8xbf16, #tpu.memory_space<vmem>>, vector<16x16x8xbf16>,
    %5 = vector.shape_cast %3 : vector<16x16x8xbf16> to vector<256x8xbf16>
    %c0_8 = arith.constant 0 : index
    %c0_9 = arith.constant 0 : index
    %6 = vector.load %arg12[%c0_8, %c0_9] : memref<40x128xf32, #tpu.memory_space<vmem>>, vector<40x128xf32>
    %7 = arith.extf %5 : vector<256x8xbf16> to vector<256x8xf32>
    %cst_10 = arith.constant dense<0.000000e+00> : vector<8xf32>
    %8 = vector.multi_reduction <add>, %7, %cst_10 [0] : vector<256x8xf32> to vector<8xf32>
    %9 = vector.shape_cast %8 : vector<8xf32> to vector<1x8xf32>
    %cst_11 = arith.constant 2.560000e+02 : f32
    %10 = vector.broadcast %cst_11 : f32 to vector<1x8xf32>
    %11 = arith.divf %9, %10 : vector<1x8xf32>
    %c0_12 = arith.constant 0 : index
    %c0_13 = arith.constant 0 : index
    %12 = vector.load %arg10[%c0_12, %c0_13] : memref<8x8xf32, #tpu.memory_space<vmem>>, vector<8x8xf32>
    %cst_14 = arith.constant dense<0.000000e+00> : vector<1x8xf32>
    %13 = tpu.matmul %11, %12, %cst_14 {dimension_numbers = #tpu.dot_dimension_numbers<[1], [0], [0], [1], [0, 0, 1, 1], [], []>} : vector<1x8xf32>, vector<8x8xf32>, vector<1x8xf32> -> vector<1x8xf32>
    %c0_15 = arith.constant 0 : index
    %c0_16 = arith.constant 0 : index
    %14 = vector.load %arg11[%c0_15, %c0_16] : memref<1x8xf32, #tpu.memory_space<vmem>>, vector<1x8xf32>
    %15 = arith.addf %13, %14 : vector<1x8xf32>
    %cst_17 = arith.constant 0.000000e+00 : f32
    %16 = vector.broadcast %cst_17 : f32 to vector<1x8xf32>
    %17 = arith.maximumf %15, %16 : vector<1x8xf32>
    %c0_18 = arith.constant 0 : index
    %c0_19 = arith.constant 0 : index
    %18 = vector.load %arg13[%c0_18, %c0_19] : memref<1x128xf32, #tpu.memory_space<vmem>>, vector<1x128xf32>
    %19 = vector.extract_strided_slice %6 {offsets = [32, 0], sizes = [8, 128], strides = [1, 1]} : vector<40x128xf32> to vector<8x128xf32>
    %cst_20 = arith.constant dense<0.000000e+00> : vector<1x128xf32>
    %20 = tpu.matmul %17, %19, %cst_20 {dimension_numbers = #tpu.dot_dimension_numbers<[1], [0], [0], [1], [0, 0, 1, 1], [], []>} : vector<1x8xf32>, vector<8x128xf32>, vector<1x128xf32> -> vector<1x128xf32>
    %21 = arith.addf %18, %20 : vector<1x128xf32>
    %c0_21 = arith.constant 0 : index
    %c0_22 = arith.constant 0 : index
    %22 = vector.load %arg2[%c0_21, %c0_22] : memref<8x8xbf16, #tpu.memory_space<vmem>>, vector<8x8xbf16>
    %cst_23 = arith.constant dense<0.000000e+00> : vector<256x8xf32>
    %23 = tpu.matmul %5, %22, %cst_23 {dimension_numbers = #tpu.dot_dimension_numbers<[1], [0], [0], [1], [0, 0, 1, 1], [], []>} : vector<256x8xbf16>, vector<8x8xbf16>, vector<256x8xf32> -> vector<256x8xf32>
    %c0_24 = arith.constant 0 : index
    %c0_25 = arith.constant 0 : index
    %24 = vector.load %arg3[%c0_24, %c0_25] : memref<1x8xf32, #tpu.memory_space<vmem>>, vector<1x8xf32>
    %25 = vector.broadcast %24 : vector<1x8xf32> to vector<256x8xf32>
    %26 = arith.addf %23, %25 : vector<256x8xf32>
    %cst_26 = arith.constant 0.000000e+00 : f32
    %27 = vector.broadcast %cst_26 : f32 to vector<256x8xf32>
    %28 = arith.maximumf %26, %27 : vector<256x8xf32>
    %29 = vector.extract_strided_slice %6 {offsets = [0, 0], sizes = [8, 128], strides = [1, 1]} : vector<40x128xf32> to vector<8x128xf32>
    %cst_27 = arith.constant dense<0.000000e+00> : vector<256x128xf32>
    %30 = tpu.matmul %28, %29, %cst_27 {dimension_numbers = #tpu.dot_dimension_numbers<[1], [0], [0], [1], [0, 0, 1, 1], [], []>} : vector<256x8xf32>, vector<8x128xf32>, vector<256x128xf32> -> vector<256x128xf32>
    %31 = vector.broadcast %21 : vector<1x128xf32> to vector<256x128xf32>
    %32 = arith.addf %31, %30 : vector<256x128xf32>
    %c0_28 = arith.constant 0 : index
    %c0_29 = arith.constant 0 : index
    %c0_30 = arith.constant 0 : index
    %33 = vector.load %arg14[%c0_28, %c0_29, %c0_30] : memref<1x256x128xf32, #tpu.memory_space<vmem>>, vector<1x256x128xf32>
    %34 = vector.shape_cast %33 : vector<1x256x128xf32> to vector<256x128xf32>
    %35 = vector.shape_cast %32 : vector<256x128xf32> to vector<1x256x128xf32>
    tpu.vector_store %arg14[%c0_28, %c0_29, %c0_30], %35 {strides = array<i32>} : memref<1x256x128xf32, #tpu.memory_space<vmem>>, vector<1x256x128xf32>,
    %c0_31 = arith.constant 0 : index
    %c0_32 = arith.constant 0 : index
    %c0_33 = arith.constant 0 : index
    %36 = vector.load %arg14[%c0_31, %c0_32, %c0_33] : memref<1x256x128xf32, #tpu.memory_space<vmem>>, vector<1x256x128xf32>
    %37 = vector.shape_cast %36 : vector<1x256x128xf32> to vector<256x128xf32>
    %38 = vector.extract_strided_slice %6 {offsets = [8, 0], sizes = [8, 128], strides = [1, 1]} : vector<40x128xf32> to vector<8x128xf32>
    %cst_34 = arith.constant 0.000000e+00 : f32
    %39 = vector.broadcast %cst_34 : f32 to vector<256x8xf32>
    %c10 = arith.constant 10 : index
    %c10_35 = arith.constant 10 : index
    %c0_36 = arith.constant 0 : index
    %40 = vector.load %arg15[%c10, %c10_35, %c0_36] : memref<48x48x8xbf16, #tpu.memory_space<vmem>>, vector<16x16x8xbf16>
    %41 = vector.shape_cast %40 : vector<16x16x8xbf16> to vector<256x8xbf16>
    %c0_37 = arith.constant 0 : index
    %c0_38 = arith.constant 0 : index
    %42 = vector.load %arg4[%c0_37, %c0_38] : memref<72x8xbf16, #tpu.memory_space<vmem>>, vector<8x8xbf16>
    %cst_39 = arith.constant dense<0.000000e+00> : vector<256x8xf32>
    %43 = tpu.matmul %41, %42, %cst_39 {dimension_numbers = #tpu.dot_dimension_numbers<[1], [0], [0], [1], [0, 0, 1, 1], [], []>} : vector<256x8xbf16>, vector<8x8xbf16>, vector<256x8xf32> -> vector<256x8xf32>
    %44 = arith.addf %39, %43 : vector<256x8xf32>
    %c10_40 = arith.constant 10 : index
    %c16_41 = arith.constant 16 : index
    %c0_42 = arith.constant 0 : index
    %45 = vector.load %arg15[%c10_40, %c16_41, %c0_42] : memref<48x48x8xbf16, #tpu.memory_space<vmem>>, vector<16x16x8xbf16>
    %46 = vector.shape_cast %45 : vector<16x16x8xbf16> to vector<256x8xbf16>
    %c8 = arith.constant 8 : index
    %c0_43 = arith.constant 0 : index
    %47 = vector.load %arg4[%c8, %c0_43] : memref<72x8xbf16, #tpu.memory_space<vmem>>, vector<8x8xbf16>
    %cst_44 = arith.constant dense<0.000000e+00> : vector<256x8xf32>
    %48 = tpu.matmul %46, %47, %cst_44 {dimension_numbers = #tpu.dot_dimension_numbers<[1], [0], [0], [1], [0, 0, 1, 1], [], []>} : vector<256x8xbf16>, vector<8x8xbf16>, vector<256x8xf32> -> vector<256x8xf32>
    %49 = arith.addf %44, %48 : vector<256x8xf32>
    %c10_45 = arith.constant 10 : index
    %c22 = arith.constant 22 : index
    %c0_46 = arith.constant 0 : index
    %50 = vector.load %arg15[%c10_45, %c22, %c0_46] : memref<48x48x8xbf16, #tpu.memory_space<vmem>>, vector<16x16x8xbf16>
    %51 = vector.shape_cast %50 : vector<16x16x8xbf16> to vector<256x8xbf16>
    %c16_47 = arith.constant 16 : index
    %c0_48 = arith.constant 0 : index
    %52 = vector.load %arg4[%c16_47, %c0_48] : memref<72x8xbf16, #tpu.memory_space<vmem>>, vector<8x8xbf16>
    %cst_49 = arith.constant dense<0.000000e+00> : vector<256x8xf32>
    %53 = tpu.matmul %51, %52, %cst_49 {dimension_numbers = #tpu.dot_dimension_numbers<[1], [0], [0], [1], [0, 0, 1, 1], [], []>} : vector<256x8xbf16>, vector<8x8xbf16>, vector<256x8xf32> -> vector<256x8xf32>
    %54 = arith.addf %49, %53 : vector<256x8xf32>
    %c16_50 = arith.constant 16 : index
    %c10_51 = arith.constant 10 : index
    %c0_52 = arith.constant 0 : index
    %55 = vector.load %arg15[%c16_50, %c10_51, %c0_52] : memref<48x48x8xbf16, #tpu.memory_space<vmem>>, vector<16x16x8xbf16>
    %56 = vector.shape_cast %55 : vector<16x16x8xbf16> to vector<256x8xbf16>
    %c24 = arith.constant 24 : index
    %c0_53 = arith.constant 0 : index
    %57 = vector.load %arg4[%c24, %c0_53] : memref<72x8xbf16, #tpu.memory_space<vmem>>, vector<8x8xbf16>
    %cst_54 = arith.constant dense<0.000000e+00> : vector<256x8xf32>
    %58 = tpu.matmul %56, %57, %cst_54 {dimension_numbers = #tpu.dot_dimension_numbers<[1], [0], [0], [1], [0, 0, 1, 1], [], []>} : vector<256x8xbf16>, vector<8x8xbf16>, vector<256x8xf32> -> vector<256x8xf32>
    %59 = arith.addf %54, %58 : vector<256x8xf32>
    %c32 = arith.constant 32 : index
    %c0_55 = arith.constant 0 : index
    %60 = vector.load %arg4[%c32, %c0_55] : memref<72x8xbf16, #tpu.memory_space<vmem>>, vector<8x8xbf16>
    %cst_56 = arith.constant dense<0.000000e+00> : vector<256x8xf32>
    %61 = tpu.matmul %5, %60, %cst_56 {dimension_numbers = #tpu.dot_dimension_numbers<[1], [0], [0], [1], [0, 0, 1, 1], [], []>} : vector<256x8xbf16>, vector<8x8xbf16>, vector<256x8xf32> -> vector<256x8xf32>
    %62 = arith.addf %59, %61 : vector<256x8xf32>
    %c16_57 = arith.constant 16 : index
    %c22_58 = arith.constant 22 : index
    %c0_59 = arith.constant 0 : index
    %63 = vector.load %arg15[%c16_57, %c22_58, %c0_59] : memref<48x48x8xbf16, #tpu.memory_space<vmem>>, vector<16x16x8xbf16>
    %64 = vector.shape_cast %63 : vector<16x16x8xbf16> to vector<256x8xbf16>
    %c40 = arith.constant 40 : index
    %c0_60 = arith.constant 0 : index
    %65 = vector.load %arg4[%c40, %c0_60] : memref<72x8xbf16, #tpu.memory_space<vmem>>, vector<8x8xbf16>
    %cst_61 = arith.constant dense<0.000000e+00> : vector<256x8xf32>
    %66 = tpu.matmul %64, %65, %cst_61 {dimension_numbers = #tpu.dot_dimension_numbers<[1], [0], [0], [1], [0, 0, 1, 1], [], []>} : vector<256x8xbf16>, vector<8x8xbf16>, vector<256x8xf32> -> vector<256x8xf32>
    %67 = arith.addf %62, %66 : vector<256x8xf32>
    %c22_62 = arith.constant 22 : index
    %c10_63 = arith.constant 10 : index
    %c0_64 = arith.constant 0 : index
    %68 = vector.load %arg15[%c22_62, %c10_63, %c0_64] : memref<48x48x8xbf16, #tpu.memory_space<vmem>>, vector<16x16x8xbf16>
    %69 = vector.shape_cast %68 : vector<16x16x8xbf16> to vector<256x8xbf16>
    %c48 = arith.constant 48 : index
    %c0_65 = arith.constant 0 : index
    %70 = vector.load %arg4[%c48, %c0_65] : memref<72x8xbf16, #tpu.memory_space<vmem>>, vector<8x8xbf16>
    %cst_66 = arith.constant dense<0.000000e+00> : vector<256x8xf32>
    %71 = tpu.matmul %69, %70, %cst_66 {dimension_numbers = #tpu.dot_dimension_numbers<[1], [0], [0], [1], [0, 0, 1, 1], [], []>} : vector<256x8xbf16>, vector<8x8xbf16>, vector<256x8xf32> -> vector<256x8xf32>
    %72 = arith.addf %67, %71 : vector<256x8xf32>
    %c22_67 = arith.constant 22 : index
    %c16_68 = arith.constant 16 : index
    %c0_69 = arith.constant 0 : index
    %73 = vector.load %arg15[%c22_67, %c16_68, %c0_69] : memref<48x48x8xbf16, #tpu.memory_space<vmem>>, vector<16x16x8xbf16>
    %74 = vector.shape_cast %73 : vector<16x16x8xbf16> to vector<256x8xbf16>
    %c56 = arith.constant 56 : index
    %c0_70 = arith.constant 0 : index
    %75 = vector.load %arg4[%c56, %c0_70] : memref<72x8xbf16, #tpu.memory_space<vmem>>, vector<8x8xbf16>
    %cst_71 = arith.constant dense<0.000000e+00> : vector<256x8xf32>
    %76 = tpu.matmul %74, %75, %cst_71 {dimension_numbers = #tpu.dot_dimension_numbers<[1], [0], [0], [1], [0, 0, 1, 1], [], []>} : vector<256x8xbf16>, vector<8x8xbf16>, vector<256x8xf32> -> vector<256x8xf32>
    %77 = arith.addf %72, %76 : vector<256x8xf32>
    %c22_72 = arith.constant 22 : index
    %c22_73 = arith.constant 22 : index
    %c0_74 = arith.constant 0 : index
    %78 = vector.load %arg15[%c22_72, %c22_73, %c0_74] : memref<48x48x8xbf16, #tpu.memory_space<vmem>>, vector<16x16x8xbf16>
    %79 = vector.shape_cast %78 : vector<16x16x8xbf16> to vector<256x8xbf16>
    %c64 = arith.constant 64 : index
    %c0_75 = arith.constant 0 : index
    %80 = vector.load %arg4[%c64, %c0_75] : memref<72x8xbf16, #tpu.memory_space<vmem>>, vector<8x8xbf16>
    %cst_76 = arith.constant dense<0.000000e+00> : vector<256x8xf32>
    %81 = tpu.matmul %79, %80, %cst_76 {dimension_numbers = #tpu.dot_dimension_numbers<[1], [0], [0], [1], [0, 0, 1, 1], [], []>} : vector<256x8xbf16>, vector<8x8xbf16>, vector<256x8xf32> -> vector<256x8xf32>
    %82 = arith.addf %77, %81 : vector<256x8xf32>
    %c0_77 = arith.constant 0 : index
    %c0_78 = arith.constant 0 : index
    %83 = vector.load %arg5[%c0_77, %c0_78] : memref<1x8xf32, #tpu.memory_space<vmem>>, vector<1x8xf32>
    %84 = vector.broadcast %83 : vector<1x8xf32> to vector<256x8xf32>
    %85 = arith.addf %82, %84 : vector<256x8xf32>
    %cst_79 = arith.constant 0.000000e+00 : f32
    %86 = vector.broadcast %cst_79 : f32 to vector<256x8xf32>
    %87 = arith.maximumf %85, %86 : vector<256x8xf32>
    %cst_80 = arith.constant dense<0.000000e+00> : vector<256x128xf32>
    %88 = tpu.matmul %87, %38, %cst_80 {dimension_numbers = #tpu.dot_dimension_numbers<[1], [0], [0], [1], [0, 0, 1, 1], [], []>} : vector<256x8xf32>, vector<8x128xf32>, vector<256x128xf32> -> vector<256x128xf32>
    %89 = arith.addf %37, %88 : vector<256x128xf32>
    %c0_81 = arith.constant 0 : index
    %c0_82 = arith.constant 0 : index
    %c0_83 = arith.constant 0 : index
    %90 = vector.load %arg14[%c0_81, %c0_82, %c0_83] : memref<1x256x128xf32, #tpu.memory_space<vmem>>, vector<1x256x128xf32>
    %91 = vector.shape_cast %90 : vector<1x256x128xf32> to vector<256x128xf32>
    %92 = vector.shape_cast %89 : vector<256x128xf32> to vector<1x256x128xf32>
    tpu.vector_store %arg14[%c0_81, %c0_82, %c0_83], %92 {strides = array<i32>} : memref<1x256x128xf32, #tpu.memory_space<vmem>>, vector<1x256x128xf32>,
    %c0_84 = arith.constant 0 : index
    %c0_85 = arith.constant 0 : index
    %c0_86 = arith.constant 0 : index
    %93 = vector.load %arg14[%c0_84, %c0_85, %c0_86] : memref<1x256x128xf32, #tpu.memory_space<vmem>>, vector<1x256x128xf32>
    %94 = vector.shape_cast %93 : vector<1x256x128xf32> to vector<256x128xf32>
    %95 = vector.extract_strided_slice %6 {offsets = [16, 0], sizes = [8, 128], strides = [1, 1]} : vector<40x128xf32> to vector<8x128xf32>
    %cst_87 = arith.constant 0.000000e+00 : f32
    %96 = vector.broadcast %cst_87 : f32 to vector<256x8xf32>
    %c4 = arith.constant 4 : index
    %c4_88 = arith.constant 4 : index
    %c0_89 = arith.constant 0 : index
    %97 = vector.load %arg15[%c4, %c4_88, %c0_89] : memref<48x48x8xbf16, #tpu.memory_space<vmem>>, vector<16x16x8xbf16>
    %98 = vector.shape_cast %97 : vector<16x16x8xbf16> to vector<256x8xbf16>
    %c0_90 = arith.constant 0 : index
    %c0_91 = arith.constant 0 : index
    %99 = vector.load %arg6[%c0_90, %c0_91] : memref<72x8xbf16, #tpu.memory_space<vmem>>, vector<8x8xbf16>
    %cst_92 = arith.constant dense<0.000000e+00> : vector<256x8xf32>
    %100 = tpu.matmul %98, %99, %cst_92 {dimension_numbers = #tpu.dot_dimension_numbers<[1], [0], [0], [1], [0, 0, 1, 1], [], []>} : vector<256x8xbf16>, vector<8x8xbf16>, vector<256x8xf32> -> vector<256x8xf32>
    %101 = arith.addf %96, %100 : vector<256x8xf32>
    %c4_93 = arith.constant 4 : index
    %c16_94 = arith.constant 16 : index
    %c0_95 = arith.constant 0 : index
    %102 = vector.load %arg15[%c4_93, %c16_94, %c0_95] : memref<48x48x8xbf16, #tpu.memory_space<vmem>>, vector<16x16x8xbf16>
    %103 = vector.shape_cast %102 : vector<16x16x8xbf16> to vector<256x8xbf16>
    %c8_96 = arith.constant 8 : index
    %c0_97 = arith.constant 0 : index
    %104 = vector.load %arg6[%c8_96, %c0_97] : memref<72x8xbf16, #tpu.memory_space<vmem>>, vector<8x8xbf16>
    %cst_98 = arith.constant dense<0.000000e+00> : vector<256x8xf32>
    %105 = tpu.matmul %103, %104, %cst_98 {dimension_numbers = #tpu.dot_dimension_numbers<[1], [0], [0], [1], [0, 0, 1, 1], [], []>} : vector<256x8xbf16>, vector<8x8xbf16>, vector<256x8xf32> -> vector<256x8xf32>
    %106 = arith.addf %101, %105 : vector<256x8xf32>
    %c4_99 = arith.constant 4 : index
    %c28 = arith.constant 28 : index
    %c0_100 = arith.constant 0 : index
    %107 = vector.load %arg15[%c4_99, %c28, %c0_100] : memref<48x48x8xbf16, #tpu.memory_space<vmem>>, vector<16x16x8xbf16>
    %108 = vector.shape_cast %107 : vector<16x16x8xbf16> to vector<256x8xbf16>
    %c16_101 = arith.constant 16 : index
    %c0_102 = arith.constant 0 : index
    %109 = vector.load %arg6[%c16_101, %c0_102] : memref<72x8xbf16, #tpu.memory_space<vmem>>, vector<8x8xbf16>
    %cst_103 = arith.constant dense<0.000000e+00> : vector<256x8xf32>
    %110 = tpu.matmul %108, %109, %cst_103 {dimension_numbers = #tpu.dot_dimension_numbers<[1], [0], [0], [1], [0, 0, 1, 1], [], []>} : vector<256x8xbf16>, vector<8x8xbf16>, vector<256x8xf32> -> vector<256x8xf32>
    %111 = arith.addf %106, %110 : vector<256x8xf32>
    %c16_104 = arith.constant 16 : index
    %c4_105 = arith.constant 4 : index
    %c0_106 = arith.constant 0 : index
    %112 = vector.load %arg15[%c16_104, %c4_105, %c0_106] : memref<48x48x8xbf16, #tpu.memory_space<vmem>>, vector<16x16x8xbf16>
    %113 = vector.shape_cast %112 : vector<16x16x8xbf16> to vector<256x8xbf16>
    %c24_107 = arith.constant 24 : index
    %c0_108 = arith.constant 0 : index
    %114 = vector.load %arg6[%c24_107, %c0_108] : memref<72x8xbf16, #tpu.memory_space<vmem>>, vector<8x8xbf16>
    %cst_109 = arith.constant dense<0.000000e+00> : vector<256x8xf32>
    %115 = tpu.matmul %113, %114, %cst_109 {dimension_numbers = #tpu.dot_dimension_numbers<[1], [0], [0], [1], [0, 0, 1, 1], [], []>} : vector<256x8xbf16>, vector<8x8xbf16>, vector<256x8xf32> -> vector<256x8xf32>
    %116 = arith.addf %111, %115 : vector<256x8xf32>
    %c32_110 = arith.constant 32 : index
    %c0_111 = arith.constant 0 : index
    %117 = vector.load %arg6[%c32_110, %c0_111] : memref<72x8xbf16, #tpu.memory_space<vmem>>, vector<8x8xbf16>
    %cst_112 = arith.constant dense<0.000000e+00> : vector<256x8xf32>
    %118 = tpu.matmul %5, %117, %cst_112 {dimension_numbers = #tpu.dot_dimension_numbers<[1], [0], [0], [1], [0, 0, 1, 1], [], []>} : vector<256x8xbf16>, vector<8x8xbf16>, vector<256x8xf32> -> vector<256x8xf32>
    %119 = arith.addf %116, %118 : vector<256x8xf32>
    %c16_113 = arith.constant 16 : index
    %c28_114 = arith.constant 28 : index
    %c0_115 = arith.constant 0 : index
    %120 = vector.load %arg15[%c16_113, %c28_114, %c0_115] : memref<48x48x8xbf16, #tpu.memory_space<vmem>>, vector<16x16x8xbf16>
    %121 = vector.shape_cast %120 : vector<16x16x8xbf16> to vector<256x8xbf16>
    %c40_116 = arith.constant 40 : index
    %c0_117 = arith.constant 0 : index
    %122 = vector.load %arg6[%c40_116, %c0_117] : memref<72x8xbf16, #tpu.memory_space<vmem>>, vector<8x8xbf16>
    %cst_118 = arith.constant dense<0.000000e+00> : vector<256x8xf32>
    %123 = tpu.matmul %121, %122, %cst_118 {dimension_numbers = #tpu.dot_dimension_numbers<[1], [0], [0], [1], [0, 0, 1, 1], [], []>} : vector<256x8xbf16>, vector<8x8xbf16>, vector<256x8xf32> -> vector<256x8xf32>
    %124 = arith.addf %119, %123 : vector<256x8xf32>
    %c28_119 = arith.constant 28 : index
    %c4_120 = arith.constant 4 : index
    %c0_121 = arith.constant 0 : index
    %125 = vector.load %arg15[%c28_119, %c4_120, %c0_121] : memref<48x48x8xbf16, #tpu.memory_space<vmem>>, vector<16x16x8xbf16>
    %126 = vector.shape_cast %125 : vector<16x16x8xbf16> to vector<256x8xbf16>
    %c48_122 = arith.constant 48 : index
    %c0_123 = arith.constant 0 : index
    %127 = vector.load %arg6[%c48_122, %c0_123] : memref<72x8xbf16, #tpu.memory_space<vmem>>, vector<8x8xbf16>
    %cst_124 = arith.constant dense<0.000000e+00> : vector<256x8xf32>
    %128 = tpu.matmul %126, %127, %cst_124 {dimension_numbers = #tpu.dot_dimension_numbers<[1], [0], [0], [1], [0, 0, 1, 1], [], []>} : vector<256x8xbf16>, vector<8x8xbf16>, vector<256x8xf32> -> vector<256x8xf32>
    %129 = arith.addf %124, %128 : vector<256x8xf32>
    %c28_125 = arith.constant 28 : index
    %c16_126 = arith.constant 16 : index
    %c0_127 = arith.constant 0 : index
    %130 = vector.load %arg15[%c28_125, %c16_126, %c0_127] : memref<48x48x8xbf16, #tpu.memory_space<vmem>>, vector<16x16x8xbf16>
    %131 = vector.shape_cast %130 : vector<16x16x8xbf16> to vector<256x8xbf16>
    %c56_128 = arith.constant 56 : index
    %c0_129 = arith.constant 0 : index
    %132 = vector.load %arg6[%c56_128, %c0_129] : memref<72x8xbf16, #tpu.memory_space<vmem>>, vector<8x8xbf16>
    %cst_130 = arith.constant dense<0.000000e+00> : vector<256x8xf32>
    %133 = tpu.matmul %131, %132, %cst_130 {dimension_numbers = #tpu.dot_dimension_numbers<[1], [0], [0], [1], [0, 0, 1, 1], [], []>} : vector<256x8xbf16>, vector<8x8xbf16>, vector<256x8xf32> -> vector<256x8xf32>
    %134 = arith.addf %129, %133 : vector<256x8xf32>
    %c28_131 = arith.constant 28 : index
    %c28_132 = arith.constant 28 : index
    %c0_133 = arith.constant 0 : index
    %135 = vector.load %arg15[%c28_131, %c28_132, %c0_133] : memref<48x48x8xbf16, #tpu.memory_space<vmem>>, vector<16x16x8xbf16>
    %136 = vector.shape_cast %135 : vector<16x16x8xbf16> to vector<256x8xbf16>
    %c64_134 = arith.constant 64 : index
    %c0_135 = arith.constant 0 : index
    %137 = vector.load %arg6[%c64_134, %c0_135] : memref<72x8xbf16, #tpu.memory_space<vmem>>, vector<8x8xbf16>
    %cst_136 = arith.constant dense<0.000000e+00> : vector<256x8xf32>
    %138 = tpu.matmul %136, %137, %cst_136 {dimension_numbers = #tpu.dot_dimension_numbers<[1], [0], [0], [1], [0, 0, 1, 1], [], []>} : vector<256x8xbf16>, vector<8x8xbf16>, vector<256x8xf32> -> vector<256x8xf32>
    %139 = arith.addf %134, %138 : vector<256x8xf32>
    %c0_137 = arith.constant 0 : index
    %c0_138 = arith.constant 0 : index
    %140 = vector.load %arg7[%c0_137, %c0_138] : memref<1x8xf32, #tpu.memory_space<vmem>>, vector<1x8xf32>
    %141 = vector.broadcast %140 : vector<1x8xf32> to vector<256x8xf32>
    %142 = arith.addf %139, %141 : vector<256x8xf32>
    %cst_139 = arith.constant 0.000000e+00 : f32
    %143 = vector.broadcast %cst_139 : f32 to vector<256x8xf32>
    %144 = arith.maximumf %142, %143 : vector<256x8xf32>
    %cst_140 = arith.constant dense<0.000000e+00> : vector<256x128xf32>
    %145 = tpu.matmul %144, %95, %cst_140 {dimension_numbers = #tpu.dot_dimension_numbers<[1], [0], [0], [1], [0, 0, 1, 1], [], []>} : vector<256x8xf32>, vector<8x128xf32>, vector<256x128xf32> -> vector<256x128xf32>
    %146 = arith.addf %94, %145 : vector<256x128xf32>
    %c0_141 = arith.constant 0 : index
    %c0_142 = arith.constant 0 : index
    %c0_143 = arith.constant 0 : index
    %147 = vector.load %arg14[%c0_141, %c0_142, %c0_143] : memref<1x256x128xf32, #tpu.memory_space<vmem>>, vector<1x256x128xf32>
    %148 = vector.shape_cast %147 : vector<1x256x128xf32> to vector<256x128xf32>
    %149 = vector.shape_cast %146 : vector<256x128xf32> to vector<1x256x128xf32>
    tpu.vector_store %arg14[%c0_141, %c0_142, %c0_143], %149 {strides = array<i32>} : memref<1x256x128xf32, #tpu.memory_space<vmem>>, vector<1x256x128xf32>,
    %c0_144 = arith.constant 0 : index
    %c0_145 = arith.constant 0 : index
    %c0_146 = arith.constant 0 : index
    %150 = vector.load %arg14[%c0_144, %c0_145, %c0_146] : memref<1x256x128xf32, #tpu.memory_space<vmem>>, vector<1x256x128xf32>
    %151 = vector.shape_cast %150 : vector<1x256x128xf32> to vector<256x128xf32>
    %152 = vector.extract_strided_slice %6 {offsets = [24, 0], sizes = [8, 128], strides = [1, 1]} : vector<40x128xf32> to vector<8x128xf32>
    %cst_147 = arith.constant 0.000000e+00 : f32
    %153 = vector.broadcast %cst_147 : f32 to vector<256x8xf32>
    %c0_148 = arith.constant 0 : index
    %c0_149 = arith.constant 0 : index
    %154 = vector.load %arg8[%c0_148, %c0_149] : memref<8x8xbf16, #tpu.memory_space<vmem>>, vector<8x8xbf16>
    %cst_150 = arith.constant dense<0.000000e+00> : vector<256x8xf32>
    %155 = tpu.matmul %5, %154, %cst_150 {dimension_numbers = #tpu.dot_dimension_numbers<[1], [0], [0], [1], [0, 0, 1, 1], [], []>} : vector<256x8xbf16>, vector<8x8xbf16>, vector<256x8xf32> -> vector<256x8xf32>
    %156 = arith.addf %153, %155 : vector<256x8xf32>
    %c0_151 = arith.constant 0 : index
    %c0_152 = arith.constant 0 : index
    %157 = vector.load %arg9[%c0_151, %c0_152] : memref<1x8xf32, #tpu.memory_space<vmem>>, vector<1x8xf32>
    %158 = vector.broadcast %157 : vector<1x8xf32> to vector<256x8xf32>
    %159 = arith.addf %156, %158 : vector<256x8xf32>
    %cst_153 = arith.constant 0.000000e+00 : f32
    %160 = vector.broadcast %cst_153 : f32 to vector<256x8xf32>
    %161 = arith.maximumf %159, %160 : vector<256x8xf32>
    %cst_154 = arith.constant dense<0.000000e+00> : vector<256x128xf32>
    %162 = tpu.matmul %161, %152, %cst_154 {dimension_numbers = #tpu.dot_dimension_numbers<[1], [0], [0], [1], [0, 0, 1, 1], [], []>} : vector<256x8xf32>, vector<8x128xf32>, vector<256x128xf32> -> vector<256x128xf32>
    %163 = arith.addf %151, %162 : vector<256x128xf32>
    %c0_155 = arith.constant 0 : index
    %c0_156 = arith.constant 0 : index
    %c0_157 = arith.constant 0 : index
    %164 = vector.load %arg14[%c0_155, %c0_156, %c0_157] : memref<1x256x128xf32, #tpu.memory_space<vmem>>, vector<1x256x128xf32>
    %165 = vector.shape_cast %164 : vector<1x256x128xf32> to vector<256x128xf32>
    %166 = vector.shape_cast %163 : vector<256x128xf32> to vector<1x256x128xf32>
    tpu.vector_store %arg14[%c0_155, %c0_156, %c0_157], %166 {strides = array<i32>} : memref<1x256x128xf32, #tpu.memory_space<vmem>>, vector<1x256x128xf32>,
    %c0_158 = arith.constant 0 : index
    %c0_159 = arith.constant 0 : index
    %c0_160 = arith.constant 0 : index
    %167 = vector.load %arg14[%c0_158, %c0_159, %c0_160] : memref<1x256x128xf32, #tpu.memory_space<vmem>>, vector<1x256x128xf32>
    %168 = vector.shape_cast %167 : vector<1x256x128xf32> to vector<256x128xf32>
    %cst_161 = arith.constant 0.000000e+00 : f32
    %169 = vector.broadcast %cst_161 : f32 to vector<256x128xf32>
    %170 = arith.maximumf %168, %169 : vector<256x128xf32>
    %c0_162 = arith.constant 0 : index
    %c0_163 = arith.constant 0 : index
    %c0_164 = arith.constant 0 : index
    %171 = vector.load %arg14[%c0_162, %c0_163, %c0_164] : memref<1x256x128xf32, #tpu.memory_space<vmem>>, vector<1x256x128xf32>
    %172 = vector.shape_cast %171 : vector<1x256x128xf32> to vector<256x128xf32>
    %173 = vector.shape_cast %170 : vector<256x128xf32> to vector<1x256x128xf32>
    tpu.vector_store %arg14[%c0_162, %c0_163, %c0_164], %173 {strides = array<i32>} : memref<1x256x128xf32, #tpu.memory_space<vmem>>, vector<1x256x128xf32>,
    return
  }
  func.func @transform_0(%arg0: i32) -> (i32, i32, i32, i32) {
    %c0_i32 = arith.constant 0 : i32
    %c0_i32_0 = arith.constant 0 : i32
    %c0_i32_1 = arith.constant 0 : i32
    %c0_i32_2 = arith.constant 0 : i32
    return %arg0, %c0_i32, %c0_i32_0, %c0_i32_1 : i32, i32, i32, i32
  }
  func.func @transform_1(%arg0: i32) -> (i32, i32) {
    %c0_i32 = arith.constant 0 : i32
    %c0_i32_0 = arith.constant 0 : i32
    %c0_i32_1 = arith.constant 0 : i32
    return %c0_i32, %c0_i32_0 : i32, i32
  }
  func.func @transform_2(%arg0: i32) -> (i32, i32) {
    %c0_i32 = arith.constant 0 : i32
    %c0_i32_0 = arith.constant 0 : i32
    %c0_i32_1 = arith.constant 0 : i32
    return %c0_i32, %c0_i32_0 : i32, i32
  }
  func.func @transform_3(%arg0: i32) -> (i32, i32) {
    %c0_i32 = arith.constant 0 : i32
    %c0_i32_0 = arith.constant 0 : i32
    %c0_i32_1 = arith.constant 0 : i32
    return %c0_i32, %c0_i32_0 : i32, i32
  }
  func.func @transform_4(%arg0: i32) -> (i32, i32) {
    %c0_i32 = arith.constant 0 : i32
    %c0_i32_0 = arith.constant 0 : i32
    %c0_i32_1 = arith.constant 0 : i32
    return %c0_i32, %c0_i32_0 : i32, i32
  }
  func.func @transform_5(%arg0: i32) -> (i32, i32) {
    %c0_i32 = arith.constant 0 : i32
    %c0_i32_0 = arith.constant 0 : i32
    %c0_i32_1 = arith.constant 0 : i32
    return %c0_i32, %c0_i32_0 : i32, i32
  }
  func.func @transform_6(%arg0: i32) -> (i32, i32) {
    %c0_i32 = arith.constant 0 : i32
    %c0_i32_0 = arith.constant 0 : i32
    %c0_i32_1 = arith.constant 0 : i32
    return %c0_i32, %c0_i32_0 : i32, i32
  }
  func.func @transform_7(%arg0: i32) -> (i32, i32) {
    %c0_i32 = arith.constant 0 : i32
    %c0_i32_0 = arith.constant 0 : i32
    %c0_i32_1 = arith.constant 0 : i32
    return %c0_i32, %c0_i32_0 : i32, i32
  }
  func.func @transform_8(%arg0: i32) -> (i32, i32) {
    %c0_i32 = arith.constant 0 : i32
    %c0_i32_0 = arith.constant 0 : i32
    %c0_i32_1 = arith.constant 0 : i32
    return %c0_i32, %c0_i32_0 : i32, i32
  }
  func.func @transform_9(%arg0: i32) -> (i32, i32) {
    %c0_i32 = arith.constant 0 : i32
    %c0_i32_0 = arith.constant 0 : i32
    %c0_i32_1 = arith.constant 0 : i32
    return %c0_i32, %c0_i32_0 : i32, i32
  }
  func.func @transform_10(%arg0: i32) -> (i32, i32) {
    %c0_i32 = arith.constant 0 : i32
    %c0_i32_0 = arith.constant 0 : i32
    %c0_i32_1 = arith.constant 0 : i32
    return %c0_i32, %c0_i32_0 : i32, i32
  }
  func.func @transform_11(%arg0: i32) -> (i32, i32) {
    %c0_i32 = arith.constant 0 : i32
    %c0_i32_0 = arith.constant 0 : i32
    %c0_i32_1 = arith.constant 0 : i32
    return %c0_i32, %c0_i32_0 : i32, i32
  }
  func.func @transform_12(%arg0: i32) -> (i32, i32) {
    %c0_i32 = arith.constant 0 : i32
    %c0_i32_0 = arith.constant 0 : i32
    %c0_i32_1 = arith.constant 0 : i32
    return %c0_i32, %c0_i32_0 : i32, i32
  }
  func.func @transform_13(%arg0: i32) -> (i32, i32, i32) {
    %c0_i32 = arith.constant 0 : i32
    %c0_i32_0 = arith.constant 0 : i32
    %c0_i32_1 = arith.constant 0 : i32
    return %arg0, %c0_i32, %c0_i32_0 : i32, i32, i32
  }
}

</mosaic_0001>

<llo_original>
// kernel: tpu_custom_call.1
$region0: #{tpu_custom_call.1}
  #allocation0 [shape = 'u32[]', space=smem, size = 0x4, offset = 0x4, fixed_abs, tag = 'smem constant byte address 0x4 - core index']
  #allocation1 [shape = 'u32[144,128]{1,0:T(1,128)}', space=vmem, size = 0x12000, scoped, tag = 'internal scratch']
  #allocation2 [shape = 'bf16[48,48,8]{2,1,0:T(16,128)(2,1)}', space=vmem, size = 0x90000, scoped, tag = 'scratch operand']
  %s0 = inlined_call_operand.vmem [shape: bf16[2,16,16,8], index: 0, kind: input, shape index: {}]
  %s1 = inlined_call_operand.vmem [shape: bf16[8,8], index: 1, kind: input, shape index: {}]
  %s2 = inlined_call_operand.vmem [shape: f32[1,8], index: 2, kind: input, shape index: {}]
  %s3 = inlined_call_operand.vmem [shape: bf16[72,8], index: 3, kind: input, shape index: {}]
  %s4 = inlined_call_operand.vmem [shape: f32[1,8], index: 4, kind: input, shape index: {}]
  %s5 = inlined_call_operand.vmem [shape: bf16[72,8], index: 5, kind: input, shape index: {}]
  %s6 = inlined_call_operand.vmem [shape: f32[1,8], index: 6, kind: input, shape index: {}]
  %s7 = inlined_call_operand.vmem [shape: bf16[8,8], index: 7, kind: input, shape index: {}]
  %s8 = inlined_call_operand.vmem [shape: f32[1,8], index: 8, kind: input, shape index: {}]
  %s9 = inlined_call_operand.vmem [shape: f32[8,8], index: 9, kind: input, shape index: {}]
  %s10 = inlined_call_operand.vmem [shape: f32[1,8], index: 10, kind: input, shape index: {}]
  %s11 = inlined_call_operand.vmem [shape: f32[40,128], index: 11, kind: input, shape index: {}]
  %s12 = inlined_call_operand.vmem [shape: f32[1,128], index: 12, kind: input, shape index: {}]
  %s13 = inlined_call_operand.hbm [shape: f32[2,256,128], index: 13, kind: output, shape index: {}]
  %s14 = sld [smem:[#allocation0]]
  $region85: #{tpu_custom_call.1} parent=0
    _
  %s16 = ssub.s32 1, %s14
  %s17 = scalar_select 0, %s16, %s14
  $region1: #{tpu_custom_call.1} parent=0
    #allocation3 [shape = 'u8[262144]{0}', space=vmem, size = 0x40000, scoped, tag = 'output window, operand 0']
    #allocation4 [shape = 's32[2]{0}', space=sflag, size = 0x8, scoped, tag = 'scoped memory for tpu_custom_call.1']
    %18 = vsyncpa [#allocation4], 0
    %s19 = scalar_lea.sflag [#allocation4], 1
    %20 = vsyncpa %s19, 0
    loop: start=0, step=1, limit=4
    $region2: #{tpu_custom_call.1} parent=1 // loop_pre_header
      _
    $region3: #{tpu_custom_call.1} parent=1 // loop_header
      %s22 = sphi 0, %s26
      %p23 = scmp.ge.s32.totalorder %s22, 4
      %s32 = sphi 0, %s34
      %s35 = sphi 0, %s32
      %s36 = sphi 0, %s35
      %s52 = sphi 0, %s36
      %s56 = sphi 0, %s56
      %s58 = sphi 0, %s56
      %s59 = sphi 0, %s58
      %s73 = sphi 0, %s59
      %s77 = sphi 0, %s77
      %s79 = sphi 0, %s77
      %s80 = sphi 0, %s79
      %s94 = sphi 0, %s80
      %s98 = sphi 0, %s98
      %s100 = sphi 0, %s98
      %s101 = sphi 0, %s100
      %s115 = sphi 0, %s101
      %s119 = sphi 0, %s119
      %s121 = sphi 0, %s119
      %s122 = sphi 0, %s121
      %s136 = sphi 0, %s122
      %s140 = sphi 0, %s140
      %s142 = sphi 0, %s140
      %s143 = sphi 0, %s142
      %s157 = sphi 0, %s143
      %s161 = sphi 0, %s161
      %s163 = sphi 0, %s161
      %s164 = sphi 0, %s163
      %s178 = sphi 0, %s164
      %s182 = sphi 0, %s182
      %s184 = sphi 0, %s182
      %s185 = sphi 0, %s184
      %s199 = sphi 0, %s185
      %s203 = sphi 0, %s203
      %s205 = sphi 0, %s203
      %s206 = sphi 0, %s205
      %s220 = sphi 0, %s206
      %s224 = sphi 0, %s224
      %s226 = sphi 0, %s224
      %s227 = sphi 0, %s226
      %s241 = sphi 0, %s227
      %s245 = sphi 0, %s245
      %s247 = sphi 0, %s245
      %s248 = sphi 0, %s247
      %s262 = sphi 0, %s248
      %s266 = sphi 0, %s266
      %s268 = sphi 0, %s266
      %s269 = sphi 0, %s268
      %s283 = sphi 0, %s269
      %s287 = sphi 0, %s287
      %s289 = sphi 0, %s287
      %s290 = sphi 0, %s289
      %s304 = sphi 0, %s290
      %s310 = sphi 0, %s312
      %s313 = sphi 0, %s310
      %s314 = sphi 0, %s313
      %s330 = sphi 0, %s314
    $region4: #{tpu_custom_call.1} parent=1 // loop_header_branch
      %25 = sbr.rel (%p23) target = $region8
    $region5: #{tpu_custom_call.1} parent=1 // loop_body
      %s27 = ssub.s32 %s22, 1
      %s28 = ssub.s32 %s22, 2
      %s29 = sadd.s32 %s22, 1
      %s30 = ssub.s32 %s22, %s29
      %p31 = scmp.eq.s32.totalorder %s30, 0
      %s33 = sadd.s32 %s32, 1
      %s34 = scalar_select %p31, %s32, %s33
      %p37 = pneg %p31
      %p38 = scmp.eq.s32.totalorder %s22, 1
      %p39 = por %p37, %p38
      %p40 = scmp.ne.s32.totalorder %s32, %s35
      %p41 = scmp.eq.s32.totalorder %s22, 0
      %p42 = por %p40, %p41
      %p43 = scmp.ne.s32.totalorder %s32, %s35
      %p44 = scmp.eq.s32.totalorder %s27, 1
      %p45 = por %p43, %p44
      %p46 = scmp.ne.s32.totalorder %s35, %s36
      %p47 = scmp.eq.s32.totalorder %s27, 0
      %p48 = por %p46, %p47
      %p49 = scmp.ne.s32.totalorder %s35, %s36
      %p50 = scmp.eq.s32.totalorder %s28, 1
      %p51 = por %p49, %p50
      %p53 = scmp.ne.s32.totalorder %s36, %s52
      %p54 = scmp.eq.s32.totalorder %s28, 0
      %p55 = por %p53, %p54
      %s57 = sadd.s32 %s56, 1
      %p60 = scmp.eq.s32.totalorder %s22, 1
      %p61 = scmp.ne.s32.totalorder %s56, %s58
      %p62 = scmp.eq.s32.totalorder %s22, 0
      %p63 = por %p61, %p62
      %p64 = scmp.ne.s32.totalorder %s56, %s58
      %p65 = scmp.eq.s32.totalorder %s27, 1
      %p66 = por %p64, %p65
      %p67 = scmp.ne.s32.totalorder %s58, %s59
      %p68 = scmp.eq.s32.totalorder %s27, 0
      %p69 = por %p67, %p68
      %p70 = scmp.ne.s32.totalorder %s58, %s59
      %p71 = scmp.eq.s32.totalorder %s28, 1
      %p72 = por %p70, %p71
      %p74 = scmp.ne.s32.totalorder %s59, %s73
      %p75 = scmp.eq.s32.totalorder %s28, 0
      %p76 = por %p74, %p75
      %s78 = sadd.s32 %s77, 1
      %p81 = scmp.eq.s32.totalorder %s22, 1
      %p82 = scmp.ne.s32.totalorder %s77, %s79
      %p83 = scmp.eq.s32.totalorder %s22, 0
      %p84 = por %p82, %p83
      %p85 = scmp.ne.s32.totalorder %s77, %s79
      %p86 = scmp.eq.s32.totalorder %s27, 1
      %p87 = por %p85, %p86
      %p88 = scmp.ne.s32.totalorder %s79, %s80
      %p89 = scmp.eq.s32.totalorder %s27, 0
      %p90 = por %p88, %p89
      %p91 = scmp.ne.s32.totalorder %s79, %s80
      %p92 = scmp.eq.s32.totalorder %s28, 1
      %p93 = por %p91, %p92
      %p95 = scmp.ne.s32.totalorder %s80, %s94
      %p96 = scmp.eq.s32.totalorder %s28, 0
      %p97 = por %p95, %p96
      %s99 = sadd.s32 %s98, 1
      %p102 = scmp.eq.s32.totalorder %s22, 1
      %p103 = scmp.ne.s32.totalorder %s98, %s100
      %p104 = scmp.eq.s32.totalorder %s22, 0
      %p105 = por %p103, %p104
      %p106 = scmp.ne.s32.totalorder %s98, %s100
      %p107 = scmp.eq.s32.totalorder %s27, 1
      %p108 = por %p106, %p107
      %p109 = scmp.ne.s32.totalorder %s100, %s101
      %p110 = scmp.eq.s32.totalorder %s27, 0
      %p111 = por %p109, %p110
      %p112 = scmp.ne.s32.totalorder %s100, %s101
      %p113 = scmp.eq.s32.totalorder %s28, 1
      %p114 = por %p112, %p113
      %p116 = scmp.ne.s32.totalorder %s101, %s115
      %p117 = scmp.eq.s32.totalorder %s28, 0
      %p118 = por %p116, %p117
      %s120 = sadd.s32 %s119, 1
      %p123 = scmp.eq.s32.totalorder %s22, 1
      %p124 = scmp.ne.s32.totalorder %s119, %s121
      %p125 = scmp.eq.s32.totalorder %s22, 0
      %p126 = por %p124, %p125
      %p127 = scmp.ne.s32.totalorder %s119, %s121
      %p128 = scmp.eq.s32.totalorder %s27, 1
      %p129 = por %p127, %p128
      %p130 = scmp.ne.s32.totalorder %s121, %s122
      %p131 = scmp.eq.s32.totalorder %s27, 0
      %p132 = por %p130, %p131
      %p133 = scmp.ne.s32.totalorder %s121, %s122
      %p134 = scmp.eq.s32.totalorder %s28, 1
      %p135 = por %p133, %p134
      %p137 = scmp.ne.s32.totalorder %s122, %s136
      %p138 = scmp.eq.s32.totalorder %s28, 0
      %p139 = por %p137, %p138
      %s141 = sadd.s32 %s140, 1
      %p144 = scmp.eq.s32.totalorder %s22, 1
      %p145 = scmp.ne.s32.totalorder %s140, %s142
      %p146 = scmp.eq.s32.totalorder %s22, 0
      %p147 = por %p145, %p146
      %p148 = scmp.ne.s32.totalorder %s140, %s142
      %p149 = scmp.eq.s32.totalorder %s27, 1
      %p150 = por %p148, %p149
      %p151 = scmp.ne.s32.totalorder %s142, %s143
      %p152 = scmp.eq.s32.totalorder %s27, 0
      %p153 = por %p151, %p152
      %p154 = scmp.ne.s32.totalorder %s142, %s143
      %p155 = scmp.eq.s32.totalorder %s28, 1
      %p156 = por %p154, %p155
      %p158 = scmp.ne.s32.totalorder %s143, %s157
      %p159 = scmp.eq.s32.totalorder %s28, 0
      %p160 = por %p158, %p159
      %s162 = sadd.s32 %s161, 1
      %p165 = scmp.eq.s32.totalorder %s22, 1
      %p166 = scmp.ne.s32.totalorder %s161, %s163
      %p167 = scmp.eq.s32.totalorder %s22, 0
      %p168 = por %p166, %p167
      %p169 = scmp.ne.s32.totalorder %s161, %s163
      %p170 = scmp.eq.s32.totalorder %s27, 1
      %p171 = por %p169, %p170
      %p172 = scmp.ne.s32.totalorder %s163, %s164
      %p173 = scmp.eq.s32.totalorder %s27, 0
      %p174 = por %p172, %p173
      %p175 = scmp.ne.s32.totalorder %s163, %s164
      %p176 = scmp.eq.s32.totalorder %s28, 1
      %p177 = por %p175, %p176
      %p179 = scmp.ne.s32.totalorder %s164, %s178
      %p180 = scmp.eq.s32.totalorder %s28, 0
      %p181 = por %p179, %p180
      %s183 = sadd.s32 %s182, 1
      %p186 = scmp.eq.s32.totalorder %s22, 1
      %p187 = scmp.ne.s32.totalorder %s182, %s184
      %p188 = scmp.eq.s32.totalorder %s22, 0
      %p189 = por %p187, %p188
      %p190 = scmp.ne.s32.totalorder %s182, %s184
      %p191 = scmp.eq.s32.totalorder %s27, 1
      %p192 = por %p190, %p191
      %p193 = scmp.ne.s32.totalorder %s184, %s185
      %p194 = scmp.eq.s32.totalorder %s27, 0
      %p195 = por %p193, %p194
      %p196 = scmp.ne.s32.totalorder %s184, %s185
      %p197 = scmp.eq.s32.totalorder %s28, 1
      %p198 = por %p196, %p197
      %p200 = scmp.ne.s32.totalorder %s185, %s199
      %p201 = scmp.eq.s32.totalorder %s28, 0
      %p202 = por %p200, %p201
      %s204 = sadd.s32 %s203, 1
      %p207 = scmp.eq.s32.totalorder %s22, 1
      %p208 = scmp.ne.s32.totalorder %s203, %s205
      %p209 = scmp.eq.s32.totalorder %s22, 0
      %p210 = por %p208, %p209
      %p211 = scmp.ne.s32.totalorder %s203, %s205
      %p212 = scmp.eq.s32.totalorder %s27, 1
      %p213 = por %p211, %p212
      %p214 = scmp.ne.s32.totalorder %s205, %s206
      %p215 = scmp.eq.s32.totalorder %s27, 0
      %p216 = por %p214, %p215
      %p217 = scmp.ne.s32.totalorder %s205, %s206
      %p218 = scmp.eq.s32.totalorder %s28, 1
      %p219 = por %p217, %p218
      %p221 = scmp.ne.s32.totalorder %s206, %s220
      %p222 = scmp.eq.s32.totalorder %s28, 0
      %p223 = por %p221, %p222
      %s225 = sadd.s32 %s224, 1
      %p228 = scmp.eq.s32.totalorder %s22, 1
      %p229 = scmp.ne.s32.totalorder %s224, %s226
      %p230 = scmp.eq.s32.totalorder %s22, 0
      %p231 = por %p229, %p230
      %p232 = scmp.ne.s32.totalorder %s224, %s226
      %p233 = scmp.eq.s32.totalorder %s27, 1
      %p234 = por %p232, %p233
      %p235 = scmp.ne.s32.totalorder %s226, %s227
      %p236 = scmp.eq.s32.totalorder %s27, 0
      %p237 = por %p235, %p236
      %p238 = scmp.ne.s32.totalorder %s226, %s227
      %p239 = scmp.eq.s32.totalorder %s28, 1
      %p240 = por %p238, %p239
      %p242 = scmp.ne.s32.totalorder %s227, %s241
      %p243 = scmp.eq.s32.totalorder %s28, 0
      %p244 = por %p242, %p243
      %s246 = sadd.s32 %s245, 1
      %p249 = scmp.eq.s32.totalorder %s22, 1
      %p250 = scmp.ne.s32.totalorder %s245, %s247
      %p251 = scmp.eq.s32.totalorder %s22, 0
      %p252 = por %p250, %p251
      %p253 = scmp.ne.s32.totalorder %s245, %s247
      %p254 = scmp.eq.s32.totalorder %s27, 1
      %p255 = por %p253, %p254
      %p256 = scmp.ne.s32.totalorder %s247, %s248
      %p257 = scmp.eq.s32.totalorder %s27, 0
      %p258 = por %p256, %p257
      %p259 = scmp.ne.s32.totalorder %s247, %s248
      %p260 = scmp.eq.s32.totalorder %s28, 1
      %p261 = por %p259, %p260
      %p263 = scmp.ne.s32.totalorder %s248, %s262
      %p264 = scmp.eq.s32.totalorder %s28, 0
      %p265 = por %p263, %p264
      %s267 = sadd.s32 %s266, 1
      %p270 = scmp.eq.s32.totalorder %s22, 1
      %p271 = scmp.ne.s32.totalorder %s266, %s268
      %p272 = scmp.eq.s32.totalorder %s22, 0
      %p273 = por %p271, %p272
      %p274 = scmp.ne.s32.totalorder %s266, %s268
      %p275 = scmp.eq.s32.totalorder %s27, 1
      %p276 = por %p274, %p275
      %p277 = scmp.ne.s32.totalorder %s268, %s269
      %p278 = scmp.eq.s32.totalorder %s27, 0
      %p279 = por %p277, %p278
      %p280 = scmp.ne.s32.totalorder %s268, %s269
      %p281 = scmp.eq.s32.totalorder %s28, 1
      %p282 = por %p280, %p281
      %p284 = scmp.ne.s32.totalorder %s269, %s283
      %p285 = scmp.eq.s32.totalorder %s28, 0
      %p286 = por %p284, %p285
      %s288 = sadd.s32 %s287, 1
      %p291 = scmp.eq.s32.totalorder %s22, 1
      %p292 = scmp.ne.s32.totalorder %s287, %s289
      %p293 = scmp.eq.s32.totalorder %s22, 0
      %p294 = por %p292, %p293
      %p295 = scmp.ne.s32.totalorder %s287, %s289
      %p296 = scmp.eq.s32.totalorder %s27, 1
      %p297 = por %p295, %p296
      %p298 = scmp.ne.s32.totalorder %s289, %s290
      %p299 = scmp.eq.s32.totalorder %s27, 0
      %p300 = por %p298, %p299
      %p301 = scmp.ne.s32.totalorder %s289, %s290
      %p302 = scmp.eq.s32.totalorder %s28, 1
      %p303 = por %p301, %p302
      %p305 = scmp.ne.s32.totalorder %s290, %s304
      %p306 = scmp.eq.s32.totalorder %s28, 0
      %p307 = por %p305, %p306
      %s308 = ssub.s32 %s22, %s29
      %p309 = scmp.eq.s32.totalorder %s308, 0
      %s311 = sadd.s32 %s310, 1
      %s312 = scalar_select %p309, %s310, %s311
      %p315 = pneg %p309
      %p316 = scmp.eq.s32.totalorder %s22, 1
      %p317 = por %p315, %p316
      %p318 = scmp.ne.s32.totalorder %s310, %s313
      %p319 = scmp.eq.s32.totalorder %s22, 0
      %p320 = por %p318, %p319
      %p321 = scmp.ne.s32.totalorder %s310, %s313
      %p322 = scmp.eq.s32.totalorder %s27, 1
      %p323 = por %p321, %p322
      %p324 = scmp.ne.s32.totalorder %s313, %s314
      %p325 = scmp.eq.s32.totalorder %s27, 0
      %p326 = por %p324, %p325
      %p327 = scmp.ne.s32.totalorder %s313, %s314
      %p328 = scmp.eq.s32.totalorder %s28, 1
      %p329 = por %p327, %p328
      %p331 = scmp.ne.s32.totalorder %s314, %s330
      %p332 = scmp.eq.s32.totalorder %s28, 0
      %p333 = por %p331, %p332
      %p334 = scmp.le.s32.totalorder 1, %s22
      %p335 = scmp.lt.s32.totalorder %s22, 3
      %p336 = pnand %p334, %p335
      %p337 = pneg %p336
      // Predicated region
      $region9: #{tpu_custom_call.1} parent=5 // pred_check
        _
      $region10: #{tpu_custom_call.1} parent=5 // pred_check_branch
        %339 = sbr.rel (%p336) target = $region12
      $region11: #{tpu_custom_call.1} parent=5 // pred_region
        %s340 = ssub.s32 %s22, 1
        // Predicated region
        $region13: #{tpu_custom_call.1} parent=11 // pred_check
          %p341 = pneg %p69
        $region14: #{tpu_custom_call.1} parent=11 // pred_check_branch
          %343 = sbr.rel (%p341) target = $region16
        $region15: #{tpu_custom_call.1} parent=11 // pred_region
          _
        $region16: #{tpu_custom_call.1} parent=11 // pred_fallthru
          _
        // Predicated region
        $region17: #{tpu_custom_call.1} parent=11 // pred_check
          %p344 = pneg %p90
        $region18: #{tpu_custom_call.1} parent=11 // pred_check_branch
          %346 = sbr.rel (%p344) target = $region20
        $region19: #{tpu_custom_call.1} parent=11 // pred_region
          _
        $region20: #{tpu_custom_call.1} parent=11 // pred_fallthru
          _
        // Predicated region
        $region21: #{tpu_custom_call.1} parent=11 // pred_check
          %p347 = pneg %p111
        $region22: #{tpu_custom_call.1} parent=11 // pred_check_branch
          %349 = sbr.rel (%p347) target = $region24
        $region23: #{tpu_custom_call.1} parent=11 // pred_region
          _
        $region24: #{tpu_custom_call.1} parent=11 // pred_fallthru
          _
        // Predicated region
        $region25: #{tpu_custom_call.1} parent=11 // pred_check
          %p350 = pneg %p132
        $region26: #{tpu_custom_call.1} parent=11 // pred_check_branch
          %352 = sbr.rel (%p350) target = $region28
        $region27: #{tpu_custom_call.1} parent=11 // pred_region
          _
        $region28: #{tpu_custom_call.1} parent=11 // pred_fallthru
          _
        // Predicated region
        $region29: #{tpu_custom_call.1} parent=11 // pred_check
          %p353 = pneg %p153
        $region30: #{tpu_custom_call.1} parent=11 // pred_check_branch
          %355 = sbr.rel (%p353) target = $region32
        $region31: #{tpu_custom_call.1} parent=11 // pred_region
          _
        $region32: #{tpu_custom_call.1} parent=11 // pred_fallthru
          _
        // Predicated region
        $region33: #{tpu_custom_call.1} parent=11 // pred_check
          %p356 = pneg %p174
        $region34: #{tpu_custom_call.1} parent=11 // pred_check_branch
          %358 = sbr.rel (%p356) target = $region36
        $region35: #{tpu_custom_call.1} parent=11 // pred_region
          _
        $region36: #{tpu_custom_call.1} parent=11 // pred_fallthru
          _
        // Predicated region
        $region37: #{tpu_custom_call.1} parent=11 // pred_check
          %p359 = pneg %p195
        $region38: #{tpu_custom_call.1} parent=11 // pred_check_branch
          %361 = sbr.rel (%p359) target = $region40
        $region39: #{tpu_custom_call.1} parent=11 // pred_region
          _
        $region40: #{tpu_custom_call.1} parent=11 // pred_fallthru
          _
        // Predicated region
        $region41: #{tpu_custom_call.1} parent=11 // pred_check
          %p362 = pneg %p216
        $region42: #{tpu_custom_call.1} parent=11 // pred_check_branch
          %364 = sbr.rel (%p362) target = $region44
        $region43: #{tpu_custom_call.1} parent=11 // pred_region
          _
        $region44: #{tpu_custom_call.1} parent=11 // pred_fallthru
          _
        // Predicated region
        $region45: #{tpu_custom_call.1} parent=11 // pred_check
          %p365 = pneg %p237
        $region46: #{tpu_custom_call.1} parent=11 // pred_check_branch
          %367 = sbr.rel (%p365) target = $region48
        $region47: #{tpu_custom_call.1} parent=11 // pred_region
          _
        $region48: #{tpu_custom_call.1} parent=11 // pred_fallthru
          _
        // Predicated region
        $region49: #{tpu_custom_call.1} parent=11 // pred_check
          %p368 = pneg %p258
        $region50: #{tpu_custom_call.1} parent=11 // pred_check_branch
          %370 = sbr.rel (%p368) target = $region52
        $region51: #{tpu_custom_call.1} parent=11 // pred_region
          _
        $region52: #{tpu_custom_call.1} parent=11 // pred_fallthru
          _
        // Predicated region
        $region53: #{tpu_custom_call.1} parent=11 // pred_check
          %p371 = pneg %p279
        $region54: #{tpu_custom_call.1} parent=11 // pred_check_branch
          %373 = sbr.rel (%p371) target = $region56
        $region55: #{tpu_custom_call.1} parent=11 // pred_region
          _
        $region56: #{tpu_custom_call.1} parent=11 // pred_fallthru
          _
        // Predicated region
        $region57: #{tpu_custom_call.1} parent=11 // pred_check
          %p374 = pneg %p300
        $region58: #{tpu_custom_call.1} parent=11 // pred_check_branch
          %376 = sbr.rel (%p374) target = $region60
        $region59: #{tpu_custom_call.1} parent=11 // pred_region
          _
        $region60: #{tpu_custom_call.1} parent=11 // pred_fallthru
          _
      $region12: #{tpu_custom_call.1} parent=5 // pred_fallthru
        _
      %p377 = scmp.lt.s32.totalorder %s22, 2
      // Predicated region
      $region61: #{tpu_custom_call.1} parent=5 // pred_check
        %p378 = pneg %p377
      $region62: #{tpu_custom_call.1} parent=5 // pred_check_branch
        %380 = sbr.rel (%p378) target = $region64
      $region63: #{tpu_custom_call.1} parent=5 // pred_region
        // Predicated region
        $region65: #{tpu_custom_call.1} parent=63 // pred_check
          %p381 = pneg %p42
        $region66: #{tpu_custom_call.1} parent=63 // pred_check_branch
          %383 = sbr.rel (%p381) target = $region68
        $region67: #{tpu_custom_call.1} parent=63 // pred_region
          %p384 = scmp.lt.s32.totalorder %s22, 1
          %s385 = scalar_select %p384, %s22, 1
          %s386 = smul.addr %s385, 32
          %s387 = smul.addr %s386, 4
          %s388 = scalar_lea.vmem %s0, %s387
        $region68: #{tpu_custom_call.1} parent=63 // pred_fallthru
          _
      $region64: #{tpu_custom_call.1} parent=5 // pred_fallthru
        _
      %p389 = scmp.le.s32.totalorder 1, %s22
      %p390 = scmp.lt.s32.totalorder %s22, 3
      %p391 = pnand %p389, %p390
      %p392 = pneg %p391
      // Predicated region
      $region69: #{tpu_custom_call.1} parent=5 // pred_check
        _
      $region70: #{tpu_custom_call.1} parent=5 // pred_check_branch
        %394 = sbr.rel (%p391) target = $region72
      $region71: #{tpu_custom_call.1} parent=5 // pred_region
        %s395 = ssub.s32 %s22, 1
        %p396 = scmp.lt.s32.totalorder %s27, 1
        %s397 = scalar_select %p396, %s27, 1
        %s398 = smul.addr %s397, 32
        %s399 = smul.addr %s398, 4
        %s400 = scalar_lea.vmem %s0, %s399
        %p401 = pneg %p48
        %p402 = pneg %p45
        %p403 = pneg %p69
        %p404 = pneg %p66
        %p405 = pneg %p90
        %p406 = pneg %p87
        %p407 = pneg %p111
        %p408 = pneg %p108
        %p409 = pneg %p132
        %p410 = pneg %p129
        %p411 = pneg %p153
        %p412 = pneg %p150
        %p413 = pneg %p174
        %p414 = pneg %p171
        %p415 = pneg %p195
        %p416 = pneg %p192
        %p417 = pneg %p216
        %p418 = pneg %p213
        %p419 = pneg %p237
        %p420 = pneg %p234
        %p421 = pneg %p258
        %p422 = pneg %p255
        %p423 = pneg %p279
        %p424 = pneg %p276
        %p425 = pneg %p300
        %p426 = pneg %p297
        %p427 = pneg %p326
        %p428 = pneg %p323
        %s429 = sand.u32 %s313, 1
        %s430 = scalar_lea.sflag [#allocation4], %s429
        %s431 = sand.u32 %s313, 1
        %s432 = smul.addr %s431, 256
        %s433 = scalar_lea.vmem [#allocation3], %s432
        %p434 = scmp.lt.s32.totalorder %s27, 1
        %s435 = scalar_select %p434, %s27, 1
        %s436 = smul.addr %s435, 32
        %s437 = smul.addr %s436, 4
        %s438 = scalar_lea.vmem %s0, %s437
        %vm440 = vcmask 64512
        %441 = vst.msk [vmem:[#allocation2] sm:$0xff] %vm440, 0
        %442 = vst.msk [vmem:[#allocation2 + $0x8] sm:$0xff] %vm440, 0
        %443 = vst.msk [vmem:[#allocation2 + $0x10] sm:$0xff] %vm440, 0
        %444 = vst.msk [vmem:[#allocation2 + $0x18] sm:$0xff] %vm440, 0
        %445 = vst.msk [vmem:[#allocation2 + $0x20] sm:$0xff] %vm440, 0
        %446 = vst.msk [vmem:[#allocation2 + $0x28] sm:$0xff] %vm440, 0
        %447 = vst.msk [vmem:[#allocation2 + $0x30] sm:$0xff] %vm440, 0
        %448 = vst.msk [vmem:[#allocation2 + $0x38] sm:$0xff] %vm440, 0
        %449 = vst.msk [vmem:[#allocation2 + $0x40] sm:$0xff] %vm440, 0
        %450 = vst.msk [vmem:[#allocation2 + $0x48] sm:$0xff] %vm440, 0
        %451 = vst.msk [vmem:[#allocation2 + $0x50] sm:$0xff] %vm440, 0
        %452 = vst.msk [vmem:[#allocation2 + $0x58] sm:$0xff] %vm440, 0
        %453 = vst.msk [vmem:[#allocation2 + $0x60] sm:$0xff] %vm440, 0
        %454 = vst.msk [vmem:[#allocation2 + $0x68] sm:$0xff] %vm440, 0
        %455 = vst.msk [vmem:[#allocation2 + $0x70] sm:$0xff] %vm440, 0
        %456 = vst.msk [vmem:[#allocation2 + $0x78] sm:$0xff] %vm440, 0
        %457 = vst.msk [vmem:[#allocation2 + $0x80] sm:$0xff] %vm440, 0
        %458 = vst.msk [vmem:[#allocation2 + $0x88] sm:$0xff] %vm440, 0
        %459 = vst.msk [vmem:[#allocation2 + $0x90] sm:$0xff] %vm440, 0
        %460 = vst.msk [vmem:[#allocation2 + $0x98] sm:$0xff] %vm440, 0
        %461 = vst.msk [vmem:[#allocation2 + $0xa0] sm:$0xff] %vm440, 0
        %462 = vst.msk [vmem:[#allocation2 + $0xa8] sm:$0xff] %vm440, 0
        %463 = vst.msk [vmem:[#allocation2 + $0xb0] sm:$0xff] %vm440, 0
        %464 = vst.msk [vmem:[#allocation2 + $0xb8] sm:$0xff] %vm440, 0
        %465 = vst.msk [vmem:[#allocation2 + $0xc0] sm:$0xff] %vm440, 0
        %466 = vst.msk [vmem:[#allocation2 + $0xc8] sm:$0xff] %vm440, 0
        %467 = vst.msk [vmem:[#allocation2 + $0xd0] sm:$0xff] %vm440, 0
        %468 = vst.msk [vmem:[#allocation2 + $0xd8] sm:$0xff] %vm440, 0
        %469 = vst.msk [vmem:[#allocation2 + $0xe0] sm:$0xff] %vm440, 0
        %470 = vst.msk [vmem:[#allocation2 + $0xe8] sm:$0xff] %vm440, 0
        %471 = vst.msk [vmem:[#allocation2 + $0xf0] sm:$0xff] %vm440, 0
        %472 = vst.msk [vmem:[#allocation2 + $0xf8] sm:$0xff] %vm440, 0
        %473 = vst.msk [vmem:[#allocation2 + $0x100] sm:$0xff] %vm440, 0
        %474 = vst.msk [vmem:[#allocation2 + $0x108] sm:$0xff] %vm440, 0
        %475 = vst.msk [vmem:[#allocation2 + $0x110] sm:$0xff] %vm440, 0
        %476 = vst.msk [vmem:[#allocation2 + $0x118] sm:$0xff] %vm440, 0
        %477 = vst.msk [vmem:[#allocation2 + $0x120] sm:$0xff] %vm440, 0
        %478 = vst.msk [vmem:[#allocation2 + $0x128] sm:$0xff] %vm440, 0
        %479 = vst.msk [vmem:[#allocation2 + $0x130] sm:$0xff] %vm440, 0
        %480 = vst.msk [vmem:[#allocation2 + $0x138] sm:$0xff] %vm440, 0
        %481 = vst.msk [vmem:[#allocation2 + $0x140] sm:$0xff] %vm440, 0
        %482 = vst.msk [vmem:[#allocation2 + $0x148] sm:$0xff] %vm440, 0
        %483 = vst.msk [vmem:[#allocation2 + $0x150] sm:$0xff] %vm440, 0
        %484 = vst.msk [vmem:[#allocation2 + $0x158] sm:$0xff] %vm440, 0
        %485 = vst.msk [vmem:[#allocation2 + $0x160] sm:$0xff] %vm440, 0
        %486 = vst.msk [vmem:[#allocation2 + $0x168] sm:$0xff] %vm440, 0
        %487 = vst.msk [vmem:[#allocation2 + $0x170] sm:$0xff] %vm440, 0
        %488 = vst.msk [vmem:[#allocation2 + $0x178] sm:$0xff] %vm440, 0
        %489 = vst.msk [vmem:[#allocation2 + $0x180] sm:$0xff] %vm440, 0
        %490 = vst.msk [vmem:[#allocation2 + $0x188] sm:$0xff] %vm440, 0
        %491 = vst.msk [vmem:[#allocation2 + $0x190] sm:$0xff] %vm440, 0
        %492 = vst.msk [vmem:[#allocation2 + $0x198] sm:$0xff] %vm440, 0
        %493 = vst.msk [vmem:[#allocation2 + $0x1a0] sm:$0xff] %vm440, 0
        %494 = vst.msk [vmem:[#allocation2 + $0x1a8] sm:$0xff] %vm440, 0
        %495 = vst.msk [vmem:[#allocation2 + $0x1b0] sm:$0xff] %vm440, 0
        %496 = vst.msk [vmem:[#allocation2 + $0x1b8] sm:$0xff] %vm440, 0
        %497 = vst.msk [vmem:[#allocation2 + $0x1c0] sm:$0xff] %vm440, 0
        %498 = vst.msk [vmem:[#allocation2 + $0x1c8] sm:$0xff] %vm440, 0
        %499 = vst.msk [vmem:[#allocation2 + $0x1d0] sm:$0xff] %vm440, 0
        %500 = vst.msk [vmem:[#allocation2 + $0x1d8] sm:$0xff] %vm440, 0
        %501 = vst.msk [vmem:[#allocation2 + $0x1e0] sm:$0xff] %vm440, 0
        %502 = vst.msk [vmem:[#allocation2 + $0x1e8] sm:$0xff] %vm440, 0
        %503 = vst.msk [vmem:[#allocation2 + $0x1f0] sm:$0xff] %vm440, 0
        %504 = vst.msk [vmem:[#allocation2 + $0x1f8] sm:$0xff] %vm440, 0
        %505 = vst.msk [vmem:[#allocation2 + $0x200] sm:$0xff] %vm440, 0
        %506 = vst.msk [vmem:[#allocation2 + $0x208] sm:$0xff] %vm440, 0
        %507 = vst.msk [vmem:[#allocation2 + $0x210] sm:$0xff] %vm440, 0
        %508 = vst.msk [vmem:[#allocation2 + $0x218] sm:$0xff] %vm440, 0
        %509 = vst.msk [vmem:[#allocation2 + $0x220] sm:$0xff] %vm440, 0
        %510 = vst.msk [vmem:[#allocation2 + $0x228] sm:$0xff] %vm440, 0
        %511 = vst.msk [vmem:[#allocation2 + $0x230] sm:$0xff] %vm440, 0
        %512 = vst.msk [vmem:[#allocation2 + $0x238] sm:$0xff] %vm440, 0
        %513 = vst.msk [vmem:[#allocation2 + $0x240] sm:$0xff] %vm440, 0
        %514 = vst.msk [vmem:[#allocation2 + $0x248] sm:$0xff] %vm440, 0
        %515 = vst.msk [vmem:[#allocation2 + $0x250] sm:$0xff] %vm440, 0
        %516 = vst.msk [vmem:[#allocation2 + $0x258] sm:$0xff] %vm440, 0
        %517 = vst.msk [vmem:[#allocation2 + $0x260] sm:$0xff] %vm440, 0
        %518 = vst.msk [vmem:[#allocation2 + $0x268] sm:$0xff] %vm440, 0
        %519 = vst.msk [vmem:[#allocation2 + $0x270] sm:$0xff] %vm440, 0
        %520 = vst.msk [vmem:[#allocation2 + $0x278] sm:$0xff] %vm440, 0
        %521 = vst.msk [vmem:[#allocation2 + $0x280] sm:$0xff] %vm440, 0
        %522 = vst.msk [vmem:[#allocation2 + $0x288] sm:$0xff] %vm440, 0
        %523 = vst.msk [vmem:[#allocation2 + $0x290] sm:$0xff] %vm440, 0
        %524 = vst.msk [vmem:[#allocation2 + $0x298] sm:$0xff] %vm440, 0
        %525 = vst.msk [vmem:[#allocation2 + $0x2a0] sm:$0xff] %vm440, 0
        %526 = vst.msk [vmem:[#allocation2 + $0x2a8] sm:$0xff] %vm440, 0
        %527 = vst.msk [vmem:[#allocation2 + $0x2b0] sm:$0xff] %vm440, 0
        %528 = vst.msk [vmem:[#allocation2 + $0x2b8] sm:$0xff] %vm440, 0
        %529 = vst.msk [vmem:[#allocation2 + $0x2c0] sm:$0xff] %vm440, 0
        %530 = vst.msk [vmem:[#allocation2 + $0x2c8] sm:$0xff] %vm440, 0
        %531 = vst.msk [vmem:[#allocation2 + $0x2d0] sm:$0xff] %vm440, 0
        %532 = vst.msk [vmem:[#allocation2 + $0x2d8] sm:$0xff] %vm440, 0
        %533 = vst.msk [vmem:[#allocation2 + $0x2e0] sm:$0xff] %vm440, 0
        %534 = vst.msk [vmem:[#allocation2 + $0x2e8] sm:$0xff] %vm440, 0
        %535 = vst.msk [vmem:[#allocation2 + $0x2f0] sm:$0xff] %vm440, 0
        %536 = vst.msk [vmem:[#allocation2 + $0x2f8] sm:$0xff] %vm440, 0
        %537 = vst.msk [vmem:[#allocation2 + $0x300] sm:$0xff] %vm440, 0
        %538 = vst.msk [vmem:[#allocation2 + $0x308] sm:$0xff] %vm440, 0
        %539 = vst.msk [vmem:[#allocation2 + $0x310] sm:$0xff] %vm440, 0
        %540 = vst.msk [vmem:[#allocation2 + $0x318] sm:$0xff] %vm440, 0
        %541 = vst.msk [vmem:[#allocation2 + $0x320] sm:$0xff] %vm440, 0
        %542 = vst.msk [vmem:[#allocation2 + $0x328] sm:$0xff] %vm440, 0
        %543 = vst.msk [vmem:[#allocation2 + $0x330] sm:$0xff] %vm440, 0
        %544 = vst.msk [vmem:[#allocation2 + $0x338] sm:$0xff] %vm440, 0
        %545 = vst.msk [vmem:[#allocation2 + $0x340] sm:$0xff] %vm440, 0
        %546 = vst.msk [vmem:[#allocation2 + $0x348] sm:$0xff] %vm440, 0
        %547 = vst.msk [vmem:[#allocation2 + $0x350] sm:$0xff] %vm440, 0
        %548 = vst.msk [vmem:[#allocation2 + $0x358] sm:$0xff] %vm440, 0
        %549 = vst.msk [vmem:[#allocation2 + $0x360] sm:$0xff] %vm440, 0
        %550 = vst.msk [vmem:[#allocation2 + $0x368] sm:$0xff] %vm440, 0
        %551 = vst.msk [vmem:[#allocation2 + $0x370] sm:$0xff] %vm440, 0
        %552 = vst.msk [vmem:[#allocation2 + $0x378] sm:$0xff] %vm440, 0
        %553 = vst.msk [vmem:[#allocation2 + $0x380] sm:$0xff] %vm440, 0
        %554 = vst.msk [vmem:[#allocation2 + $0x388] sm:$0xff] %vm440, 0
        %555 = vst.msk [vmem:[#allocation2 + $0x390] sm:$0xff] %vm440, 0
        %556 = vst.msk [vmem:[#allocation2 + $0x398] sm:$0xff] %vm440, 0
        %557 = vst.msk [vmem:[#allocation2 + $0x3a0] sm:$0xff] %vm440, 0
        %558 = vst.msk [vmem:[#allocation2 + $0x3a8] sm:$0xff] %vm440, 0
        %559 = vst.msk [vmem:[#allocation2 + $0x3b0] sm:$0xff] %vm440, 0
        %560 = vst.msk [vmem:[#allocation2 + $0x3b8] sm:$0xff] %vm440, 0
        %561 = vst.msk [vmem:[#allocation2 + $0x3c0] sm:$0xff] %vm440, 0
        %562 = vst.msk [vmem:[#allocation2 + $0x3c8] sm:$0xff] %vm440, 0
        %563 = vst.msk [vmem:[#allocation2 + $0x3d0] sm:$0xff] %vm440, 0
        %564 = vst.msk [vmem:[#allocation2 + $0x3d8] sm:$0xff] %vm440, 0
        %565 = vst.msk [vmem:[#allocation2 + $0x3e0] sm:$0xff] %vm440, 0
        %566 = vst.msk [vmem:[#allocation2 + $0x3e8] sm:$0xff] %vm440, 0
        %567 = vst.msk [vmem:[#allocation2 + $0x3f0] sm:$0xff] %vm440, 0
        %568 = vst.msk [vmem:[#allocation2 + $0x3f8] sm:$0xff] %vm440, 0
        %569 = vst.msk [vmem:[#allocation2 + $0x400] sm:$0xff] %vm440, 0
        %570 = vst.msk [vmem:[#allocation2 + $0x408] sm:$0xff] %vm440, 0
        %571 = vst.msk [vmem:[#allocation2 + $0x410] sm:$0xff] %vm440, 0
        %572 = vst.msk [vmem:[#allocation2 + $0x418] sm:$0xff] %vm440, 0
        %573 = vst.msk [vmem:[#allocation2 + $0x420] sm:$0xff] %vm440, 0
        %574 = vst.msk [vmem:[#allocation2 + $0x428] sm:$0xff] %vm440, 0
        %575 = vst.msk [vmem:[#allocation2 + $0x430] sm:$0xff] %vm440, 0
        %576 = vst.msk [vmem:[#allocation2 + $0x438] sm:$0xff] %vm440, 0
        %577 = vst.msk [vmem:[#allocation2 + $0x440] sm:$0xff] %vm440, 0
        %578 = vst.msk [vmem:[#allocation2 + $0x448] sm:$0xff] %vm440, 0
        %579 = vst.msk [vmem:[#allocation2 + $0x450] sm:$0xff] %vm440, 0
        %580 = vst.msk [vmem:[#allocation2 + $0x458] sm:$0xff] %vm440, 0
        %581 = vst.msk [vmem:[#allocation2 + $0x460] sm:$0xff] %vm440, 0
        %582 = vst.msk [vmem:[#allocation2 + $0x468] sm:$0xff] %vm440, 0
        %583 = vst.msk [vmem:[#allocation2 + $0x470] sm:$0xff] %vm440, 0
        %584 = vst.msk [vmem:[#allocation2 + $0x478] sm:$0xff] %vm440, 0
        %v585 = vld [vmem:[%s438] sm:$0xf]
        %v586 = vld [vmem:[%s438 + $0x4] sm:$0xf]
        %v587 = vld [vmem:[%s438 + $0x8] sm:$0xf]
        %v588 = vld [vmem:[%s438 + $0xc] sm:$0xf]
        %v589 = vld [vmem:[%s438 + $0x10] sm:$0xf]
        %v590 = vld [vmem:[%s438 + $0x14] sm:$0xf]
        %v591 = vld [vmem:[%s438 + $0x18] sm:$0xf]
        %v592 = vld [vmem:[%s438 + $0x1c] sm:$0xf]
        %v593 = vld [vmem:[%s438 + $0x20] sm:$0xf]
        %v594 = vld [vmem:[%s438 + $0x24] sm:$0xf]
        %v595 = vld [vmem:[%s438 + $0x28] sm:$0xf]
        %v596 = vld [vmem:[%s438 + $0x2c] sm:$0xf]
        %v597 = vld [vmem:[%s438 + $0x30] sm:$0xf]
        %v598 = vld [vmem:[%s438 + $0x34] sm:$0xf]
        %v599 = vld [vmem:[%s438 + $0x38] sm:$0xf]
        %v600 = vld [vmem:[%s438 + $0x3c] sm:$0xf]
        %v601 = vld [vmem:[%s438 + $0x40] sm:$0xf]
        %v602 = vld [vmem:[%s438 + $0x44] sm:$0xf]
        %v603 = vld [vmem:[%s438 + $0x48] sm:$0xf]
        %v604 = vld [vmem:[%s438 + $0x4c] sm:$0xf]
        %v605 = vld [vmem:[%s438 + $0x50] sm:$0xf]
        %v606 = vld [vmem:[%s438 + $0x54] sm:$0xf]
        %v607 = vld [vmem:[%s438 + $0x58] sm:$0xf]
        %v608 = vld [vmem:[%s438 + $0x5c] sm:$0xf]
        %v609 = vld [vmem:[%s438 + $0x60] sm:$0xf]
        %v610 = vld [vmem:[%s438 + $0x64] sm:$0xf]
        %v611 = vld [vmem:[%s438 + $0x68] sm:$0xf]
        %v612 = vld [vmem:[%s438 + $0x6c] sm:$0xf]
        %v613 = vld [vmem:[%s438 + $0x70] sm:$0xf]
        %v614 = vld [vmem:[%s438 + $0x74] sm:$0xf]
        %v615 = vld [vmem:[%s438 + $0x78] sm:$0xf]
        %v616 = vld [vmem:[%s438 + $0x7c] sm:$0xf]
        %v649 = vunpack.c.l.b16 %v585
        %v650 = vunpack.c.l.b16 %v586
        %v651 = vunpack.c.l.b16 %v587
        %v652 = vunpack.c.l.b16 %v588
        %v653 = vunpack.c.l.b16 %v589
        %v654 = vunpack.c.l.b16 %v590
        %v655 = vunpack.c.l.b16 %v591
        %v656 = vunpack.c.l.b16 %v592
        %v657 = vunpack.c.l.b16 %v593
        %v658 = vunpack.c.l.b16 %v594
        %v659 = vunpack.c.l.b16 %v595
        %v660 = vunpack.c.l.b16 %v596
        %v661 = vunpack.c.l.b16 %v597
        %v662 = vunpack.c.l.b16 %v598
        %v663 = vunpack.c.l.b16 %v599
        %v664 = vunpack.c.l.b16 %v600
        %v665 = vunpack.c.l.b16 %v601
        %v666 = vunpack.c.l.b16 %v602
        %v667 = vunpack.c.l.b16 %v603
        %v668 = vunpack.c.l.b16 %v604
        %v669 = vunpack.c.l.b16 %v605
        %v670 = vunpack.c.l.b16 %v606
        %v671 = vunpack.c.l.b16 %v607
        %v672 = vunpack.c.l.b16 %v608
        %v673 = vunpack.c.l.b16 %v609
        %v674 = vunpack.c.l.b16 %v610
        %v675 = vunpack.c.l.b16 %v611
        %v676 = vunpack.c.l.b16 %v612
        %v677 = vunpack.c.l.b16 %v613
        %v678 = vunpack.c.l.b16 %v614
        %v679 = vunpack.c.l.b16 %v615
        %v680 = vunpack.c.l.b16 %v616
        %v681 = vpack.c.b16 %v650, %v649
        %v682 = vpack.c.b16 %v652, %v651
        %v683 = vpack.c.b16 %v654, %v653
        %v684 = vpack.c.b16 %v656, %v655
        %v685 = vpack.c.b16 %v658, %v657
        %v686 = vpack.c.b16 %v660, %v659
        %v687 = vpack.c.b16 %v662, %v661
        %v688 = vpack.c.b16 %v664, %v663
        %v689 = vpack.c.b16 %v666, %v665
        %v690 = vpack.c.b16 %v668, %v667
        %v691 = vpack.c.b16 %v670, %v669
        %v692 = vpack.c.b16 %v672, %v671
        %v693 = vpack.c.b16 %v674, %v673
        %v694 = vpack.c.b16 %v676, %v675
        %v695 = vpack.c.b16 %v678, %v677
        %v696 = vpack.c.b16 %v680, %v679
        %s713 = scalar_lea.vmem [#allocation2], 384
        %714 = vst.msk [vmem:[%s713 + $0x8] sm:$0xff] %vm440, %v681
        %715 = vst.msk [vmem:[%s713 + $0x20] sm:$0xff] %vm440, %v682
        %716 = vst.msk [vmem:[%s713 + $0x38] sm:$0xff] %vm440, %v683
        %717 = vst.msk [vmem:[%s713 + $0x50] sm:$0xff] %vm440, %v684
        %718 = vst.msk [vmem:[%s713 + $0x68] sm:$0xff] %vm440, %v685
        %719 = vst.msk [vmem:[%s713 + $0x80] sm:$0xff] %vm440, %v686
        %720 = vst.msk [vmem:[%s713 + $0x98] sm:$0xff] %vm440, %v687
        %721 = vst.msk [vmem:[%s713 + $0xb0] sm:$0xff] %vm440, %v688
        %722 = vst.msk [vmem:[%s713 + $0xc8] sm:$0xff] %vm440, %v689
        %723 = vst.msk [vmem:[%s713 + $0xe0] sm:$0xff] %vm440, %v690
        %724 = vst.msk [vmem:[%s713 + $0xf8] sm:$0xff] %vm440, %v691
        %725 = vst.msk [vmem:[%s713 + $0x110] sm:$0xff] %vm440, %v692
        %726 = vst.msk [vmem:[%s713 + $0x128] sm:$0xff] %vm440, %v693
        %727 = vst.msk [vmem:[%s713 + $0x140] sm:$0xff] %vm440, %v694
        %728 = vst.msk [vmem:[%s713 + $0x158] sm:$0xff] %vm440, %v695
        %729 = vst.msk [vmem:[%s713 + $0x170] sm:$0xff] %vm440, %v696
        %v730 = vld [vmem:[%s11] sm:$0xff]
        %v731 = vld [vmem:[%s11 + $0x8] sm:$0xff]
        %v732 = vld [vmem:[%s11 + $0x10] sm:$0xff]
        %v733 = vld [vmem:[%s11 + $0x18] sm:$0xff]
        %v734 = vld [vmem:[%s11 + $0x20] sm:$0xff]
        %v735 = vunpack.c.l.bf16 %v585
        %v736 = vunpack.c.l.bf16 %v586
        %v737 = vunpack.c.l.bf16 %v587
        %v738 = vunpack.c.l.bf16 %v588
        %v739 = vunpack.c.l.bf16 %v589
        %v740 = vunpack.c.l.bf16 %v590
        %v741 = vunpack.c.l.bf16 %v591
        %v742 = vunpack.c.l.bf16 %v592
        %v743 = vunpack.c.l.bf16 %v593
        %v744 = vunpack.c.l.bf16 %v594
        %v745 = vunpack.c.l.bf16 %v595
        %v746 = vunpack.c.l.bf16 %v596
        %v747 = vunpack.c.l.bf16 %v597
        %v748 = vunpack.c.l.bf16 %v598
        %v749 = vunpack.c.l.bf16 %v599
        %v750 = vunpack.c.l.bf16 %v600
        %v751 = vunpack.c.l.bf16 %v601
        %v752 = vunpack.c.l.bf16 %v602
        %v753 = vunpack.c.l.bf16 %v603
        %v754 = vunpack.c.l.bf16 %v604
        %v755 = vunpack.c.l.bf16 %v605
        %v756 = vunpack.c.l.bf16 %v606
        %v757 = vunpack.c.l.bf16 %v607
        %v758 = vunpack.c.l.bf16 %v608
        %v759 = vunpack.c.l.bf16 %v609
        %v760 = vunpack.c.l.bf16 %v610
        %v761 = vunpack.c.l.bf16 %v611
        %v762 = vunpack.c.l.bf16 %v612
        %v763 = vunpack.c.l.bf16 %v613
        %v764 = vunpack.c.l.bf16 %v614
        %v765 = vunpack.c.l.bf16 %v615
        %v766 = vunpack.c.l.bf16 %v616
        %v767 = vsel %vm440, %v735, 0.0
        %v768 = vsel %vm440, %v736, 0.0
        %v769 = vadd.f32 %v767, %v768
        %v770 = vsel %vm440, %v737, 0.0
        %v771 = vadd.f32 %v769, %v770
        %v772 = vsel %vm440, %v738, 0.0
        %v773 = vadd.f32 %v771, %v772
        %v774 = vsel %vm440, %v739, 0.0
        %v775 = vadd.f32 %v773, %v774
        %v776 = vsel %vm440, %v740, 0.0
        %v777 = vadd.f32 %v775, %v776
        %v778 = vsel %vm440, %v741, 0.0
        %v779 = vadd.f32 %v777, %v778
        %v780 = vsel %vm440, %v742, 0.0
        %v781 = vadd.f32 %v779, %v780
        %v782 = vsel %vm440, %v743, 0.0
        %v783 = vadd.f32 %v781, %v782
        %v784 = vsel %vm440, %v744, 0.0
        %v785 = vadd.f32 %v783, %v784
        %v786 = vsel %vm440, %v745, 0.0
        %v787 = vadd.f32 %v785, %v786
        %v788 = vsel %vm440, %v746, 0.0
        %v789 = vadd.f32 %v787, %v788
        %v790 = vsel %vm440, %v747, 0.0
        %v791 = vadd.f32 %v789, %v790
        %v792 = vsel %vm440, %v748, 0.0
        %v793 = vadd.f32 %v791, %v792
        %v794 = vsel %vm440, %v749, 0.0
        %v795 = vadd.f32 %v793, %v794
        %v796 = vsel %vm440, %v750, 0.0
        %v797 = vadd.f32 %v795, %v796
        %v798 = vsel %vm440, %v751, 0.0
        %v799 = vadd.f32 %v797, %v798
        %v800 = vsel %vm440, %v752, 0.0
        %v801 = vadd.f32 %v799, %v800
        %v802 = vsel %vm440, %v753, 0.0
        %v803 = vadd.f32 %v801, %v802
        %v804 = vsel %vm440, %v754, 0.0
        %v805 = vadd.f32 %v803, %v804
        %v806 = vsel %vm440, %v755, 0.0
        %v807 = vadd.f32 %v805, %v806
        %v808 = vsel %vm440, %v756, 0.0
        %v809 = vadd.f32 %v807, %v808
        %v810 = vsel %vm440, %v757, 0.0
        %v811 = vadd.f32 %v809, %v810
        %v812 = vsel %vm440, %v758, 0.0
        %v813 = vadd.f32 %v811, %v812
        %v814 = vsel %vm440, %v759, 0.0
        %v815 = vadd.f32 %v813, %v814
        %v816 = vsel %vm440, %v760, 0.0
        %v817 = vadd.f32 %v815, %v816
        %v818 = vsel %vm440, %v761, 0.0
        %v819 = vadd.f32 %v817, %v818
        %v820 = vsel %vm440, %v762, 0.0
        %v821 = vadd.f32 %v819, %v820
        %v822 = vsel %vm440, %v763, 0.0
        %v823 = vadd.f32 %v821, %v822
        %v824 = vsel %vm440, %v764, 0.0
        %v825 = vadd.f32 %v823, %v824
        %v826 = vsel %vm440, %v765, 0.0
        %v827 = vadd.f32 %v825, %v826
        %v828 = vsel %vm440, %v766, 0.0
        %v829 = vadd.f32 %v827, %v828
        %v830 = vrot.slane %v829, 4
        %v831 = vadd.f32 %v829, %v830
        %v832 = vrot.slane %v831, 2
        %v833 = vadd.f32 %v831, %v832
        %v834 = vrot.slane %v833, 1
        %v835 = vadd.f32 %v833, %v834
        %v836 = vrcp.pop 256.0
        %v837 = vmul.f32 %v835, %v836
        %v838 = vld [vmem:[%s9] sm:$0xff]
        %v839 = vld [vmem:[%s10] sm:$0x1]
        %v841 = vsel %vm440, %v837, 0
        %843 = vmatprep.subr.mxu0 0.0
        %844 = vmatpush1.msra.mxu0 %v838
        %845 = vmatprep.subr.mxu0 0.0
        %846 = vmatpush1.msra.mxu0 0.0
        %847 = vmatprep.subr.mxu0 0.0
        %848 = vmatpush1.msra.mxu0 0.0
        %849 = vmatprep.subr.mxu0 0.0
        %850 = vmatpush1.msra.mxu0 0.0
        %851 = vmatprep.subr.mxu0 0.0
        %852 = vmatpush1.msra.mxu0 0.0
        %853 = vmatprep.subr.mxu0 0.0
        %854 = vmatpush1.msra.mxu0 0.0
        %855 = vmatprep.subr.mxu0 0.0
        %856 = vmatpush1.msra.mxu0 0.0
        %857 = vmatprep.subr.mxu0 0.0
        %858 = vmatpush1.msra.mxu0 0.0
        %859 = vmatprep.subr.mxu0 0.0
        %860 = vmatpush1.msra.mxu0 0.0
        %861 = vmatprep.subr.mxu0 0.0
        %862 = vmatpush1.msra.mxu0 0.0
        %863 = vmatprep.subr.mxu0 0.0
        %864 = vmatpush1.msra.mxu0 0.0
        %865 = vmatprep.subr.mxu0 0.0
        %866 = vmatpush1.msra.mxu0 0.0
        %867 = vmatprep.subr.mxu0 0.0
        %868 = vmatpush1.msra.mxu0 0.0
        %869 = vmatprep.subr.mxu0 0.0
        %870 = vmatpush1.msra.mxu0 0.0
        %871 = vmatprep.subr.mxu0 0.0
        %872 = vmatpush1.msra.mxu0 0.0
        %873 = vmatprep.subr.mxu0 0.0
        %874 = vmatpush1.msra.mxu0 0.0
        %875 = vmatprep.subr.mxu0 0.0
        %876 = vmatpush1.msra.mxu0 0.0
        %877 = vmatprep.subr.mxu0 0.0
        %878 = vmatpush1.msra.mxu0 0.0
        %879 = vmatprep.subr.mxu0 0.0
        %880 = vmatpush1.msra.mxu0 0.0
        %881 = vmatprep.subr.mxu0 0.0
        %882 = vmatpush1.msra.mxu0 0.0
        %883 = vmatprep.subr.mxu0 0.0
        %884 = vmatpush1.msra.mxu0 0.0
        %885 = vmatprep.subr.mxu0 0.0
        %886 = vmatpush1.msra.mxu0 0.0
        %887 = vmatprep.subr.mxu0 0.0
        %888 = vmatpush1.msra.mxu0 0.0
        %889 = vmatprep.subr.mxu0 0.0
        %890 = vmatpush1.msra.mxu0 0.0
        %891 = vmatprep.subr.mxu0 0.0
        %892 = vmatpush1.msra.mxu0 0.0
        %893 = vmatprep.subr.mxu0 0.0
        %894 = vmatpush1.msra.mxu0 0.0
        %895 = vmatprep.subr.mxu0 0.0
        %896 = vmatpush1.msra.mxu0 0.0
        %897 = vmatprep.subr.mxu0 0.0
        %898 = vmatpush1.msra.mxu0 0.0
        %899 = vmatprep.subr.mxu0 0.0
        %900 = vmatpush1.msra.mxu0 0.0
        %901 = vmatprep.subr.mxu0 0.0
        %902 = vmatpush1.msra.mxu0 0.0
        %903 = vmatprep.subr.mxu0 0.0
        %904 = vmatpush1.msra.mxu0 0.0
        %905 = vmatprep.subr.mxu0 0.0
        %906 = vmatpush1.msra.mxu0 0.0
        %907 = vmatprep.mubr.f32.mxu0 0.0
        %908 = vmatmul.mubr.f32.gmra.mrb[0].mxu0 %v841
        %v909 = vpop.f32.mrb[0].mxu0
        %v910 = vadd.f32 %v839, %v909
        %v911 = vpop.f32.mrb[0].mxu0
        %912 = vdwg.mxu0
        %v913 = vmax.f32 %v910, 0.0
        %v914 = vld [vmem:[%s12] sm:$0x1]
        %v916 = vsel %vm440, %v913, 0
        %918 = vmatprep.subr.mxu0 0.0
        %919 = vmatpush1.msra.mxu0 %v734
        %920 = vmatprep.subr.mxu0 0.0
        %921 = vmatpush1.msra.mxu0 0.0
        %922 = vmatprep.subr.mxu0 0.0
        %923 = vmatpush1.msra.mxu0 0.0
        %924 = vmatprep.subr.mxu0 0.0
        %925 = vmatpush1.msra.mxu0 0.0
        %926 = vmatprep.subr.mxu0 0.0
        %927 = vmatpush1.msra.mxu0 0.0
        %928 = vmatprep.subr.mxu0 0.0
        %929 = vmatpush1.msra.mxu0 0.0
        %930 = vmatprep.subr.mxu0 0.0
        %931 = vmatpush1.msra.mxu0 0.0
        %932 = vmatprep.subr.mxu0 0.0
        %933 = vmatpush1.msra.mxu0 0.0
        %934 = vmatprep.subr.mxu0 0.0
        %935 = vmatpush1.msra.mxu0 0.0
        %936 = vmatprep.subr.mxu0 0.0
        %937 = vmatpush1.msra.mxu0 0.0
        %938 = vmatprep.subr.mxu0 0.0
        %939 = vmatpush1.msra.mxu0 0.0
        %940 = vmatprep.subr.mxu0 0.0
        %941 = vmatpush1.msra.mxu0 0.0
        %942 = vmatprep.subr.mxu0 0.0
        %943 = vmatpush1.msra.mxu0 0.0
        %944 = vmatprep.subr.mxu0 0.0
        %945 = vmatpush1.msra.mxu0 0.0
        %946 = vmatprep.subr.mxu0 0.0
        %947 = vmatpush1.msra.mxu0 0.0
        %948 = vmatprep.subr.mxu0 0.0
        %949 = vmatpush1.msra.mxu0 0.0
        %950 = vmatprep.subr.mxu0 0.0
        %951 = vmatpush1.msra.mxu0 0.0
        %952 = vmatprep.subr.mxu0 0.0
        %953 = vmatpush1.msra.mxu0 0.0
        %954 = vmatprep.subr.mxu0 0.0
        %955 = vmatpush1.msra.mxu0 0.0
        %956 = vmatprep.subr.mxu0 0.0
        %957 = vmatpush1.msra.mxu0 0.0
        %958 = vmatprep.subr.mxu0 0.0
        %959 = vmatpush1.msra.mxu0 0.0
        %960 = vmatprep.subr.mxu0 0.0
        %961 = vmatpush1.msra.mxu0 0.0
        %962 = vmatprep.subr.mxu0 0.0
        %963 = vmatpush1.msra.mxu0 0.0
        %964 = vmatprep.subr.mxu0 0.0
        %965 = vmatpush1.msra.mxu0 0.0
        %966 = vmatprep.subr.mxu0 0.0
        %967 = vmatpush1.msra.mxu0 0.0
        %968 = vmatprep.subr.mxu0 0.0
        %969 = vmatpush1.msra.mxu0 0.0
        %970 = vmatprep.subr.mxu0 0.0
        %971 = vmatpush1.msra.mxu0 0.0
        %972 = vmatprep.subr.mxu0 0.0
        %973 = vmatpush1.msra.mxu0 0.0
        %974 = vmatprep.subr.mxu0 0.0
        %975 = vmatpush1.msra.mxu0 0.0
        %976 = vmatprep.subr.mxu0 0.0
        %977 = vmatpush1.msra.mxu0 0.0
        %978 = vmatprep.subr.mxu0 0.0
        %979 = vmatpush1.msra.mxu0 0.0
        %980 = vmatprep.subr.mxu0 0.0
        %981 = vmatpush1.msra.mxu0 0.0
        %982 = vmatprep.mubr.f32.mxu0 0.0
        %983 = vmatmul.mubr.f32.gmra.mrb[0].mxu0 %v916
        %v984 = vpop.f32.mrb[0].mxu0
        %v985 = vadd.f32 0.0, %v984
        %v986 = vpop.f32.mrb[0].mxu0
        %987 = vdwg.mxu0
        %v988 = vadd.f32 %v914, %v985
        %v989 = vld [vmem:[%s1] sm:$0xf]
        %v990 = vld [vmem:[%s2] sm:$0x1]
        %v992 = vlaneseq
        %v993 = vshrl.u32 %v992, 7
        %v994 = vsub.s32 0, %v993
        %v995 = vrot.slane %v990, %v994
        %v998 = vsel %vm440, %v681, 0
        %v1001 = vsel %vm440, %v682, 0
        %v1004 = vsel %vm440, %v683, 0
        %v1007 = vsel %vm440, %v684, 0
        %v1010 = vsel %vm440, %v685, 0
        %v1013 = vsel %vm440, %v686, 0
        %v1016 = vsel %vm440, %v687, 0
        %v1019 = vsel %vm440, %v688, 0
        %v1022 = vsel %vm440, %v689, 0
        %v1025 = vsel %vm440, %v690, 0
        %v1028 = vsel %vm440, %v691, 0
        %v1031 = vsel %vm440, %v692, 0
        %v1034 = vsel %vm440, %v693, 0
        %v1037 = vsel %vm440, %v694, 0
        %v1040 = vsel %vm440, %v695, 0
        %v1043 = vsel %vm440, %v696, 0
        %vm1045 = vcmask 1043456
        %v1047 = vsel %vm1045, %v989, 0
        %1049 = vmatprep.subr.bf16.mxu0 0
        %1050 = vmatpush1.bf16.msra.mxu0 %v1047
        %1051 = vmatprep.subr.bf16.mxu0 0
        %1052 = vmatpush1.bf16.msra.mxu0 0
        %1053 = vmatprep.subr.bf16.mxu0 0
        %1054 = vmatpush1.bf16.msra.mxu0 0
        %1055 = vmatprep.subr.bf16.mxu0 0
        %1056 = vmatpush1.bf16.msra.mxu0 0
        %1057 = vmatprep.subr.bf16.mxu0 0
        %1058 = vmatpush1.bf16.msra.mxu0 0
        %1059 = vmatprep.subr.bf16.mxu0 0
        %1060 = vmatpush1.bf16.msra.mxu0 0
        %1061 = vmatprep.subr.bf16.mxu0 0
        %1062 = vmatpush1.bf16.msra.mxu0 0
        %1063 = vmatprep.subr.bf16.mxu0 0
        %1064 = vmatpush1.bf16.msra.mxu0 0
        %1065 = vmatprep.subr.bf16.mxu0 0
        %1066 = vmatpush1.bf16.msra.mxu0 0
        %1067 = vmatprep.subr.bf16.mxu0 0
        %1068 = vmatpush1.bf16.msra.mxu0 0
        %1069 = vmatprep.subr.bf16.mxu0 0
        %1070 = vmatpush1.bf16.msra.mxu0 0
        %1071 = vmatprep.subr.bf16.mxu0 0
        %1072 = vmatpush1.bf16.msra.mxu0 0
        %1073 = vmatprep.subr.bf16.mxu0 0
        %1074 = vmatpush1.bf16.msra.mxu0 0
        %1075 = vmatprep.subr.bf16.mxu0 0
        %1076 = vmatpush1.bf16.msra.mxu0 0
        %1077 = vmatprep.subr.bf16.mxu0 0
        %1078 = vmatpush1.bf16.msra.mxu0 0
        %1079 = vmatprep.subr.bf16.mxu0 0
        %1080 = vmatpush1.bf16.msra.mxu0 0
        %1081 = vmatprep.mubr.bf16.mxu0 0
        %1082 = vmatmul.mubr.bf16.gmra.mrb[0].mxu0 %v998
        %v1083 = vpop.f32.mrb[0].mxu0
        %v1084 = vadd.f32 %v995, %v1083
        %v1085 = vpop.f32.mrb[0].mxu0
        %v1086 = vpop.f32.mrb[0].mxu0
        %v1087 = vadd.f32 %v995, %v1086
        %v1088 = vpop.f32.mrb[0].mxu0
        %1089 = vmatprep.mubr.bf16.mxu0 0
        %1090 = vmatmul.mubr.bf16.gmra.mrb[0].mxu0 %v1001
        %v1091 = vpop.f32.mrb[0].mxu0
        %v1092 = vadd.f32 %v995, %v1091
        %v1093 = vpop.f32.mrb[0].mxu0
        %v1094 = vpop.f32.mrb[0].mxu0
        %v1095 = vadd.f32 %v995, %v1094
        %v1096 = vpop.f32.mrb[0].mxu0
        %1097 = vmatprep.mubr.bf16.mxu0 0
        %1098 = vmatmul.mubr.bf16.gmra.mrb[0].mxu0 %v1004
        %v1099 = vpop.f32.mrb[0].mxu0
        %v1100 = vadd.f32 %v995, %v1099
        %v1101 = vpop.f32.mrb[0].mxu0
        %v1102 = vpop.f32.mrb[0].mxu0
        %v1103 = vadd.f32 %v995, %v1102
        %v1104 = vpop.f32.mrb[0].mxu0
        %1105 = vmatprep.mubr.bf16.mxu0 0
        %1106 = vmatmul.mubr.bf16.gmra.mrb[0].mxu0 %v1007
        %v1107 = vpop.f32.mrb[0].mxu0
        %v1108 = vadd.f32 %v995, %v1107
        %v1109 = vpop.f32.mrb[0].mxu0
        %v1110 = vpop.f32.mrb[0].mxu0
        %v1111 = vadd.f32 %v995, %v1110
        %v1112 = vpop.f32.mrb[0].mxu0
        %1113 = vmatprep.mubr.bf16.mxu0 0
        %1114 = vmatmul.mubr.bf16.gmra.mrb[0].mxu0 %v1010
        %v1115 = vpop.f32.mrb[0].mxu0
        %v1116 = vadd.f32 %v995, %v1115
        %v1117 = vpop.f32.mrb[0].mxu0
        %v1118 = vpop.f32.mrb[0].mxu0
        %v1119 = vadd.f32 %v995, %v1118
        %v1120 = vpop.f32.mrb[0].mxu0
        %1121 = vmatprep.mubr.bf16.mxu0 0
        %1122 = vmatmul.mubr.bf16.gmra.mrb[0].mxu0 %v1013
        %v1123 = vpop.f32.mrb[0].mxu0
        %v1124 = vadd.f32 %v995, %v1123
        %v1125 = vpop.f32.mrb[0].mxu0
        %v1126 = vpop.f32.mrb[0].mxu0
        %v1127 = vadd.f32 %v995, %v1126
        %v1128 = vpop.f32.mrb[0].mxu0
        %1129 = vmatprep.mubr.bf16.mxu0 0
        %1130 = vmatmul.mubr.bf16.gmra.mrb[0].mxu0 %v1016
        %v1131 = vpop.f32.mrb[0].mxu0
        %v1132 = vadd.f32 %v995, %v1131
        %v1133 = vpop.f32.mrb[0].mxu0
        %v1134 = vpop.f32.mrb[0].mxu0
        %v1135 = vadd.f32 %v995, %v1134
        %v1136 = vpop.f32.mrb[0].mxu0
        %1137 = vmatprep.mubr.bf16.mxu0 0
        %1138 = vmatmul.mubr.bf16.gmra.mrb[0].mxu0 %v1019
        %v1139 = vpop.f32.mrb[0].mxu0
        %v1140 = vadd.f32 %v995, %v1139
        %v1141 = vpop.f32.mrb[0].mxu0
        %v1142 = vpop.f32.mrb[0].mxu0
        %v1143 = vadd.f32 %v995, %v1142
        %v1144 = vpop.f32.mrb[0].mxu0
        %1145 = vmatprep.mubr.bf16.mxu0 0
        %1146 = vmatmul.mubr.bf16.gmra.mrb[0].mxu0 %v1022
        %v1147 = vpop.f32.mrb[0].mxu0
        %v1148 = vadd.f32 %v995, %v1147
        %v1149 = vpop.f32.mrb[0].mxu0
        %v1150 = vpop.f32.mrb[0].mxu0
        %v1151 = vadd.f32 %v995, %v1150
        %v1152 = vpop.f32.mrb[0].mxu0
        %1153 = vmatprep.mubr.bf16.mxu0 0
        %1154 = vmatmul.mubr.bf16.gmra.mrb[0].mxu0 %v1025
        %v1155 = vpop.f32.mrb[0].mxu0
        %v1156 = vadd.f32 %v995, %v1155
        %v1157 = vpop.f32.mrb[0].mxu0
        %v1158 = vpop.f32.mrb[0].mxu0
        %v1159 = vadd.f32 %v995, %v1158
        %v1160 = vpop.f32.mrb[0].mxu0
        %1161 = vmatprep.mubr.bf16.mxu0 0
        %1162 = vmatmul.mubr.bf16.gmra.mrb[0].mxu0 %v1028
        %v1163 = vpop.f32.mrb[0].mxu0
        %v1164 = vadd.f32 %v995, %v1163
        %v1165 = vpop.f32.mrb[0].mxu0
        %v1166 = vpop.f32.mrb[0].mxu0
        %v1167 = vadd.f32 %v995, %v1166
        %v1168 = vpop.f32.mrb[0].mxu0
        %1169 = vmatprep.mubr.bf16.mxu0 0
        %1170 = vmatmul.mubr.bf16.gmra.mrb[0].mxu0 %v1031
        %v1171 = vpop.f32.mrb[0].mxu0
        %v1172 = vadd.f32 %v995, %v1171
        %v1173 = vpop.f32.mrb[0].mxu0
        %v1174 = vpop.f32.mrb[0].mxu0
        %v1175 = vadd.f32 %v995, %v1174
        %v1176 = vpop.f32.mrb[0].mxu0
        %1177 = vmatprep.mubr.bf16.mxu0 0
        %1178 = vmatmul.mubr.bf16.gmra.mrb[0].mxu0 %v1034
        %v1179 = vpop.f32.mrb[0].mxu0
        %v1180 = vadd.f32 %v995, %v1179
        %v1181 = vpop.f32.mrb[0].mxu0
        %v1182 = vpop.f32.mrb[0].mxu0
        %v1183 = vadd.f32 %v995, %v1182
        %v1184 = vpop.f32.mrb[0].mxu0
        %1185 = vmatprep.mubr.bf16.mxu0 0
        %1186 = vmatmul.mubr.bf16.gmra.mrb[0].mxu0 %v1037
        %v1187 = vpop.f32.mrb[0].mxu0
        %v1188 = vadd.f32 %v995, %v1187
        %v1189 = vpop.f32.mrb[0].mxu0
        %v1190 = vpop.f32.mrb[0].mxu0
        %v1191 = vadd.f32 %v995, %v1190
        %v1192 = vpop.f32.mrb[0].mxu0
        %1193 = vmatprep.mubr.bf16.mxu0 0
        %1194 = vmatmul.mubr.bf16.gmra.mrb[0].mxu0 %v1040
        %v1195 = vpop.f32.mrb[0].mxu0
        %v1196 = vadd.f32 %v995, %v1195
        %v1197 = vpop.f32.mrb[0].mxu0
        %v1198 = vpop.f32.mrb[0].mxu0
        %v1199 = vadd.f32 %v995, %v1198
        %v1200 = vpop.f32.mrb[0].mxu0
        %1201 = vmatprep.mubr.bf16.mxu0 0
        %1202 = vmatmul.mubr.bf16.gmra.mrb[0].mxu0 %v1043
        %v1203 = vpop.f32.mrb[0].mxu0
        %v1204 = vadd.f32 %v995, %v1203
        %v1205 = vpop.f32.mrb[0].mxu0
        %v1206 = vpop.f32.mrb[0].mxu0
        %v1207 = vadd.f32 %v995, %v1206
        %v1208 = vpop.f32.mrb[0].mxu0
        %1209 = vdwg.mxu0
        %v1210 = vmax.f32 %v1084, 0.0
        %v1211 = vmax.f32 %v1087, 0.0
        %v1212 = vmax.f32 %v1092, 0.0
        %v1213 = vmax.f32 %v1095, 0.0
        %v1214 = vmax.f32 %v1100, 0.0
        %v1215 = vmax.f32 %v1103, 0.0
        %v1216 = vmax.f32 %v1108, 0.0
        %v1217 = vmax.f32 %v1111, 0.0
        %v1218 = vmax.f32 %v1116, 0.0
        %v1219 = vmax.f32 %v1119, 0.0
        %v1220 = vmax.f32 %v1124, 0.0
        %v1221 = vmax.f32 %v1127, 0.0
        %v1222 = vmax.f32 %v1132, 0.0
        %v1223 = vmax.f32 %v1135, 0.0
        %v1224 = vmax.f32 %v1140, 0.0
        %v1225 = vmax.f32 %v1143, 0.0
        %v1226 = vmax.f32 %v1148, 0.0
        %v1227 = vmax.f32 %v1151, 0.0
        %v1228 = vmax.f32 %v1156, 0.0
        %v1229 = vmax.f32 %v1159, 0.0
        %v1230 = vmax.f32 %v1164, 0.0
        %v1231 = vmax.f32 %v1167, 0.0
        %v1232 = vmax.f32 %v1172, 0.0
        %v1233 = vmax.f32 %v1175, 0.0
        %v1234 = vmax.f32 %v1180, 0.0
        %v1235 = vmax.f32 %v1183, 0.0
        %v1236 = vmax.f32 %v1188, 0.0
        %v1237 = vmax.f32 %v1191, 0.0
        %v1238 = vmax.f32 %v1196, 0.0
        %v1239 = vmax.f32 %v1199, 0.0
        %v1240 = vmax.f32 %v1204, 0.0
        %v1241 = vmax.f32 %v1207, 0.0
        %v1243 = vsel %vm440, %v1210, 0
        %v1246 = vsel %vm440, %v1211, 0
        %v1249 = vsel %vm440, %v1212, 0
        %v1252 = vsel %vm440, %v1213, 0
        %v1255 = vsel %vm440, %v1214, 0
        %v1258 = vsel %vm440, %v1215, 0
        %v1261 = vsel %vm440, %v1216, 0
        %v1264 = vsel %vm440, %v1217, 0
        %v1267 = vsel %vm440, %v1218, 0
        %v1270 = vsel %vm440, %v1219, 0
        %v1273 = vsel %vm440, %v1220, 0
        %v1276 = vsel %vm440, %v1221, 0
        %v1279 = vsel %vm440, %v1222, 0
        %v1282 = vsel %vm440, %v1223, 0
        %v1285 = vsel %vm440, %v1224, 0
        %v1288 = vsel %vm440, %v1225, 0
        %v1291 = vsel %vm440, %v1226, 0
        %v1294 = vsel %vm440, %v1227, 0
        %v1297 = vsel %vm440, %v1228, 0
        %v1300 = vsel %vm440, %v1229, 0
        %v1303 = vsel %vm440, %v1230, 0
        %v1306 = vsel %vm440, %v1231, 0
        %v1309 = vsel %vm440, %v1232, 0
        %v1312 = vsel %vm440, %v1233, 0
        %v1315 = vsel %vm440, %v1234, 0
        %v1318 = vsel %vm440, %v1235, 0
        %v1321 = vsel %vm440, %v1236, 0
        %v1324 = vsel %vm440, %v1237, 0
        %v1327 = vsel %vm440, %v1238, 0
        %v1330 = vsel %vm440, %v1239, 0
        %v1333 = vsel %vm440, %v1240, 0
        %v1336 = vsel %vm440, %v1241, 0
        %1338 = vmatprep.subr.mxu0 0.0
        %1339 = vmatpush1.msra.mxu0 %v730
        %1340 = vmatprep.subr.mxu0 0.0
        %1341 = vmatpush1.msra.mxu0 0.0
        %1342 = vmatprep.subr.mxu0 0.0
        %1343 = vmatpush1.msra.mxu0 0.0
        %1344 = vmatprep.subr.mxu0 0.0
        %1345 = vmatpush1.msra.mxu0 0.0
        %1346 = vmatprep.subr.mxu0 0.0
        %1347 = vmatpush1.msra.mxu0 0.0
        %1348 = vmatprep.subr.mxu0 0.0
        %1349 = vmatpush1.msra.mxu0 0.0
        %1350 = vmatprep.subr.mxu0 0.0
        %1351 = vmatpush1.msra.mxu0 0.0
        %1352 = vmatprep.subr.mxu0 0.0
        %1353 = vmatpush1.msra.mxu0 0.0
        %1354 = vmatprep.subr.mxu0 0.0
        %1355 = vmatpush1.msra.mxu0 0.0
        %1356 = vmatprep.subr.mxu0 0.0
        %1357 = vmatpush1.msra.mxu0 0.0
        %1358 = vmatprep.subr.mxu0 0.0
        %1359 = vmatpush1.msra.mxu0 0.0
        %1360 = vmatprep.subr.mxu0 0.0
        %1361 = vmatpush1.msra.mxu0 0.0
        %1362 = vmatprep.subr.mxu0 0.0
        %1363 = vmatpush1.msra.mxu0 0.0
        %1364 = vmatprep.subr.mxu0 0.0
        %1365 = vmatpush1.msra.mxu0 0.0
        %1366 = vmatprep.subr.mxu0 0.0
        %1367 = vmatpush1.msra.mxu0 0.0
        %1368 = vmatprep.subr.mxu0 0.0
        %1369 = vmatpush1.msra.mxu0 0.0
        %1370 = vmatprep.subr.mxu0 0.0
        %1371 = vmatpush1.msra.mxu0 0.0
        %1372 = vmatprep.subr.mxu0 0.0
        %1373 = vmatpush1.msra.mxu0 0.0
        %1374 = vmatprep.subr.mxu0 0.0
        %1375 = vmatpush1.msra.mxu0 0.0
        %1376 = vmatprep.subr.mxu0 0.0
        %1377 = vmatpush1.msra.mxu0 0.0
        %1378 = vmatprep.subr.mxu0 0.0
        %1379 = vmatpush1.msra.mxu0 0.0
        %1380 = vmatprep.subr.mxu0 0.0
        %1381 = vmatpush1.msra.mxu0 0.0
        %1382 = vmatprep.subr.mxu0 0.0
        %1383 = vmatpush1.msra.mxu0 0.0
        %1384 = vmatprep.subr.mxu0 0.0
        %1385 = vmatpush1.msra.mxu0 0.0
        %1386 = vmatprep.subr.mxu0 0.0
        %1387 = vmatpush1.msra.mxu0 0.0
        %1388 = vmatprep.subr.mxu0 0.0
        %1389 = vmatpush1.msra.mxu0 0.0
        %1390 = vmatprep.subr.mxu0 0.0
        %1391 = vmatpush1.msra.mxu0 0.0
        %1392 = vmatprep.subr.mxu0 0.0
        %1393 = vmatpush1.msra.mxu0 0.0
        %1394 = vmatprep.subr.mxu0 0.0
        %1395 = vmatpush1.msra.mxu0 0.0
        %1396 = vmatprep.subr.mxu0 0.0
        %1397 = vmatpush1.msra.mxu0 0.0
        %1398 = vmatprep.subr.mxu0 0.0
        %1399 = vmatpush1.msra.mxu0 0.0
        %1400 = vmatprep.subr.mxu0 0.0
        %1401 = vmatpush1.msra.mxu0 0.0
        %1402 = vmatprep.mubr.f32.mxu0 0.0
        %1403 = vmatmul.mubr.f32.gmra.mrb[0].mxu0 %v1243
        %v1404 = vpop.f32.mrb[0].mxu0
        %v1405 = vadd.f32 0.0, %v1404
        %v1406 = vpop.f32.mrb[0].mxu0
        %1407 = vmatprep.mubr.f32.mxu0 0.0
        %1408 = vmatmul.mubr.f32.gmra.mrb[0].mxu0 %v1246
        %v1409 = vpop.f32.mrb[0].mxu0
        %v1410 = vadd.f32 0.0, %v1409
        %v1411 = vpop.f32.mrb[0].mxu0
        %1412 = vmatprep.mubr.f32.mxu0 0.0
        %1413 = vmatmul.mubr.f32.gmra.mrb[0].mxu0 %v1249
        %v1414 = vpop.f32.mrb[0].mxu0
        %v1415 = vadd.f32 0.0, %v1414
        %v1416 = vpop.f32.mrb[0].mxu0
        %1417 = vmatprep.mubr.f32.mxu0 0.0
        %1418 = vmatmul.mubr.f32.gmra.mrb[0].mxu0 %v1252
        %v1419 = vpop.f32.mrb[0].mxu0
        %v1420 = vadd.f32 0.0, %v1419
        %v1421 = vpop.f32.mrb[0].mxu0
        %1422 = vmatprep.mubr.f32.mxu0 0.0
        %1423 = vmatmul.mubr.f32.gmra.mrb[0].mxu0 %v1255
        %v1424 = vpop.f32.mrb[0].mxu0
        %v1425 = vadd.f32 0.0, %v1424
        %v1426 = vpop.f32.mrb[0].mxu0
        %1427 = vmatprep.mubr.f32.mxu0 0.0
        %1428 = vmatmul.mubr.f32.gmra.mrb[0].mxu0 %v1258
        %v1429 = vpop.f32.mrb[0].mxu0
        %v1430 = vadd.f32 0.0, %v1429
        %v1431 = vpop.f32.mrb[0].mxu0
        %1432 = vmatprep.mubr.f32.mxu0 0.0
        %1433 = vmatmul.mubr.f32.gmra.mrb[0].mxu0 %v1261
        %v1434 = vpop.f32.mrb[0].mxu0
        %v1435 = vadd.f32 0.0, %v1434
        %v1436 = vpop.f32.mrb[0].mxu0
        %1437 = vmatprep.mubr.f32.mxu0 0.0
        %1438 = vmatmul.mubr.f32.gmra.mrb[0].mxu0 %v1264
        %v1439 = vpop.f32.mrb[0].mxu0
        %v1440 = vadd.f32 0.0, %v1439
        %v1441 = vpop.f32.mrb[0].mxu0
        %1442 = vmatprep.mubr.f32.mxu0 0.0
        %1443 = vmatmul.mubr.f32.gmra.mrb[0].mxu0 %v1267
        %v1444 = vpop.f32.mrb[0].mxu0
        %v1445 = vadd.f32 0.0, %v1444
        %v1446 = vpop.f32.mrb[0].mxu0
        %1447 = vmatprep.mubr.f32.mxu0 0.0
        %1448 = vmatmul.mubr.f32.gmra.mrb[0].mxu0 %v1270
        %v1449 = vpop.f32.mrb[0].mxu0
        %v1450 = vadd.f32 0.0, %v1449
        %v1451 = vpop.f32.mrb[0].mxu0
        %1452 = vmatprep.mubr.f32.mxu0 0.0
        %1453 = vmatmul.mubr.f32.gmra.mrb[0].mxu0 %v1273
        %v1454 = vpop.f32.mrb[0].mxu0
        %v1455 = vadd.f32 0.0, %v1454
        %v1456 = vpop.f32.mrb[0].mxu0
        %1457 = vmatprep.mubr.f32.mxu0 0.0
        %1458 = vmatmul.mubr.f32.gmra.mrb[0].mxu0 %v1276
        %v1459 = vpop.f32.mrb[0].mxu0
        %v1460 = vadd.f32 0.0, %v1459
        %v1461 = vpop.f32.mrb[0].mxu0
        %1462 = vmatprep.mubr.f32.mxu0 0.0
        %1463 = vmatmul.mubr.f32.gmra.mrb[0].mxu0 %v1279
        %v1464 = vpop.f32.mrb[0].mxu0
        %v1465 = vadd.f32 0.0, %v1464
        %v1466 = vpop.f32.mrb[0].mxu0
        %1467 = vmatprep.mubr.f32.mxu0 0.0
        %1468 = vmatmul.mubr.f32.gmra.mrb[0].mxu0 %v1282
        %v1469 = vpop.f32.mrb[0].mxu0
        %v1470 = vadd.f32 0.0, %v1469
        %v1471 = vpop.f32.mrb[0].mxu0
        %1472 = vmatprep.mubr.f32.mxu0 0.0
        %1473 = vmatmul.mubr.f32.gmra.mrb[0].mxu0 %v1285
        %v1474 = vpop.f32.mrb[0].mxu0
        %v1475 = vadd.f32 0.0, %v1474
        %v1476 = vpop.f32.mrb[0].mxu0
        %1477 = vmatprep.mubr.f32.mxu0 0.0
        %1478 = vmatmul.mubr.f32.gmra.mrb[0].mxu0 %v1288
        %v1479 = vpop.f32.mrb[0].mxu0
        %v1480 = vadd.f32 0.0, %v1479
        %v1481 = vpop.f32.mrb[0].mxu0
        %1482 = vmatprep.mubr.f32.mxu0 0.0
        %1483 = vmatmul.mubr.f32.gmra.mrb[0].mxu0 %v1291
        %v1484 = vpop.f32.mrb[0].mxu0
        %v1485 = vadd.f32 0.0, %v1484
        %v1486 = vpop.f32.mrb[0].mxu0
        %1487 = vmatprep.mubr.f32.mxu0 0.0
        %1488 = vmatmul.mubr.f32.gmra.mrb[0].mxu0 %v1294
        %v1489 = vpop.f32.mrb[0].mxu0
        %v1490 = vadd.f32 0.0, %v1489
        %v1491 = vpop.f32.mrb[0].mxu0
        %1492 = vmatprep.mubr.f32.mxu0 0.0
        %1493 = vmatmul.mubr.f32.gmra.mrb[0].mxu0 %v1297
        %v1494 = vpop.f32.mrb[0].mxu0
        %v1495 = vadd.f32 0.0, %v1494
        %v1496 = vpop.f32.mrb[0].mxu0
        %1497 = vmatprep.mubr.f32.mxu0 0.0
        %1498 = vmatmul.mubr.f32.gmra.mrb[0].mxu0 %v1300
        %v1499 = vpop.f32.mrb[0].mxu0
        %v1500 = vadd.f32 0.0, %v1499
        %v1501 = vpop.f32.mrb[0].mxu0
        %1502 = vmatprep.mubr.f32.mxu0 0.0
        %1503 = vmatmul.mubr.f32.gmra.mrb[0].mxu0 %v1303
        %v1504 = vpop.f32.mrb[0].mxu0
        %v1505 = vadd.f32 0.0, %v1504
        %v1506 = vpop.f32.mrb[0].mxu0
        %1507 = vmatprep.mubr.f32.mxu0 0.0
        %1508 = vmatmul.mubr.f32.gmra.mrb[0].mxu0 %v1306
        %v1509 = vpop.f32.mrb[0].mxu0
        %v1510 = vadd.f32 0.0, %v1509
        %v1511 = vpop.f32.mrb[0].mxu0
        %1512 = vmatprep.mubr.f32.mxu0 0.0
        %1513 = vmatmul.mubr.f32.gmra.mrb[0].mxu0 %v1309
        %v1514 = vpop.f32.mrb[0].mxu0
        %v1515 = vadd.f32 0.0, %v1514
        %v1516 = vpop.f32.mrb[0].mxu0
        %1517 = vmatprep.mubr.f32.mxu0 0.0
        %1518 = vmatmul.mubr.f32.gmra.mrb[0].mxu0 %v1312
        %v1519 = vpop.f32.mrb[0].mxu0
        %v1520 = vadd.f32 0.0, %v1519
        %v1521 = vpop.f32.mrb[0].mxu0
        %1522 = vmatprep.mubr.f32.mxu0 0.0
        %1523 = vmatmul.mubr.f32.gmra.mrb[0].mxu0 %v1315
        %v1524 = vpop.f32.mrb[0].mxu0
        %v1525 = vadd.f32 0.0, %v1524
        %v1526 = vpop.f32.mrb[0].mxu0
        %1527 = vmatprep.mubr.f32.mxu0 0.0
        %1528 = vmatmul.mubr.f32.gmra.mrb[0].mxu0 %v1318
        %v1529 = vpop.f32.mrb[0].mxu0
        %v1530 = vadd.f32 0.0, %v1529
        %v1531 = vpop.f32.mrb[0].mxu0
        %1532 = vmatprep.mubr.f32.mxu0 0.0
        %1533 = vmatmul.mubr.f32.gmra.mrb[0].mxu0 %v1321
        %v1534 = vpop.f32.mrb[0].mxu0
        %v1535 = vadd.f32 0.0, %v1534
        %v1536 = vpop.f32.mrb[0].mxu0
        %1537 = vmatprep.mubr.f32.mxu0 0.0
        %1538 = vmatmul.mubr.f32.gmra.mrb[0].mxu0 %v1324
        %v1539 = vpop.f32.mrb[0].mxu0
        %v1540 = vadd.f32 0.0, %v1539
        %v1541 = vpop.f32.mrb[0].mxu0
        %1542 = vmatprep.mubr.f32.mxu0 0.0
        %1543 = vmatmul.mubr.f32.gmra.mrb[0].mxu0 %v1327
        %v1544 = vpop.f32.mrb[0].mxu0
        %v1545 = vadd.f32 0.0, %v1544
        %v1546 = vpop.f32.mrb[0].mxu0
        %1547 = vmatprep.mubr.f32.mxu0 0.0
        %1548 = vmatmul.mubr.f32.gmra.mrb[0].mxu0 %v1330
        %v1549 = vpop.f32.mrb[0].mxu0
        %v1550 = vadd.f32 0.0, %v1549
        %v1551 = vpop.f32.mrb[0].mxu0
        %1552 = vmatprep.mubr.f32.mxu0 0.0
        %1553 = vmatmul.mubr.f32.gmra.mrb[0].mxu0 %v1333
        %v1554 = vpop.f32.mrb[0].mxu0
        %v1555 = vadd.f32 0.0, %v1554
        %v1556 = vpop.f32.mrb[0].mxu0
        %1557 = vmatprep.mubr.f32.mxu0 0.0
        %1558 = vmatmul.mubr.f32.gmra.mrb[0].mxu0 %v1336
        %v1559 = vpop.f32.mrb[0].mxu0
        %v1560 = vadd.f32 0.0, %v1559
        %v1561 = vpop.f32.mrb[0].mxu0
        %1562 = vdwg.mxu0
        %v1564 = vlaneseq
        %v1565 = vshrl.u32 %v1564, 7
        %v1566 = vsub.s32 0, %v1565
        %v1567 = vrot.slane %v988, %v1566
        %v1569 = vadd.f32 %v1567, %v1405
        %v1570 = vadd.f32 %v1567, %v1410
        %v1571 = vadd.f32 %v1567, %v1415
        %v1572 = vadd.f32 %v1567, %v1420
        %v1573 = vadd.f32 %v1567, %v1425
        %v1574 = vadd.f32 %v1567, %v1430
        %v1575 = vadd.f32 %v1567, %v1435
        %v1576 = vadd.f32 %v1567, %v1440
        %v1577 = vadd.f32 %v1567, %v1445
        %v1578 = vadd.f32 %v1567, %v1450
        %v1579 = vadd.f32 %v1567, %v1455
        %v1580 = vadd.f32 %v1567, %v1460
        %v1581 = vadd.f32 %v1567, %v1465
        %v1582 = vadd.f32 %v1567, %v1470
        %v1583 = vadd.f32 %v1567, %v1475
        %v1584 = vadd.f32 %v1567, %v1480
        %v1585 = vadd.f32 %v1567, %v1485
        %v1586 = vadd.f32 %v1567, %v1490
        %v1587 = vadd.f32 %v1567, %v1495
        %v1588 = vadd.f32 %v1567, %v1500
        %v1589 = vadd.f32 %v1567, %v1505
        %v1590 = vadd.f32 %v1567, %v1510
        %v1591 = vadd.f32 %v1567, %v1515
        %v1592 = vadd.f32 %v1567, %v1520
        %v1593 = vadd.f32 %v1567, %v1525
        %v1594 = vadd.f32 %v1567, %v1530
        %v1595 = vadd.f32 %v1567, %v1535
        %v1596 = vadd.f32 %v1567, %v1540
        %v1597 = vadd.f32 %v1567, %v1545
        %v1598 = vadd.f32 %v1567, %v1550
        %v1599 = vadd.f32 %v1567, %v1555
        %v1600 = vadd.f32 %v1567, %v1560
        %1601 = vst [vmem:[%s433] sm:$0xff] %v1569
        %1602 = vst [vmem:[%s433 + $0x8] sm:$0xff] %v1570
        %1603 = vst [vmem:[%s433 + $0x10] sm:$0xff] %v1571
        %1604 = vst [vmem:[%s433 + $0x18] sm:$0xff] %v1572
        %1605 = vst [vmem:[%s433 + $0x20] sm:$0xff] %v1573
        %1606 = vst [vmem:[%s433 + $0x28] sm:$0xff] %v1574
        %1607 = vst [vmem:[%s433 + $0x30] sm:$0xff] %v1575
        %1608 = vst [vmem:[%s433 + $0x38] sm:$0xff] %v1576
        %1609 = vst [vmem:[%s433 + $0x40] sm:$0xff] %v1577
        %1610 = vst [vmem:[%s433 + $0x48] sm:$0xff] %v1578
        %1611 = vst [vmem:[%s433 + $0x50] sm:$0xff] %v1579
        %1612 = vst [vmem:[%s433 + $0x58] sm:$0xff] %v1580
        %1613 = vst [vmem:[%s433 + $0x60] sm:$0xff] %v1581
        %1614 = vst [vmem:[%s433 + $0x68] sm:$0xff] %v1582
        %1615 = vst [vmem:[%s433 + $0x70] sm:$0xff] %v1583
        %1616 = vst [vmem:[%s433 + $0x78] sm:$0xff] %v1584
        %1617 = vst [vmem:[%s433 + $0x80] sm:$0xff] %v1585
        %1618 = vst [vmem:[%s433 + $0x88] sm:$0xff] %v1586
        %1619 = vst [vmem:[%s433 + $0x90] sm:$0xff] %v1587
        %1620 = vst [vmem:[%s433 + $0x98] sm:$0xff] %v1588
        %1621 = vst [vmem:[%s433 + $0xa0] sm:$0xff] %v1589
        %1622 = vst [vmem:[%s433 + $0xa8] sm:$0xff] %v1590
        %1623 = vst [vmem:[%s433 + $0xb0] sm:$0xff] %v1591
        %1624 = vst [vmem:[%s433 + $0xb8] sm:$0xff] %v1592
        %1625 = vst [vmem:[%s433 + $0xc0] sm:$0xff] %v1593
        %1626 = vst [vmem:[%s433 + $0xc8] sm:$0xff] %v1594
        %1627 = vst [vmem:[%s433 + $0xd0] sm:$0xff] %v1595
        %1628 = vst [vmem:[%s433 + $0xd8] sm:$0xff] %v1596
        %1629 = vst [vmem:[%s433 + $0xe0] sm:$0xff] %v1597
        %1630 = vst [vmem:[%s433 + $0xe8] sm:$0xff] %v1598
        %1631 = vst [vmem:[%s433 + $0xf0] sm:$0xff] %v1599
        %1632 = vst [vmem:[%s433 + $0xf8] sm:$0xff] %v1600
        %v1633 = vld [vmem:[%s433] sm:$0xff]
        %v1634 = vld [vmem:[%s433 + $0x8] sm:$0xff]
        %v1635 = vld [vmem:[%s433 + $0x10] sm:$0xff]
        %v1636 = vld [vmem:[%s433 + $0x18] sm:$0xff]
        %v1637 = vld [vmem:[%s433 + $0x20] sm:$0xff]
        %v1638 = vld [vmem:[%s433 + $0x28] sm:$0xff]
        %v1639 = vld [vmem:[%s433 + $0x30] sm:$0xff]
        %v1640 = vld [vmem:[%s433 + $0x38] sm:$0xff]
        %v1641 = vld [vmem:[%s433 + $0x40] sm:$0xff]
        %v1642 = vld [vmem:[%s433 + $0x48] sm:$0xff]
        %v1643 = vld [vmem:[%s433 + $0x50] sm:$0xff]
        %v1644 = vld [vmem:[%s433 + $0x58] sm:$0xff]
        %v1645 = vld [vmem:[%s433 + $0x60] sm:$0xff]
        %v1646 = vld [vmem:[%s433 + $0x68] sm:$0xff]
        %v1647 = vld [vmem:[%s433 + $0x70] sm:$0xff]
        %v1648 = vld [vmem:[%s433 + $0x78] sm:$0xff]
        %v1649 = vld [vmem:[%s433 + $0x80] sm:$0xff]
        %v1650 = vld [vmem:[%s433 + $0x88] sm:$0xff]
        %v1651 = vld [vmem:[%s433 + $0x90] sm:$0xff]
        %v1652 = vld [vmem:[%s433 + $0x98] sm:$0xff]
        %v1653 = vld [vmem:[%s433 + $0xa0] sm:$0xff]
        %v1654 = vld [vmem:[%s433 + $0xa8] sm:$0xff]
        %v1655 = vld [vmem:[%s433 + $0xb0] sm:$0xff]
        %v1656 = vld [vmem:[%s433 + $0xb8] sm:$0xff]
        %v1657 = vld [vmem:[%s433 + $0xc0] sm:$0xff]
        %v1658 = vld [vmem:[%s433 + $0xc8] sm:$0xff]
        %v1659 = vld [vmem:[%s433 + $0xd0] sm:$0xff]
        %v1660 = vld [vmem:[%s433 + $0xd8] sm:$0xff]
        %v1661 = vld [vmem:[%s433 + $0xe0] sm:$0xff]
        %v1662 = vld [vmem:[%s433 + $0xe8] sm:$0xff]
        %v1663 = vld [vmem:[%s433 + $0xf0] sm:$0xff]
        %v1664 = vld [vmem:[%s433 + $0xf8] sm:$0xff]
        %s1665 = scalar_lea.vmem [#allocation2], 240
        %v1666 = vld [vmem:[%s1665] sm:$0xe0]
        %v1667 = vld [vmem:[%s1665 + $0x8] sm:$0x1f]
        %v1668 = vld [vmem:[%s1665 + $0x18] sm:$0xe0]
        %v1669 = vld [vmem:[%s1665 + $0x20] sm:$0x1f]
        %v1670 = vld [vmem:[%s1665 + $0x30] sm:$0xe0]
        %v1671 = vld [vmem:[%s1665 + $0x38] sm:$0x1f]
        %v1672 = vld [vmem:[%s1665 + $0x48] sm:$0xe0]
        %v1673 = vld [vmem:[%s1665 + $0x50] sm:$0x1f]
        %v1674 = vld [vmem:[%s1665 + $0x60] sm:$0xe0]
        %v1675 = vld [vmem:[%s1665 + $0x68] sm:$0x1f]
        %v1676 = vld [vmem:[%s1665 + $0x78] sm:$0xe0]
        %v1677 = vld [vmem:[%s1665 + $0x80] sm:$0x1f]
        %v1678 = vld [vmem:[%s1665 + $0x90] sm:$0xe0]
        %v1679 = vld [vmem:[%s1665 + $0x98] sm:$0x1f]
        %v1680 = vld [vmem:[%s1665 + $0xa8] sm:$0xe0]
        %v1681 = vld [vmem:[%s1665 + $0xb0] sm:$0x1f]
        %v1682 = vld [vmem:[%s1665 + $0xc0] sm:$0xe0]
        %v1683 = vld [vmem:[%s1665 + $0xc8] sm:$0x1f]
        %v1684 = vld [vmem:[%s1665 + $0xd8] sm:$0xe0]
        %v1685 = vld [vmem:[%s1665 + $0xe0] sm:$0x1f]
        %v1686 = vld [vmem:[%s1665 + $0xf0] sm:$0xe0]
        %v1687 = vld [vmem:[%s1665 + $0xf8] sm:$0x1f]
        %v1688 = vld [vmem:[%s1665 + $0x108] sm:$0xe0]
        %v1689 = vld [vmem:[%s1665 + $0x110] sm:$0x1f]
        %v1690 = vld [vmem:[%s1665 + $0x120] sm:$0xe0]
        %v1691 = vld [vmem:[%s1665 + $0x128] sm:$0x1f]
        %v1692 = vld [vmem:[%s1665 + $0x138] sm:$0xe0]
        %v1693 = vld [vmem:[%s1665 + $0x140] sm:$0x1f]
        %v1694 = vld [vmem:[%s1665 + $0x150] sm:$0xe0]
        %v1695 = vld [vmem:[%s1665 + $0x158] sm:$0x1f]
        %v1696 = vld [vmem:[%s1665 + $0x168] sm:$0xe0]
        %v1697 = vld [vmem:[%s1665 + $0x170] sm:$0x1f]
        %vm1730 = vcmask 1042432
        %v1731 = vrot.slane %v1666, 5
        %v1732 = vrot.slane %v1667, 5
        %v1733 = vsel %vm1730, %v1731, %v1732
        %v1734 = vrot.slane %v1668, 5
        %v1735 = vrot.slane %v1669, 5
        %v1736 = vsel %vm1730, %v1734, %v1735
        %v1737 = vrot.slane %v1670, 5
        %v1738 = vrot.slane %v1671, 5
        %v1739 = vsel %vm1730, %v1737, %v1738
        %v1740 = vrot.slane %v1672, 5
        %v1741 = vrot.slane %v1673, 5
        %v1742 = vsel %vm1730, %v1740, %v1741
        %v1743 = vrot.slane %v1674, 5
        %v1744 = vrot.slane %v1675, 5
        %v1745 = vsel %vm1730, %v1743, %v1744
        %v1746 = vrot.slane %v1676, 5
        %v1747 = vrot.slane %v1677, 5
        %v1748 = vsel %vm1730, %v1746, %v1747
        %v1749 = vrot.slane %v1678, 5
        %v1750 = vrot.slane %v1679, 5
        %v1751 = vsel %vm1730, %v1749, %v1750
        %v1752 = vrot.slane %v1680, 5
        %v1753 = vrot.slane %v1681, 5
        %v1754 = vsel %vm1730, %v1752, %v1753
        %v1755 = vrot.slane %v1682, 5
        %v1756 = vrot.slane %v1683, 5
        %v1757 = vsel %vm1730, %v1755, %v1756
        %v1758 = vrot.slane %v1684, 5
        %v1759 = vrot.slane %v1685, 5
        %v1760 = vsel %vm1730, %v1758, %v1759
        %v1761 = vrot.slane %v1686, 5
        %v1762 = vrot.slane %v1687, 5
        %v1763 = vsel %vm1730, %v1761, %v1762
        %v1764 = vrot.slane %v1688, 5
        %v1765 = vrot.slane %v1689, 5
        %v1766 = vsel %vm1730, %v1764, %v1765
        %v1767 = vrot.slane %v1690, 5
        %v1768 = vrot.slane %v1691, 5
        %v1769 = vsel %vm1730, %v1767, %v1768
        %v1770 = vrot.slane %v1692, 5
        %v1771 = vrot.slane %v1693, 5
        %v1772 = vsel %vm1730, %v1770, %v1771
        %v1773 = vrot.slane %v1694, 5
        %v1774 = vrot.slane %v1695, 5
        %v1775 = vsel %vm1730, %v1773, %v1774
        %v1776 = vrot.slane %v1696, 5
        %v1777 = vrot.slane %v1697, 5
        %v1778 = vsel %vm1730, %v1776, %v1777
        %v1779 = vld [vmem:[%s3] sm:$0xf]
        %v1780 = vld [vmem:[%s1665 + $0x8] sm:$0xff]
        %v1781 = vld [vmem:[%s1665 + $0x20] sm:$0xff]
        %v1782 = vld [vmem:[%s1665 + $0x38] sm:$0xff]
        %v1783 = vld [vmem:[%s1665 + $0x50] sm:$0xff]
        %v1784 = vld [vmem:[%s1665 + $0x68] sm:$0xff]
        %v1785 = vld [vmem:[%s1665 + $0x80] sm:$0xff]
        %v1786 = vld [vmem:[%s1665 + $0x98] sm:$0xff]
        %v1787 = vld [vmem:[%s1665 + $0xb0] sm:$0xff]
        %v1788 = vld [vmem:[%s1665 + $0xc8] sm:$0xff]
        %v1789 = vld [vmem:[%s1665 + $0xe0] sm:$0xff]
        %v1790 = vld [vmem:[%s1665 + $0xf8] sm:$0xff]
        %v1791 = vld [vmem:[%s1665 + $0x110] sm:$0xff]
        %v1792 = vld [vmem:[%s1665 + $0x128] sm:$0xff]
        %v1793 = vld [vmem:[%s1665 + $0x140] sm:$0xff]
        %v1794 = vld [vmem:[%s1665 + $0x158] sm:$0xff]
        %v1795 = vld [vmem:[%s1665 + $0x170] sm:$0xff]
        %v1796 = vld [vmem:[%s3 + $0x4] sm:$0xf]
        %v1798 = vsel %vm440, %v1780, 0
        %v1801 = vsel %vm440, %v1781, 0
        %v1804 = vsel %vm440, %v1782, 0
        %v1807 = vsel %vm440, %v1783, 0
        %v1810 = vsel %vm440, %v1784, 0
        %v1813 = vsel %vm440, %v1785, 0
        %v1816 = vsel %vm440, %v1786, 0
        %v1819 = vsel %vm440, %v1787, 0
        %v1822 = vsel %vm440, %v1788, 0
        %v1825 = vsel %vm440, %v1789, 0
        %v1828 = vsel %vm440, %v1790, 0
        %v1831 = vsel %vm440, %v1791, 0
        %v1834 = vsel %vm440, %v1792, 0
        %v1837 = vsel %vm440, %v1793, 0
        %v1840 = vsel %vm440, %v1794, 0
        %v1843 = vsel %vm440, %v1795, 0
        %v1846 = vsel %vm1045, %v1796, 0
        %1848 = vmatprep.subr.bf16.mxu0 0
        %1849 = vmatpush1.bf16.msra.mxu0 %v1846
        %1850 = vmatprep.subr.bf16.mxu0 0
        %1851 = vmatpush1.bf16.msra.mxu0 0
        %1852 = vmatprep.subr.bf16.mxu0 0
        %1853 = vmatpush1.bf16.msra.mxu0 0
        %1854 = vmatprep.subr.bf16.mxu0 0
        %1855 = vmatpush1.bf16.msra.mxu0 0
        %1856 = vmatprep.subr.bf16.mxu0 0
        %1857 = vmatpush1.bf16.msra.mxu0 0
        %1858 = vmatprep.subr.bf16.mxu0 0
        %1859 = vmatpush1.bf16.msra.mxu0 0
        %1860 = vmatprep.subr.bf16.mxu0 0
        %1861 = vmatpush1.bf16.msra.mxu0 0
        %1862 = vmatprep.subr.bf16.mxu0 0
        %1863 = vmatpush1.bf16.msra.mxu0 0
        %1864 = vmatprep.subr.bf16.mxu0 0
        %1865 = vmatpush1.bf16.msra.mxu0 0
        %1866 = vmatprep.subr.bf16.mxu0 0
        %1867 = vmatpush1.bf16.msra.mxu0 0
        %1868 = vmatprep.subr.bf16.mxu0 0
        %1869 = vmatpush1.bf16.msra.mxu0 0
        %1870 = vmatprep.subr.bf16.mxu0 0
        %1871 = vmatpush1.bf16.msra.mxu0 0
        %1872 = vmatprep.subr.bf16.mxu0 0
        %1873 = vmatpush1.bf16.msra.mxu0 0
        %1874 = vmatprep.subr.bf16.mxu0 0
        %1875 = vmatpush1.bf16.msra.mxu0 0
        %1876 = vmatprep.subr.bf16.mxu0 0
        %1877 = vmatpush1.bf16.msra.mxu0 0
        %1878 = vmatprep.subr.bf16.mxu0 0
        %1879 = vmatpush1.bf16.msra.mxu0 0
        %1880 = vmatprep.mubr.bf16.mxu0 0
        %1881 = vmatmul.mubr.bf16.gmra.mrb[0].mxu0 %v1798
        %v1882 = vpop.f32.mrb[0].mxu0
        %v1883 = vadd.f32 0.0, %v1882
        %v1884 = vpop.f32.mrb[0].mxu0
        %v1885 = vpop.f32.mrb[0].mxu0
        %v1886 = vadd.f32 0.0, %v1885
        %v1887 = vpop.f32.mrb[0].mxu0
        %1888 = vmatprep.mubr.bf16.mxu0 0
        %1889 = vmatmul.mubr.bf16.gmra.mrb[0].mxu0 %v1801
        %v1890 = vpop.f32.mrb[0].mxu0
        %v1891 = vadd.f32 0.0, %v1890
        %v1892 = vpop.f32.mrb[0].mxu0
        %v1893 = vpop.f32.mrb[0].mxu0
        %v1894 = vadd.f32 0.0, %v1893
        %v1895 = vpop.f32.mrb[0].mxu0
        %1896 = vmatprep.mubr.bf16.mxu0 0
        %1897 = vmatmul.mubr.bf16.gmra.mrb[0].mxu0 %v1804
        %v1898 = vpop.f32.mrb[0].mxu0
        %v1899 = vadd.f32 0.0, %v1898
        %v1900 = vpop.f32.mrb[0].mxu0
        %v1901 = vpop.f32.mrb[0].mxu0
        %v1902 = vadd.f32 0.0, %v1901
        %v1903 = vpop.f32.mrb[0].mxu0
        %1904 = vmatprep.mubr.bf16.mxu0 0
        %1905 = vmatmul.mubr.bf16.gmra.mrb[0].mxu0 %v1807
        %v1906 = vpop.f32.mrb[0].mxu0
        %v1907 = vadd.f32 0.0, %v1906
        %v1908 = vpop.f32.mrb[0].mxu0
        %v1909 = vpop.f32.mrb[0].mxu0
        %v1910 = vadd.f32 0.0, %v1909
        %v1911 = vpop.f32.mrb[0].mxu0
        %1912 = vmatprep.mubr.bf16.mxu0 0
        %1913 = vmatmul.mubr.bf16.gmra.mrb[0].mxu0 %v1810
        %v1914 = vpop.f32.mrb[0].mxu0
        %v1915 = vadd.f32 0.0, %v1914
        %v1916 = vpop.f32.mrb[0].mxu0
        %v1917 = vpop.f32.mrb[0].mxu0
        %v1918 = vadd.f32 0.0, %v1917
        %v1919 = vpop.f32.mrb[0].mxu0
        %1920 = vmatprep.mubr.bf16.mxu0 0
        %1921 = vmatmul.mubr.bf16.gmra.mrb[0].mxu0 %v1813
        %v1922 = vpop.f32.mrb[0].mxu0
        %v1923 = vadd.f32 0.0, %v1922
        %v1924 = vpop.f32.mrb[0].mxu0
        %v1925 = vpop.f32.mrb[0].mxu0
        %v1926 = vadd.f32 0.0, %v1925
        %v1927 = vpop.f32.mrb[0].mxu0
        %1928 = vmatprep.mubr.bf16.mxu0 0
        %1929 = vmatmul.mubr.bf16.gmra.mrb[0].mxu0 %v1816
        %v1930 = vpop.f32.mrb[0].mxu0
        %v1931 = vadd.f32 0.0, %v1930
        %v1932 = vpop.f32.mrb[0].mxu0
        %v1933 = vpop.f32.mrb[0].mxu0
        %v1934 = vadd.f32 0.0, %v1933
        %v1935 = vpop.f32.mrb[0].mxu0
        %1936 = vmatprep.mubr.bf16.mxu0 0
        %1937 = vmatmul.mubr.bf16.gmra.mrb[0].mxu0 %v1819
        %v1938 = vpop.f32.mrb[0].mxu0
        %v1939 = vadd.f32 0.0, %v1938
        %v1940 = vpop.f32.mrb[0].mxu0
        %v1941 = vpop.f32.mrb[0].mxu0
        %v1942 = vadd.f32 0.0, %v1941
        %v1943 = vpop.f32.mrb[0].mxu0
        %1944 = vmatprep.mubr.bf16.mxu0 0
        %1945 = vmatmul.mubr.bf16.gmra.mrb[0].mxu0 %v1822
        %v1946 = vpop.f32.mrb[0].mxu0
        %v1947 = vadd.f32 0.0, %v1946
        %v1948 = vpop.f32.mrb[0].mxu0
        %v1949 = vpop.f32.mrb[0].mxu0
        %v1950 = vadd.f32 0.0, %v1949
        %v1951 = vpop.f32.mrb[0].mxu0
        %1952 = vmatprep.mubr.bf16.mxu0 0
        %1953 = vmatmul.mubr.bf16.gmra.mrb[0].mxu0 %v1825
        %v1954 = vpop.f32.mrb[0].mxu0
        %v1955 = vadd.f32 0.0, %v1954
        %v1956 = vpop.f32.mrb[0].mxu0
        %v1957 = vpop.f32.mrb[0].mxu0
        %v1958 = vadd.f32 0.0, %v1957
        %v1959 = vpop.f32.mrb[0].mxu0
        %1960 = vmatprep.mubr.bf16.mxu0 0
        %1961 = vmatmul.mubr.bf16.gmra.mrb[0].mxu0 %v1828
        %v1962 = vpop.f32.mrb[0].mxu0
        %v1963 = vadd.f32 0.0, %v1962
        %v1964 = vpop.f32.mrb[0].mxu0
        %v1965 = vpop.f32.mrb[0].mxu0
        %v1966 = vadd.f32 0.0, %v1965
        %v1967 = vpop.f32.mrb[0].mxu0
        %1968 = vmatprep.mubr.bf16.mxu0 0
        %1969 = vmatmul.mubr.bf16.gmra.mrb[0].mxu0 %v1831
        %v1970 = vpop.f32.mrb[0].mxu0
        %v1971 = vadd.f32 0.0, %v1970
        %v1972 = vpop.f32.mrb[0].mxu0
        %v1973 = vpop.f32.mrb[0].mxu0
        %v1974 = vadd.f32 0.0, %v1973
        %v1975 = vpop.f32.mrb[0].mxu0
        %1976 = vmatprep.mubr.bf16.mxu0 0
        %1977 = vmatmul.mubr.bf16.gmra.mrb[0].mxu0 %v1834
        %v1978 = vpop.f32.mrb[0].mxu0
        %v1979 = vadd.f32 0.0, %v1978
        %v1980 = vpop.f32.mrb[0].mxu0
        %v1981 = vpop.f32.mrb[0].mxu0
        %v1982 = vadd.f32 0.0, %v1981
        %v1983 = vpop.f32.mrb[0].mxu0
        %1984 = vmatprep.mubr.bf16.mxu0 0
        %1985 = vmatmul.mubr.bf16.gmra.mrb[0].mxu0 %v1837
        %v1986 = vpop.f32.mrb[0].mxu0
        %v1987 = vadd.f32 0.0, %v1986
        %v1988 = vpop.f32.mrb[0].mxu0
        %v1989 = vpop.f32.mrb[0].mxu0
        %v1990 = vadd.f32 0.0, %v1989
        %v1991 = vpop.f32.mrb[0].mxu0
        %1992 = vmatprep.mubr.bf16.mxu0 0
        %1993 = vmatmul.mubr.bf16.gmra.mrb[0].mxu0 %v1840
        %v1994 = vpop.f32.mrb[0].mxu0
        %v1995 = vadd.f32 0.0, %v1994
        %v1996 = vpop.f32.mrb[0].mxu0
        %v1997 = vpop.f32.mrb[0].mxu0
        %v1998 = vadd.f32 0.0, %v1997
        %v1999 = vpop.f32.mrb[0].mxu0
        %2000 = vmatprep.mubr.bf16.mxu0 0
        %2001 = vmatmul.mubr.bf16.gmra.mrb[0].mxu0 %v1843
        %v2002 = vpop.f32.mrb[0].mxu0
        %v2003 = vadd.f32 0.0, %v2002
        %v2004 = vpop.f32.mrb[0].mxu0
        %v2005 = vpop.f32.mrb[0].mxu0
        %v2006 = vadd.f32 0.0, %v2005
        %v2007 = vpop.f32.mrb[0].mxu0
        %2008 = vdwg.mxu0
        %v2010 = vsel %vm440, %v1733, 0
        %v2013 = vsel %vm440, %v1736, 0
        %v2016 = vsel %vm440, %v1739, 0
        %v2019 = vsel %vm440, %v1742, 0
        %v2022 = vsel %vm440, %v1745, 0
        %v2025 = vsel %vm440, %v1748, 0
        %v2028 = vsel %vm440, %v1751, 0
        %v2031 = vsel %vm440, %v1754, 0
        %v2034 = vsel %vm440, %v1757, 0
        %v2037 = vsel %vm440, %v1760, 0
        %v2040 = vsel %vm440, %v1763, 0
        %v2043 = vsel %vm440, %v1766, 0
        %v2046 = vsel %vm440, %v1769, 0
        %v2049 = vsel %vm440, %v1772, 0
        %v2052 = vsel %vm440, %v1775, 0
        %v2055 = vsel %vm440, %v1778, 0
        %v2058 = vsel %vm1045, %v1779, 0
        %2060 = vmatprep.subr.bf16.mxu0 0
        %2061 = vmatpush1.bf16.msra.mxu0 %v2058
        %2062 = vmatprep.subr.bf16.mxu0 0
        %2063 = vmatpush1.bf16.msra.mxu0 0
        %2064 = vmatprep.subr.bf16.mxu0 0
        %2065 = vmatpush1.bf16.msra.mxu0 0
        %2066 = vmatprep.subr.bf16.mxu0 0
        %2067 = vmatpush1.bf16.msra.mxu0 0
        %2068 = vmatprep.subr.bf16.mxu0 0
        %2069 = vmatpush1.bf16.msra.mxu0 0
        %2070 = vmatprep.subr.bf16.mxu0 0
        %2071 = vmatpush1.bf16.msra.mxu0 0
        %2072 = vmatprep.subr.bf16.mxu0 0
        %2073 = vmatpush1.bf16.msra.mxu0 0
        %2074 = vmatprep.subr.bf16.mxu0 0
        %2075 = vmatpush1.bf16.msra.mxu0 0
        %2076 = vmatprep.subr.bf16.mxu0 0
        %2077 = vmatpush1.bf16.msra.mxu0 0
        %2078 = vmatprep.subr.bf16.mxu0 0
        %2079 = vmatpush1.bf16.msra.mxu0 0
        %2080 = vmatprep.subr.bf16.mxu0 0
        %2081 = vmatpush1.bf16.msra.mxu0 0
        %2082 = vmatprep.subr.bf16.mxu0 0
        %2083 = vmatpush1.bf16.msra.mxu0 0
        %2084 = vmatprep.subr.bf16.mxu0 0
        %2085 = vmatpush1.bf16.msra.mxu0 0
        %2086 = vmatprep.subr.bf16.mxu0 0
        %2087 = vmatpush1.bf16.msra.mxu0 0
        %2088 = vmatprep.subr.bf16.mxu0 0
        %2089 = vmatpush1.bf16.msra.mxu0 0
        %2090 = vmatprep.subr.bf16.mxu0 0
        %2091 = vmatpush1.bf16.msra.mxu0 0
        %2092 = vmatprep.mubr.bf16.mxu0 0
        %2093 = vmatmul.mubr.bf16.gmra.mrb[0].mxu0 %v2010
        %v2094 = vpop.f32.mrb[0].mxu0
        %v2095 = vadd.f32 %v1883, %v2094
        %v2096 = vpop.f32.mrb[0].mxu0
        %v2097 = vpop.f32.mrb[0].mxu0
        %v2098 = vadd.f32 %v1886, %v2097
        %v2099 = vpop.f32.mrb[0].mxu0
        %2100 = vmatprep.mubr.bf16.mxu0 0
        %2101 = vmatmul.mubr.bf16.gmra.mrb[0].mxu0 %v2013
        %v2102 = vpop.f32.mrb[0].mxu0
        %v2103 = vadd.f32 %v1891, %v2102
        %v2104 = vpop.f32.mrb[0].mxu0
        %v2105 = vpop.f32.mrb[0].mxu0
        %v2106 = vadd.f32 %v1894, %v2105
        %v2107 = vpop.f32.mrb[0].mxu0
        %2108 = vmatprep.mubr.bf16.mxu0 0
        %2109 = vmatmul.mubr.bf16.gmra.mrb[0].mxu0 %v2016
        %v2110 = vpop.f32.mrb[0].mxu0
        %v2111 = vadd.f32 %v1899, %v2110
        %v2112 = vpop.f32.mrb[0].mxu0
        %v2113 = vpop.f32.mrb[0].mxu0
        %v2114 = vadd.f32 %v1902, %v2113
        %v2115 = vpop.f32.mrb[0].mxu0
        %2116 = vmatprep.mubr.bf16.mxu0 0
        %2117 = vmatmul.mubr.bf16.gmra.mrb[0].mxu0 %v2019
        %v2118 = vpop.f32.mrb[0].mxu0
        %v2119 = vadd.f32 %v1907, %v2118
        %v2120 = vpop.f32.mrb[0].mxu0
        %v2121 = vpop.f32.mrb[0].mxu0
        %v2122 = vadd.f32 %v1910, %v2121
        %v2123 = vpop.f32.mrb[0].mxu0
        %2124 = vmatprep.mubr.bf16.mxu0 0
        %2125 = vmatmul.mubr.bf16.gmra.mrb[0].mxu0 %v2022
        %v2126 = vpop.f32.mrb[0].mxu0
        %v2127 = vadd.f32 %v1915, %v2126
        %v2128 = vpop.f32.mrb[0].mxu0
        %v2129 = vpop.f32.mrb[0].mxu0
        %v2130 = vadd.f32 %v1918, %v2129
        %v2131 = vpop.f32.mrb[0].mxu0
        %2132 = vmatprep.mubr.bf16.mxu0 0
        %2133 = vmatmul.mubr.bf16.gmra.mrb[0].mxu0 %v2025
        %v2134 = vpop.f32.mrb[0].mxu0
        %v2135 = vadd.f32 %v1923, %v2134
        %v2136 = vpop.f32.mrb[0].mxu0
        %v2137 = vpop.f32.mrb[0].mxu0
        %v2138 = vadd.f32 %v1926, %v2137
        %v2139 = vpop.f32.mrb[0].mxu0
        %2140 = vmatprep.mubr.bf16.mxu0 0
        %2141 = vmatmul.mubr.bf16.gmra.mrb[0].mxu0 %v2028
        %v2142 = vpop.f32.mrb[0].mxu0
        %v2143 = vadd.f32 %v1931, %v2142
        %v2144 = vpop.f32.mrb[0].mxu0
        %v2145 = vpop.f32.mrb[0].mxu0
        %v2146 = vadd.f32 %v1934, %v2145
        %v2147 = vpop.f32.mrb[0].mxu0
        %2148 = vmatprep.mubr.bf16.mxu0 0
        %2149 = vmatmul.mubr.bf16.gmra.mrb[0].mxu0 %v2031
        %v2150 = vpop.f32.mrb[0].mxu0
        %v2151 = vadd.f32 %v1939, %v2150
        %v2152 = vpop.f32.mrb[0].mxu0
        %v2153 = vpop.f32.mrb[0].mxu0
        %v2154 = vadd.f32 %v1942, %v2153
        %v2155 = vpop.f32.mrb[0].mxu0
        %2156 = vmatprep.mubr.bf16.mxu0 0
        %2157 = vmatmul.mubr.bf16.gmra.mrb[0].mxu0 %v2034
        %v2158 = vpop.f32.mrb[0].mxu0
        %v2159 = vadd.f32 %v1947, %v2158
        %v2160 = vpop.f32.mrb[0].mxu0
        %v2161 = vpop.f32.mrb[0].mxu0
        %v2162 = vadd.f32 %v1950, %v2161
        %v2163 = vpop.f32.mrb[0].mxu0
        %2164 = vmatprep.mubr.bf16.mxu0 0
        %2165 = vmatmul.mubr.bf16.gmra.mrb[0].mxu0 %v2037
        %v2166 = vpop.f32.mrb[0].mxu0
        %v2167 = vadd.f32 %v1955, %v2166
        %v2168 = vpop.f32.mrb[0].mxu0
        %v2169 = vpop.f32.mrb[0].mxu0
        %v2170 = vadd.f32 %v1958, %v2169
        %v2171 = vpop.f32.mrb[0].mxu0
        %2172 = vmatprep.mubr.bf16.mxu0 0
        %2173 = vmatmul.mubr.bf16.gmra.mrb[0].mxu0 %v2040
        %v2174 = vpop.f32.mrb[0].mxu0
        %v2175 = vadd.f32 %v1963, %v2174
        %v2176 = vpop.f32.mrb[0].mxu0
        %v2177 = vpop.f32.mrb[0].mxu0
        %v2178 = vadd.f32 %v1966, %v2177
        %v2179 = vpop.f32.mrb[0].mxu0
        %2180 = vmatprep.mubr.bf16.mxu0 0
        %2181 = vmatmul.mubr.bf16.gmra.mrb[0].mxu0 %v2043
        %v2182 = vpop.f32.mrb[0].mxu0
        %v2183 = vadd.f32 %v1971, %v2182
        %v2184 = vpop.f32.mrb[0].mxu0
        %v2185 = vpop.f32.mrb[0].mxu0
        %v2186 = vadd.f32 %v1974, %v2185
        %v2187 = vpop.f32.mrb[0].mxu0
        %2188 = vmatprep.mubr.bf16.mxu0 0
        %2189 = vmatmul.mubr.bf16.gmra.mrb[0].mxu0 %v2046
        %v2190 = vpop.f32.mrb[0].mxu0
        %v2191 = vadd.f32 %v1979, %v2190
        %v2192 = vpop.f32.mrb[0].mxu0
        %v2193 = vpop.f32.mrb[0].mxu0
        %v2194 = vadd.f32 %v1982, %v2193
        %v2195 = vpop.f32.mrb[0].mxu0
        %2196 = vmatprep.mubr.bf16.mxu0 0
        %2197 = vmatmul.mubr.bf16.gmra.mrb[0].mxu0 %v2049
        %v2198 = vpop.f32.mrb[0].mxu0
        %v2199 = vadd.f32 %v1987, %v2198
        %v2200 = vpop.f32.mrb[0].mxu0
        %v2201 = vpop.f32.mrb[0].mxu0
        %v2202 = vadd.f32 %v1990, %v2201
        %v2203 = vpop.f32.mrb[0].mxu0
        %2204 = vmatprep.mubr.bf16.mxu0 0
        %2205 = vmatmul.mubr.bf16.gmra.mrb[0].mxu0 %v2052
        %v2206 = vpop.f32.mrb[0].mxu0
        %v2207 = vadd.f32 %v1995, %v2206
        %v2208 = vpop.f32.mrb[0].mxu0
        %v2209 = vpop.f32.mrb[0].mxu0
        %v2210 = vadd.f32 %v1998, %v2209
        %v2211 = vpop.f32.mrb[0].mxu0
        %2212 = vmatprep.mubr.bf16.mxu0 0
        %2213 = vmatmul.mubr.bf16.gmra.mrb[0].mxu0 %v2055
        %v2214 = vpop.f32.mrb[0].mxu0
        %v2215 = vadd.f32 %v2003, %v2214
        %v2216 = vpop.f32.mrb[0].mxu0
        %v2217 = vpop.f32.mrb[0].mxu0
        %v2218 = vadd.f32 %v2006, %v2217
        %v2219 = vpop.f32.mrb[0].mxu0
        %2220 = vdwg.mxu0
        %v2221 = vld [vmem:[%s1665 + $0x8] sm:$0xf8]
        %v2222 = vld [vmem:[%s1665 + $0x10] sm:$0x7]
        %v2223 = vld [vmem:[%s1665 + $0x20] sm:$0xf8]
        %v2224 = vld [vmem:[%s1665 + $0x28] sm:$0x7]
        %v2225 = vld [vmem:[%s1665 + $0x38] sm:$0xf8]
        %v2226 = vld [vmem:[%s1665 + $0x40] sm:$0x7]
        %v2227 = vld [vmem:[%s1665 + $0x50] sm:$0xf8]
        %v2228 = vld [vmem:[%s1665 + $0x58] sm:$0x7]
        %v2229 = vld [vmem:[%s1665 + $0x68] sm:$0xf8]
        %v2230 = vld [vmem:[%s1665 + $0x70] sm:$0x7]
        %v2231 = vld [vmem:[%s1665 + $0x80] sm:$0xf8]
        %v2232 = vld [vmem:[%s1665 + $0x88] sm:$0x7]
        %v2233 = vld [vmem:[%s1665 + $0x98] sm:$0xf8]
        %v2234 = vld [vmem:[%s1665 + $0xa0] sm:$0x7]
        %v2235 = vld [vmem:[%s1665 + $0xb0] sm:$0xf8]
        %v2236 = vld [vmem:[%s1665 + $0xb8] sm:$0x7]
        %v2237 = vld [vmem:[%s1665 + $0xc8] sm:$0xf8]
        %v2238 = vld [vmem:[%s1665 + $0xd0] sm:$0x7]
        %v2239 = vld [vmem:[%s1665 + $0xe0] sm:$0xf8]
        %v2240 = vld [vmem:[%s1665 + $0xe8] sm:$0x7]
        %v2241 = vld [vmem:[%s1665 + $0xf8] sm:$0xf8]
        %v2242 = vld [vmem:[%s1665 + $0x100] sm:$0x7]
        %v2243 = vld [vmem:[%s1665 + $0x110] sm:$0xf8]
        %v2244 = vld [vmem:[%s1665 + $0x118] sm:$0x7]
        %v2245 = vld [vmem:[%s1665 + $0x128] sm:$0xf8]
        %v2246 = vld [vmem:[%s1665 + $0x130] sm:$0x7]
        %v2247 = vld [vmem:[%s1665 + $0x140] sm:$0xf8]
        %v2248 = vld [vmem:[%s1665 + $0x148] sm:$0x7]
        %v2249 = vld [vmem:[%s1665 + $0x158] sm:$0xf8]
        %v2250 = vld [vmem:[%s1665 + $0x160] sm:$0x7]
        %v2251 = vld [vmem:[%s1665 + $0x170] sm:$0xf8]
        %v2252 = vld [vmem:[%s1665 + $0x178] sm:$0x7]
        %vm2285 = vcmask 1044480
        %v2286 = vrot.slane %v2221, 3
        %v2287 = vrot.slane %v2222, 3
        %v2288 = vsel %vm2285, %v2286, %v2287
        %v2289 = vrot.slane %v2223, 3
        %v2290 = vrot.slane %v2224, 3
        %v2291 = vsel %vm2285, %v2289, %v2290
        %v2292 = vrot.slane %v2225, 3
        %v2293 = vrot.slane %v2226, 3
        %v2294 = vsel %vm2285, %v2292, %v2293
        %v2295 = vrot.slane %v2227, 3
        %v2296 = vrot.slane %v2228, 3
        %v2297 = vsel %vm2285, %v2295, %v2296
        %v2298 = vrot.slane %v2229, 3
        %v2299 = vrot.slane %v2230, 3
        %v2300 = vsel %vm2285, %v2298, %v2299
        %v2301 = vrot.slane %v2231, 3
        %v2302 = vrot.slane %v2232, 3
        %v2303 = vsel %vm2285, %v2301, %v2302
        %v2304 = vrot.slane %v2233, 3
        %v2305 = vrot.slane %v2234, 3
        %v2306 = vsel %vm2285, %v2304, %v2305
        %v2307 = vrot.slane %v2235, 3
        %v2308 = vrot.slane %v2236, 3
        %v2309 = vsel %vm2285, %v2307, %v2308
        %v2310 = vrot.slane %v2237, 3
        %v2311 = vrot.slane %v2238, 3
        %v2312 = vsel %vm2285, %v2310, %v2311
        %v2313 = vrot.slane %v2239, 3
        %v2314 = vrot.slane %v2240, 3
        %v2315 = vsel %vm2285, %v2313, %v2314
        %v2316 = vrot.slane %v2241, 3
        %v2317 = vrot.slane %v2242, 3
        %v2318 = vsel %vm2285, %v2316, %v2317
        %v2319 = vrot.slane %v2243, 3
        %v2320 = vrot.slane %v2244, 3
        %v2321 = vsel %vm2285, %v2319, %v2320
        %v2322 = vrot.slane %v2245, 3
        %v2323 = vrot.slane %v2246, 3
        %v2324 = vsel %vm2285, %v2322, %v2323
        %v2325 = vrot.slane %v2247, 3
        %v2326 = vrot.slane %v2248, 3
        %v2327 = vsel %vm2285, %v2325, %v2326
        %v2328 = vrot.slane %v2249, 3
        %v2329 = vrot.slane %v2250, 3
        %v2330 = vsel %vm2285, %v2328, %v2329
        %v2331 = vrot.slane %v2251, 3
        %v2332 = vrot.slane %v2252, 3
        %v2333 = vsel %vm2285, %v2331, %v2332
        %v2334 = vld [vmem:[%s3 + $0x8] sm:$0xf]
        %v2336 = vsel %vm440, %v2288, 0
        %v2339 = vsel %vm440, %v2291, 0
        %v2342 = vsel %vm440, %v2294, 0
        %v2345 = vsel %vm440, %v2297, 0
        %v2348 = vsel %vm440, %v2300, 0
        %v2351 = vsel %vm440, %v2303, 0
        %v2354 = vsel %vm440, %v2306, 0
        %v2357 = vsel %vm440, %v2309, 0
        %v2360 = vsel %vm440, %v2312, 0
        %v2363 = vsel %vm440, %v2315, 0
        %v2366 = vsel %vm440, %v2318, 0
        %v2369 = vsel %vm440, %v2321, 0
        %v2372 = vsel %vm440, %v2324, 0
        %v2375 = vsel %vm440, %v2327, 0
        %v2378 = vsel %vm440, %v2330, 0
        %v2381 = vsel %vm440, %v2333, 0
        %v2384 = vsel %vm1045, %v2334, 0
        %2386 = vmatprep.subr.bf16.mxu0 0
        %2387 = vmatpush1.bf16.msra.mxu0 %v2384
        %2388 = vmatprep.subr.bf16.mxu0 0
        %2389 = vmatpush1.bf16.msra.mxu0 0
        %2390 = vmatprep.subr.bf16.mxu0 0
        %2391 = vmatpush1.bf16.msra.mxu0 0
        %2392 = vmatprep.subr.bf16.mxu0 0
        %2393 = vmatpush1.bf16.msra.mxu0 0
        %2394 = vmatprep.subr.bf16.mxu0 0
        %2395 = vmatpush1.bf16.msra.mxu0 0
        %2396 = vmatprep.subr.bf16.mxu0 0
        %2397 = vmatpush1.bf16.msra.mxu0 0
        %2398 = vmatprep.subr.bf16.mxu0 0
        %2399 = vmatpush1.bf16.msra.mxu0 0
        %2400 = vmatprep.subr.bf16.mxu0 0
        %2401 = vmatpush1.bf16.msra.mxu0 0
        %2402 = vmatprep.subr.bf16.mxu0 0
        %2403 = vmatpush1.bf16.msra.mxu0 0
        %2404 = vmatprep.subr.bf16.mxu0 0
        %2405 = vmatpush1.bf16.msra.mxu0 0
        %2406 = vmatprep.subr.bf16.mxu0 0
        %2407 = vmatpush1.bf16.msra.mxu0 0
        %2408 = vmatprep.subr.bf16.mxu0 0
        %2409 = vmatpush1.bf16.msra.mxu0 0
        %2410 = vmatprep.subr.bf16.mxu0 0
        %2411 = vmatpush1.bf16.msra.mxu0 0
        %2412 = vmatprep.subr.bf16.mxu0 0
        %2413 = vmatpush1.bf16.msra.mxu0 0
        %2414 = vmatprep.subr.bf16.mxu0 0
        %2415 = vmatpush1.bf16.msra.mxu0 0
        %2416 = vmatprep.subr.bf16.mxu0 0
        %2417 = vmatpush1.bf16.msra.mxu0 0
        %2418 = vmatprep.mubr.bf16.mxu0 0
        %2419 = vmatmul.mubr.bf16.gmra.mrb[0].mxu0 %v2336
        %v2420 = vpop.f32.mrb[0].mxu0
        %v2421 = vadd.f32 0.0, %v2420
        %v2422 = vpop.f32.mrb[0].mxu0
        %v2423 = vpop.f32.mrb[0].mxu0
        %v2424 = vadd.f32 0.0, %v2423
        %v2425 = vpop.f32.mrb[0].mxu0
        %2426 = vmatprep.mubr.bf16.mxu0 0
        %2427 = vmatmul.mubr.bf16.gmra.mrb[0].mxu0 %v2339
        %v2428 = vpop.f32.mrb[0].mxu0
        %v2429 = vadd.f32 0.0, %v2428
        %v2430 = vpop.f32.mrb[0].mxu0
        %v2431 = vpop.f32.mrb[0].mxu0
        %v2432 = vadd.f32 0.0, %v2431
        %v2433 = vpop.f32.mrb[0].mxu0
        %2434 = vmatprep.mubr.bf16.mxu0 0
        %2435 = vmatmul.mubr.bf16.gmra.mrb[0].mxu0 %v2342
        %v2436 = vpop.f32.mrb[0].mxu0
        %v2437 = vadd.f32 0.0, %v2436
        %v2438 = vpop.f32.mrb[0].mxu0
        %v2439 = vpop.f32.mrb[0].mxu0
        %v2440 = vadd.f32 0.0, %v2439
        %v2441 = vpop.f32.mrb[0].mxu0
        %2442 = vmatprep.mubr.bf16.mxu0 0
        %2443 = vmatmul.mubr.bf16.gmra.mrb[0].mxu0 %v2345
        %v2444 = vpop.f32.mrb[0].mxu0
        %v2445 = vadd.f32 0.0, %v2444
        %v2446 = vpop.f32.mrb[0].mxu0
        %v2447 = vpop.f32.mrb[0].mxu0
        %v2448 = vadd.f32 0.0, %v2447
        %v2449 = vpop.f32.mrb[0].mxu0
        %2450 = vmatprep.mubr.bf16.mxu0 0
        %2451 = vmatmul.mubr.bf16.gmra.mrb[0].mxu0 %v2348
        %v2452 = vpop.f32.mrb[0].mxu0
        %v2453 = vadd.f32 0.0, %v2452
        %v2454 = vpop.f32.mrb[0].mxu0
        %v2455 = vpop.f32.mrb[0].mxu0
        %v2456 = vadd.f32 0.0, %v2455
        %v2457 = vpop.f32.mrb[0].mxu0
        %2458 = vmatprep.mubr.bf16.mxu0 0
        %2459 = vmatmul.mubr.bf16.gmra.mrb[0].mxu0 %v2351
        %v2460 = vpop.f32.mrb[0].mxu0
        %v2461 = vadd.f32 0.0, %v2460
        %v2462 = vpop.f32.mrb[0].mxu0
        %v2463 = vpop.f32.mrb[0].mxu0
        %v2464 = vadd.f32 0.0, %v2463
        %v2465 = vpop.f32.mrb[0].mxu0
        %2466 = vmatprep.mubr.bf16.mxu0 0
        %2467 = vmatmul.mubr.bf16.gmra.mrb[0].mxu0 %v2354
        %v2468 = vpop.f32.mrb[0].mxu0
        %v2469 = vadd.f32 0.0, %v2468
        %v2470 = vpop.f32.mrb[0].mxu0
        %v2471 = vpop.f32.mrb[0].mxu0
        %v2472 = vadd.f32 0.0, %v2471
        %v2473 = vpop.f32.mrb[0].mxu0
        %2474 = vmatprep.mubr.bf16.mxu0 0
        %2475 = vmatmul.mubr.bf16.gmra.mrb[0].mxu0 %v2357
        %v2476 = vpop.f32.mrb[0].mxu0
        %v2477 = vadd.f32 0.0, %v2476
        %v2478 = vpop.f32.mrb[0].mxu0
        %v2479 = vpop.f32.mrb[0].mxu0
        %v2480 = vadd.f32 0.0, %v2479
        %v2481 = vpop.f32.mrb[0].mxu0
        %2482 = vmatprep.mubr.bf16.mxu0 0
        %2483 = vmatmul.mubr.bf16.gmra.mrb[0].mxu0 %v2360
        %v2484 = vpop.f32.mrb[0].mxu0
        %v2485 = vadd.f32 0.0, %v2484
        %v2486 = vpop.f32.mrb[0].mxu0
        %v2487 = vpop.f32.mrb[0].mxu0
        %v2488 = vadd.f32 0.0, %v2487
        %v2489 = vpop.f32.mrb[0].mxu0
        %2490 = vmatprep.mubr.bf16.mxu0 0
        %2491 = vmatmul.mubr.bf16.gmra.mrb[0].mxu0 %v2363
        %v2492 = vpop.f32.mrb[0].mxu0
        %v2493 = vadd.f32 0.0, %v2492
        %v2494 = vpop.f32.mrb[0].mxu0
        %v2495 = vpop.f32.mrb[0].mxu0
        %v2496 = vadd.f32 0.0, %v2495
        %v2497 = vpop.f32.mrb[0].mxu0
        %2498 = vmatprep.mubr.bf16.mxu0 0
        %2499 = vmatmul.mubr.bf16.gmra.mrb[0].mxu0 %v2366
        %v2500 = vpop.f32.mrb[0].mxu0
        %v2501 = vadd.f32 0.0, %v2500
        %v2502 = vpop.f32.mrb[0].mxu0
        %v2503 = vpop.f32.mrb[0].mxu0
        %v2504 = vadd.f32 0.0, %v2503
        %v2505 = vpop.f32.mrb[0].mxu0
        %2506 = vmatprep.mubr.bf16.mxu0 0
        %2507 = vmatmul.mubr.bf16.gmra.mrb[0].mxu0 %v2369
        %v2508 = vpop.f32.mrb[0].mxu0
        %v2509 = vadd.f32 0.0, %v2508
        %v2510 = vpop.f32.mrb[0].mxu0
        %v2511 = vpop.f32.mrb[0].mxu0
        %v2512 = vadd.f32 0.0, %v2511
        %v2513 = vpop.f32.mrb[0].mxu0
        %2514 = vmatprep.mubr.bf16.mxu0 0
        %2515 = vmatmul.mubr.bf16.gmra.mrb[0].mxu0 %v2372
        %v2516 = vpop.f32.mrb[0].mxu0
        %v2517 = vadd.f32 0.0, %v2516
        %v2518 = vpop.f32.mrb[0].mxu0
        %v2519 = vpop.f32.mrb[0].mxu0
        %v2520 = vadd.f32 0.0, %v2519
        %v2521 = vpop.f32.mrb[0].mxu0
        %2522 = vmatprep.mubr.bf16.mxu0 0
        %2523 = vmatmul.mubr.bf16.gmra.mrb[0].mxu0 %v2375
        %v2524 = vpop.f32.mrb[0].mxu0
        %v2525 = vadd.f32 0.0, %v2524
        %v2526 = vpop.f32.mrb[0].mxu0
        %v2527 = vpop.f32.mrb[0].mxu0
        %v2528 = vadd.f32 0.0, %v2527
        %v2529 = vpop.f32.mrb[0].mxu0
        %2530 = vmatprep.mubr.bf16.mxu0 0
        %2531 = vmatmul.mubr.bf16.gmra.mrb[0].mxu0 %v2378
        %v2532 = vpop.f32.mrb[0].mxu0
        %v2533 = vadd.f32 0.0, %v2532
        %v2534 = vpop.f32.mrb[0].mxu0
        %v2535 = vpop.f32.mrb[0].mxu0
        %v2536 = vadd.f32 0.0, %v2535
        %v2537 = vpop.f32.mrb[0].mxu0
        %2538 = vmatprep.mubr.bf16.mxu0 0
        %2539 = vmatmul.mubr.bf16.gmra.mrb[0].mxu0 %v2381
        %v2540 = vpop.f32.mrb[0].mxu0
        %v2541 = vadd.f32 0.0, %v2540
        %v2542 = vpop.f32.mrb[0].mxu0
        %v2543 = vpop.f32.mrb[0].mxu0
        %v2544 = vadd.f32 0.0, %v2543
        %v2545 = vpop.f32.mrb[0].mxu0
        %2546 = vdwg.mxu0
        %v2547 = vadd.f32 %v2095, %v2421
        %v2548 = vadd.f32 %v2098, %v2424
        %v2549 = vadd.f32 %v2103, %v2429
        %v2550 = vadd.f32 %v2106, %v2432
        %v2551 = vadd.f32 %v2111, %v2437
        %v2552 = vadd.f32 %v2114, %v2440
        %v2553 = vadd.f32 %v2119, %v2445
        %v2554 = vadd.f32 %v2122, %v2448
        %v2555 = vadd.f32 %v2127, %v2453
        %v2556 = vadd.f32 %v2130, %v2456
        %v2557 = vadd.f32 %v2135, %v2461
        %v2558 = vadd.f32 %v2138, %v2464
        %v2559 = vadd.f32 %v2143, %v2469
        %v2560 = vadd.f32 %v2146, %v2472
        %v2561 = vadd.f32 %v2151, %v2477
        %v2562 = vadd.f32 %v2154, %v2480
        %v2563 = vadd.f32 %v2159, %v2485
        %v2564 = vadd.f32 %v2162, %v2488
        %v2565 = vadd.f32 %v2167, %v2493
        %v2566 = vadd.f32 %v2170, %v2496
        %v2567 = vadd.f32 %v2175, %v2501
        %v2568 = vadd.f32 %v2178, %v2504
        %v2569 = vadd.f32 %v2183, %v2509
        %v2570 = vadd.f32 %v2186, %v2512
        %v2571 = vadd.f32 %v2191, %v2517
        %v2572 = vadd.f32 %v2194, %v2520
        %v2573 = vadd.f32 %v2199, %v2525
        %v2574 = vadd.f32 %v2202, %v2528
        %v2575 = vadd.f32 %v2207, %v2533
        %v2576 = vadd.f32 %v2210, %v2536
        %v2577 = vadd.f32 %v2215, %v2541
        %v2578 = vadd.f32 %v2218, %v2544
        %v2579 = vld [vmem:[%s713] sm:$0xe0]
        %v2580 = vld [vmem:[%s713 + $0x8] sm:$0x1f]
        %v2581 = vld [vmem:[%s713 + $0x18] sm:$0xe0]
        %v2582 = vld [vmem:[%s713 + $0x20] sm:$0x1f]
        %v2583 = vld [vmem:[%s713 + $0x30] sm:$0xe0]
        %v2584 = vld [vmem:[%s713 + $0x38] sm:$0x1f]
        %v2585 = vld [vmem:[%s713 + $0x48] sm:$0xe0]
        %v2586 = vld [vmem:[%s713 + $0x50] sm:$0x1f]
        %v2587 = vld [vmem:[%s713 + $0x60] sm:$0xe0]
        %v2588 = vld [vmem:[%s713 + $0x68] sm:$0x1f]
        %v2589 = vld [vmem:[%s713 + $0x78] sm:$0xe0]
        %v2590 = vld [vmem:[%s713 + $0x80] sm:$0x1f]
        %v2591 = vld [vmem:[%s713 + $0x90] sm:$0xe0]
        %v2592 = vld [vmem:[%s713 + $0x98] sm:$0x1f]
        %v2593 = vld [vmem:[%s713 + $0xa8] sm:$0xe0]
        %v2594 = vld [vmem:[%s713 + $0xb0] sm:$0x1f]
        %v2595 = vld [vmem:[%s713 + $0xc0] sm:$0xe0]
        %v2596 = vld [vmem:[%s713 + $0xc8] sm:$0x1f]
        %v2597 = vld [vmem:[%s713 + $0xd8] sm:$0xe0]
        %v2598 = vld [vmem:[%s713 + $0xe0] sm:$0x1f]
        %v2599 = vld [vmem:[%s713 + $0xf0] sm:$0xe0]
        %v2600 = vld [vmem:[%s713 + $0xf8] sm:$0x1f]
        %v2601 = vld [vmem:[%s713 + $0x108] sm:$0xe0]
        %v2602 = vld [vmem:[%s713 + $0x110] sm:$0x1f]
        %v2603 = vld [vmem:[%s713 + $0x120] sm:$0xe0]
        %v2604 = vld [vmem:[%s713 + $0x128] sm:$0x1f]
        %v2605 = vld [vmem:[%s713 + $0x138] sm:$0xe0]
        %v2606 = vld [vmem:[%s713 + $0x140] sm:$0x1f]
        %v2607 = vld [vmem:[%s713 + $0x150] sm:$0xe0]
        %v2608 = vld [vmem:[%s713 + $0x158] sm:$0x1f]
        %v2609 = vld [vmem:[%s713 + $0x168] sm:$0xe0]
        %v2610 = vld [vmem:[%s713 + $0x170] sm:$0x1f]
        %v2643 = vrot.slane %v2579, 5
        %v2644 = vrot.slane %v2580, 5
        %v2645 = vsel %vm1730, %v2643, %v2644
        %v2646 = vrot.slane %v2581, 5
        %v2647 = vrot.slane %v2582, 5
        %v2648 = vsel %vm1730, %v2646, %v2647
        %v2649 = vrot.slane %v2583, 5
        %v2650 = vrot.slane %v2584, 5
        %v2651 = vsel %vm1730, %v2649, %v2650
        %v2652 = vrot.slane %v2585, 5
        %v2653 = vrot.slane %v2586, 5
        %v2654 = vsel %vm1730, %v2652, %v2653
        %v2655 = vrot.slane %v2587, 5
        %v2656 = vrot.slane %v2588, 5
        %v2657 = vsel %vm1730, %v2655, %v2656
        %v2658 = vrot.slane %v2589, 5
        %v2659 = vrot.slane %v2590, 5
        %v2660 = vsel %vm1730, %v2658, %v2659
        %v2661 = vrot.slane %v2591, 5
        %v2662 = vrot.slane %v2592, 5
        %v2663 = vsel %vm1730, %v2661, %v2662
        %v2664 = vrot.slane %v2593, 5
        %v2665 = vrot.slane %v2594, 5
        %v2666 = vsel %vm1730, %v2664, %v2665
        %v2667 = vrot.slane %v2595, 5
        %v2668 = vrot.slane %v2596, 5
        %v2669 = vsel %vm1730, %v2667, %v2668
        %v2670 = vrot.slane %v2597, 5
        %v2671 = vrot.slane %v2598, 5
        %v2672 = vsel %vm1730, %v2670, %v2671
        %v2673 = vrot.slane %v2599, 5
        %v2674 = vrot.slane %v2600, 5
        %v2675 = vsel %vm1730, %v2673, %v2674
        %v2676 = vrot.slane %v2601, 5
        %v2677 = vrot.slane %v2602, 5
        %v2678 = vsel %vm1730, %v2676, %v2677
        %v2679 = vrot.slane %v2603, 5
        %v2680 = vrot.slane %v2604, 5
        %v2681 = vsel %vm1730, %v2679, %v2680
        %v2682 = vrot.slane %v2605, 5
        %v2683 = vrot.slane %v2606, 5
        %v2684 = vsel %vm1730, %v2682, %v2683
        %v2685 = vrot.slane %v2607, 5
        %v2686 = vrot.slane %v2608, 5
        %v2687 = vsel %vm1730, %v2685, %v2686
        %v2688 = vrot.slane %v2609, 5
        %v2689 = vrot.slane %v2610, 5
        %v2690 = vsel %vm1730, %v2688, %v2689
        %v2691 = vld [vmem:[%s3 + $0xc] sm:$0xf]
        %v2693 = vsel %vm440, %v2645, 0
        %v2696 = vsel %vm440, %v2648, 0
        %v2699 = vsel %vm440, %v2651, 0
        %v2702 = vsel %vm440, %v2654, 0
        %v2705 = vsel %vm440, %v2657, 0
        %v2708 = vsel %vm440, %v2660, 0
        %v2711 = vsel %vm440, %v2663, 0
        %v2714 = vsel %vm440, %v2666, 0
        %v2717 = vsel %vm440, %v2669, 0
        %v2720 = vsel %vm440, %v2672, 0
        %v2723 = vsel %vm440, %v2675, 0
        %v2726 = vsel %vm440, %v2678, 0
        %v2729 = vsel %vm440, %v2681, 0
        %v2732 = vsel %vm440, %v2684, 0
        %v2735 = vsel %vm440, %v2687, 0
        %v2738 = vsel %vm440, %v2690, 0
        %v2741 = vsel %vm1045, %v2691, 0
        %2743 = vmatprep.subr.bf16.mxu0 0
        %2744 = vmatpush1.bf16.msra.mxu0 %v2741
        %2745 = vmatprep.subr.bf16.mxu0 0
        %2746 = vmatpush1.bf16.msra.mxu0 0
        %2747 = vmatprep.subr.bf16.mxu0 0
        %2748 = vmatpush1.bf16.msra.mxu0 0
        %2749 = vmatprep.subr.bf16.mxu0 0
        %2750 = vmatpush1.bf16.msra.mxu0 0
        %2751 = vmatprep.subr.bf16.mxu0 0
        %2752 = vmatpush1.bf16.msra.mxu0 0
        %2753 = vmatprep.subr.bf16.mxu0 0
        %2754 = vmatpush1.bf16.msra.mxu0 0
        %2755 = vmatprep.subr.bf16.mxu0 0
        %2756 = vmatpush1.bf16.msra.mxu0 0
        %2757 = vmatprep.subr.bf16.mxu0 0
        %2758 = vmatpush1.bf16.msra.mxu0 0
        %2759 = vmatprep.subr.bf16.mxu0 0
        %2760 = vmatpush1.bf16.msra.mxu0 0
        %2761 = vmatprep.subr.bf16.mxu0 0
        %2762 = vmatpush1.bf16.msra.mxu0 0
        %2763 = vmatprep.subr.bf16.mxu0 0
        %2764 = vmatpush1.bf16.msra.mxu0 0
        %2765 = vmatprep.subr.bf16.mxu0 0
        %2766 = vmatpush1.bf16.msra.mxu0 0
        %2767 = vmatprep.subr.bf16.mxu0 0
        %2768 = vmatpush1.bf16.msra.mxu0 0
        %2769 = vmatprep.subr.bf16.mxu0 0
        %2770 = vmatpush1.bf16.msra.mxu0 0
        %2771 = vmatprep.subr.bf16.mxu0 0
        %2772 = vmatpush1.bf16.msra.mxu0 0
        %2773 = vmatprep.subr.bf16.mxu0 0
        %2774 = vmatpush1.bf16.msra.mxu0 0
        %2775 = vmatprep.mubr.bf16.mxu0 0
        %2776 = vmatmul.mubr.bf16.gmra.mrb[0].mxu0 %v2693
        %v2777 = vpop.f32.mrb[0].mxu0
        %v2778 = vadd.f32 0.0, %v2777
        %v2779 = vpop.f32.mrb[0].mxu0
        %v2780 = vpop.f32.mrb[0].mxu0
        %v2781 = vadd.f32 0.0, %v2780
        %v2782 = vpop.f32.mrb[0].mxu0
        %2783 = vmatprep.mubr.bf16.mxu0 0
        %2784 = vmatmul.mubr.bf16.gmra.mrb[0].mxu0 %v2696
        %v2785 = vpop.f32.mrb[0].mxu0
        %v2786 = vadd.f32 0.0, %v2785
        %v2787 = vpop.f32.mrb[0].mxu0
        %v2788 = vpop.f32.mrb[0].mxu0
        %v2789 = vadd.f32 0.0, %v2788
        %v2790 = vpop.f32.mrb[0].mxu0
        %2791 = vmatprep.mubr.bf16.mxu0 0
        %2792 = vmatmul.mubr.bf16.gmra.mrb[0].mxu0 %v2699
        %v2793 = vpop.f32.mrb[0].mxu0
        %v2794 = vadd.f32 0.0, %v2793
        %v2795 = vpop.f32.mrb[0].mxu0
        %v2796 = vpop.f32.mrb[0].mxu0
        %v2797 = vadd.f32 0.0, %v2796
        %v2798 = vpop.f32.mrb[0].mxu0
        %2799 = vmatprep.mubr.bf16.mxu0 0
        %2800 = vmatmul.mubr.bf16.gmra.mrb[0].mxu0 %v2702
        %v2801 = vpop.f32.mrb[0].mxu0
        %v2802 = vadd.f32 0.0, %v2801
        %v2803 = vpop.f32.mrb[0].mxu0
        %v2804 = vpop.f32.mrb[0].mxu0
        %v2805 = vadd.f32 0.0, %v2804
        %v2806 = vpop.f32.mrb[0].mxu0
        %2807 = vmatprep.mubr.bf16.mxu0 0
        %2808 = vmatmul.mubr.bf16.gmra.mrb[0].mxu0 %v2705
        %v2809 = vpop.f32.mrb[0].mxu0
        %v2810 = vadd.f32 0.0, %v2809
        %v2811 = vpop.f32.mrb[0].mxu0
        %v2812 = vpop.f32.mrb[0].mxu0
        %v2813 = vadd.f32 0.0, %v2812
        %v2814 = vpop.f32.mrb[0].mxu0
        %2815 = vmatprep.mubr.bf16.mxu0 0
        %2816 = vmatmul.mubr.bf16.gmra.mrb[0].mxu0 %v2708
        %v2817 = vpop.f32.mrb[0].mxu0
        %v2818 = vadd.f32 0.0, %v2817
        %v2819 = vpop.f32.mrb[0].mxu0
        %v2820 = vpop.f32.mrb[0].mxu0
        %v2821 = vadd.f32 0.0, %v2820
        %v2822 = vpop.f32.mrb[0].mxu0
        %2823 = vmatprep.mubr.bf16.mxu0 0
        %2824 = vmatmul.mubr.bf16.gmra.mrb[0].mxu0 %v2711
        %v2825 = vpop.f32.mrb[0].mxu0
        %v2826 = vadd.f32 0.0, %v2825
        %v2827 = vpop.f32.mrb[0].mxu0
        %v2828 = vpop.f32.mrb[0].mxu0
        %v2829 = vadd.f32 0.0, %v2828
        %v2830 = vpop.f32.mrb[0].mxu0
        %2831 = vmatprep.mubr.bf16.mxu0 0
        %2832 = vmatmul.mubr.bf16.gmra.mrb[0].mxu0 %v2714
        %v2833 = vpop.f32.mrb[0].mxu0
        %v2834 = vadd.f32 0.0, %v2833
        %v2835 = vpop.f32.mrb[0].mxu0
        %v2836 = vpop.f32.mrb[0].mxu0
        %v2837 = vadd.f32 0.0, %v2836
        %v2838 = vpop.f32.mrb[0].mxu0
        %2839 = vmatprep.mubr.bf16.mxu0 0
        %2840 = vmatmul.mubr.bf16.gmra.mrb[0].mxu0 %v2717
        %v2841 = vpop.f32.mrb[0].mxu0
        %v2842 = vadd.f32 0.0, %v2841
        %v2843 = vpop.f32.mrb[0].mxu0
        %v2844 = vpop.f32.mrb[0].mxu0
        %v2845 = vadd.f32 0.0, %v2844
        %v2846 = vpop.f32.mrb[0].mxu0
        %2847 = vmatprep.mubr.bf16.mxu0 0
        %2848 = vmatmul.mubr.bf16.gmra.mrb[0].mxu0 %v2720
        %v2849 = vpop.f32.mrb[0].mxu0
        %v2850 = vadd.f32 0.0, %v2849
        %v2851 = vpop.f32.mrb[0].mxu0
        %v2852 = vpop.f32.mrb[0].mxu0
        %v2853 = vadd.f32 0.0, %v2852
        %v2854 = vpop.f32.mrb[0].mxu0
        %2855 = vmatprep.mubr.bf16.mxu0 0
        %2856 = vmatmul.mubr.bf16.gmra.mrb[0].mxu0 %v2723
        %v2857 = vpop.f32.mrb[0].mxu0
        %v2858 = vadd.f32 0.0, %v2857
        %v2859 = vpop.f32.mrb[0].mxu0
        %v2860 = vpop.f32.mrb[0].mxu0
        %v2861 = vadd.f32 0.0, %v2860
        %v2862 = vpop.f32.mrb[0].mxu0
        %2863 = vmatprep.mubr.bf16.mxu0 0
        %2864 = vmatmul.mubr.bf16.gmra.mrb[0].mxu0 %v2726
        %v2865 = vpop.f32.mrb[0].mxu0
        %v2866 = vadd.f32 0.0, %v2865
        %v2867 = vpop.f32.mrb[0].mxu0
        %v2868 = vpop.f32.mrb[0].mxu0
        %v2869 = vadd.f32 0.0, %v2868
        %v2870 = vpop.f32.mrb[0].mxu0
        %2871 = vmatprep.mubr.bf16.mxu0 0
        %2872 = vmatmul.mubr.bf16.gmra.mrb[0].mxu0 %v2729
        %v2873 = vpop.f32.mrb[0].mxu0
        %v2874 = vadd.f32 0.0, %v2873
        %v2875 = vpop.f32.mrb[0].mxu0
        %v2876 = vpop.f32.mrb[0].mxu0
        %v2877 = vadd.f32 0.0, %v2876
        %v2878 = vpop.f32.mrb[0].mxu0
        %2879 = vmatprep.mubr.bf16.mxu0 0
        %2880 = vmatmul.mubr.bf16.gmra.mrb[0].mxu0 %v2732
        %v2881 = vpop.f32.mrb[0].mxu0
        %v2882 = vadd.f32 0.0, %v2881
        %v2883 = vpop.f32.mrb[0].mxu0
        %v2884 = vpop.f32.mrb[0].mxu0
        %v2885 = vadd.f32 0.0, %v2884
        %v2886 = vpop.f32.mrb[0].mxu0
        %2887 = vmatprep.mubr.bf16.mxu0 0
        %2888 = vmatmul.mubr.bf16.gmra.mrb[0].mxu0 %v2735
        %v2889 = vpop.f32.mrb[0].mxu0
        %v2890 = vadd.f32 0.0, %v2889
        %v2891 = vpop.f32.mrb[0].mxu0
        %v2892 = vpop.f32.mrb[0].mxu0
        %v2893 = vadd.f32 0.0, %v2892
        %v2894 = vpop.f32.mrb[0].mxu0
        %2895 = vmatprep.mubr.bf16.mxu0 0
        %2896 = vmatmul.mubr.bf16.gmra.mrb[0].mxu0 %v2738
        %v2897 = vpop.f32.mrb[0].mxu0
        %v2898 = vadd.f32 0.0, %v2897
        %v2899 = vpop.f32.mrb[0].mxu0
        %v2900 = vpop.f32.mrb[0].mxu0
        %v2901 = vadd.f32 0.0, %v2900
        %v2902 = vpop.f32.mrb[0].mxu0
        %2903 = vdwg.mxu0
        %v2904 = vadd.f32 %v2547, %v2778
        %v2905 = vadd.f32 %v2548, %v2781
        %v2906 = vadd.f32 %v2549, %v2786
        %v2907 = vadd.f32 %v2550, %v2789
        %v2908 = vadd.f32 %v2551, %v2794
        %v2909 = vadd.f32 %v2552, %v2797
        %v2910 = vadd.f32 %v2553, %v2802
        %v2911 = vadd.f32 %v2554, %v2805
        %v2912 = vadd.f32 %v2555, %v2810
        %v2913 = vadd.f32 %v2556, %v2813
        %v2914 = vadd.f32 %v2557, %v2818
        %v2915 = vadd.f32 %v2558, %v2821
        %v2916 = vadd.f32 %v2559, %v2826
        %v2917 = vadd.f32 %v2560, %v2829
        %v2918 = vadd.f32 %v2561, %v2834
        %v2919 = vadd.f32 %v2562, %v2837
        %v2920 = vadd.f32 %v2563, %v2842
        %v2921 = vadd.f32 %v2564, %v2845
        %v2922 = vadd.f32 %v2565, %v2850
        %v2923 = vadd.f32 %v2566, %v2853
        %v2924 = vadd.f32 %v2567, %v2858
        %v2925 = vadd.f32 %v2568, %v2861
        %v2926 = vadd.f32 %v2569, %v2866
        %v2927 = vadd.f32 %v2570, %v2869
        %v2928 = vadd.f32 %v2571, %v2874
        %v2929 = vadd.f32 %v2572, %v2877
        %v2930 = vadd.f32 %v2573, %v2882
        %v2931 = vadd.f32 %v2574, %v2885
        %v2932 = vadd.f32 %v2575, %v2890
        %v2933 = vadd.f32 %v2576, %v2893
        %v2934 = vadd.f32 %v2577, %v2898
        %v2935 = vadd.f32 %v2578, %v2901
        %v2936 = vld [vmem:[%s3 + $0x10] sm:$0xf]
        %v2938 = vsel %vm1045, %v2936, 0
        %2940 = vmatprep.subr.bf16.mxu0 0
        %2941 = vmatpush1.bf16.msra.mxu0 %v2938
        %2942 = vmatprep.subr.bf16.mxu0 0
        %2943 = vmatpush1.bf16.msra.mxu0 0
        %2944 = vmatprep.subr.bf16.mxu0 0
        %2945 = vmatpush1.bf16.msra.mxu0 0
        %2946 = vmatprep.subr.bf16.mxu0 0
        %2947 = vmatpush1.bf16.msra.mxu0 0
        %2948 = vmatprep.subr.bf16.mxu0 0
        %2949 = vmatpush1.bf16.msra.mxu0 0
        %2950 = vmatprep.subr.bf16.mxu0 0
        %2951 = vmatpush1.bf16.msra.mxu0 0
        %2952 = vmatprep.subr.bf16.mxu0 0
        %2953 = vmatpush1.bf16.msra.mxu0 0
        %2954 = vmatprep.subr.bf16.mxu0 0
        %2955 = vmatpush1.bf16.msra.mxu0 0
        %2956 = vmatprep.subr.bf16.mxu0 0
        %2957 = vmatpush1.bf16.msra.mxu0 0
        %2958 = vmatprep.subr.bf16.mxu0 0
        %2959 = vmatpush1.bf16.msra.mxu0 0
        %2960 = vmatprep.subr.bf16.mxu0 0
        %2961 = vmatpush1.bf16.msra.mxu0 0
        %2962 = vmatprep.subr.bf16.mxu0 0
        %2963 = vmatpush1.bf16.msra.mxu0 0
        %2964 = vmatprep.subr.bf16.mxu0 0
        %2965 = vmatpush1.bf16.msra.mxu0 0
        %2966 = vmatprep.subr.bf16.mxu0 0
        %2967 = vmatpush1.bf16.msra.mxu0 0
        %2968 = vmatprep.subr.bf16.mxu0 0
        %2969 = vmatpush1.bf16.msra.mxu0 0
        %2970 = vmatprep.subr.bf16.mxu0 0
        %2971 = vmatpush1.bf16.msra.mxu0 0
        %2972 = vmatprep.mubr.bf16.mxu0 0
        %2973 = vmatmul.mubr.bf16.gmra.mrb[0].mxu0 %v998
        %v2974 = vpop.f32.mrb[0].mxu0
        %v2975 = vadd.f32 0.0, %v2974
        %v2976 = vpop.f32.mrb[0].mxu0
        %v2977 = vpop.f32.mrb[0].mxu0
        %v2978 = vadd.f32 0.0, %v2977
        %v2979 = vpop.f32.mrb[0].mxu0
        %2980 = vmatprep.mubr.bf16.mxu0 0
        %2981 = vmatmul.mubr.bf16.gmra.mrb[0].mxu0 %v1001
        %v2982 = vpop.f32.mrb[0].mxu0
        %v2983 = vadd.f32 0.0, %v2982
        %v2984 = vpop.f32.mrb[0].mxu0
        %v2985 = vpop.f32.mrb[0].mxu0
        %v2986 = vadd.f32 0.0, %v2985
        %v2987 = vpop.f32.mrb[0].mxu0
        %2988 = vmatprep.mubr.bf16.mxu0 0
        %2989 = vmatmul.mubr.bf16.gmra.mrb[0].mxu0 %v1004
        %v2990 = vpop.f32.mrb[0].mxu0
        %v2991 = vadd.f32 0.0, %v2990
        %v2992 = vpop.f32.mrb[0].mxu0
        %v2993 = vpop.f32.mrb[0].mxu0
        %v2994 = vadd.f32 0.0, %v2993
        %v2995 = vpop.f32.mrb[0].mxu0
        %2996 = vmatprep.mubr.bf16.mxu0 0
        %2997 = vmatmul.mubr.bf16.gmra.mrb[0].mxu0 %v1007
        %v2998 = vpop.f32.mrb[0].mxu0
        %v2999 = vadd.f32 0.0, %v2998
        %v3000 = vpop.f32.mrb[0].mxu0
        %v3001 = vpop.f32.mrb[0].mxu0
        %v3002 = vadd.f32 0.0, %v3001
        %v3003 = vpop.f32.mrb[0].mxu0
        %3004 = vmatprep.mubr.bf16.mxu0 0
        %3005 = vmatmul.mubr.bf16.gmra.mrb[0].mxu0 %v1010
        %v3006 = vpop.f32.mrb[0].mxu0
        %v3007 = vadd.f32 0.0, %v3006
        %v3008 = vpop.f32.mrb[0].mxu0
        %v3009 = vpop.f32.mrb[0].mxu0
        %v3010 = vadd.f32 0.0, %v3009
        %v3011 = vpop.f32.mrb[0].mxu0
        %3012 = vmatprep.mubr.bf16.mxu0 0
        %3013 = vmatmul.mubr.bf16.gmra.mrb[0].mxu0 %v1013
        %v3014 = vpop.f32.mrb[0].mxu0
        %v3015 = vadd.f32 0.0, %v3014
        %v3016 = vpop.f32.mrb[0].mxu0
        %v3017 = vpop.f32.mrb[0].mxu0
        %v3018 = vadd.f32 0.0, %v3017
        %v3019 = vpop.f32.mrb[0].mxu0
        %3020 = vmatprep.mubr.bf16.mxu0 0
        %3021 = vmatmul.mubr.bf16.gmra.mrb[0].mxu0 %v1016
        %v3022 = vpop.f32.mrb[0].mxu0
        %v3023 = vadd.f32 0.0, %v3022
        %v3024 = vpop.f32.mrb[0].mxu0
        %v3025 = vpop.f32.mrb[0].mxu0
        %v3026 = vadd.f32 0.0, %v3025
        %v3027 = vpop.f32.mrb[0].mxu0
        %3028 = vmatprep.mubr.bf16.mxu0 0
        %3029 = vmatmul.mubr.bf16.gmra.mrb[0].mxu0 %v1019
        %v3030 = vpop.f32.mrb[0].mxu0
        %v3031 = vadd.f32 0.0, %v3030
        %v3032 = vpop.f32.mrb[0].mxu0
        %v3033 = vpop.f32.mrb[0].mxu0
        %v3034 = vadd.f32 0.0, %v3033
        %v3035 = vpop.f32.mrb[0].mxu0
        %3036 = vmatprep.mubr.bf16.mxu0 0
        %3037 = vmatmul.mubr.bf16.gmra.mrb[0].mxu0 %v1022
        %v3038 = vpop.f32.mrb[0].mxu0
        %v3039 = vadd.f32 0.0, %v3038
        %v3040 = vpop.f32.mrb[0].mxu0
        %v3041 = vpop.f32.mrb[0].mxu0
        %v3042 = vadd.f32 0.0, %v3041
        %v3043 = vpop.f32.mrb[0].mxu0
        %3044 = vmatprep.mubr.bf16.mxu0 0
        %3045 = vmatmul.mubr.bf16.gmra.mrb[0].mxu0 %v1025
        %v3046 = vpop.f32.mrb[0].mxu0
        %v3047 = vadd.f32 0.0, %v3046
        %v3048 = vpop.f32.mrb[0].mxu0
        %v3049 = vpop.f32.mrb[0].mxu0
        %v3050 = vadd.f32 0.0, %v3049
        %v3051 = vpop.f32.mrb[0].mxu0
        %3052 = vmatprep.mubr.bf16.mxu0 0
        %3053 = vmatmul.mubr.bf16.gmra.mrb[0].mxu0 %v1028
        %v3054 = vpop.f32.mrb[0].mxu0
        %v3055 = vadd.f32 0.0, %v3054
        %v3056 = vpop.f32.mrb[0].mxu0
        %v3057 = vpop.f32.mrb[0].mxu0
        %v3058 = vadd.f32 0.0, %v3057
        %v3059 = vpop.f32.mrb[0].mxu0
        %3060 = vmatprep.mubr.bf16.mxu0 0
        %3061 = vmatmul.mubr.bf16.gmra.mrb[0].mxu0 %v1031
        %v3062 = vpop.f32.mrb[0].mxu0
        %v3063 = vadd.f32 0.0, %v3062
        %v3064 = vpop.f32.mrb[0].mxu0
        %v3065 = vpop.f32.mrb[0].mxu0
        %v3066 = vadd.f32 0.0, %v3065
        %v3067 = vpop.f32.mrb[0].mxu0
        %3068 = vmatprep.mubr.bf16.mxu0 0
        %3069 = vmatmul.mubr.bf16.gmra.mrb[0].mxu0 %v1034
        %v3070 = vpop.f32.mrb[0].mxu0
        %v3071 = vadd.f32 0.0, %v3070
        %v3072 = vpop.f32.mrb[0].mxu0
        %v3073 = vpop.f32.mrb[0].mxu0
        %v3074 = vadd.f32 0.0, %v3073
        %v3075 = vpop.f32.mrb[0].mxu0
        %3076 = vmatprep.mubr.bf16.mxu0 0
        %3077 = vmatmul.mubr.bf16.gmra.mrb[0].mxu0 %v1037
        %v3078 = vpop.f32.mrb[0].mxu0
        %v3079 = vadd.f32 0.0, %v3078
        %v3080 = vpop.f32.mrb[0].mxu0
        %v3081 = vpop.f32.mrb[0].mxu0
        %v3082 = vadd.f32 0.0, %v3081
        %v3083 = vpop.f32.mrb[0].mxu0
        %3084 = vmatprep.mubr.bf16.mxu0 0
        %3085 = vmatmul.mubr.bf16.gmra.mrb[0].mxu0 %v1040
        %v3086 = vpop.f32.mrb[0].mxu0
        %v3087 = vadd.f32 0.0, %v3086
        %v3088 = vpop.f32.mrb[0].mxu0
        %v3089 = vpop.f32.mrb[0].mxu0
        %v3090 = vadd.f32 0.0, %v3089
        %v3091 = vpop.f32.mrb[0].mxu0
        %3092 = vmatprep.mubr.bf16.mxu0 0
        %3093 = vmatmul.mubr.bf16.gmra.mrb[0].mxu0 %v1043
        %v3094 = vpop.f32.mrb[0].mxu0
        %v3095 = vadd.f32 0.0, %v3094
        %v3096 = vpop.f32.mrb[0].mxu0
        %v3097 = vpop.f32.mrb[0].mxu0
        %v3098 = vadd.f32 0.0, %v3097
        %v3099 = vpop.f32.mrb[0].mxu0
        %3100 = vdwg.mxu0
        %v3101 = vadd.f32 %v2904, %v2975
        %v3102 = vadd.f32 %v2905, %v2978
        %v3103 = vadd.f32 %v2906, %v2983
        %v3104 = vadd.f32 %v2907, %v2986
        %v3105 = vadd.f32 %v2908, %v2991
        %v3106 = vadd.f32 %v2909, %v2994
        %v3107 = vadd.f32 %v2910, %v2999
        %v3108 = vadd.f32 %v2911, %v3002
        %v3109 = vadd.f32 %v2912, %v3007
        %v3110 = vadd.f32 %v2913, %v3010
        %v3111 = vadd.f32 %v2914, %v3015
        %v3112 = vadd.f32 %v2915, %v3018
        %v3113 = vadd.f32 %v2916, %v3023
        %v3114 = vadd.f32 %v2917, %v3026
        %v3115 = vadd.f32 %v2918, %v3031
        %v3116 = vadd.f32 %v2919, %v3034
        %v3117 = vadd.f32 %v2920, %v3039
        %v3118 = vadd.f32 %v2921, %v3042
        %v3119 = vadd.f32 %v2922, %v3047
        %v3120 = vadd.f32 %v2923, %v3050
        %v3121 = vadd.f32 %v2924, %v3055
        %v3122 = vadd.f32 %v2925, %v3058
        %v3123 = vadd.f32 %v2926, %v3063
        %v3124 = vadd.f32 %v2927, %v3066
        %v3125 = vadd.f32 %v2928, %v3071
        %v3126 = vadd.f32 %v2929, %v3074
        %v3127 = vadd.f32 %v2930, %v3079
        %v3128 = vadd.f32 %v2931, %v3082
        %v3129 = vadd.f32 %v2932, %v3087
        %v3130 = vadd.f32 %v2933, %v3090
        %v3131 = vadd.f32 %v2934, %v3095
        %v3132 = vadd.f32 %v2935, %v3098
        %v3133 = vld [vmem:[%s713 + $0x8] sm:$0xf8]
        %v3134 = vld [vmem:[%s713 + $0x10] sm:$0x7]
        %v3135 = vld [vmem:[%s713 + $0x20] sm:$0xf8]
        %v3136 = vld [vmem:[%s713 + $0x28] sm:$0x7]
        %v3137 = vld [vmem:[%s713 + $0x38] sm:$0xf8]
        %v3138 = vld [vmem:[%s713 + $0x40] sm:$0x7]
        %v3139 = vld [vmem:[%s713 + $0x50] sm:$0xf8]
        %v3140 = vld [vmem:[%s713 + $0x58] sm:$0x7]
        %v3141 = vld [vmem:[%s713 + $0x68] sm:$0xf8]
        %v3142 = vld [vmem:[%s713 + $0x70] sm:$0x7]
        %v3143 = vld [vmem:[%s713 + $0x80] sm:$0xf8]
        %v3144 = vld [vmem:[%s713 + $0x88] sm:$0x7]
        %v3145 = vld [vmem:[%s713 + $0x98] sm:$0xf8]
        %v3146 = vld [vmem:[%s713 + $0xa0] sm:$0x7]
        %v3147 = vld [vmem:[%s713 + $0xb0] sm:$0xf8]
        %v3148 = vld [vmem:[%s713 + $0xb8] sm:$0x7]
        %v3149 = vld [vmem:[%s713 + $0xc8] sm:$0xf8]
        %v3150 = vld [vmem:[%s713 + $0xd0] sm:$0x7]
        %v3151 = vld [vmem:[%s713 + $0xe0] sm:$0xf8]
        %v3152 = vld [vmem:[%s713 + $0xe8] sm:$0x7]
        %v3153 = vld [vmem:[%s713 + $0xf8] sm:$0xf8]
        %v3154 = vld [vmem:[%s713 + $0x100] sm:$0x7]
        %v3155 = vld [vmem:[%s713 + $0x110] sm:$0xf8]
        %v3156 = vld [vmem:[%s713 + $0x118] sm:$0x7]
        %v3157 = vld [vmem:[%s713 + $0x128] sm:$0xf8]
        %v3158 = vld [vmem:[%s713 + $0x130] sm:$0x7]
        %v3159 = vld [vmem:[%s713 + $0x140] sm:$0xf8]
        %v3160 = vld [vmem:[%s713 + $0x148] sm:$0x7]
        %v3161 = vld [vmem:[%s713 + $0x158] sm:$0xf8]
        %v3162 = vld [vmem:[%s713 + $0x160] sm:$0x7]
        %v3163 = vld [vmem:[%s713 + $0x170] sm:$0xf8]
        %v3164 = vld [vmem:[%s713 + $0x178] sm:$0x7]
        %v3197 = vrot.slane %v3133, 3
        %v3198 = vrot.slane %v3134, 3
        %v3199 = vsel %vm2285, %v3197, %v3198
        %v3200 = vrot.slane %v3135, 3
        %v3201 = vrot.slane %v3136, 3
        %v3202 = vsel %vm2285, %v3200, %v3201
        %v3203 = vrot.slane %v3137, 3
        %v3204 = vrot.slane %v3138, 3
        %v3205 = vsel %vm2285, %v3203, %v3204
        %v3206 = vrot.slane %v3139, 3
        %v3207 = vrot.slane %v3140, 3
        %v3208 = vsel %vm2285, %v3206, %v3207
        %v3209 = vrot.slane %v3141, 3
        %v3210 = vrot.slane %v3142, 3
        %v3211 = vsel %vm2285, %v3209, %v3210
        %v3212 = vrot.slane %v3143, 3
        %v3213 = vrot.slane %v3144, 3
        %v3214 = vsel %vm2285, %v3212, %v3213
        %v3215 = vrot.slane %v3145, 3
        %v3216 = vrot.slane %v3146, 3
        %v3217 = vsel %vm2285, %v3215, %v3216
        %v3218 = vrot.slane %v3147, 3
        %v3219 = vrot.slane %v3148, 3
        %v3220 = vsel %vm2285, %v3218, %v3219
        %v3221 = vrot.slane %v3149, 3
        %v3222 = vrot.slane %v3150, 3
        %v3223 = vsel %vm2285, %v3221, %v3222
        %v3224 = vrot.slane %v3151, 3
        %v3225 = vrot.slane %v3152, 3
        %v3226 = vsel %vm2285, %v3224, %v3225
        %v3227 = vrot.slane %v3153, 3
        %v3228 = vrot.slane %v3154, 3
        %v3229 = vsel %vm2285, %v3227, %v3228
        %v3230 = vrot.slane %v3155, 3
        %v3231 = vrot.slane %v3156, 3
        %v3232 = vsel %vm2285, %v3230, %v3231
        %v3233 = vrot.slane %v3157, 3
        %v3234 = vrot.slane %v3158, 3
        %v3235 = vsel %vm2285, %v3233, %v3234
        %v3236 = vrot.slane %v3159, 3
        %v3237 = vrot.slane %v3160, 3
        %v3238 = vsel %vm2285, %v3236, %v3237
        %v3239 = vrot.slane %v3161, 3
        %v3240 = vrot.slane %v3162, 3
        %v3241 = vsel %vm2285, %v3239, %v3240
        %v3242 = vrot.slane %v3163, 3
        %v3243 = vrot.slane %v3164, 3
        %v3244 = vsel %vm2285, %v3242, %v3243
        %v3245 = vld [vmem:[%s3 + $0x14] sm:$0xf]
        %v3247 = vsel %vm440, %v3199, 0
        %v3250 = vsel %vm440, %v3202, 0
        %v3253 = vsel %vm440, %v3205, 0
        %v3256 = vsel %vm440, %v3208, 0
        %v3259 = vsel %vm440, %v3211, 0
        %v3262 = vsel %vm440, %v3214, 0
        %v3265 = vsel %vm440, %v3217, 0
        %v3268 = vsel %vm440, %v3220, 0
        %v3271 = vsel %vm440, %v3223, 0
        %v3274 = vsel %vm440, %v3226, 0
        %v3277 = vsel %vm440, %v3229, 0
        %v3280 = vsel %vm440, %v3232, 0
        %v3283 = vsel %vm440, %v3235, 0
        %v3286 = vsel %vm440, %v3238, 0
        %v3289 = vsel %vm440, %v3241, 0
        %v3292 = vsel %vm440, %v3244, 0
        %v3295 = vsel %vm1045, %v3245, 0
        %3297 = vmatprep.subr.bf16.mxu0 0
        %3298 = vmatpush1.bf16.msra.mxu0 %v3295
        %3299 = vmatprep.subr.bf16.mxu0 0
        %3300 = vmatpush1.bf16.msra.mxu0 0
        %3301 = vmatprep.subr.bf16.mxu0 0
        %3302 = vmatpush1.bf16.msra.mxu0 0
        %3303 = vmatprep.subr.bf16.mxu0 0
        %3304 = vmatpush1.bf16.msra.mxu0 0
        %3305 = vmatprep.subr.bf16.mxu0 0
        %3306 = vmatpush1.bf16.msra.mxu0 0
        %3307 = vmatprep.subr.bf16.mxu0 0
        %3308 = vmatpush1.bf16.msra.mxu0 0
        %3309 = vmatprep.subr.bf16.mxu0 0
        %3310 = vmatpush1.bf16.msra.mxu0 0
        %3311 = vmatprep.subr.bf16.mxu0 0
        %3312 = vmatpush1.bf16.msra.mxu0 0
        %3313 = vmatprep.subr.bf16.mxu0 0
        %3314 = vmatpush1.bf16.msra.mxu0 0
        %3315 = vmatprep.subr.bf16.mxu0 0
        %3316 = vmatpush1.bf16.msra.mxu0 0
        %3317 = vmatprep.subr.bf16.mxu0 0
        %3318 = vmatpush1.bf16.msra.mxu0 0
        %3319 = vmatprep.subr.bf16.mxu0 0
        %3320 = vmatpush1.bf16.msra.mxu0 0
        %3321 = vmatprep.subr.bf16.mxu0 0
        %3322 = vmatpush1.bf16.msra.mxu0 0
        %3323 = vmatprep.subr.bf16.mxu0 0
        %3324 = vmatpush1.bf16.msra.mxu0 0
        %3325 = vmatprep.subr.bf16.mxu0 0
        %3326 = vmatpush1.bf16.msra.mxu0 0
        %3327 = vmatprep.subr.bf16.mxu0 0
        %3328 = vmatpush1.bf16.msra.mxu0 0
        %3329 = vmatprep.mubr.bf16.mxu0 0
        %3330 = vmatmul.mubr.bf16.gmra.mrb[0].mxu0 %v3247
        %v3331 = vpop.f32.mrb[0].mxu0
        %v3332 = vadd.f32 0.0, %v3331
        %v3333 = vpop.f32.mrb[0].mxu0
        %v3334 = vpop.f32.mrb[0].mxu0
        %v3335 = vadd.f32 0.0, %v3334
        %v3336 = vpop.f32.mrb[0].mxu0
        %3337 = vmatprep.mubr.bf16.mxu0 0
        %3338 = vmatmul.mubr.bf16.gmra.mrb[0].mxu0 %v3250
        %v3339 = vpop.f32.mrb[0].mxu0
        %v3340 = vadd.f32 0.0, %v3339
        %v3341 = vpop.f32.mrb[0].mxu0
        %v3342 = vpop.f32.mrb[0].mxu0
        %v3343 = vadd.f32 0.0, %v3342
        %v3344 = vpop.f32.mrb[0].mxu0
        %3345 = vmatprep.mubr.bf16.mxu0 0
        %3346 = vmatmul.mubr.bf16.gmra.mrb[0].mxu0 %v3253
        %v3347 = vpop.f32.mrb[0].mxu0
        %v3348 = vadd.f32 0.0, %v3347
        %v3349 = vpop.f32.mrb[0].mxu0
        %v3350 = vpop.f32.mrb[0].mxu0
        %v3351 = vadd.f32 0.0, %v3350
        %v3352 = vpop.f32.mrb[0].mxu0
        %3353 = vmatprep.mubr.bf16.mxu0 0
        %3354 = vmatmul.mubr.bf16.gmra.mrb[0].mxu0 %v3256
        %v3355 = vpop.f32.mrb[0].mxu0
        %v3356 = vadd.f32 0.0, %v3355
        %v3357 = vpop.f32.mrb[0].mxu0
        %v3358 = vpop.f32.mrb[0].mxu0
        %v3359 = vadd.f32 0.0, %v3358
        %v3360 = vpop.f32.mrb[0].mxu0
        %3361 = vmatprep.mubr.bf16.mxu0 0
        %3362 = vmatmul.mubr.bf16.gmra.mrb[0].mxu0 %v3259
        %v3363 = vpop.f32.mrb[0].mxu0
        %v3364 = vadd.f32 0.0, %v3363
        %v3365 = vpop.f32.mrb[0].mxu0
        %v3366 = vpop.f32.mrb[0].mxu0
        %v3367 = vadd.f32 0.0, %v3366
        %v3368 = vpop.f32.mrb[0].mxu0
        %3369 = vmatprep.mubr.bf16.mxu0 0
        %3370 = vmatmul.mubr.bf16.gmra.mrb[0].mxu0 %v3262
        %v3371 = vpop.f32.mrb[0].mxu0
        %v3372 = vadd.f32 0.0, %v3371
        %v3373 = vpop.f32.mrb[0].mxu0
        %v3374 = vpop.f32.mrb[0].mxu0
        %v3375 = vadd.f32 0.0, %v3374
        %v3376 = vpop.f32.mrb[0].mxu0
        %3377 = vmatprep.mubr.bf16.mxu0 0
        %3378 = vmatmul.mubr.bf16.gmra.mrb[0].mxu0 %v3265
        %v3379 = vpop.f32.mrb[0].mxu0
        %v3380 = vadd.f32 0.0, %v3379
        %v3381 = vpop.f32.mrb[0].mxu0
        %v3382 = vpop.f32.mrb[0].mxu0
        %v3383 = vadd.f32 0.0, %v3382
        %v3384 = vpop.f32.mrb[0].mxu0
        %3385 = vmatprep.mubr.bf16.mxu0 0
        %3386 = vmatmul.mubr.bf16.gmra.mrb[0].mxu0 %v3268
        %v3387 = vpop.f32.mrb[0].mxu0
        %v3388 = vadd.f32 0.0, %v3387
        %v3389 = vpop.f32.mrb[0].mxu0
        %v3390 = vpop.f32.mrb[0].mxu0
        %v3391 = vadd.f32 0.0, %v3390
        %v3392 = vpop.f32.mrb[0].mxu0
        %3393 = vmatprep.mubr.bf16.mxu0 0
        %3394 = vmatmul.mubr.bf16.gmra.mrb[0].mxu0 %v3271
        %v3395 = vpop.f32.mrb[0].mxu0
        %v3396 = vadd.f32 0.0, %v3395
        %v3397 = vpop.f32.mrb[0].mxu0
        %v3398 = vpop.f32.mrb[0].mxu0
        %v3399 = vadd.f32 0.0, %v3398
        %v3400 = vpop.f32.mrb[0].mxu0
        %3401 = vmatprep.mubr.bf16.mxu0 0
        %3402 = vmatmul.mubr.bf16.gmra.mrb[0].mxu0 %v3274
        %v3403 = vpop.f32.mrb[0].mxu0
        %v3404 = vadd.f32 0.0, %v3403
        %v3405 = vpop.f32.mrb[0].mxu0
        %v3406 = vpop.f32.mrb[0].mxu0
        %v3407 = vadd.f32 0.0, %v3406
        %v3408 = vpop.f32.mrb[0].mxu0
        %3409 = vmatprep.mubr.bf16.mxu0 0
        %3410 = vmatmul.mubr.bf16.gmra.mrb[0].mxu0 %v3277
        %v3411 = vpop.f32.mrb[0].mxu0
        %v3412 = vadd.f32 0.0, %v3411
        %v3413 = vpop.f32.mrb[0].mxu0
        %v3414 = vpop.f32.mrb[0].mxu0
        %v3415 = vadd.f32 0.0, %v3414
        %v3416 = vpop.f32.mrb[0].mxu0
        %3417 = vmatprep.mubr.bf16.mxu0 0
        %3418 = vmatmul.mubr.bf16.gmra.mrb[0].mxu0 %v3280
        %v3419 = vpop.f32.mrb[0].mxu0
        %v3420 = vadd.f32 0.0, %v3419
        %v3421 = vpop.f32.mrb[0].mxu0
        %v3422 = vpop.f32.mrb[0].mxu0
        %v3423 = vadd.f32 0.0, %v3422
        %v3424 = vpop.f32.mrb[0].mxu0
        %3425 = vmatprep.mubr.bf16.mxu0 0
        %3426 = vmatmul.mubr.bf16.gmra.mrb[0].mxu0 %v3283
        %v3427 = vpop.f32.mrb[0].mxu0
        %v3428 = vadd.f32 0.0, %v3427
        %v3429 = vpop.f32.mrb[0].mxu0
        %v3430 = vpop.f32.mrb[0].mxu0
        %v3431 = vadd.f32 0.0, %v3430
        %v3432 = vpop.f32.mrb[0].mxu0
        %3433 = vmatprep.mubr.bf16.mxu0 0
        %3434 = vmatmul.mubr.bf16.gmra.mrb[0].mxu0 %v3286
        %v3435 = vpop.f32.mrb[0].mxu0
        %v3436 = vadd.f32 0.0, %v3435
        %v3437 = vpop.f32.mrb[0].mxu0
        %v3438 = vpop.f32.mrb[0].mxu0
        %v3439 = vadd.f32 0.0, %v3438
        %v3440 = vpop.f32.mrb[0].mxu0
        %3441 = vmatprep.mubr.bf16.mxu0 0
        %3442 = vmatmul.mubr.bf16.gmra.mrb[0].mxu0 %v3289
        %v3443 = vpop.f32.mrb[0].mxu0
        %v3444 = vadd.f32 0.0, %v3443
        %v3445 = vpop.f32.mrb[0].mxu0
        %v3446 = vpop.f32.mrb[0].mxu0
        %v3447 = vadd.f32 0.0, %v3446
        %v3448 = vpop.f32.mrb[0].mxu0
        %3449 = vmatprep.mubr.bf16.mxu0 0
        %3450 = vmatmul.mubr.bf16.gmra.mrb[0].mxu0 %v3292
        %v3451 = vpop.f32.mrb[0].mxu0
        %v3452 = vadd.f32 0.0, %v3451
        %v3453 = vpop.f32.mrb[0].mxu0
        %v3454 = vpop.f32.mrb[0].mxu0
        %v3455 = vadd.f32 0.0, %v3454
        %v3456 = vpop.f32.mrb[0].mxu0
        %3457 = vdwg.mxu0
        %v3458 = vadd.f32 %v3101, %v3332
        %v3459 = vadd.f32 %v3102, %v3335
        %v3460 = vadd.f32 %v3103, %v3340
        %v3461 = vadd.f32 %v3104, %v3343
        %v3462 = vadd.f32 %v3105, %v3348
        %v3463 = vadd.f32 %v3106, %v3351
        %v3464 = vadd.f32 %v3107, %v3356
        %v3465 = vadd.f32 %v3108, %v3359
        %v3466 = vadd.f32 %v3109, %v3364
        %v3467 = vadd.f32 %v3110, %v3367
        %v3468 = vadd.f32 %v3111, %v3372
        %v3469 = vadd.f32 %v3112, %v3375
        %v3470 = vadd.f32 %v3113, %v3380
        %v3471 = vadd.f32 %v3114, %v3383
        %v3472 = vadd.f32 %v3115, %v3388
        %v3473 = vadd.f32 %v3116, %v3391
        %v3474 = vadd.f32 %v3117, %v3396
        %v3475 = vadd.f32 %v3118, %v3399
        %v3476 = vadd.f32 %v3119, %v3404
        %v3477 = vadd.f32 %v3120, %v3407
        %v3478 = vadd.f32 %v3121, %v3412
        %v3479 = vadd.f32 %v3122, %v3415
        %v3480 = vadd.f32 %v3123, %v3420
        %v3481 = vadd.f32 %v3124, %v3423
        %v3482 = vadd.f32 %v3125, %v3428
        %v3483 = vadd.f32 %v3126, %v3431
        %v3484 = vadd.f32 %v3127, %v3436
        %v3485 = vadd.f32 %v3128, %v3439
        %v3486 = vadd.f32 %v3129, %v3444
        %v3487 = vadd.f32 %v3130, %v3447
        %v3488 = vadd.f32 %v3131, %v3452
        %v3489 = vadd.f32 %v3132, %v3455
        %s3490 = scalar_lea.vmem [#allocation2], 528
        %v3491 = vld [vmem:[%s3490] sm:$0xe0]
        %v3492 = vld [vmem:[%s3490 + $0x8] sm:$0x1f]
        %v3493 = vld [vmem:[%s3490 + $0x18] sm:$0xe0]
        %v3494 = vld [vmem:[%s3490 + $0x20] sm:$0x1f]
        %v3495 = vld [vmem:[%s3490 + $0x30] sm:$0xe0]
        %v3496 = vld [vmem:[%s3490 + $0x38] sm:$0x1f]
        %v3497 = vld [vmem:[%s3490 + $0x48] sm:$0xe0]
        %v3498 = vld [vmem:[%s3490 + $0x50] sm:$0x1f]
        %v3499 = vld [vmem:[%s3490 + $0x60] sm:$0xe0]
        %v3500 = vld [vmem:[%s3490 + $0x68] sm:$0x1f]
        %v3501 = vld [vmem:[%s3490 + $0x78] sm:$0xe0]
        %v3502 = vld [vmem:[%s3490 + $0x80] sm:$0x1f]
        %v3503 = vld [vmem:[%s3490 + $0x90] sm:$0xe0]
        %v3504 = vld [vmem:[%s3490 + $0x98] sm:$0x1f]
        %v3505 = vld [vmem:[%s3490 + $0xa8] sm:$0xe0]
        %v3506 = vld [vmem:[%s3490 + $0xb0] sm:$0x1f]
        %v3507 = vld [vmem:[%s3490 + $0xc0] sm:$0xe0]
        %v3508 = vld [vmem:[%s3490 + $0xc8] sm:$0x1f]
        %v3509 = vld [vmem:[%s3490 + $0xd8] sm:$0xe0]
        %v3510 = vld [vmem:[%s3490 + $0xe0] sm:$0x1f]
        %v3511 = vld [vmem:[%s3490 + $0xf0] sm:$0xe0]
        %v3512 = vld [vmem:[%s3490 + $0xf8] sm:$0x1f]
        %v3513 = vld [vmem:[%s3490 + $0x108] sm:$0xe0]
        %v3514 = vld [vmem:[%s3490 + $0x110] sm:$0x1f]
        %v3515 = vld [vmem:[%s3490 + $0x120] sm:$0xe0]
        %v3516 = vld [vmem:[%s3490 + $0x128] sm:$0x1f]
        %v3517 = vld [vmem:[%s3490 + $0x138] sm:$0xe0]
        %v3518 = vld [vmem:[%s3490 + $0x140] sm:$0x1f]
        %v3519 = vld [vmem:[%s3490 + $0x150] sm:$0xe0]
        %v3520 = vld [vmem:[%s3490 + $0x158] sm:$0x1f]
        %v3521 = vld [vmem:[%s3490 + $0x168] sm:$0xe0]
        %v3522 = vld [vmem:[%s3490 + $0x170] sm:$0x1f]
        %v3555 = vrot.slane %v3491, 5
        %v3556 = vrot.slane %v3492, 5
        %v3557 = vsel %vm1730, %v3555, %v3556
        %v3558 = vrot.slane %v3493, 5
        %v3559 = vrot.slane %v3494, 5
        %v3560 = vsel %vm1730, %v3558, %v3559
        %v3561 = vrot.slane %v3495, 5
        %v3562 = vrot.slane %v3496, 5
        %v3563 = vsel %vm1730, %v3561, %v3562
        %v3564 = vrot.slane %v3497, 5
        %v3565 = vrot.slane %v3498, 5
        %v3566 = vsel %vm1730, %v3564, %v3565
        %v3567 = vrot.slane %v3499, 5
        %v3568 = vrot.slane %v3500, 5
        %v3569 = vsel %vm1730, %v3567, %v3568
        %v3570 = vrot.slane %v3501, 5
        %v3571 = vrot.slane %v3502, 5
        %v3572 = vsel %vm1730, %v3570, %v3571
        %v3573 = vrot.slane %v3503, 5
        %v3574 = vrot.slane %v3504, 5
        %v3575 = vsel %vm1730, %v3573, %v3574
        %v3576 = vrot.slane %v3505, 5
        %v3577 = vrot.slane %v3506, 5
        %v3578 = vsel %vm1730, %v3576, %v3577
        %v3579 = vrot.slane %v3507, 5
        %v3580 = vrot.slane %v3508, 5
        %v3581 = vsel %vm1730, %v3579, %v3580
        %v3582 = vrot.slane %v3509, 5
        %v3583 = vrot.slane %v3510, 5
        %v3584 = vsel %vm1730, %v3582, %v3583
        %v3585 = vrot.slane %v3511, 5
        %v3586 = vrot.slane %v3512, 5
        %v3587 = vsel %vm1730, %v3585, %v3586
        %v3588 = vrot.slane %v3513, 5
        %v3589 = vrot.slane %v3514, 5
        %v3590 = vsel %vm1730, %v3588, %v3589
        %v3591 = vrot.slane %v3515, 5
        %v3592 = vrot.slane %v3516, 5
        %v3593 = vsel %vm1730, %v3591, %v3592
        %v3594 = vrot.slane %v3517, 5
        %v3595 = vrot.slane %v3518, 5
        %v3596 = vsel %vm1730, %v3594, %v3595
        %v3597 = vrot.slane %v3519, 5
        %v3598 = vrot.slane %v3520, 5
        %v3599 = vsel %vm1730, %v3597, %v3598
        %v3600 = vrot.slane %v3521, 5
        %v3601 = vrot.slane %v3522, 5
        %v3602 = vsel %vm1730, %v3600, %v3601
        %v3603 = vld [vmem:[%s3 + $0x18] sm:$0xf]
        %v3605 = vsel %vm440, %v3557, 0
        %v3608 = vsel %vm440, %v3560, 0
        %v3611 = vsel %vm440, %v3563, 0
        %v3614 = vsel %vm440, %v3566, 0
        %v3617 = vsel %vm440, %v3569, 0
        %v3620 = vsel %vm440, %v3572, 0
        %v3623 = vsel %vm440, %v3575, 0
        %v3626 = vsel %vm440, %v3578, 0
        %v3629 = vsel %vm440, %v3581, 0
        %v3632 = vsel %vm440, %v3584, 0
        %v3635 = vsel %vm440, %v3587, 0
        %v3638 = vsel %vm440, %v3590, 0
        %v3641 = vsel %vm440, %v3593, 0
        %v3644 = vsel %vm440, %v3596, 0
        %v3647 = vsel %vm440, %v3599, 0
        %v3650 = vsel %vm440, %v3602, 0
        %v3653 = vsel %vm1045, %v3603, 0
        %3655 = vmatprep.subr.bf16.mxu0 0
        %3656 = vmatpush1.bf16.msra.mxu0 %v3653
        %3657 = vmatprep.subr.bf16.mxu0 0
        %3658 = vmatpush1.bf16.msra.mxu0 0
        %3659 = vmatprep.subr.bf16.mxu0 0
        %3660 = vmatpush1.bf16.msra.mxu0 0
        %3661 = vmatprep.subr.bf16.mxu0 0
        %3662 = vmatpush1.bf16.msra.mxu0 0
        %3663 = vmatprep.subr.bf16.mxu0 0
        %3664 = vmatpush1.bf16.msra.mxu0 0
        %3665 = vmatprep.subr.bf16.mxu0 0
        %3666 = vmatpush1.bf16.msra.mxu0 0
        %3667 = vmatprep.subr.bf16.mxu0 0
        %3668 = vmatpush1.bf16.msra.mxu0 0
        %3669 = vmatprep.subr.bf16.mxu0 0
        %3670 = vmatpush1.bf16.msra.mxu0 0
        %3671 = vmatprep.subr.bf16.mxu0 0
        %3672 = vmatpush1.bf16.msra.mxu0 0
        %3673 = vmatprep.subr.bf16.mxu0 0
        %3674 = vmatpush1.bf16.msra.mxu0 0
        %3675 = vmatprep.subr.bf16.mxu0 0
        %3676 = vmatpush1.bf16.msra.mxu0 0
        %3677 = vmatprep.subr.bf16.mxu0 0
        %3678 = vmatpush1.bf16.msra.mxu0 0
        %3679 = vmatprep.subr.bf16.mxu0 0
        %3680 = vmatpush1.bf16.msra.mxu0 0
        %3681 = vmatprep.subr.bf16.mxu0 0
        %3682 = vmatpush1.bf16.msra.mxu0 0
        %3683 = vmatprep.subr.bf16.mxu0 0
        %3684 = vmatpush1.bf16.msra.mxu0 0
        %3685 = vmatprep.subr.bf16.mxu0 0
        %3686 = vmatpush1.bf16.msra.mxu0 0
        %3687 = vmatprep.mubr.bf16.mxu0 0
        %3688 = vmatmul.mubr.bf16.gmra.mrb[0].mxu0 %v3605
        %v3689 = vpop.f32.mrb[0].mxu0
        %v3690 = vadd.f32 0.0, %v3689
        %v3691 = vpop.f32.mrb[0].mxu0
        %v3692 = vpop.f32.mrb[0].mxu0
        %v3693 = vadd.f32 0.0, %v3692
        %v3694 = vpop.f32.mrb[0].mxu0
        %3695 = vmatprep.mubr.bf16.mxu0 0
        %3696 = vmatmul.mubr.bf16.gmra.mrb[0].mxu0 %v3608
        %v3697 = vpop.f32.mrb[0].mxu0
        %v3698 = vadd.f32 0.0, %v3697
        %v3699 = vpop.f32.mrb[0].mxu0
        %v3700 = vpop.f32.mrb[0].mxu0
        %v3701 = vadd.f32 0.0, %v3700
        %v3702 = vpop.f32.mrb[0].mxu0
        %3703 = vmatprep.mubr.bf16.mxu0 0
        %3704 = vmatmul.mubr.bf16.gmra.mrb[0].mxu0 %v3611
        %v3705 = vpop.f32.mrb[0].mxu0
        %v3706 = vadd.f32 0.0, %v3705
        %v3707 = vpop.f32.mrb[0].mxu0
        %v3708 = vpop.f32.mrb[0].mxu0
        %v3709 = vadd.f32 0.0, %v3708
        %v3710 = vpop.f32.mrb[0].mxu0
        %3711 = vmatprep.mubr.bf16.mxu0 0
        %3712 = vmatmul.mubr.bf16.gmra.mrb[0].mxu0 %v3614
        %v3713 = vpop.f32.mrb[0].mxu0
        %v3714 = vadd.f32 0.0, %v3713
        %v3715 = vpop.f32.mrb[0].mxu0
        %v3716 = vpop.f32.mrb[0].mxu0
        %v3717 = vadd.f32 0.0, %v3716
        %v3718 = vpop.f32.mrb[0].mxu0
        %3719 = vmatprep.mubr.bf16.mxu0 0
        %3720 = vmatmul.mubr.bf16.gmra.mrb[0].mxu0 %v3617
        %v3721 = vpop.f32.mrb[0].mxu0
        %v3722 = vadd.f32 0.0, %v3721
        %v3723 = vpop.f32.mrb[0].mxu0
        %v3724 = vpop.f32.mrb[0].mxu0
        %v3725 = vadd.f32 0.0, %v3724
        %v3726 = vpop.f32.mrb[0].mxu0
        %3727 = vmatprep.mubr.bf16.mxu0 0
        %3728 = vmatmul.mubr.bf16.gmra.mrb[0].mxu0 %v3620
        %v3729 = vpop.f32.mrb[0].mxu0
        %v3730 = vadd.f32 0.0, %v3729
        %v3731 = vpop.f32.mrb[0].mxu0
        %v3732 = vpop.f32.mrb[0].mxu0
        %v3733 = vadd.f32 0.0, %v3732
        %v3734 = vpop.f32.mrb[0].mxu0
        %3735 = vmatprep.mubr.bf16.mxu0 0
        %3736 = vmatmul.mubr.bf16.gmra.mrb[0].mxu0 %v3623
        %v3737 = vpop.f32.mrb[0].mxu0
        %v3738 = vadd.f32 0.0, %v3737
        %v3739 = vpop.f32.mrb[0].mxu0
        %v3740 = vpop.f32.mrb[0].mxu0
        %v3741 = vadd.f32 0.0, %v3740
        %v3742 = vpop.f32.mrb[0].mxu0
        %3743 = vmatprep.mubr.bf16.mxu0 0
        %3744 = vmatmul.mubr.bf16.gmra.mrb[0].mxu0 %v3626
        %v3745 = vpop.f32.mrb[0].mxu0
        %v3746 = vadd.f32 0.0, %v3745
        %v3747 = vpop.f32.mrb[0].mxu0
        %v3748 = vpop.f32.mrb[0].mxu0
        %v3749 = vadd.f32 0.0, %v3748
        %v3750 = vpop.f32.mrb[0].mxu0
        %3751 = vmatprep.mubr.bf16.mxu0 0
        %3752 = vmatmul.mubr.bf16.gmra.mrb[0].mxu0 %v3629
        %v3753 = vpop.f32.mrb[0].mxu0
        %v3754 = vadd.f32 0.0, %v3753
        %v3755 = vpop.f32.mrb[0].mxu0
        %v3756 = vpop.f32.mrb[0].mxu0
        %v3757 = vadd.f32 0.0, %v3756
        %v3758 = vpop.f32.mrb[0].mxu0
        %3759 = vmatprep.mubr.bf16.mxu0 0
        %3760 = vmatmul.mubr.bf16.gmra.mrb[0].mxu0 %v3632
        %v3761 = vpop.f32.mrb[0].mxu0
        %v3762 = vadd.f32 0.0, %v3761
        %v3763 = vpop.f32.mrb[0].mxu0
        %v3764 = vpop.f32.mrb[0].mxu0
        %v3765 = vadd.f32 0.0, %v3764
        %v3766 = vpop.f32.mrb[0].mxu0
        %3767 = vmatprep.mubr.bf16.mxu0 0
        %3768 = vmatmul.mubr.bf16.gmra.mrb[0].mxu0 %v3635
        %v3769 = vpop.f32.mrb[0].mxu0
        %v3770 = vadd.f32 0.0, %v3769
        %v3771 = vpop.f32.mrb[0].mxu0
        %v3772 = vpop.f32.mrb[0].mxu0
        %v3773 = vadd.f32 0.0, %v3772
        %v3774 = vpop.f32.mrb[0].mxu0
        %3775 = vmatprep.mubr.bf16.mxu0 0
        %3776 = vmatmul.mubr.bf16.gmra.mrb[0].mxu0 %v3638
        %v3777 = vpop.f32.mrb[0].mxu0
        %v3778 = vadd.f32 0.0, %v3777
        %v3779 = vpop.f32.mrb[0].mxu0
        %v3780 = vpop.f32.mrb[0].mxu0
        %v3781 = vadd.f32 0.0, %v3780
        %v3782 = vpop.f32.mrb[0].mxu0
        %3783 = vmatprep.mubr.bf16.mxu0 0
        %3784 = vmatmul.mubr.bf16.gmra.mrb[0].mxu0 %v3641
        %v3785 = vpop.f32.mrb[0].mxu0
        %v3786 = vadd.f32 0.0, %v3785
        %v3787 = vpop.f32.mrb[0].mxu0
        %v3788 = vpop.f32.mrb[0].mxu0
        %v3789 = vadd.f32 0.0, %v3788
        %v3790 = vpop.f32.mrb[0].mxu0
        %3791 = vmatprep.mubr.bf16.mxu0 0
        %3792 = vmatmul.mubr.bf16.gmra.mrb[0].mxu0 %v3644
        %v3793 = vpop.f32.mrb[0].mxu0
        %v3794 = vadd.f32 0.0, %v3793
        %v3795 = vpop.f32.mrb[0].mxu0
        %v3796 = vpop.f32.mrb[0].mxu0
        %v3797 = vadd.f32 0.0, %v3796
        %v3798 = vpop.f32.mrb[0].mxu0
        %3799 = vmatprep.mubr.bf16.mxu0 0
        %3800 = vmatmul.mubr.bf16.gmra.mrb[0].mxu0 %v3647
        %v3801 = vpop.f32.mrb[0].mxu0
        %v3802 = vadd.f32 0.0, %v3801
        %v3803 = vpop.f32.mrb[0].mxu0
        %v3804 = vpop.f32.mrb[0].mxu0
        %v3805 = vadd.f32 0.0, %v3804
        %v3806 = vpop.f32.mrb[0].mxu0
        %3807 = vmatprep.mubr.bf16.mxu0 0
        %3808 = vmatmul.mubr.bf16.gmra.mrb[0].mxu0 %v3650
        %v3809 = vpop.f32.mrb[0].mxu0
        %v3810 = vadd.f32 0.0, %v3809
        %v3811 = vpop.f32.mrb[0].mxu0
        %v3812 = vpop.f32.mrb[0].mxu0
        %v3813 = vadd.f32 0.0, %v3812
        %v3814 = vpop.f32.mrb[0].mxu0
        %3815 = vdwg.mxu0
        %v3816 = vadd.f32 %v3458, %v3690
        %v3817 = vadd.f32 %v3459, %v3693
        %v3818 = vadd.f32 %v3460, %v3698
        %v3819 = vadd.f32 %v3461, %v3701
        %v3820 = vadd.f32 %v3462, %v3706
        %v3821 = vadd.f32 %v3463, %v3709
        %v3822 = vadd.f32 %v3464, %v3714
        %v3823 = vadd.f32 %v3465, %v3717
        %v3824 = vadd.f32 %v3466, %v3722
        %v3825 = vadd.f32 %v3467, %v3725
        %v3826 = vadd.f32 %v3468, %v3730
        %v3827 = vadd.f32 %v3469, %v3733
        %v3828 = vadd.f32 %v3470, %v3738
        %v3829 = vadd.f32 %v3471, %v3741
        %v3830 = vadd.f32 %v3472, %v3746
        %v3831 = vadd.f32 %v3473, %v3749
        %v3832 = vadd.f32 %v3474, %v3754
        %v3833 = vadd.f32 %v3475, %v3757
        %v3834 = vadd.f32 %v3476, %v3762
        %v3835 = vadd.f32 %v3477, %v3765
        %v3836 = vadd.f32 %v3478, %v3770
        %v3837 = vadd.f32 %v3479, %v3773
        %v3838 = vadd.f32 %v3480, %v3778
        %v3839 = vadd.f32 %v3481, %v3781
        %v3840 = vadd.f32 %v3482, %v3786
        %v3841 = vadd.f32 %v3483, %v3789
        %v3842 = vadd.f32 %v3484, %v3794
        %v3843 = vadd.f32 %v3485, %v3797
        %v3844 = vadd.f32 %v3486, %v3802
        %v3845 = vadd.f32 %v3487, %v3805
        %v3846 = vadd.f32 %v3488, %v3810
        %v3847 = vadd.f32 %v3489, %v3813
        %v3848 = vld [vmem:[%s3490 + $0x8] sm:$0xff]
        %v3849 = vld [vmem:[%s3490 + $0x20] sm:$0xff]
        %v3850 = vld [vmem:[%s3490 + $0x38] sm:$0xff]
        %v3851 = vld [vmem:[%s3490 + $0x50] sm:$0xff]
        %v3852 = vld [vmem:[%s3490 + $0x68] sm:$0xff]
        %v3853 = vld [vmem:[%s3490 + $0x80] sm:$0xff]
        %v3854 = vld [vmem:[%s3490 + $0x98] sm:$0xff]
        %v3855 = vld [vmem:[%s3490 + $0xb0] sm:$0xff]
        %v3856 = vld [vmem:[%s3490 + $0xc8] sm:$0xff]
        %v3857 = vld [vmem:[%s3490 + $0xe0] sm:$0xff]
        %v3858 = vld [vmem:[%s3490 + $0xf8] sm:$0xff]
        %v3859 = vld [vmem:[%s3490 + $0x110] sm:$0xff]
        %v3860 = vld [vmem:[%s3490 + $0x128] sm:$0xff]
        %v3861 = vld [vmem:[%s3490 + $0x140] sm:$0xff]
        %v3862 = vld [vmem:[%s3490 + $0x158] sm:$0xff]
        %v3863 = vld [vmem:[%s3490 + $0x170] sm:$0xff]
        %v3864 = vld [vmem:[%s3 + $0x1c] sm:$0xf]
        %v3866 = vsel %vm440, %v3848, 0
        %v3869 = vsel %vm440, %v3849, 0
        %v3872 = vsel %vm440, %v3850, 0
        %v3875 = vsel %vm440, %v3851, 0
        %v3878 = vsel %vm440, %v3852, 0
        %v3881 = vsel %vm440, %v3853, 0
        %v3884 = vsel %vm440, %v3854, 0
        %v3887 = vsel %vm440, %v3855, 0
        %v3890 = vsel %vm440, %v3856, 0
        %v3893 = vsel %vm440, %v3857, 0
        %v3896 = vsel %vm440, %v3858, 0
        %v3899 = vsel %vm440, %v3859, 0
        %v3902 = vsel %vm440, %v3860, 0
        %v3905 = vsel %vm440, %v3861, 0
        %v3908 = vsel %vm440, %v3862, 0
        %v3911 = vsel %vm440, %v3863, 0
        %v3914 = vsel %vm1045, %v3864, 0
        %3916 = vmatprep.subr.bf16.mxu0 0
        %3917 = vmatpush1.bf16.msra.mxu0 %v3914
        %3918 = vmatprep.subr.bf16.mxu0 0
        %3919 = vmatpush1.bf16.msra.mxu0 0
        %3920 = vmatprep.subr.bf16.mxu0 0
        %3921 = vmatpush1.bf16.msra.mxu0 0
        %3922 = vmatprep.subr.bf16.mxu0 0
        %3923 = vmatpush1.bf16.msra.mxu0 0
        %3924 = vmatprep.subr.bf16.mxu0 0
        %3925 = vmatpush1.bf16.msra.mxu0 0
        %3926 = vmatprep.subr.bf16.mxu0 0
        %3927 = vmatpush1.bf16.msra.mxu0 0
        %3928 = vmatprep.subr.bf16.mxu0 0
        %3929 = vmatpush1.bf16.msra.mxu0 0
        %3930 = vmatprep.subr.bf16.mxu0 0
        %3931 = vmatpush1.bf16.msra.mxu0 0
        %3932 = vmatprep.subr.bf16.mxu0 0
        %3933 = vmatpush1.bf16.msra.mxu0 0
        %3934 = vmatprep.subr.bf16.mxu0 0
        %3935 = vmatpush1.bf16.msra.mxu0 0
        %3936 = vmatprep.subr.bf16.mxu0 0
        %3937 = vmatpush1.bf16.msra.mxu0 0
        %3938 = vmatprep.subr.bf16.mxu0 0
        %3939 = vmatpush1.bf16.msra.mxu0 0
        %3940 = vmatprep.subr.bf16.mxu0 0
        %3941 = vmatpush1.bf16.msra.mxu0 0
        %3942 = vmatprep.subr.bf16.mxu0 0
        %3943 = vmatpush1.bf16.msra.mxu0 0
        %3944 = vmatprep.subr.bf16.mxu0 0
        %3945 = vmatpush1.bf16.msra.mxu0 0
        %3946 = vmatprep.subr.bf16.mxu0 0
        %3947 = vmatpush1.bf16.msra.mxu0 0
        %3948 = vmatprep.mubr.bf16.mxu0 0
        %3949 = vmatmul.mubr.bf16.gmra.mrb[0].mxu0 %v3866
        %v3950 = vpop.f32.mrb[0].mxu0
        %v3951 = vadd.f32 0.0, %v3950
        %v3952 = vpop.f32.mrb[0].mxu0
        %v3953 = vpop.f32.mrb[0].mxu0
        %v3954 = vadd.f32 0.0, %v3953
        %v3955 = vpop.f32.mrb[0].mxu0
        %3956 = vmatprep.mubr.bf16.mxu0 0
        %3957 = vmatmul.mubr.bf16.gmra.mrb[0].mxu0 %v3869
        %v3958 = vpop.f32.mrb[0].mxu0
        %v3959 = vadd.f32 0.0, %v3958
        %v3960 = vpop.f32.mrb[0].mxu0
        %v3961 = vpop.f32.mrb[0].mxu0
        %v3962 = vadd.f32 0.0, %v3961
        %v3963 = vpop.f32.mrb[0].mxu0
        %3964 = vmatprep.mubr.bf16.mxu0 0
        %3965 = vmatmul.mubr.bf16.gmra.mrb[0].mxu0 %v3872
        %v3966 = vpop.f32.mrb[0].mxu0
        %v3967 = vadd.f32 0.0, %v3966
        %v3968 = vpop.f32.mrb[0].mxu0
        %v3969 = vpop.f32.mrb[0].mxu0
        %v3970 = vadd.f32 0.0, %v3969
        %v3971 = vpop.f32.mrb[0].mxu0
        %3972 = vmatprep.mubr.bf16.mxu0 0
        %3973 = vmatmul.mubr.bf16.gmra.mrb[0].mxu0 %v3875
        %v3974 = vpop.f32.mrb[0].mxu0
        %v3975 = vadd.f32 0.0, %v3974
        %v3976 = vpop.f32.mrb[0].mxu0
        %v3977 = vpop.f32.mrb[0].mxu0
        %v3978 = vadd.f32 0.0, %v3977
        %v3979 = vpop.f32.mrb[0].mxu0
        %3980 = vmatprep.mubr.bf16.mxu0 0
        %3981 = vmatmul.mubr.bf16.gmra.mrb[0].mxu0 %v3878
        %v3982 = vpop.f32.mrb[0].mxu0
        %v3983 = vadd.f32 0.0, %v3982
        %v3984 = vpop.f32.mrb[0].mxu0
        %v3985 = vpop.f32.mrb[0].mxu0
        %v3986 = vadd.f32 0.0, %v3985
        %v3987 = vpop.f32.mrb[0].mxu0
        %3988 = vmatprep.mubr.bf16.mxu0 0
        %3989 = vmatmul.mubr.bf16.gmra.mrb[0].mxu0 %v3881
        %v3990 = vpop.f32.mrb[0].mxu0
        %v3991 = vadd.f32 0.0, %v3990
        %v3992 = vpop.f32.mrb[0].mxu0
        %v3993 = vpop.f32.mrb[0].mxu0
        %v3994 = vadd.f32 0.0, %v3993
        %v3995 = vpop.f32.mrb[0].mxu0
        %3996 = vmatprep.mubr.bf16.mxu0 0
        %3997 = vmatmul.mubr.bf16.gmra.mrb[0].mxu0 %v3884
        %v3998 = vpop.f32.mrb[0].mxu0
        %v3999 = vadd.f32 0.0, %v3998
        %v4000 = vpop.f32.mrb[0].mxu0
        %v4001 = vpop.f32.mrb[0].mxu0
        %v4002 = vadd.f32 0.0, %v4001
        %v4003 = vpop.f32.mrb[0].mxu0
        %4004 = vmatprep.mubr.bf16.mxu0 0
        %4005 = vmatmul.mubr.bf16.gmra.mrb[0].mxu0 %v3887
        %v4006 = vpop.f32.mrb[0].mxu0
        %v4007 = vadd.f32 0.0, %v4006
        %v4008 = vpop.f32.mrb[0].mxu0
        %v4009 = vpop.f32.mrb[0].mxu0
        %v4010 = vadd.f32 0.0, %v4009
        %v4011 = vpop.f32.mrb[0].mxu0
        %4012 = vmatprep.mubr.bf16.mxu0 0
        %4013 = vmatmul.mubr.bf16.gmra.mrb[0].mxu0 %v3890
        %v4014 = vpop.f32.mrb[0].mxu0
        %v4015 = vadd.f32 0.0, %v4014
        %v4016 = vpop.f32.mrb[0].mxu0
        %v4017 = vpop.f32.mrb[0].mxu0
        %v4018 = vadd.f32 0.0, %v4017
        %v4019 = vpop.f32.mrb[0].mxu0
        %4020 = vmatprep.mubr.bf16.mxu0 0
        %4021 = vmatmul.mubr.bf16.gmra.mrb[0].mxu0 %v3893
        %v4022 = vpop.f32.mrb[0].mxu0
        %v4023 = vadd.f32 0.0, %v4022
        %v4024 = vpop.f32.mrb[0].mxu0
        %v4025 = vpop.f32.mrb[0].mxu0
        %v4026 = vadd.f32 0.0, %v4025
        %v4027 = vpop.f32.mrb[0].mxu0
        %4028 = vmatprep.mubr.bf16.mxu0 0
        %4029 = vmatmul.mubr.bf16.gmra.mrb[0].mxu0 %v3896
        %v4030 = vpop.f32.mrb[0].mxu0
        %v4031 = vadd.f32 0.0, %v4030
        %v4032 = vpop.f32.mrb[0].mxu0
        %v4033 = vpop.f32.mrb[0].mxu0
        %v4034 = vadd.f32 0.0, %v4033
        %v4035 = vpop.f32.mrb[0].mxu0
        %4036 = vmatprep.mubr.bf16.mxu0 0
        %4037 = vmatmul.mubr.bf16.gmra.mrb[0].mxu0 %v3899
        %v4038 = vpop.f32.mrb[0].mxu0
        %v4039 = vadd.f32 0.0, %v4038
        %v4040 = vpop.f32.mrb[0].mxu0
        %v4041 = vpop.f32.mrb[0].mxu0
        %v4042 = vadd.f32 0.0, %v4041
        %v4043 = vpop.f32.mrb[0].mxu0
        %4044 = vmatprep.mubr.bf16.mxu0 0
        %4045 = vmatmul.mubr.bf16.gmra.mrb[0].mxu0 %v3902
        %v4046 = vpop.f32.mrb[0].mxu0
        %v4047 = vadd.f32 0.0, %v4046
        %v4048 = vpop.f32.mrb[0].mxu0
        %v4049 = vpop.f32.mrb[0].mxu0
        %v4050 = vadd.f32 0.0, %v4049
        %v4051 = vpop.f32.mrb[0].mxu0
        %4052 = vmatprep.mubr.bf16.mxu0 0
        %4053 = vmatmul.mubr.bf16.gmra.mrb[0].mxu0 %v3905
        %v4054 = vpop.f32.mrb[0].mxu0
        %v4055 = vadd.f32 0.0, %v4054
        %v4056 = vpop.f32.mrb[0].mxu0
        %v4057 = vpop.f32.mrb[0].mxu0
        %v4058 = vadd.f32 0.0, %v4057
        %v4059 = vpop.f32.mrb[0].mxu0
        %4060 = vmatprep.mubr.bf16.mxu0 0
        %4061 = vmatmul.mubr.bf16.gmra.mrb[0].mxu0 %v3908
        %v4062 = vpop.f32.mrb[0].mxu0
        %v4063 = vadd.f32 0.0, %v4062
        %v4064 = vpop.f32.mrb[0].mxu0
        %v4065 = vpop.f32.mrb[0].mxu0
        %v4066 = vadd.f32 0.0, %v4065
        %v4067 = vpop.f32.mrb[0].mxu0
        %4068 = vmatprep.mubr.bf16.mxu0 0
        %4069 = vmatmul.mubr.bf16.gmra.mrb[0].mxu0 %v3911
        %v4070 = vpop.f32.mrb[0].mxu0
        %v4071 = vadd.f32 0.0, %v4070
        %v4072 = vpop.f32.mrb[0].mxu0
        %v4073 = vpop.f32.mrb[0].mxu0
        %v4074 = vadd.f32 0.0, %v4073
        %v4075 = vpop.f32.mrb[0].mxu0
        %4076 = vdwg.mxu0
        %v4077 = vadd.f32 %v3816, %v3951
        %v4078 = vadd.f32 %v3817, %v3954
        %v4079 = vadd.f32 %v3818, %v3959
        %v4080 = vadd.f32 %v3819, %v3962
        %v4081 = vadd.f32 %v3820, %v3967
        %v4082 = vadd.f32 %v3821, %v3970
        %v4083 = vadd.f32 %v3822, %v3975
        %v4084 = vadd.f32 %v3823, %v3978
        %v4085 = vadd.f32 %v3824, %v3983
        %v4086 = vadd.f32 %v3825, %v3986
        %v4087 = vadd.f32 %v3826, %v3991
        %v4088 = vadd.f32 %v3827, %v3994
        %v4089 = vadd.f32 %v3828, %v3999
        %v4090 = vadd.f32 %v3829, %v4002
        %v4091 = vadd.f32 %v3830, %v4007
        %v4092 = vadd.f32 %v3831, %v4010
        %v4093 = vadd.f32 %v3832, %v4015
        %v4094 = vadd.f32 %v3833, %v4018
        %v4095 = vadd.f32 %v3834, %v4023
        %v4096 = vadd.f32 %v3835, %v4026
        %v4097 = vadd.f32 %v3836, %v4031
        %v4098 = vadd.f32 %v3837, %v4034
        %v4099 = vadd.f32 %v3838, %v4039
        %v4100 = vadd.f32 %v3839, %v4042
        %v4101 = vadd.f32 %v3840, %v4047
        %v4102 = vadd.f32 %v3841, %v4050
        %v4103 = vadd.f32 %v3842, %v4055
        %v4104 = vadd.f32 %v3843, %v4058
        %v4105 = vadd.f32 %v3844, %v4063
        %v4106 = vadd.f32 %v3845, %v4066
        %v4107 = vadd.f32 %v3846, %v4071
        %v4108 = vadd.f32 %v3847, %v4074
        %v4109 = vld [vmem:[%s3490 + $0x8] sm:$0xf8]
        %v4110 = vld [vmem:[%s3490 + $0x10] sm:$0x7]
        %v4111 = vld [vmem:[%s3490 + $0x20] sm:$0xf8]
        %v4112 = vld [vmem:[%s3490 + $0x28] sm:$0x7]
        %v4113 = vld [vmem:[%s3490 + $0x38] sm:$0xf8]
        %v4114 = vld [vmem:[%s3490 + $0x40] sm:$0x7]
        %v4115 = vld [vmem:[%s3490 + $0x50] sm:$0xf8]
        %v4116 = vld [vmem:[%s3490 + $0x58] sm:$0x7]
        %v4117 = vld [vmem:[%s3490 + $0x68] sm:$0xf8]
        %v4118 = vld [vmem:[%s3490 + $0x70] sm:$0x7]
        %v4119 = vld [vmem:[%s3490 + $0x80] sm:$0xf8]
        %v4120 = vld [vmem:[%s3490 + $0x88] sm:$0x7]
        %v4121 = vld [vmem:[%s3490 + $0x98] sm:$0xf8]
        %v4122 = vld [vmem:[%s3490 + $0xa0] sm:$0x7]
        %v4123 = vld [vmem:[%s3490 + $0xb0] sm:$0xf8]
        %v4124 = vld [vmem:[%s3490 + $0xb8] sm:$0x7]
        %v4125 = vld [vmem:[%s3490 + $0xc8] sm:$0xf8]
        %v4126 = vld [vmem:[%s3490 + $0xd0] sm:$0x7]
        %v4127 = vld [vmem:[%s3490 + $0xe0] sm:$0xf8]
        %v4128 = vld [vmem:[%s3490 + $0xe8] sm:$0x7]
        %v4129 = vld [vmem:[%s3490 + $0xf8] sm:$0xf8]
        %v4130 = vld [vmem:[%s3490 + $0x100] sm:$0x7]
        %v4131 = vld [vmem:[%s3490 + $0x110] sm:$0xf8]
        %v4132 = vld [vmem:[%s3490 + $0x118] sm:$0x7]
        %v4133 = vld [vmem:[%s3490 + $0x128] sm:$0xf8]
        %v4134 = vld [vmem:[%s3490 + $0x130] sm:$0x7]
        %v4135 = vld [vmem:[%s3490 + $0x140] sm:$0xf8]
        %v4136 = vld [vmem:[%s3490 + $0x148] sm:$0x7]
        %v4137 = vld [vmem:[%s3490 + $0x158] sm:$0xf8]
        %v4138 = vld [vmem:[%s3490 + $0x160] sm:$0x7]
        %v4139 = vld [vmem:[%s3490 + $0x170] sm:$0xf8]
        %v4140 = vld [vmem:[%s3490 + $0x178] sm:$0x7]
        %v4173 = vrot.slane %v4109, 3
        %v4174 = vrot.slane %v4110, 3
        %v4175 = vsel %vm2285, %v4173, %v4174
        %v4176 = vrot.slane %v4111, 3
        %v4177 = vrot.slane %v4112, 3
        %v4178 = vsel %vm2285, %v4176, %v4177
        %v4179 = vrot.slane %v4113, 3
        %v4180 = vrot.slane %v4114, 3
        %v4181 = vsel %vm2285, %v4179, %v4180
        %v4182 = vrot.slane %v4115, 3
        %v4183 = vrot.slane %v4116, 3
        %v4184 = vsel %vm2285, %v4182, %v4183
        %v4185 = vrot.slane %v4117, 3
        %v4186 = vrot.slane %v4118, 3
        %v4187 = vsel %vm2285, %v4185, %v4186
        %v4188 = vrot.slane %v4119, 3
        %v4189 = vrot.slane %v4120, 3
        %v4190 = vsel %vm2285, %v4188, %v4189
        %v4191 = vrot.slane %v4121, 3
        %v4192 = vrot.slane %v4122, 3
        %v4193 = vsel %vm2285, %v4191, %v4192
        %v4194 = vrot.slane %v4123, 3
        %v4195 = vrot.slane %v4124, 3
        %v4196 = vsel %vm2285, %v4194, %v4195
        %v4197 = vrot.slane %v4125, 3
        %v4198 = vrot.slane %v4126, 3
        %v4199 = vsel %vm2285, %v4197, %v4198
        %v4200 = vrot.slane %v4127, 3
        %v4201 = vrot.slane %v4128, 3
        %v4202 = vsel %vm2285, %v4200, %v4201
        %v4203 = vrot.slane %v4129, 3
        %v4204 = vrot.slane %v4130, 3
        %v4205 = vsel %vm2285, %v4203, %v4204
        %v4206 = vrot.slane %v4131, 3
        %v4207 = vrot.slane %v4132, 3
        %v4208 = vsel %vm2285, %v4206, %v4207
        %v4209 = vrot.slane %v4133, 3
        %v4210 = vrot.slane %v4134, 3
        %v4211 = vsel %vm2285, %v4209, %v4210
        %v4212 = vrot.slane %v4135, 3
        %v4213 = vrot.slane %v4136, 3
        %v4214 = vsel %vm2285, %v4212, %v4213
        %v4215 = vrot.slane %v4137, 3
        %v4216 = vrot.slane %v4138, 3
        %v4217 = vsel %vm2285, %v4215, %v4216
        %v4218 = vrot.slane %v4139, 3
        %v4219 = vrot.slane %v4140, 3
        %v4220 = vsel %vm2285, %v4218, %v4219
        %v4221 = vld [vmem:[%s3 + $0x20] sm:$0xf]
        %v4223 = vsel %vm440, %v4175, 0
        %v4226 = vsel %vm440, %v4178, 0
        %v4229 = vsel %vm440, %v4181, 0
        %v4232 = vsel %vm440, %v4184, 0
        %v4235 = vsel %vm440, %v4187, 0
        %v4238 = vsel %vm440, %v4190, 0
        %v4241 = vsel %vm440, %v4193, 0
        %v4244 = vsel %vm440, %v4196, 0
        %v4247 = vsel %vm440, %v4199, 0
        %v4250 = vsel %vm440, %v4202, 0
        %v4253 = vsel %vm440, %v4205, 0
        %v4256 = vsel %vm440, %v4208, 0
        %v4259 = vsel %vm440, %v4211, 0
        %v4262 = vsel %vm440, %v4214, 0
        %v4265 = vsel %vm440, %v4217, 0
        %v4268 = vsel %vm440, %v4220, 0
        %v4271 = vsel %vm1045, %v4221, 0
        %4273 = vmatprep.subr.bf16.mxu0 0
        %4274 = vmatpush1.bf16.msra.mxu0 %v4271
        %4275 = vmatprep.subr.bf16.mxu0 0
        %4276 = vmatpush1.bf16.msra.mxu0 0
        %4277 = vmatprep.subr.bf16.mxu0 0
        %4278 = vmatpush1.bf16.msra.mxu0 0
        %4279 = vmatprep.subr.bf16.mxu0 0
        %4280 = vmatpush1.bf16.msra.mxu0 0
        %4281 = vmatprep.subr.bf16.mxu0 0
        %4282 = vmatpush1.bf16.msra.mxu0 0
        %4283 = vmatprep.subr.bf16.mxu0 0
        %4284 = vmatpush1.bf16.msra.mxu0 0
        %4285 = vmatprep.subr.bf16.mxu0 0
        %4286 = vmatpush1.bf16.msra.mxu0 0
        %4287 = vmatprep.subr.bf16.mxu0 0
        %4288 = vmatpush1.bf16.msra.mxu0 0
        %4289 = vmatprep.subr.bf16.mxu0 0
        %4290 = vmatpush1.bf16.msra.mxu0 0
        %4291 = vmatprep.subr.bf16.mxu0 0
        %4292 = vmatpush1.bf16.msra.mxu0 0
        %4293 = vmatprep.subr.bf16.mxu0 0
        %4294 = vmatpush1.bf16.msra.mxu0 0
        %4295 = vmatprep.subr.bf16.mxu0 0
        %4296 = vmatpush1.bf16.msra.mxu0 0
        %4297 = vmatprep.subr.bf16.mxu0 0
        %4298 = vmatpush1.bf16.msra.mxu0 0
        %4299 = vmatprep.subr.bf16.mxu0 0
        %4300 = vmatpush1.bf16.msra.mxu0 0
        %4301 = vmatprep.subr.bf16.mxu0 0
        %4302 = vmatpush1.bf16.msra.mxu0 0
        %4303 = vmatprep.subr.bf16.mxu0 0
        %4304 = vmatpush1.bf16.msra.mxu0 0
        %4305 = vmatprep.mubr.bf16.mxu0 0
        %4306 = vmatmul.mubr.bf16.gmra.mrb[0].mxu0 %v4223
        %v4307 = vpop.f32.mrb[0].mxu0
        %v4308 = vadd.f32 0.0, %v4307
        %v4309 = vpop.f32.mrb[0].mxu0
        %v4310 = vpop.f32.mrb[0].mxu0
        %v4311 = vadd.f32 0.0, %v4310
        %v4312 = vpop.f32.mrb[0].mxu0
        %4313 = vmatprep.mubr.bf16.mxu0 0
        %4314 = vmatmul.mubr.bf16.gmra.mrb[0].mxu0 %v4226
        %v4315 = vpop.f32.mrb[0].mxu0
        %v4316 = vadd.f32 0.0, %v4315
        %v4317 = vpop.f32.mrb[0].mxu0
        %v4318 = vpop.f32.mrb[0].mxu0
        %v4319 = vadd.f32 0.0, %v4318
        %v4320 = vpop.f32.mrb[0].mxu0
        %4321 = vmatprep.mubr.bf16.mxu0 0
        %4322 = vmatmul.mubr.bf16.gmra.mrb[0].mxu0 %v4229
        %v4323 = vpop.f32.mrb[0].mxu0
        %v4324 = vadd.f32 0.0, %v4323
        %v4325 = vpop.f32.mrb[0].mxu0
        %v4326 = vpop.f32.mrb[0].mxu0
        %v4327 = vadd.f32 0.0, %v4326
        %v4328 = vpop.f32.mrb[0].mxu0
        %4329 = vmatprep.mubr.bf16.mxu0 0
        %4330 = vmatmul.mubr.bf16.gmra.mrb[0].mxu0 %v4232
        %v4331 = vpop.f32.mrb[0].mxu0
        %v4332 = vadd.f32 0.0, %v4331
        %v4333 = vpop.f32.mrb[0].mxu0
        %v4334 = vpop.f32.mrb[0].mxu0
        %v4335 = vadd.f32 0.0, %v4334
        %v4336 = vpop.f32.mrb[0].mxu0
        %4337 = vmatprep.mubr.bf16.mxu0 0
        %4338 = vmatmul.mubr.bf16.gmra.mrb[0].mxu0 %v4235
        %v4339 = vpop.f32.mrb[0].mxu0
        %v4340 = vadd.f32 0.0, %v4339
        %v4341 = vpop.f32.mrb[0].mxu0
        %v4342 = vpop.f32.mrb[0].mxu0
        %v4343 = vadd.f32 0.0, %v4342
        %v4344 = vpop.f32.mrb[0].mxu0
        %4345 = vmatprep.mubr.bf16.mxu0 0
        %4346 = vmatmul.mubr.bf16.gmra.mrb[0].mxu0 %v4238
        %v4347 = vpop.f32.mrb[0].mxu0
        %v4348 = vadd.f32 0.0, %v4347
        %v4349 = vpop.f32.mrb[0].mxu0
        %v4350 = vpop.f32.mrb[0].mxu0
        %v4351 = vadd.f32 0.0, %v4350
        %v4352 = vpop.f32.mrb[0].mxu0
        %4353 = vmatprep.mubr.bf16.mxu0 0
        %4354 = vmatmul.mubr.bf16.gmra.mrb[0].mxu0 %v4241
        %v4355 = vpop.f32.mrb[0].mxu0
        %v4356 = vadd.f32 0.0, %v4355
        %v4357 = vpop.f32.mrb[0].mxu0
        %v4358 = vpop.f32.mrb[0].mxu0
        %v4359 = vadd.f32 0.0, %v4358
        %v4360 = vpop.f32.mrb[0].mxu0
        %4361 = vmatprep.mubr.bf16.mxu0 0
        %4362 = vmatmul.mubr.bf16.gmra.mrb[0].mxu0 %v4244
        %v4363 = vpop.f32.mrb[0].mxu0
        %v4364 = vadd.f32 0.0, %v4363
        %v4365 = vpop.f32.mrb[0].mxu0
        %v4366 = vpop.f32.mrb[0].mxu0
        %v4367 = vadd.f32 0.0, %v4366
        %v4368 = vpop.f32.mrb[0].mxu0
        %4369 = vmatprep.mubr.bf16.mxu0 0
        %4370 = vmatmul.mubr.bf16.gmra.mrb[0].mxu0 %v4247
        %v4371 = vpop.f32.mrb[0].mxu0
        %v4372 = vadd.f32 0.0, %v4371
        %v4373 = vpop.f32.mrb[0].mxu0
        %v4374 = vpop.f32.mrb[0].mxu0
        %v4375 = vadd.f32 0.0, %v4374
        %v4376 = vpop.f32.mrb[0].mxu0
        %4377 = vmatprep.mubr.bf16.mxu0 0
        %4378 = vmatmul.mubr.bf16.gmra.mrb[0].mxu0 %v4250
        %v4379 = vpop.f32.mrb[0].mxu0
        %v4380 = vadd.f32 0.0, %v4379
        %v4381 = vpop.f32.mrb[0].mxu0
        %v4382 = vpop.f32.mrb[0].mxu0
        %v4383 = vadd.f32 0.0, %v4382
        %v4384 = vpop.f32.mrb[0].mxu0
        %4385 = vmatprep.mubr.bf16.mxu0 0
        %4386 = vmatmul.mubr.bf16.gmra.mrb[0].mxu0 %v4253
        %v4387 = vpop.f32.mrb[0].mxu0
        %v4388 = vadd.f32 0.0, %v4387
        %v4389 = vpop.f32.mrb[0].mxu0
        %v4390 = vpop.f32.mrb[0].mxu0
        %v4391 = vadd.f32 0.0, %v4390
        %v4392 = vpop.f32.mrb[0].mxu0
        %4393 = vmatprep.mubr.bf16.mxu0 0
        %4394 = vmatmul.mubr.bf16.gmra.mrb[0].mxu0 %v4256
        %v4395 = vpop.f32.mrb[0].mxu0
        %v4396 = vadd.f32 0.0, %v4395
        %v4397 = vpop.f32.mrb[0].mxu0
        %v4398 = vpop.f32.mrb[0].mxu0
        %v4399 = vadd.f32 0.0, %v4398
        %v4400 = vpop.f32.mrb[0].mxu0
        %4401 = vmatprep.mubr.bf16.mxu0 0
        %4402 = vmatmul.mubr.bf16.gmra.mrb[0].mxu0 %v4259
        %v4403 = vpop.f32.mrb[0].mxu0
        %v4404 = vadd.f32 0.0, %v4403
        %v4405 = vpop.f32.mrb[0].mxu0
        %v4406 = vpop.f32.mrb[0].mxu0
        %v4407 = vadd.f32 0.0, %v4406
        %v4408 = vpop.f32.mrb[0].mxu0
        %4409 = vmatprep.mubr.bf16.mxu0 0
        %4410 = vmatmul.mubr.bf16.gmra.mrb[0].mxu0 %v4262
        %v4411 = vpop.f32.mrb[0].mxu0
        %v4412 = vadd.f32 0.0, %v4411
        %v4413 = vpop.f32.mrb[0].mxu0
        %v4414 = vpop.f32.mrb[0].mxu0
        %v4415 = vadd.f32 0.0, %v4414
        %v4416 = vpop.f32.mrb[0].mxu0
        %4417 = vmatprep.mubr.bf16.mxu0 0
        %4418 = vmatmul.mubr.bf16.gmra.mrb[0].mxu0 %v4265
        %v4419 = vpop.f32.mrb[0].mxu0
        %v4420 = vadd.f32 0.0, %v4419
        %v4421 = vpop.f32.mrb[0].mxu0
        %v4422 = vpop.f32.mrb[0].mxu0
        %v4423 = vadd.f32 0.0, %v4422
        %v4424 = vpop.f32.mrb[0].mxu0
        %4425 = vmatprep.mubr.bf16.mxu0 0
        %4426 = vmatmul.mubr.bf16.gmra.mrb[0].mxu0 %v4268
        %v4427 = vpop.f32.mrb[0].mxu0
        %v4428 = vadd.f32 0.0, %v4427
        %v4429 = vpop.f32.mrb[0].mxu0
        %v4430 = vpop.f32.mrb[0].mxu0
        %v4431 = vadd.f32 0.0, %v4430
        %v4432 = vpop.f32.mrb[0].mxu0
        %4433 = vdwg.mxu0
        %v4434 = vadd.f32 %v4077, %v4308
        %v4435 = vadd.f32 %v4078, %v4311
        %v4436 = vadd.f32 %v4079, %v4316
        %v4437 = vadd.f32 %v4080, %v4319
        %v4438 = vadd.f32 %v4081, %v4324
        %v4439 = vadd.f32 %v4082, %v4327
        %v4440 = vadd.f32 %v4083, %v4332
        %v4441 = vadd.f32 %v4084, %v4335
        %v4442 = vadd.f32 %v4085, %v4340
        %v4443 = vadd.f32 %v4086, %v4343
        %v4444 = vadd.f32 %v4087, %v4348
        %v4445 = vadd.f32 %v4088, %v4351
        %v4446 = vadd.f32 %v4089, %v4356
        %v4447 = vadd.f32 %v4090, %v4359
        %v4448 = vadd.f32 %v4091, %v4364
        %v4449 = vadd.f32 %v4092, %v4367
        %v4450 = vadd.f32 %v4093, %v4372
        %v4451 = vadd.f32 %v4094, %v4375
        %v4452 = vadd.f32 %v4095, %v4380
        %v4453 = vadd.f32 %v4096, %v4383
        %v4454 = vadd.f32 %v4097, %v4388
        %v4455 = vadd.f32 %v4098, %v4391
        %v4456 = vadd.f32 %v4099, %v4396
        %v4457 = vadd.f32 %v4100, %v4399
        %v4458 = vadd.f32 %v4101, %v4404
        %v4459 = vadd.f32 %v4102, %v4407
        %v4460 = vadd.f32 %v4103, %v4412
        %v4461 = vadd.f32 %v4104, %v4415
        %v4462 = vadd.f32 %v4105, %v4420
        %v4463 = vadd.f32 %v4106, %v4423
        %v4464 = vadd.f32 %v4107, %v4428
        %v4465 = vadd.f32 %v4108, %v4431
        %v4466 = vld [vmem:[%s4] sm:$0x1]
        %v4468 = vlaneseq
        %v4469 = vshrl.u32 %v4468, 7
        %v4470 = vsub.s32 0, %v4469
        %v4471 = vrot.slane %v4466, %v4470
        %v4473 = vadd.f32 %v4434, %v4471
        %v4474 = vadd.f32 %v4435, %v4471
        %v4475 = vadd.f32 %v4436, %v4471
        %v4476 = vadd.f32 %v4437, %v4471
        %v4477 = vadd.f32 %v4438, %v4471
        %v4478 = vadd.f32 %v4439, %v4471
        %v4479 = vadd.f32 %v4440, %v4471
        %v4480 = vadd.f32 %v4441, %v4471
        %v4481 = vadd.f32 %v4442, %v4471
        %v4482 = vadd.f32 %v4443, %v4471
        %v4483 = vadd.f32 %v4444, %v4471
        %v4484 = vadd.f32 %v4445, %v4471
        %v4485 = vadd.f32 %v4446, %v4471
        %v4486 = vadd.f32 %v4447, %v4471
        %v4487 = vadd.f32 %v4448, %v4471
        %v4488 = vadd.f32 %v4449, %v4471
        %v4489 = vadd.f32 %v4450, %v4471
        %v4490 = vadd.f32 %v4451, %v4471
        %v4491 = vadd.f32 %v4452, %v4471
        %v4492 = vadd.f32 %v4453, %v4471
        %v4493 = vadd.f32 %v4454, %v4471
        %v4494 = vadd.f32 %v4455, %v4471
        %v4495 = vadd.f32 %v4456, %v4471
        %v4496 = vadd.f32 %v4457, %v4471
        %v4497 = vadd.f32 %v4458, %v4471
        %v4498 = vadd.f32 %v4459, %v4471
        %v4499 = vadd.f32 %v4460, %v4471
        %v4500 = vadd.f32 %v4461, %v4471
        %v4501 = vadd.f32 %v4462, %v4471
        %v4502 = vadd.f32 %v4463, %v4471
        %v4503 = vadd.f32 %v4464, %v4471
        %v4504 = vadd.f32 %v4465, %v4471
        %v4505 = vmax.f32 %v4473, 0.0
        %v4506 = vmax.f32 %v4474, 0.0
        %v4507 = vmax.f32 %v4475, 0.0
        %v4508 = vmax.f32 %v4476, 0.0
        %v4509 = vmax.f32 %v4477, 0.0
        %v4510 = vmax.f32 %v4478, 0.0
        %v4511 = vmax.f32 %v4479, 0.0
        %v4512 = vmax.f32 %v4480, 0.0
        %v4513 = vmax.f32 %v4481, 0.0
        %v4514 = vmax.f32 %v4482, 0.0
        %v4515 = vmax.f32 %v4483, 0.0
        %v4516 = vmax.f32 %v4484, 0.0
        %v4517 = vmax.f32 %v4485, 0.0
        %v4518 = vmax.f32 %v4486, 0.0
        %v4519 = vmax.f32 %v4487, 0.0
        %v4520 = vmax.f32 %v4488, 0.0
        %v4521 = vmax.f32 %v4489, 0.0
        %v4522 = vmax.f32 %v4490, 0.0
        %v4523 = vmax.f32 %v4491, 0.0
        %v4524 = vmax.f32 %v4492, 0.0
        %v4525 = vmax.f32 %v4493, 0.0
        %v4526 = vmax.f32 %v4494, 0.0
        %v4527 = vmax.f32 %v4495, 0.0
        %v4528 = vmax.f32 %v4496, 0.0
        %v4529 = vmax.f32 %v4497, 0.0
        %v4530 = vmax.f32 %v4498, 0.0
        %v4531 = vmax.f32 %v4499, 0.0
        %v4532 = vmax.f32 %v4500, 0.0
        %v4533 = vmax.f32 %v4501, 0.0
        %v4534 = vmax.f32 %v4502, 0.0
        %v4535 = vmax.f32 %v4503, 0.0
        %v4536 = vmax.f32 %v4504, 0.0
        %v4538 = vsel %vm440, %v4505, 0
        %v4541 = vsel %vm440, %v4506, 0
        %v4544 = vsel %vm440, %v4507, 0
        %v4547 = vsel %vm440, %v4508, 0
        %v4550 = vsel %vm440, %v4509, 0
        %v4553 = vsel %vm440, %v4510, 0
        %v4556 = vsel %vm440, %v4511, 0
        %v4559 = vsel %vm440, %v4512, 0
        %v4562 = vsel %vm440, %v4513, 0
        %v4565 = vsel %vm440, %v4514, 0
        %v4568 = vsel %vm440, %v4515, 0
        %v4571 = vsel %vm440, %v4516, 0
        %v4574 = vsel %vm440, %v4517, 0
        %v4577 = vsel %vm440, %v4518, 0
        %v4580 = vsel %vm440, %v4519, 0
        %v4583 = vsel %vm440, %v4520, 0
        %v4586 = vsel %vm440, %v4521, 0
        %v4589 = vsel %vm440, %v4522, 0
        %v4592 = vsel %vm440, %v4523, 0
        %v4595 = vsel %vm440, %v4524, 0
        %v4598 = vsel %vm440, %v4525, 0
        %v4601 = vsel %vm440, %v4526, 0
        %v4604 = vsel %vm440, %v4527, 0
        %v4607 = vsel %vm440, %v4528, 0
        %v4610 = vsel %vm440, %v4529, 0
        %v4613 = vsel %vm440, %v4530, 0
        %v4616 = vsel %vm440, %v4531, 0
        %v4619 = vsel %vm440, %v4532, 0
        %v4622 = vsel %vm440, %v4533, 0
        %v4625 = vsel %vm440, %v4534, 0
        %v4628 = vsel %vm440, %v4535, 0
        %v4631 = vsel %vm440, %v4536, 0
        %4633 = vmatprep.subr.mxu0 0.0
        %4634 = vmatpush1.msra.mxu0 %v731
        %4635 = vmatprep.subr.mxu0 0.0
        %4636 = vmatpush1.msra.mxu0 0.0
        %4637 = vmatprep.subr.mxu0 0.0
        %4638 = vmatpush1.msra.mxu0 0.0
        %4639 = vmatprep.subr.mxu0 0.0
        %4640 = vmatpush1.msra.mxu0 0.0
        %4641 = vmatprep.subr.mxu0 0.0
        %4642 = vmatpush1.msra.mxu0 0.0
        %4643 = vmatprep.subr.mxu0 0.0
        %4644 = vmatpush1.msra.mxu0 0.0
        %4645 = vmatprep.subr.mxu0 0.0
        %4646 = vmatpush1.msra.mxu0 0.0
        %4647 = vmatprep.subr.mxu0 0.0
        %4648 = vmatpush1.msra.mxu0 0.0
        %4649 = vmatprep.subr.mxu0 0.0
        %4650 = vmatpush1.msra.mxu0 0.0
        %4651 = vmatprep.subr.mxu0 0.0
        %4652 = vmatpush1.msra.mxu0 0.0
        %4653 = vmatprep.subr.mxu0 0.0
        %4654 = vmatpush1.msra.mxu0 0.0
        %4655 = vmatprep.subr.mxu0 0.0
        %4656 = vmatpush1.msra.mxu0 0.0
        %4657 = vmatprep.subr.mxu0 0.0
        %4658 = vmatpush1.msra.mxu0 0.0
        %4659 = vmatprep.subr.mxu0 0.0
        %4660 = vmatpush1.msra.mxu0 0.0
        %4661 = vmatprep.subr.mxu0 0.0
        %4662 = vmatpush1.msra.mxu0 0.0
        %4663 = vmatprep.subr.mxu0 0.0
        %4664 = vmatpush1.msra.mxu0 0.0
        %4665 = vmatprep.subr.mxu0 0.0
        %4666 = vmatpush1.msra.mxu0 0.0
        %4667 = vmatprep.subr.mxu0 0.0
        %4668 = vmatpush1.msra.mxu0 0.0
        %4669 = vmatprep.subr.mxu0 0.0
        %4670 = vmatpush1.msra.mxu0 0.0
        %4671 = vmatprep.subr.mxu0 0.0
        %4672 = vmatpush1.msra.mxu0 0.0
        %4673 = vmatprep.subr.mxu0 0.0
        %4674 = vmatpush1.msra.mxu0 0.0
        %4675 = vmatprep.subr.mxu0 0.0
        %4676 = vmatpush1.msra.mxu0 0.0
        %4677 = vmatprep.subr.mxu0 0.0
        %4678 = vmatpush1.msra.mxu0 0.0
        %4679 = vmatprep.subr.mxu0 0.0
        %4680 = vmatpush1.msra.mxu0 0.0
        %4681 = vmatprep.subr.mxu0 0.0
        %4682 = vmatpush1.msra.mxu0 0.0
        %4683 = vmatprep.subr.mxu0 0.0
        %4684 = vmatpush1.msra.mxu0 0.0
        %4685 = vmatprep.subr.mxu0 0.0
        %4686 = vmatpush1.msra.mxu0 0.0
        %4687 = vmatprep.subr.mxu0 0.0
        %4688 = vmatpush1.msra.mxu0 0.0
        %4689 = vmatprep.subr.mxu0 0.0
        %4690 = vmatpush1.msra.mxu0 0.0
        %4691 = vmatprep.subr.mxu0 0.0
        %4692 = vmatpush1.msra.mxu0 0.0
        %4693 = vmatprep.subr.mxu0 0.0
        %4694 = vmatpush1.msra.mxu0 0.0
        %4695 = vmatprep.subr.mxu0 0.0
        %4696 = vmatpush1.msra.mxu0 0.0
        %4697 = vmatprep.mubr.f32.mxu0 0.0
        %4698 = vmatmul.mubr.f32.gmra.mrb[0].mxu0 %v4538
        %v4699 = vpop.f32.mrb[0].mxu0
        %v4700 = vadd.f32 0.0, %v4699
        %v4701 = vpop.f32.mrb[0].mxu0
        %4702 = vmatprep.mubr.f32.mxu0 0.0
        %4703 = vmatmul.mubr.f32.gmra.mrb[0].mxu0 %v4541
        %v4704 = vpop.f32.mrb[0].mxu0
        %v4705 = vadd.f32 0.0, %v4704
        %v4706 = vpop.f32.mrb[0].mxu0
        %4707 = vmatprep.mubr.f32.mxu0 0.0
        %4708 = vmatmul.mubr.f32.gmra.mrb[0].mxu0 %v4544
        %v4709 = vpop.f32.mrb[0].mxu0
        %v4710 = vadd.f32 0.0, %v4709
        %v4711 = vpop.f32.mrb[0].mxu0
        %4712 = vmatprep.mubr.f32.mxu0 0.0
        %4713 = vmatmul.mubr.f32.gmra.mrb[0].mxu0 %v4547
        %v4714 = vpop.f32.mrb[0].mxu0
        %v4715 = vadd.f32 0.0, %v4714
        %v4716 = vpop.f32.mrb[0].mxu0
        %4717 = vmatprep.mubr.f32.mxu0 0.0
        %4718 = vmatmul.mubr.f32.gmra.mrb[0].mxu0 %v4550
        %v4719 = vpop.f32.mrb[0].mxu0
        %v4720 = vadd.f32 0.0, %v4719
        %v4721 = vpop.f32.mrb[0].mxu0
        %4722 = vmatprep.mubr.f32.mxu0 0.0
        %4723 = vmatmul.mubr.f32.gmra.mrb[0].mxu0 %v4553
        %v4724 = vpop.f32.mrb[0].mxu0
        %v4725 = vadd.f32 0.0, %v4724
        %v4726 = vpop.f32.mrb[0].mxu0
        %4727 = vmatprep.mubr.f32.mxu0 0.0
        %4728 = vmatmul.mubr.f32.gmra.mrb[0].mxu0 %v4556
        %v4729 = vpop.f32.mrb[0].mxu0
        %v4730 = vadd.f32 0.0, %v4729
        %v4731 = vpop.f32.mrb[0].mxu0
        %4732 = vmatprep.mubr.f32.mxu0 0.0
        %4733 = vmatmul.mubr.f32.gmra.mrb[0].mxu0 %v4559
        %v4734 = vpop.f32.mrb[0].mxu0
        %v4735 = vadd.f32 0.0, %v4734
        %v4736 = vpop.f32.mrb[0].mxu0
        %4737 = vmatprep.mubr.f32.mxu0 0.0
        %4738 = vmatmul.mubr.f32.gmra.mrb[0].mxu0 %v4562
        %v4739 = vpop.f32.mrb[0].mxu0
        %v4740 = vadd.f32 0.0, %v4739
        %v4741 = vpop.f32.mrb[0].mxu0
        %4742 = vmatprep.mubr.f32.mxu0 0.0
        %4743 = vmatmul.mubr.f32.gmra.mrb[0].mxu0 %v4565
        %v4744 = vpop.f32.mrb[0].mxu0
        %v4745 = vadd.f32 0.0, %v4744
        %v4746 = vpop.f32.mrb[0].mxu0
        %4747 = vmatprep.mubr.f32.mxu0 0.0
        %4748 = vmatmul.mubr.f32.gmra.mrb[0].mxu0 %v4568
        %v4749 = vpop.f32.mrb[0].mxu0
        %v4750 = vadd.f32 0.0, %v4749
        %v4751 = vpop.f32.mrb[0].mxu0
        %4752 = vmatprep.mubr.f32.mxu0 0.0
        %4753 = vmatmul.mubr.f32.gmra.mrb[0].mxu0 %v4571
        %v4754 = vpop.f32.mrb[0].mxu0
        %v4755 = vadd.f32 0.0, %v4754
        %v4756 = vpop.f32.mrb[0].mxu0
        %4757 = vmatprep.mubr.f32.mxu0 0.0
        %4758 = vmatmul.mubr.f32.gmra.mrb[0].mxu0 %v4574
        %v4759 = vpop.f32.mrb[0].mxu0
        %v4760 = vadd.f32 0.0, %v4759
        %v4761 = vpop.f32.mrb[0].mxu0
        %4762 = vmatprep.mubr.f32.mxu0 0.0
        %4763 = vmatmul.mubr.f32.gmra.mrb[0].mxu0 %v4577
        %v4764 = vpop.f32.mrb[0].mxu0
        %v4765 = vadd.f32 0.0, %v4764
        %v4766 = vpop.f32.mrb[0].mxu0
        %4767 = vmatprep.mubr.f32.mxu0 0.0
        %4768 = vmatmul.mubr.f32.gmra.mrb[0].mxu0 %v4580
        %v4769 = vpop.f32.mrb[0].mxu0
        %v4770 = vadd.f32 0.0, %v4769
        %v4771 = vpop.f32.mrb[0].mxu0
        %4772 = vmatprep.mubr.f32.mxu0 0.0
        %4773 = vmatmul.mubr.f32.gmra.mrb[0].mxu0 %v4583
        %v4774 = vpop.f32.mrb[0].mxu0
        %v4775 = vadd.f32 0.0, %v4774
        %v4776 = vpop.f32.mrb[0].mxu0
        %4777 = vmatprep.mubr.f32.mxu0 0.0
        %4778 = vmatmul.mubr.f32.gmra.mrb[0].mxu0 %v4586
        %v4779 = vpop.f32.mrb[0].mxu0
        %v4780 = vadd.f32 0.0, %v4779
        %v4781 = vpop.f32.mrb[0].mxu0
        %4782 = vmatprep.mubr.f32.mxu0 0.0
        %4783 = vmatmul.mubr.f32.gmra.mrb[0].mxu0 %v4589
        %v4784 = vpop.f32.mrb[0].mxu0
        %v4785 = vadd.f32 0.0, %v4784
        %v4786 = vpop.f32.mrb[0].mxu0
        %4787 = vmatprep.mubr.f32.mxu0 0.0
        %4788 = vmatmul.mubr.f32.gmra.mrb[0].mxu0 %v4592
        %v4789 = vpop.f32.mrb[0].mxu0
        %v4790 = vadd.f32 0.0, %v4789
        %v4791 = vpop.f32.mrb[0].mxu0
        %4792 = vmatprep.mubr.f32.mxu0 0.0
        %4793 = vmatmul.mubr.f32.gmra.mrb[0].mxu0 %v4595
        %v4794 = vpop.f32.mrb[0].mxu0
        %v4795 = vadd.f32 0.0, %v4794
        %v4796 = vpop.f32.mrb[0].mxu0
        %4797 = vmatprep.mubr.f32.mxu0 0.0
        %4798 = vmatmul.mubr.f32.gmra.mrb[0].mxu0 %v4598
        %v4799 = vpop.f32.mrb[0].mxu0
        %v4800 = vadd.f32 0.0, %v4799
        %v4801 = vpop.f32.mrb[0].mxu0
        %4802 = vmatprep.mubr.f32.mxu0 0.0
        %4803 = vmatmul.mubr.f32.gmra.mrb[0].mxu0 %v4601
        %v4804 = vpop.f32.mrb[0].mxu0
        %v4805 = vadd.f32 0.0, %v4804
        %v4806 = vpop.f32.mrb[0].mxu0
        %4807 = vmatprep.mubr.f32.mxu0 0.0
        %4808 = vmatmul.mubr.f32.gmra.mrb[0].mxu0 %v4604
        %v4809 = vpop.f32.mrb[0].mxu0
        %v4810 = vadd.f32 0.0, %v4809
        %v4811 = vpop.f32.mrb[0].mxu0
        %4812 = vmatprep.mubr.f32.mxu0 0.0
        %4813 = vmatmul.mubr.f32.gmra.mrb[0].mxu0 %v4607
        %v4814 = vpop.f32.mrb[0].mxu0
        %v4815 = vadd.f32 0.0, %v4814
        %v4816 = vpop.f32.mrb[0].mxu0
        %4817 = vmatprep.mubr.f32.mxu0 0.0
        %4818 = vmatmul.mubr.f32.gmra.mrb[0].mxu0 %v4610
        %v4819 = vpop.f32.mrb[0].mxu0
        %v4820 = vadd.f32 0.0, %v4819
        %v4821 = vpop.f32.mrb[0].mxu0
        %4822 = vmatprep.mubr.f32.mxu0 0.0
        %4823 = vmatmul.mubr.f32.gmra.mrb[0].mxu0 %v4613
        %v4824 = vpop.f32.mrb[0].mxu0
        %v4825 = vadd.f32 0.0, %v4824
        %v4826 = vpop.f32.mrb[0].mxu0
        %4827 = vmatprep.mubr.f32.mxu0 0.0
        %4828 = vmatmul.mubr.f32.gmra.mrb[0].mxu0 %v4616
        %v4829 = vpop.f32.mrb[0].mxu0
        %v4830 = vadd.f32 0.0, %v4829
        %v4831 = vpop.f32.mrb[0].mxu0
        %4832 = vmatprep.mubr.f32.mxu0 0.0
        %4833 = vmatmul.mubr.f32.gmra.mrb[0].mxu0 %v4619
        %v4834 = vpop.f32.mrb[0].mxu0
        %v4835 = vadd.f32 0.0, %v4834
        %v4836 = vpop.f32.mrb[0].mxu0
        %4837 = vmatprep.mubr.f32.mxu0 0.0
        %4838 = vmatmul.mubr.f32.gmra.mrb[0].mxu0 %v4622
        %v4839 = vpop.f32.mrb[0].mxu0
        %v4840 = vadd.f32 0.0, %v4839
        %v4841 = vpop.f32.mrb[0].mxu0
        %4842 = vmatprep.mubr.f32.mxu0 0.0
        %4843 = vmatmul.mubr.f32.gmra.mrb[0].mxu0 %v4625
        %v4844 = vpop.f32.mrb[0].mxu0
        %v4845 = vadd.f32 0.0, %v4844
        %v4846 = vpop.f32.mrb[0].mxu0
        %4847 = vmatprep.mubr.f32.mxu0 0.0
        %4848 = vmatmul.mubr.f32.gmra.mrb[0].mxu0 %v4628
        %v4849 = vpop.f32.mrb[0].mxu0
        %v4850 = vadd.f32 0.0, %v4849
        %v4851 = vpop.f32.mrb[0].mxu0
        %4852 = vmatprep.mubr.f32.mxu0 0.0
        %4853 = vmatmul.mubr.f32.gmra.mrb[0].mxu0 %v4631
        %v4854 = vpop.f32.mrb[0].mxu0
        %v4855 = vadd.f32 0.0, %v4854
        %v4856 = vpop.f32.mrb[0].mxu0
        %4857 = vdwg.mxu0
        %v4858 = vadd.f32 %v1633, %v4700
        %v4859 = vadd.f32 %v1634, %v4705
        %v4860 = vadd.f32 %v1635, %v4710
        %v4861 = vadd.f32 %v1636, %v4715
        %v4862 = vadd.f32 %v1637, %v4720
        %v4863 = vadd.f32 %v1638, %v4725
        %v4864 = vadd.f32 %v1639, %v4730
        %v4865 = vadd.f32 %v1640, %v4735
        %v4866 = vadd.f32 %v1641, %v4740
        %v4867 = vadd.f32 %v1642, %v4745
        %v4868 = vadd.f32 %v1643, %v4750
        %v4869 = vadd.f32 %v1644, %v4755
        %v4870 = vadd.f32 %v1645, %v4760
        %v4871 = vadd.f32 %v1646, %v4765
        %v4872 = vadd.f32 %v1647, %v4770
        %v4873 = vadd.f32 %v1648, %v4775
        %v4874 = vadd.f32 %v1649, %v4780
        %v4875 = vadd.f32 %v1650, %v4785
        %v4876 = vadd.f32 %v1651, %v4790
        %v4877 = vadd.f32 %v1652, %v4795
        %v4878 = vadd.f32 %v1653, %v4800
        %v4879 = vadd.f32 %v1654, %v4805
        %v4880 = vadd.f32 %v1655, %v4810
        %v4881 = vadd.f32 %v1656, %v4815
        %v4882 = vadd.f32 %v1657, %v4820
        %v4883 = vadd.f32 %v1658, %v4825
        %v4884 = vadd.f32 %v1659, %v4830
        %v4885 = vadd.f32 %v1660, %v4835
        %v4886 = vadd.f32 %v1661, %v4840
        %v4887 = vadd.f32 %v1662, %v4845
        %v4888 = vadd.f32 %v1663, %v4850
        %v4889 = vadd.f32 %v1664, %v4855
        %4890 = vst [vmem:[%s433] sm:$0xff] %v4858
        %4891 = vst [vmem:[%s433 + $0x8] sm:$0xff] %v4859
        %4892 = vst [vmem:[%s433 + $0x10] sm:$0xff] %v4860
        %4893 = vst [vmem:[%s433 + $0x18] sm:$0xff] %v4861
        %4894 = vst [vmem:[%s433 + $0x20] sm:$0xff] %v4862
        %4895 = vst [vmem:[%s433 + $0x28] sm:$0xff] %v4863
        %4896 = vst [vmem:[%s433 + $0x30] sm:$0xff] %v4864
        %4897 = vst [vmem:[%s433 + $0x38] sm:$0xff] %v4865
        %4898 = vst [vmem:[%s433 + $0x40] sm:$0xff] %v4866
        %4899 = vst [vmem:[%s433 + $0x48] sm:$0xff] %v4867
        %4900 = vst [vmem:[%s433 + $0x50] sm:$0xff] %v4868
        %4901 = vst [vmem:[%s433 + $0x58] sm:$0xff] %v4869
        %4902 = vst [vmem:[%s433 + $0x60] sm:$0xff] %v4870
        %4903 = vst [vmem:[%s433 + $0x68] sm:$0xff] %v4871
        %4904 = vst [vmem:[%s433 + $0x70] sm:$0xff] %v4872
        %4905 = vst [vmem:[%s433 + $0x78] sm:$0xff] %v4873
        %4906 = vst [vmem:[%s433 + $0x80] sm:$0xff] %v4874
        %4907 = vst [vmem:[%s433 + $0x88] sm:$0xff] %v4875
        %4908 = vst [vmem:[%s433 + $0x90] sm:$0xff] %v4876
        %4909 = vst [vmem:[%s433 + $0x98] sm:$0xff] %v4877
        %4910 = vst [vmem:[%s433 + $0xa0] sm:$0xff] %v4878
        %4911 = vst [vmem:[%s433 + $0xa8] sm:$0xff] %v4879
        %4912 = vst [vmem:[%s433 + $0xb0] sm:$0xff] %v4880
        %4913 = vst [vmem:[%s433 + $0xb8] sm:$0xff] %v4881
        %4914 = vst [vmem:[%s433 + $0xc0] sm:$0xff] %v4882
        %4915 = vst [vmem:[%s433 + $0xc8] sm:$0xff] %v4883
        %4916 = vst [vmem:[%s433 + $0xd0] sm:$0xff] %v4884
        %4917 = vst [vmem:[%s433 + $0xd8] sm:$0xff] %v4885
        %4918 = vst [vmem:[%s433 + $0xe0] sm:$0xff] %v4886
        %4919 = vst [vmem:[%s433 + $0xe8] sm:$0xff] %v4887
        %4920 = vst [vmem:[%s433 + $0xf0] sm:$0xff] %v4888
        %4921 = vst [vmem:[%s433 + $0xf8] sm:$0xff] %v4889
        %v4922 = vld [vmem:[%s433] sm:$0xff]
        %v4923 = vld [vmem:[%s433 + $0x8] sm:$0xff]
        %v4924 = vld [vmem:[%s433 + $0x10] sm:$0xff]
        %v4925 = vld [vmem:[%s433 + $0x18] sm:$0xff]
        %v4926 = vld [vmem:[%s433 + $0x20] sm:$0xff]
        %v4927 = vld [vmem:[%s433 + $0x28] sm:$0xff]
        %v4928 = vld [vmem:[%s433 + $0x30] sm:$0xff]
        %v4929 = vld [vmem:[%s433 + $0x38] sm:$0xff]
        %v4930 = vld [vmem:[%s433 + $0x40] sm:$0xff]
        %v4931 = vld [vmem:[%s433 + $0x48] sm:$0xff]
        %v4932 = vld [vmem:[%s433 + $0x50] sm:$0xff]
        %v4933 = vld [vmem:[%s433 + $0x58] sm:$0xff]
        %v4934 = vld [vmem:[%s433 + $0x60] sm:$0xff]
        %v4935 = vld [vmem:[%s433 + $0x68] sm:$0xff]
        %v4936 = vld [vmem:[%s433 + $0x70] sm:$0xff]
        %v4937 = vld [vmem:[%s433 + $0x78] sm:$0xff]
        %v4938 = vld [vmem:[%s433 + $0x80] sm:$0xff]
        %v4939 = vld [vmem:[%s433 + $0x88] sm:$0xff]
        %v4940 = vld [vmem:[%s433 + $0x90] sm:$0xff]
        %v4941 = vld [vmem:[%s433 + $0x98] sm:$0xff]
        %v4942 = vld [vmem:[%s433 + $0xa0] sm:$0xff]
        %v4943 = vld [vmem:[%s433 + $0xa8] sm:$0xff]
        %v4944 = vld [vmem:[%s433 + $0xb0] sm:$0xff]
        %v4945 = vld [vmem:[%s433 + $0xb8] sm:$0xff]
        %v4946 = vld [vmem:[%s433 + $0xc0] sm:$0xff]
        %v4947 = vld [vmem:[%s433 + $0xc8] sm:$0xff]
        %v4948 = vld [vmem:[%s433 + $0xd0] sm:$0xff]
        %v4949 = vld [vmem:[%s433 + $0xd8] sm:$0xff]
        %v4950 = vld [vmem:[%s433 + $0xe0] sm:$0xff]
        %v4951 = vld [vmem:[%s433 + $0xe8] sm:$0xff]
        %v4952 = vld [vmem:[%s433 + $0xf0] sm:$0xff]
        %v4953 = vld [vmem:[%s433 + $0xf8] sm:$0xff]
        %s4954 = scalar_lea.vmem [#allocation2], 96
        %v4955 = vld [vmem:[%s4954] sm:$0xfc]
        %v4956 = vld [vmem:[%s4954 + $0x8] sm:$0x3]
        %v4957 = vld [vmem:[%s4954 + $0x18] sm:$0xfc]
        %v4958 = vld [vmem:[%s4954 + $0x20] sm:$0x3]
        %v4959 = vld [vmem:[%s4954 + $0x30] sm:$0xfc]
        %v4960 = vld [vmem:[%s4954 + $0x38] sm:$0x3]
        %v4961 = vld [vmem:[%s4954 + $0x48] sm:$0xfc]
        %v4962 = vld [vmem:[%s4954 + $0x50] sm:$0x3]
        %v4963 = vld [vmem:[%s4954 + $0x60] sm:$0xfc]
        %v4964 = vld [vmem:[%s4954 + $0x68] sm:$0x3]
        %v4965 = vld [vmem:[%s4954 + $0x78] sm:$0xfc]
        %v4966 = vld [vmem:[%s4954 + $0x80] sm:$0x3]
        %v4967 = vld [vmem:[%s4954 + $0x90] sm:$0xfc]
        %v4968 = vld [vmem:[%s4954 + $0x98] sm:$0x3]
        %v4969 = vld [vmem:[%s4954 + $0xa8] sm:$0xfc]
        %v4970 = vld [vmem:[%s4954 + $0xb0] sm:$0x3]
        %v4971 = vld [vmem:[%s4954 + $0xc0] sm:$0xfc]
        %v4972 = vld [vmem:[%s4954 + $0xc8] sm:$0x3]
        %v4973 = vld [vmem:[%s4954 + $0xd8] sm:$0xfc]
        %v4974 = vld [vmem:[%s4954 + $0xe0] sm:$0x3]
        %v4975 = vld [vmem:[%s4954 + $0xf0] sm:$0xfc]
        %v4976 = vld [vmem:[%s4954 + $0xf8] sm:$0x3]
        %v4977 = vld [vmem:[%s4954 + $0x108] sm:$0xfc]
        %v4978 = vld [vmem:[%s4954 + $0x110] sm:$0x3]
        %v4979 = vld [vmem:[%s4954 + $0x120] sm:$0xfc]
        %v4980 = vld [vmem:[%s4954 + $0x128] sm:$0x3]
        %v4981 = vld [vmem:[%s4954 + $0x138] sm:$0xfc]
        %v4982 = vld [vmem:[%s4954 + $0x140] sm:$0x3]
        %v4983 = vld [vmem:[%s4954 + $0x150] sm:$0xfc]
        %v4984 = vld [vmem:[%s4954 + $0x158] sm:$0x3]
        %v4985 = vld [vmem:[%s4954 + $0x168] sm:$0xfc]
        %v4986 = vld [vmem:[%s4954 + $0x170] sm:$0x3]
        %vm5019 = vcmask 1045504
        %v5020 = vrot.slane %v4955, 2
        %v5021 = vrot.slane %v4956, 2
        %v5022 = vsel %vm5019, %v5020, %v5021
        %v5023 = vrot.slane %v4957, 2
        %v5024 = vrot.slane %v4958, 2
        %v5025 = vsel %vm5019, %v5023, %v5024
        %v5026 = vrot.slane %v4959, 2
        %v5027 = vrot.slane %v4960, 2
        %v5028 = vsel %vm5019, %v5026, %v5027
        %v5029 = vrot.slane %v4961, 2
        %v5030 = vrot.slane %v4962, 2
        %v5031 = vsel %vm5019, %v5029, %v5030
        %v5032 = vrot.slane %v4963, 2
        %v5033 = vrot.slane %v4964, 2
        %v5034 = vsel %vm5019, %v5032, %v5033
        %v5035 = vrot.slane %v4965, 2
        %v5036 = vrot.slane %v4966, 2
        %v5037 = vsel %vm5019, %v5035, %v5036
        %v5038 = vrot.slane %v4967, 2
        %v5039 = vrot.slane %v4968, 2
        %v5040 = vsel %vm5019, %v5038, %v5039
        %v5041 = vrot.slane %v4969, 2
        %v5042 = vrot.slane %v4970, 2
        %v5043 = vsel %vm5019, %v5041, %v5042
        %v5044 = vrot.slane %v4971, 2
        %v5045 = vrot.slane %v4972, 2
        %v5046 = vsel %vm5019, %v5044, %v5045
        %v5047 = vrot.slane %v4973, 2
        %v5048 = vrot.slane %v4974, 2
        %v5049 = vsel %vm5019, %v5047, %v5048
        %v5050 = vrot.slane %v4975, 2
        %v5051 = vrot.slane %v4976, 2
        %v5052 = vsel %vm5019, %v5050, %v5051
        %v5053 = vrot.slane %v4977, 2
        %v5054 = vrot.slane %v4978, 2
        %v5055 = vsel %vm5019, %v5053, %v5054
        %v5056 = vrot.slane %v4979, 2
        %v5057 = vrot.slane %v4980, 2
        %v5058 = vsel %vm5019, %v5056, %v5057
        %v5059 = vrot.slane %v4981, 2
        %v5060 = vrot.slane %v4982, 2
        %v5061 = vsel %vm5019, %v5059, %v5060
        %v5062 = vrot.slane %v4983, 2
        %v5063 = vrot.slane %v4984, 2
        %v5064 = vsel %vm5019, %v5062, %v5063
        %v5065 = vrot.slane %v4985, 2
        %v5066 = vrot.slane %v4986, 2
        %v5067 = vsel %vm5019, %v5065, %v5066
        %v5068 = vld [vmem:[%s5] sm:$0xf]
        %v5069 = vld [vmem:[%s4954 + $0x8] sm:$0xff]
        %v5070 = vld [vmem:[%s4954 + $0x20] sm:$0xff]
        %v5071 = vld [vmem:[%s4954 + $0x38] sm:$0xff]
        %v5072 = vld [vmem:[%s4954 + $0x50] sm:$0xff]
        %v5073 = vld [vmem:[%s4954 + $0x68] sm:$0xff]
        %v5074 = vld [vmem:[%s4954 + $0x80] sm:$0xff]
        %v5075 = vld [vmem:[%s4954 + $0x98] sm:$0xff]
        %v5076 = vld [vmem:[%s4954 + $0xb0] sm:$0xff]
        %v5077 = vld [vmem:[%s4954 + $0xc8] sm:$0xff]
        %v5078 = vld [vmem:[%s4954 + $0xe0] sm:$0xff]
        %v5079 = vld [vmem:[%s4954 + $0xf8] sm:$0xff]
        %v5080 = vld [vmem:[%s4954 + $0x110] sm:$0xff]
        %v5081 = vld [vmem:[%s4954 + $0x128] sm:$0xff]
        %v5082 = vld [vmem:[%s4954 + $0x140] sm:$0xff]
        %v5083 = vld [vmem:[%s4954 + $0x158] sm:$0xff]
        %v5084 = vld [vmem:[%s4954 + $0x170] sm:$0xff]
        %v5085 = vld [vmem:[%s5 + $0x4] sm:$0xf]
        %v5087 = vsel %vm440, %v5069, 0
        %v5090 = vsel %vm440, %v5070, 0
        %v5093 = vsel %vm440, %v5071, 0
        %v5096 = vsel %vm440, %v5072, 0
        %v5099 = vsel %vm440, %v5073, 0
        %v5102 = vsel %vm440, %v5074, 0
        %v5105 = vsel %vm440, %v5075, 0
        %v5108 = vsel %vm440, %v5076, 0
        %v5111 = vsel %vm440, %v5077, 0
        %v5114 = vsel %vm440, %v5078, 0
        %v5117 = vsel %vm440, %v5079, 0
        %v5120 = vsel %vm440, %v5080, 0
        %v5123 = vsel %vm440, %v5081, 0
        %v5126 = vsel %vm440, %v5082, 0
        %v5129 = vsel %vm440, %v5083, 0
        %v5132 = vsel %vm440, %v5084, 0
        %v5135 = vsel %vm1045, %v5085, 0
        %5137 = vmatprep.subr.bf16.mxu0 0
        %5138 = vmatpush1.bf16.msra.mxu0 %v5135
        %5139 = vmatprep.subr.bf16.mxu0 0
        %5140 = vmatpush1.bf16.msra.mxu0 0
        %5141 = vmatprep.subr.bf16.mxu0 0
        %5142 = vmatpush1.bf16.msra.mxu0 0
        %5143 = vmatprep.subr.bf16.mxu0 0
        %5144 = vmatpush1.bf16.msra.mxu0 0
        %5145 = vmatprep.subr.bf16.mxu0 0
        %5146 = vmatpush1.bf16.msra.mxu0 0
        %5147 = vmatprep.subr.bf16.mxu0 0
        %5148 = vmatpush1.bf16.msra.mxu0 0
        %5149 = vmatprep.subr.bf16.mxu0 0
        %5150 = vmatpush1.bf16.msra.mxu0 0
        %5151 = vmatprep.subr.bf16.mxu0 0
        %5152 = vmatpush1.bf16.msra.mxu0 0
        %5153 = vmatprep.subr.bf16.mxu0 0
        %5154 = vmatpush1.bf16.msra.mxu0 0
        %5155 = vmatprep.subr.bf16.mxu0 0
        %5156 = vmatpush1.bf16.msra.mxu0 0
        %5157 = vmatprep.subr.bf16.mxu0 0
        %5158 = vmatpush1.bf16.msra.mxu0 0
        %5159 = vmatprep.subr.bf16.mxu0 0
        %5160 = vmatpush1.bf16.msra.mxu0 0
        %5161 = vmatprep.subr.bf16.mxu0 0
        %5162 = vmatpush1.bf16.msra.mxu0 0
        %5163 = vmatprep.subr.bf16.mxu0 0
        %5164 = vmatpush1.bf16.msra.mxu0 0
        %5165 = vmatprep.subr.bf16.mxu0 0
        %5166 = vmatpush1.bf16.msra.mxu0 0
        %5167 = vmatprep.subr.bf16.mxu0 0
        %5168 = vmatpush1.bf16.msra.mxu0 0
        %5169 = vmatprep.mubr.bf16.mxu0 0
        %5170 = vmatmul.mubr.bf16.gmra.mrb[0].mxu0 %v5087
        %v5171 = vpop.f32.mrb[0].mxu0
        %v5172 = vadd.f32 0.0, %v5171
        %v5173 = vpop.f32.mrb[0].mxu0
        %v5174 = vpop.f32.mrb[0].mxu0
        %v5175 = vadd.f32 0.0, %v5174
        %v5176 = vpop.f32.mrb[0].mxu0
        %5177 = vmatprep.mubr.bf16.mxu0 0
        %5178 = vmatmul.mubr.bf16.gmra.mrb[0].mxu0 %v5090
        %v5179 = vpop.f32.mrb[0].mxu0
        %v5180 = vadd.f32 0.0, %v5179
        %v5181 = vpop.f32.mrb[0].mxu0
        %v5182 = vpop.f32.mrb[0].mxu0
        %v5183 = vadd.f32 0.0, %v5182
        %v5184 = vpop.f32.mrb[0].mxu0
        %5185 = vmatprep.mubr.bf16.mxu0 0
        %5186 = vmatmul.mubr.bf16.gmra.mrb[0].mxu0 %v5093
        %v5187 = vpop.f32.mrb[0].mxu0
        %v5188 = vadd.f32 0.0, %v5187
        %v5189 = vpop.f32.mrb[0].mxu0
        %v5190 = vpop.f32.mrb[0].mxu0
        %v5191 = vadd.f32 0.0, %v5190
        %v5192 = vpop.f32.mrb[0].mxu0
        %5193 = vmatprep.mubr.bf16.mxu0 0
        %5194 = vmatmul.mubr.bf16.gmra.mrb[0].mxu0 %v5096
        %v5195 = vpop.f32.mrb[0].mxu0
        %v5196 = vadd.f32 0.0, %v5195
        %v5197 = vpop.f32.mrb[0].mxu0
        %v5198 = vpop.f32.mrb[0].mxu0
        %v5199 = vadd.f32 0.0, %v5198
        %v5200 = vpop.f32.mrb[0].mxu0
        %5201 = vmatprep.mubr.bf16.mxu0 0
        %5202 = vmatmul.mubr.bf16.gmra.mrb[0].mxu0 %v5099
        %v5203 = vpop.f32.mrb[0].mxu0
        %v5204 = vadd.f32 0.0, %v5203
        %v5205 = vpop.f32.mrb[0].mxu0
        %v5206 = vpop.f32.mrb[0].mxu0
        %v5207 = vadd.f32 0.0, %v5206
        %v5208 = vpop.f32.mrb[0].mxu0
        %5209 = vmatprep.mubr.bf16.mxu0 0
        %5210 = vmatmul.mubr.bf16.gmra.mrb[0].mxu0 %v5102
        %v5211 = vpop.f32.mrb[0].mxu0
        %v5212 = vadd.f32 0.0, %v5211
        %v5213 = vpop.f32.mrb[0].mxu0
        %v5214 = vpop.f32.mrb[0].mxu0
        %v5215 = vadd.f32 0.0, %v5214
        %v5216 = vpop.f32.mrb[0].mxu0
        %5217 = vmatprep.mubr.bf16.mxu0 0
        %5218 = vmatmul.mubr.bf16.gmra.mrb[0].mxu0 %v5105
        %v5219 = vpop.f32.mrb[0].mxu0
        %v5220 = vadd.f32 0.0, %v5219
        %v5221 = vpop.f32.mrb[0].mxu0
        %v5222 = vpop.f32.mrb[0].mxu0
        %v5223 = vadd.f32 0.0, %v5222
        %v5224 = vpop.f32.mrb[0].mxu0
        %5225 = vmatprep.mubr.bf16.mxu0 0
        %5226 = vmatmul.mubr.bf16.gmra.mrb[0].mxu0 %v5108
        %v5227 = vpop.f32.mrb[0].mxu0
        %v5228 = vadd.f32 0.0, %v5227
        %v5229 = vpop.f32.mrb[0].mxu0
        %v5230 = vpop.f32.mrb[0].mxu0
        %v5231 = vadd.f32 0.0, %v5230
        %v5232 = vpop.f32.mrb[0].mxu0
        %5233 = vmatprep.mubr.bf16.mxu0 0
        %5234 = vmatmul.mubr.bf16.gmra.mrb[0].mxu0 %v5111
        %v5235 = vpop.f32.mrb[0].mxu0
        %v5236 = vadd.f32 0.0, %v5235
        %v5237 = vpop.f32.mrb[0].mxu0
        %v5238 = vpop.f32.mrb[0].mxu0
        %v5239 = vadd.f32 0.0, %v5238
        %v5240 = vpop.f32.mrb[0].mxu0
        %5241 = vmatprep.mubr.bf16.mxu0 0
        %5242 = vmatmul.mubr.bf16.gmra.mrb[0].mxu0 %v5114
        %v5243 = vpop.f32.mrb[0].mxu0
        %v5244 = vadd.f32 0.0, %v5243
        %v5245 = vpop.f32.mrb[0].mxu0
        %v5246 = vpop.f32.mrb[0].mxu0
        %v5247 = vadd.f32 0.0, %v5246
        %v5248 = vpop.f32.mrb[0].mxu0
        %5249 = vmatprep.mubr.bf16.mxu0 0
        %5250 = vmatmul.mubr.bf16.gmra.mrb[0].mxu0 %v5117
        %v5251 = vpop.f32.mrb[0].mxu0
        %v5252 = vadd.f32 0.0, %v5251
        %v5253 = vpop.f32.mrb[0].mxu0
        %v5254 = vpop.f32.mrb[0].mxu0
        %v5255 = vadd.f32 0.0, %v5254
        %v5256 = vpop.f32.mrb[0].mxu0
        %5257 = vmatprep.mubr.bf16.mxu0 0
        %5258 = vmatmul.mubr.bf16.gmra.mrb[0].mxu0 %v5120
        %v5259 = vpop.f32.mrb[0].mxu0
        %v5260 = vadd.f32 0.0, %v5259
        %v5261 = vpop.f32.mrb[0].mxu0
        %v5262 = vpop.f32.mrb[0].mxu0
        %v5263 = vadd.f32 0.0, %v5262
        %v5264 = vpop.f32.mrb[0].mxu0
        %5265 = vmatprep.mubr.bf16.mxu0 0
        %5266 = vmatmul.mubr.bf16.gmra.mrb[0].mxu0 %v5123
        %v5267 = vpop.f32.mrb[0].mxu0
        %v5268 = vadd.f32 0.0, %v5267
        %v5269 = vpop.f32.mrb[0].mxu0
        %v5270 = vpop.f32.mrb[0].mxu0
        %v5271 = vadd.f32 0.0, %v5270
        %v5272 = vpop.f32.mrb[0].mxu0
        %5273 = vmatprep.mubr.bf16.mxu0 0
        %5274 = vmatmul.mubr.bf16.gmra.mrb[0].mxu0 %v5126
        %v5275 = vpop.f32.mrb[0].mxu0
        %v5276 = vadd.f32 0.0, %v5275
        %v5277 = vpop.f32.mrb[0].mxu0
        %v5278 = vpop.f32.mrb[0].mxu0
        %v5279 = vadd.f32 0.0, %v5278
        %v5280 = vpop.f32.mrb[0].mxu0
        %5281 = vmatprep.mubr.bf16.mxu0 0
        %5282 = vmatmul.mubr.bf16.gmra.mrb[0].mxu0 %v5129
        %v5283 = vpop.f32.mrb[0].mxu0
        %v5284 = vadd.f32 0.0, %v5283
        %v5285 = vpop.f32.mrb[0].mxu0
        %v5286 = vpop.f32.mrb[0].mxu0
        %v5287 = vadd.f32 0.0, %v5286
        %v5288 = vpop.f32.mrb[0].mxu0
        %5289 = vmatprep.mubr.bf16.mxu0 0
        %5290 = vmatmul.mubr.bf16.gmra.mrb[0].mxu0 %v5132
        %v5291 = vpop.f32.mrb[0].mxu0
        %v5292 = vadd.f32 0.0, %v5291
        %v5293 = vpop.f32.mrb[0].mxu0
        %v5294 = vpop.f32.mrb[0].mxu0
        %v5295 = vadd.f32 0.0, %v5294
        %v5296 = vpop.f32.mrb[0].mxu0
        %5297 = vdwg.mxu0
        %v5299 = vsel %vm440, %v5022, 0
        %v5302 = vsel %vm440, %v5025, 0
        %v5305 = vsel %vm440, %v5028, 0
        %v5308 = vsel %vm440, %v5031, 0
        %v5311 = vsel %vm440, %v5034, 0
        %v5314 = vsel %vm440, %v5037, 0
        %v5317 = vsel %vm440, %v5040, 0
        %v5320 = vsel %vm440, %v5043, 0
        %v5323 = vsel %vm440, %v5046, 0
        %v5326 = vsel %vm440, %v5049, 0
        %v5329 = vsel %vm440, %v5052, 0
        %v5332 = vsel %vm440, %v5055, 0
        %v5335 = vsel %vm440, %v5058, 0
        %v5338 = vsel %vm440, %v5061, 0
        %v5341 = vsel %vm440, %v5064, 0
        %v5344 = vsel %vm440, %v5067, 0
        %v5347 = vsel %vm1045, %v5068, 0
        %5349 = vmatprep.subr.bf16.mxu0 0
        %5350 = vmatpush1.bf16.msra.mxu0 %v5347
        %5351 = vmatprep.subr.bf16.mxu0 0
        %5352 = vmatpush1.bf16.msra.mxu0 0
        %5353 = vmatprep.subr.bf16.mxu0 0
        %5354 = vmatpush1.bf16.msra.mxu0 0
        %5355 = vmatprep.subr.bf16.mxu0 0
        %5356 = vmatpush1.bf16.msra.mxu0 0
        %5357 = vmatprep.subr.bf16.mxu0 0
        %5358 = vmatpush1.bf16.msra.mxu0 0
        %5359 = vmatprep.subr.bf16.mxu0 0
        %5360 = vmatpush1.bf16.msra.mxu0 0
        %5361 = vmatprep.subr.bf16.mxu0 0
        %5362 = vmatpush1.bf16.msra.mxu0 0
        %5363 = vmatprep.subr.bf16.mxu0 0
        %5364 = vmatpush1.bf16.msra.mxu0 0
        %5365 = vmatprep.subr.bf16.mxu0 0
        %5366 = vmatpush1.bf16.msra.mxu0 0
        %5367 = vmatprep.subr.bf16.mxu0 0
        %5368 = vmatpush1.bf16.msra.mxu0 0
        %5369 = vmatprep.subr.bf16.mxu0 0
        %5370 = vmatpush1.bf16.msra.mxu0 0
        %5371 = vmatprep.subr.bf16.mxu0 0
        %5372 = vmatpush1.bf16.msra.mxu0 0
        %5373 = vmatprep.subr.bf16.mxu0 0
        %5374 = vmatpush1.bf16.msra.mxu0 0
        %5375 = vmatprep.subr.bf16.mxu0 0
        %5376 = vmatpush1.bf16.msra.mxu0 0
        %5377 = vmatprep.subr.bf16.mxu0 0
        %5378 = vmatpush1.bf16.msra.mxu0 0
        %5379 = vmatprep.subr.bf16.mxu0 0
        %5380 = vmatpush1.bf16.msra.mxu0 0
        %5381 = vmatprep.mubr.bf16.mxu0 0
        %5382 = vmatmul.mubr.bf16.gmra.mrb[0].mxu0 %v5299
        %v5383 = vpop.f32.mrb[0].mxu0
        %v5384 = vadd.f32 %v5172, %v5383
        %v5385 = vpop.f32.mrb[0].mxu0
        %v5386 = vpop.f32.mrb[0].mxu0
        %v5387 = vadd.f32 %v5175, %v5386
        %v5388 = vpop.f32.mrb[0].mxu0
        %5389 = vmatprep.mubr.bf16.mxu0 0
        %5390 = vmatmul.mubr.bf16.gmra.mrb[0].mxu0 %v5302
        %v5391 = vpop.f32.mrb[0].mxu0
        %v5392 = vadd.f32 %v5180, %v5391
        %v5393 = vpop.f32.mrb[0].mxu0
        %v5394 = vpop.f32.mrb[0].mxu0
        %v5395 = vadd.f32 %v5183, %v5394
        %v5396 = vpop.f32.mrb[0].mxu0
        %5397 = vmatprep.mubr.bf16.mxu0 0
        %5398 = vmatmul.mubr.bf16.gmra.mrb[0].mxu0 %v5305
        %v5399 = vpop.f32.mrb[0].mxu0
        %v5400 = vadd.f32 %v5188, %v5399
        %v5401 = vpop.f32.mrb[0].mxu0
        %v5402 = vpop.f32.mrb[0].mxu0
        %v5403 = vadd.f32 %v5191, %v5402
        %v5404 = vpop.f32.mrb[0].mxu0
        %5405 = vmatprep.mubr.bf16.mxu0 0
        %5406 = vmatmul.mubr.bf16.gmra.mrb[0].mxu0 %v5308
        %v5407 = vpop.f32.mrb[0].mxu0
        %v5408 = vadd.f32 %v5196, %v5407
        %v5409 = vpop.f32.mrb[0].mxu0
        %v5410 = vpop.f32.mrb[0].mxu0
        %v5411 = vadd.f32 %v5199, %v5410
        %v5412 = vpop.f32.mrb[0].mxu0
        %5413 = vmatprep.mubr.bf16.mxu0 0
        %5414 = vmatmul.mubr.bf16.gmra.mrb[0].mxu0 %v5311
        %v5415 = vpop.f32.mrb[0].mxu0
        %v5416 = vadd.f32 %v5204, %v5415
        %v5417 = vpop.f32.mrb[0].mxu0
        %v5418 = vpop.f32.mrb[0].mxu0
        %v5419 = vadd.f32 %v5207, %v5418
        %v5420 = vpop.f32.mrb[0].mxu0
        %5421 = vmatprep.mubr.bf16.mxu0 0
        %5422 = vmatmul.mubr.bf16.gmra.mrb[0].mxu0 %v5314
        %v5423 = vpop.f32.mrb[0].mxu0
        %v5424 = vadd.f32 %v5212, %v5423
        %v5425 = vpop.f32.mrb[0].mxu0
        %v5426 = vpop.f32.mrb[0].mxu0
        %v5427 = vadd.f32 %v5215, %v5426
        %v5428 = vpop.f32.mrb[0].mxu0
        %5429 = vmatprep.mubr.bf16.mxu0 0
        %5430 = vmatmul.mubr.bf16.gmra.mrb[0].mxu0 %v5317
        %v5431 = vpop.f32.mrb[0].mxu0
        %v5432 = vadd.f32 %v5220, %v5431
        %v5433 = vpop.f32.mrb[0].mxu0
        %v5434 = vpop.f32.mrb[0].mxu0
        %v5435 = vadd.f32 %v5223, %v5434
        %v5436 = vpop.f32.mrb[0].mxu0
        %5437 = vmatprep.mubr.bf16.mxu0 0
        %5438 = vmatmul.mubr.bf16.gmra.mrb[0].mxu0 %v5320
        %v5439 = vpop.f32.mrb[0].mxu0
        %v5440 = vadd.f32 %v5228, %v5439
        %v5441 = vpop.f32.mrb[0].mxu0
        %v5442 = vpop.f32.mrb[0].mxu0
        %v5443 = vadd.f32 %v5231, %v5442
        %v5444 = vpop.f32.mrb[0].mxu0
        %5445 = vmatprep.mubr.bf16.mxu0 0
        %5446 = vmatmul.mubr.bf16.gmra.mrb[0].mxu0 %v5323
        %v5447 = vpop.f32.mrb[0].mxu0
        %v5448 = vadd.f32 %v5236, %v5447
        %v5449 = vpop.f32.mrb[0].mxu0
        %v5450 = vpop.f32.mrb[0].mxu0
        %v5451 = vadd.f32 %v5239, %v5450
        %v5452 = vpop.f32.mrb[0].mxu0
        %5453 = vmatprep.mubr.bf16.mxu0 0
        %5454 = vmatmul.mubr.bf16.gmra.mrb[0].mxu0 %v5326
        %v5455 = vpop.f32.mrb[0].mxu0
        %v5456 = vadd.f32 %v5244, %v5455
        %v5457 = vpop.f32.mrb[0].mxu0
        %v5458 = vpop.f32.mrb[0].mxu0
        %v5459 = vadd.f32 %v5247, %v5458
        %v5460 = vpop.f32.mrb[0].mxu0
        %5461 = vmatprep.mubr.bf16.mxu0 0
        %5462 = vmatmul.mubr.bf16.gmra.mrb[0].mxu0 %v5329
        %v5463 = vpop.f32.mrb[0].mxu0
        %v5464 = vadd.f32 %v5252, %v5463
        %v5465 = vpop.f32.mrb[0].mxu0
        %v5466 = vpop.f32.mrb[0].mxu0
        %v5467 = vadd.f32 %v5255, %v5466
        %v5468 = vpop.f32.mrb[0].mxu0
        %5469 = vmatprep.mubr.bf16.mxu0 0
        %5470 = vmatmul.mubr.bf16.gmra.mrb[0].mxu0 %v5332
        %v5471 = vpop.f32.mrb[0].mxu0
        %v5472 = vadd.f32 %v5260, %v5471
        %v5473 = vpop.f32.mrb[0].mxu0
        %v5474 = vpop.f32.mrb[0].mxu0
        %v5475 = vadd.f32 %v5263, %v5474
        %v5476 = vpop.f32.mrb[0].mxu0
        %5477 = vmatprep.mubr.bf16.mxu0 0
        %5478 = vmatmul.mubr.bf16.gmra.mrb[0].mxu0 %v5335
        %v5479 = vpop.f32.mrb[0].mxu0
        %v5480 = vadd.f32 %v5268, %v5479
        %v5481 = vpop.f32.mrb[0].mxu0
        %v5482 = vpop.f32.mrb[0].mxu0
        %v5483 = vadd.f32 %v5271, %v5482
        %v5484 = vpop.f32.mrb[0].mxu0
        %5485 = vmatprep.mubr.bf16.mxu0 0
        %5486 = vmatmul.mubr.bf16.gmra.mrb[0].mxu0 %v5338
        %v5487 = vpop.f32.mrb[0].mxu0
        %v5488 = vadd.f32 %v5276, %v5487
        %v5489 = vpop.f32.mrb[0].mxu0
        %v5490 = vpop.f32.mrb[0].mxu0
        %v5491 = vadd.f32 %v5279, %v5490
        %v5492 = vpop.f32.mrb[0].mxu0
        %5493 = vmatprep.mubr.bf16.mxu0 0
        %5494 = vmatmul.mubr.bf16.gmra.mrb[0].mxu0 %v5341
        %v5495 = vpop.f32.mrb[0].mxu0
        %v5496 = vadd.f32 %v5284, %v5495
        %v5497 = vpop.f32.mrb[0].mxu0
        %v5498 = vpop.f32.mrb[0].mxu0
        %v5499 = vadd.f32 %v5287, %v5498
        %v5500 = vpop.f32.mrb[0].mxu0
        %5501 = vmatprep.mubr.bf16.mxu0 0
        %5502 = vmatmul.mubr.bf16.gmra.mrb[0].mxu0 %v5344
        %v5503 = vpop.f32.mrb[0].mxu0
        %v5504 = vadd.f32 %v5292, %v5503
        %v5505 = vpop.f32.mrb[0].mxu0
        %v5506 = vpop.f32.mrb[0].mxu0
        %v5507 = vadd.f32 %v5295, %v5506
        %v5508 = vpop.f32.mrb[0].mxu0
        %5509 = vdwg.mxu0
        %v5510 = vld [vmem:[%s4954 + $0x8] sm:$0xc0]
        %v5511 = vld [vmem:[%s4954 + $0x10] sm:$0x3f]
        %v5512 = vld [vmem:[%s4954 + $0x20] sm:$0xc0]
        %v5513 = vld [vmem:[%s4954 + $0x28] sm:$0x3f]
        %v5514 = vld [vmem:[%s4954 + $0x38] sm:$0xc0]
        %v5515 = vld [vmem:[%s4954 + $0x40] sm:$0x3f]
        %v5516 = vld [vmem:[%s4954 + $0x50] sm:$0xc0]
        %v5517 = vld [vmem:[%s4954 + $0x58] sm:$0x3f]
        %v5518 = vld [vmem:[%s4954 + $0x68] sm:$0xc0]
        %v5519 = vld [vmem:[%s4954 + $0x70] sm:$0x3f]
        %v5520 = vld [vmem:[%s4954 + $0x80] sm:$0xc0]
        %v5521 = vld [vmem:[%s4954 + $0x88] sm:$0x3f]
        %v5522 = vld [vmem:[%s4954 + $0x98] sm:$0xc0]
        %v5523 = vld [vmem:[%s4954 + $0xa0] sm:$0x3f]
        %v5524 = vld [vmem:[%s4954 + $0xb0] sm:$0xc0]
        %v5525 = vld [vmem:[%s4954 + $0xb8] sm:$0x3f]
        %v5526 = vld [vmem:[%s4954 + $0xc8] sm:$0xc0]
        %v5527 = vld [vmem:[%s4954 + $0xd0] sm:$0x3f]
        %v5528 = vld [vmem:[%s4954 + $0xe0] sm:$0xc0]
        %v5529 = vld [vmem:[%s4954 + $0xe8] sm:$0x3f]
        %v5530 = vld [vmem:[%s4954 + $0xf8] sm:$0xc0]
        %v5531 = vld [vmem:[%s4954 + $0x100] sm:$0x3f]
        %v5532 = vld [vmem:[%s4954 + $0x110] sm:$0xc0]
        %v5533 = vld [vmem:[%s4954 + $0x118] sm:$0x3f]
        %v5534 = vld [vmem:[%s4954 + $0x128] sm:$0xc0]
        %v5535 = vld [vmem:[%s4954 + $0x130] sm:$0x3f]
        %v5536 = vld [vmem:[%s4954 + $0x140] sm:$0xc0]
        %v5537 = vld [vmem:[%s4954 + $0x148] sm:$0x3f]
        %v5538 = vld [vmem:[%s4954 + $0x158] sm:$0xc0]
        %v5539 = vld [vmem:[%s4954 + $0x160] sm:$0x3f]
        %v5540 = vld [vmem:[%s4954 + $0x170] sm:$0xc0]
        %v5541 = vld [vmem:[%s4954 + $0x178] sm:$0x3f]
        %vm5574 = vcmask 1041408
        %v5575 = vrot.slane %v5510, 6
        %v5576 = vrot.slane %v5511, 6
        %v5577 = vsel %vm5574, %v5575, %v5576
        %v5578 = vrot.slane %v5512, 6
        %v5579 = vrot.slane %v5513, 6
        %v5580 = vsel %vm5574, %v5578, %v5579
        %v5581 = vrot.slane %v5514, 6
        %v5582 = vrot.slane %v5515, 6
        %v5583 = vsel %vm5574, %v5581, %v5582
        %v5584 = vrot.slane %v5516, 6
        %v5585 = vrot.slane %v5517, 6
        %v5586 = vsel %vm5574, %v5584, %v5585
        %v5587 = vrot.slane %v5518, 6
        %v5588 = vrot.slane %v5519, 6
        %v5589 = vsel %vm5574, %v5587, %v5588
        %v5590 = vrot.slane %v5520, 6
        %v5591 = vrot.slane %v5521, 6
        %v5592 = vsel %vm5574, %v5590, %v5591
        %v5593 = vrot.slane %v5522, 6
        %v5594 = vrot.slane %v5523, 6
        %v5595 = vsel %vm5574, %v5593, %v5594
        %v5596 = vrot.slane %v5524, 6
        %v5597 = vrot.slane %v5525, 6
        %v5598 = vsel %vm5574, %v5596, %v5597
        %v5599 = vrot.slane %v5526, 6
        %v5600 = vrot.slane %v5527, 6
        %v5601 = vsel %vm5574, %v5599, %v5600
        %v5602 = vrot.slane %v5528, 6
        %v5603 = vrot.slane %v5529, 6
        %v5604 = vsel %vm5574, %v5602, %v5603
        %v5605 = vrot.slane %v5530, 6
        %v5606 = vrot.slane %v5531, 6
        %v5607 = vsel %vm5574, %v5605, %v5606
        %v5608 = vrot.slane %v5532, 6
        %v5609 = vrot.slane %v5533, 6
        %v5610 = vsel %vm5574, %v5608, %v5609
        %v5611 = vrot.slane %v5534, 6
        %v5612 = vrot.slane %v5535, 6
        %v5613 = vsel %vm5574, %v5611, %v5612
        %v5614 = vrot.slane %v5536, 6
        %v5615 = vrot.slane %v5537, 6
        %v5616 = vsel %vm5574, %v5614, %v5615
        %v5617 = vrot.slane %v5538, 6
        %v5618 = vrot.slane %v5539, 6
        %v5619 = vsel %vm5574, %v5617, %v5618
        %v5620 = vrot.slane %v5540, 6
        %v5621 = vrot.slane %v5541, 6
        %v5622 = vsel %vm5574, %v5620, %v5621
        %v5623 = vld [vmem:[%s5 + $0x8] sm:$0xf]
        %v5625 = vsel %vm440, %v5577, 0
        %v5628 = vsel %vm440, %v5580, 0
        %v5631 = vsel %vm440, %v5583, 0
        %v5634 = vsel %vm440, %v5586, 0
        %v5637 = vsel %vm440, %v5589, 0
        %v5640 = vsel %vm440, %v5592, 0
        %v5643 = vsel %vm440, %v5595, 0
        %v5646 = vsel %vm440, %v5598, 0
        %v5649 = vsel %vm440, %v5601, 0
        %v5652 = vsel %vm440, %v5604, 0
        %v5655 = vsel %vm440, %v5607, 0
        %v5658 = vsel %vm440, %v5610, 0
        %v5661 = vsel %vm440, %v5613, 0
        %v5664 = vsel %vm440, %v5616, 0
        %v5667 = vsel %vm440, %v5619, 0
        %v5670 = vsel %vm440, %v5622, 0
        %v5673 = vsel %vm1045, %v5623, 0
        %5675 = vmatprep.subr.bf16.mxu0 0
        %5676 = vmatpush1.bf16.msra.mxu0 %v5673
        %5677 = vmatprep.subr.bf16.mxu0 0
        %5678 = vmatpush1.bf16.msra.mxu0 0
        %5679 = vmatprep.subr.bf16.mxu0 0
        %5680 = vmatpush1.bf16.msra.mxu0 0
        %5681 = vmatprep.subr.bf16.mxu0 0
        %5682 = vmatpush1.bf16.msra.mxu0 0
        %5683 = vmatprep.subr.bf16.mxu0 0
        %5684 = vmatpush1.bf16.msra.mxu0 0
        %5685 = vmatprep.subr.bf16.mxu0 0
        %5686 = vmatpush1.bf16.msra.mxu0 0
        %5687 = vmatprep.subr.bf16.mxu0 0
        %5688 = vmatpush1.bf16.msra.mxu0 0
        %5689 = vmatprep.subr.bf16.mxu0 0
        %5690 = vmatpush1.bf16.msra.mxu0 0
        %5691 = vmatprep.subr.bf16.mxu0 0
        %5692 = vmatpush1.bf16.msra.mxu0 0
        %5693 = vmatprep.subr.bf16.mxu0 0
        %5694 = vmatpush1.bf16.msra.mxu0 0
        %5695 = vmatprep.subr.bf16.mxu0 0
        %5696 = vmatpush1.bf16.msra.mxu0 0
        %5697 = vmatprep.subr.bf16.mxu0 0
        %5698 = vmatpush1.bf16.msra.mxu0 0
        %5699 = vmatprep.subr.bf16.mxu0 0
        %5700 = vmatpush1.bf16.msra.mxu0 0
        %5701 = vmatprep.subr.bf16.mxu0 0
        %5702 = vmatpush1.bf16.msra.mxu0 0
        %5703 = vmatprep.subr.bf16.mxu0 0
        %5704 = vmatpush1.bf16.msra.mxu0 0
        %5705 = vmatprep.subr.bf16.mxu0 0
        %5706 = vmatpush1.bf16.msra.mxu0 0
        %5707 = vmatprep.mubr.bf16.mxu0 0
        %5708 = vmatmul.mubr.bf16.gmra.mrb[0].mxu0 %v5625
        %v5709 = vpop.f32.mrb[0].mxu0
        %v5710 = vadd.f32 0.0, %v5709
        %v5711 = vpop.f32.mrb[0].mxu0
        %v5712 = vpop.f32.mrb[0].mxu0
        %v5713 = vadd.f32 0.0, %v5712
        %v5714 = vpop.f32.mrb[0].mxu0
        %5715 = vmatprep.mubr.bf16.mxu0 0
        %5716 = vmatmul.mubr.bf16.gmra.mrb[0].mxu0 %v5628
        %v5717 = vpop.f32.mrb[0].mxu0
        %v5718 = vadd.f32 0.0, %v5717
        %v5719 = vpop.f32.mrb[0].mxu0
        %v5720 = vpop.f32.mrb[0].mxu0
        %v5721 = vadd.f32 0.0, %v5720
        %v5722 = vpop.f32.mrb[0].mxu0
        %5723 = vmatprep.mubr.bf16.mxu0 0
        %5724 = vmatmul.mubr.bf16.gmra.mrb[0].mxu0 %v5631
        %v5725 = vpop.f32.mrb[0].mxu0
        %v5726 = vadd.f32 0.0, %v5725
        %v5727 = vpop.f32.mrb[0].mxu0
        %v5728 = vpop.f32.mrb[0].mxu0
        %v5729 = vadd.f32 0.0, %v5728
        %v5730 = vpop.f32.mrb[0].mxu0
        %5731 = vmatprep.mubr.bf16.mxu0 0
        %5732 = vmatmul.mubr.bf16.gmra.mrb[0].mxu0 %v5634
        %v5733 = vpop.f32.mrb[0].mxu0
        %v5734 = vadd.f32 0.0, %v5733
        %v5735 = vpop.f32.mrb[0].mxu0
        %v5736 = vpop.f32.mrb[0].mxu0
        %v5737 = vadd.f32 0.0, %v5736
        %v5738 = vpop.f32.mrb[0].mxu0
        %5739 = vmatprep.mubr.bf16.mxu0 0
        %5740 = vmatmul.mubr.bf16.gmra.mrb[0].mxu0 %v5637
        %v5741 = vpop.f32.mrb[0].mxu0
        %v5742 = vadd.f32 0.0, %v5741
        %v5743 = vpop.f32.mrb[0].mxu0
        %v5744 = vpop.f32.mrb[0].mxu0
        %v5745 = vadd.f32 0.0, %v5744
        %v5746 = vpop.f32.mrb[0].mxu0
        %5747 = vmatprep.mubr.bf16.mxu0 0
        %5748 = vmatmul.mubr.bf16.gmra.mrb[0].mxu0 %v5640
        %v5749 = vpop.f32.mrb[0].mxu0
        %v5750 = vadd.f32 0.0, %v5749
        %v5751 = vpop.f32.mrb[0].mxu0
        %v5752 = vpop.f32.mrb[0].mxu0
        %v5753 = vadd.f32 0.0, %v5752
        %v5754 = vpop.f32.mrb[0].mxu0
        %5755 = vmatprep.mubr.bf16.mxu0 0
        %5756 = vmatmul.mubr.bf16.gmra.mrb[0].mxu0 %v5643
        %v5757 = vpop.f32.mrb[0].mxu0
        %v5758 = vadd.f32 0.0, %v5757
        %v5759 = vpop.f32.mrb[0].mxu0
        %v5760 = vpop.f32.mrb[0].mxu0
        %v5761 = vadd.f32 0.0, %v5760
        %v5762 = vpop.f32.mrb[0].mxu0
        %5763 = vmatprep.mubr.bf16.mxu0 0
        %5764 = vmatmul.mubr.bf16.gmra.mrb[0].mxu0 %v5646
        %v5765 = vpop.f32.mrb[0].mxu0
        %v5766 = vadd.f32 0.0, %v5765
        %v5767 = vpop.f32.mrb[0].mxu0
        %v5768 = vpop.f32.mrb[0].mxu0
        %v5769 = vadd.f32 0.0, %v5768
        %v5770 = vpop.f32.mrb[0].mxu0
        %5771 = vmatprep.mubr.bf16.mxu0 0
        %5772 = vmatmul.mubr.bf16.gmra.mrb[0].mxu0 %v5649
        %v5773 = vpop.f32.mrb[0].mxu0
        %v5774 = vadd.f32 0.0, %v5773
        %v5775 = vpop.f32.mrb[0].mxu0
        %v5776 = vpop.f32.mrb[0].mxu0
        %v5777 = vadd.f32 0.0, %v5776
        %v5778 = vpop.f32.mrb[0].mxu0
        %5779 = vmatprep.mubr.bf16.mxu0 0
        %5780 = vmatmul.mubr.bf16.gmra.mrb[0].mxu0 %v5652
        %v5781 = vpop.f32.mrb[0].mxu0
        %v5782 = vadd.f32 0.0, %v5781
        %v5783 = vpop.f32.mrb[0].mxu0
        %v5784 = vpop.f32.mrb[0].mxu0
        %v5785 = vadd.f32 0.0, %v5784
        %v5786 = vpop.f32.mrb[0].mxu0
        %5787 = vmatprep.mubr.bf16.mxu0 0
        %5788 = vmatmul.mubr.bf16.gmra.mrb[0].mxu0 %v5655
        %v5789 = vpop.f32.mrb[0].mxu0
        %v5790 = vadd.f32 0.0, %v5789
        %v5791 = vpop.f32.mrb[0].mxu0
        %v5792 = vpop.f32.mrb[0].mxu0
        %v5793 = vadd.f32 0.0, %v5792
        %v5794 = vpop.f32.mrb[0].mxu0
        %5795 = vmatprep.mubr.bf16.mxu0 0
        %5796 = vmatmul.mubr.bf16.gmra.mrb[0].mxu0 %v5658
        %v5797 = vpop.f32.mrb[0].mxu0
        %v5798 = vadd.f32 0.0, %v5797
        %v5799 = vpop.f32.mrb[0].mxu0
        %v5800 = vpop.f32.mrb[0].mxu0
        %v5801 = vadd.f32 0.0, %v5800
        %v5802 = vpop.f32.mrb[0].mxu0
        %5803 = vmatprep.mubr.bf16.mxu0 0
        %5804 = vmatmul.mubr.bf16.gmra.mrb[0].mxu0 %v5661
        %v5805 = vpop.f32.mrb[0].mxu0
        %v5806 = vadd.f32 0.0, %v5805
        %v5807 = vpop.f32.mrb[0].mxu0
        %v5808 = vpop.f32.mrb[0].mxu0
        %v5809 = vadd.f32 0.0, %v5808
        %v5810 = vpop.f32.mrb[0].mxu0
        %5811 = vmatprep.mubr.bf16.mxu0 0
        %5812 = vmatmul.mubr.bf16.gmra.mrb[0].mxu0 %v5664
        %v5813 = vpop.f32.mrb[0].mxu0
        %v5814 = vadd.f32 0.0, %v5813
        %v5815 = vpop.f32.mrb[0].mxu0
        %v5816 = vpop.f32.mrb[0].mxu0
        %v5817 = vadd.f32 0.0, %v5816
        %v5818 = vpop.f32.mrb[0].mxu0
        %5819 = vmatprep.mubr.bf16.mxu0 0
        %5820 = vmatmul.mubr.bf16.gmra.mrb[0].mxu0 %v5667
        %v5821 = vpop.f32.mrb[0].mxu0
        %v5822 = vadd.f32 0.0, %v5821
        %v5823 = vpop.f32.mrb[0].mxu0
        %v5824 = vpop.f32.mrb[0].mxu0
        %v5825 = vadd.f32 0.0, %v5824
        %v5826 = vpop.f32.mrb[0].mxu0
        %5827 = vmatprep.mubr.bf16.mxu0 0
        %5828 = vmatmul.mubr.bf16.gmra.mrb[0].mxu0 %v5670
        %v5829 = vpop.f32.mrb[0].mxu0
        %v5830 = vadd.f32 0.0, %v5829
        %v5831 = vpop.f32.mrb[0].mxu0
        %v5832 = vpop.f32.mrb[0].mxu0
        %v5833 = vadd.f32 0.0, %v5832
        %v5834 = vpop.f32.mrb[0].mxu0
        %5835 = vdwg.mxu0
        %v5836 = vadd.f32 %v5384, %v5710
        %v5837 = vadd.f32 %v5387, %v5713
        %v5838 = vadd.f32 %v5392, %v5718
        %v5839 = vadd.f32 %v5395, %v5721
        %v5840 = vadd.f32 %v5400, %v5726
        %v5841 = vadd.f32 %v5403, %v5729
        %v5842 = vadd.f32 %v5408, %v5734
        %v5843 = vadd.f32 %v5411, %v5737
        %v5844 = vadd.f32 %v5416, %v5742
        %v5845 = vadd.f32 %v5419, %v5745
        %v5846 = vadd.f32 %v5424, %v5750
        %v5847 = vadd.f32 %v5427, %v5753
        %v5848 = vadd.f32 %v5432, %v5758
        %v5849 = vadd.f32 %v5435, %v5761
        %v5850 = vadd.f32 %v5440, %v5766
        %v5851 = vadd.f32 %v5443, %v5769
        %v5852 = vadd.f32 %v5448, %v5774
        %v5853 = vadd.f32 %v5451, %v5777
        %v5854 = vadd.f32 %v5456, %v5782
        %v5855 = vadd.f32 %v5459, %v5785
        %v5856 = vadd.f32 %v5464, %v5790
        %v5857 = vadd.f32 %v5467, %v5793
        %v5858 = vadd.f32 %v5472, %v5798
        %v5859 = vadd.f32 %v5475, %v5801
        %v5860 = vadd.f32 %v5480, %v5806
        %v5861 = vadd.f32 %v5483, %v5809
        %v5862 = vadd.f32 %v5488, %v5814
        %v5863 = vadd.f32 %v5491, %v5817
        %v5864 = vadd.f32 %v5496, %v5822
        %v5865 = vadd.f32 %v5499, %v5825
        %v5866 = vadd.f32 %v5504, %v5830
        %v5867 = vadd.f32 %v5507, %v5833
        %v5868 = vld [vmem:[%s713] sm:$0xfc]
        %v5869 = vld [vmem:[%s713 + $0x8] sm:$0x3]
        %v5870 = vld [vmem:[%s713 + $0x18] sm:$0xfc]
        %v5871 = vld [vmem:[%s713 + $0x20] sm:$0x3]
        %v5872 = vld [vmem:[%s713 + $0x30] sm:$0xfc]
        %v5873 = vld [vmem:[%s713 + $0x38] sm:$0x3]
        %v5874 = vld [vmem:[%s713 + $0x48] sm:$0xfc]
        %v5875 = vld [vmem:[%s713 + $0x50] sm:$0x3]
        %v5876 = vld [vmem:[%s713 + $0x60] sm:$0xfc]
        %v5877 = vld [vmem:[%s713 + $0x68] sm:$0x3]
        %v5878 = vld [vmem:[%s713 + $0x78] sm:$0xfc]
        %v5879 = vld [vmem:[%s713 + $0x80] sm:$0x3]
        %v5880 = vld [vmem:[%s713 + $0x90] sm:$0xfc]
        %v5881 = vld [vmem:[%s713 + $0x98] sm:$0x3]
        %v5882 = vld [vmem:[%s713 + $0xa8] sm:$0xfc]
        %v5883 = vld [vmem:[%s713 + $0xb0] sm:$0x3]
        %v5884 = vld [vmem:[%s713 + $0xc0] sm:$0xfc]
        %v5885 = vld [vmem:[%s713 + $0xc8] sm:$0x3]
        %v5886 = vld [vmem:[%s713 + $0xd8] sm:$0xfc]
        %v5887 = vld [vmem:[%s713 + $0xe0] sm:$0x3]
        %v5888 = vld [vmem:[%s713 + $0xf0] sm:$0xfc]
        %v5889 = vld [vmem:[%s713 + $0xf8] sm:$0x3]
        %v5890 = vld [vmem:[%s713 + $0x108] sm:$0xfc]
        %v5891 = vld [vmem:[%s713 + $0x110] sm:$0x3]
        %v5892 = vld [vmem:[%s713 + $0x120] sm:$0xfc]
        %v5893 = vld [vmem:[%s713 + $0x128] sm:$0x3]
        %v5894 = vld [vmem:[%s713 + $0x138] sm:$0xfc]
        %v5895 = vld [vmem:[%s713 + $0x140] sm:$0x3]
        %v5896 = vld [vmem:[%s713 + $0x150] sm:$0xfc]
        %v5897 = vld [vmem:[%s713 + $0x158] sm:$0x3]
        %v5898 = vld [vmem:[%s713 + $0x168] sm:$0xfc]
        %v5899 = vld [vmem:[%s713 + $0x170] sm:$0x3]
        %v5932 = vrot.slane %v5868, 2
        %v5933 = vrot.slane %v5869, 2
        %v5934 = vsel %vm5019, %v5932, %v5933
        %v5935 = vrot.slane %v5870, 2
        %v5936 = vrot.slane %v5871, 2
        %v5937 = vsel %vm5019, %v5935, %v5936
        %v5938 = vrot.slane %v5872, 2
        %v5939 = vrot.slane %v5873, 2
        %v5940 = vsel %vm5019, %v5938, %v5939
        %v5941 = vrot.slane %v5874, 2
        %v5942 = vrot.slane %v5875, 2
        %v5943 = vsel %vm5019, %v5941, %v5942
        %v5944 = vrot.slane %v5876, 2
        %v5945 = vrot.slane %v5877, 2
        %v5946 = vsel %vm5019, %v5944, %v5945
        %v5947 = vrot.slane %v5878, 2
        %v5948 = vrot.slane %v5879, 2
        %v5949 = vsel %vm5019, %v5947, %v5948
        %v5950 = vrot.slane %v5880, 2
        %v5951 = vrot.slane %v5881, 2
        %v5952 = vsel %vm5019, %v5950, %v5951
        %v5953 = vrot.slane %v5882, 2
        %v5954 = vrot.slane %v5883, 2
        %v5955 = vsel %vm5019, %v5953, %v5954
        %v5956 = vrot.slane %v5884, 2
        %v5957 = vrot.slane %v5885, 2
        %v5958 = vsel %vm5019, %v5956, %v5957
        %v5959 = vrot.slane %v5886, 2
        %v5960 = vrot.slane %v5887, 2
        %v5961 = vsel %vm5019, %v5959, %v5960
        %v5962 = vrot.slane %v5888, 2
        %v5963 = vrot.slane %v5889, 2
        %v5964 = vsel %vm5019, %v5962, %v5963
        %v5965 = vrot.slane %v5890, 2
        %v5966 = vrot.slane %v5891, 2
        %v5967 = vsel %vm5019, %v5965, %v5966
        %v5968 = vrot.slane %v5892, 2
        %v5969 = vrot.slane %v5893, 2
        %v5970 = vsel %vm5019, %v5968, %v5969
        %v5971 = vrot.slane %v5894, 2
        %v5972 = vrot.slane %v5895, 2
        %v5973 = vsel %vm5019, %v5971, %v5972
        %v5974 = vrot.slane %v5896, 2
        %v5975 = vrot.slane %v5897, 2
        %v5976 = vsel %vm5019, %v5974, %v5975
        %v5977 = vrot.slane %v5898, 2
        %v5978 = vrot.slane %v5899, 2
        %v5979 = vsel %vm5019, %v5977, %v5978
        %v5980 = vld [vmem:[%s5 + $0xc] sm:$0xf]
        %v5982 = vsel %vm440, %v5934, 0
        %v5985 = vsel %vm440, %v5937, 0
        %v5988 = vsel %vm440, %v5940, 0
        %v5991 = vsel %vm440, %v5943, 0
        %v5994 = vsel %vm440, %v5946, 0
        %v5997 = vsel %vm440, %v5949, 0
        %v6000 = vsel %vm440, %v5952, 0
        %v6003 = vsel %vm440, %v5955, 0
        %v6006 = vsel %vm440, %v5958, 0
        %v6009 = vsel %vm440, %v5961, 0
        %v6012 = vsel %vm440, %v5964, 0
        %v6015 = vsel %vm440, %v5967, 0
        %v6018 = vsel %vm440, %v5970, 0
        %v6021 = vsel %vm440, %v5973, 0
        %v6024 = vsel %vm440, %v5976, 0
        %v6027 = vsel %vm440, %v5979, 0
        %v6030 = vsel %vm1045, %v5980, 0
        %6032 = vmatprep.subr.bf16.mxu0 0
        %6033 = vmatpush1.bf16.msra.mxu0 %v6030
        %6034 = vmatprep.subr.bf16.mxu0 0
        %6035 = vmatpush1.bf16.msra.mxu0 0
        %6036 = vmatprep.subr.bf16.mxu0 0
        %6037 = vmatpush1.bf16.msra.mxu0 0
        %6038 = vmatprep.subr.bf16.mxu0 0
        %6039 = vmatpush1.bf16.msra.mxu0 0
        %6040 = vmatprep.subr.bf16.mxu0 0
        %6041 = vmatpush1.bf16.msra.mxu0 0
        %6042 = vmatprep.subr.bf16.mxu0 0
        %6043 = vmatpush1.bf16.msra.mxu0 0
        %6044 = vmatprep.subr.bf16.mxu0 0
        %6045 = vmatpush1.bf16.msra.mxu0 0
        %6046 = vmatprep.subr.bf16.mxu0 0
        %6047 = vmatpush1.bf16.msra.mxu0 0
        %6048 = vmatprep.subr.bf16.mxu0 0
        %6049 = vmatpush1.bf16.msra.mxu0 0
        %6050 = vmatprep.subr.bf16.mxu0 0
        %6051 = vmatpush1.bf16.msra.mxu0 0
        %6052 = vmatprep.subr.bf16.mxu0 0
        %6053 = vmatpush1.bf16.msra.mxu0 0
        %6054 = vmatprep.subr.bf16.mxu0 0
        %6055 = vmatpush1.bf16.msra.mxu0 0
        %6056 = vmatprep.subr.bf16.mxu0 0
        %6057 = vmatpush1.bf16.msra.mxu0 0
        %6058 = vmatprep.subr.bf16.mxu0 0
        %6059 = vmatpush1.bf16.msra.mxu0 0
        %6060 = vmatprep.subr.bf16.mxu0 0
        %6061 = vmatpush1.bf16.msra.mxu0 0
        %6062 = vmatprep.subr.bf16.mxu0 0
        %6063 = vmatpush1.bf16.msra.mxu0 0
        %6064 = vmatprep.mubr.bf16.mxu0 0
        %6065 = vmatmul.mubr.bf16.gmra.mrb[0].mxu0 %v5982
        %v6066 = vpop.f32.mrb[0].mxu0
        %v6067 = vadd.f32 0.0, %v6066
        %v6068 = vpop.f32.mrb[0].mxu0
        %v6069 = vpop.f32.mrb[0].mxu0
        %v6070 = vadd.f32 0.0, %v6069
        %v6071 = vpop.f32.mrb[0].mxu0
        %6072 = vmatprep.mubr.bf16.mxu0 0
        %6073 = vmatmul.mubr.bf16.gmra.mrb[0].mxu0 %v5985
        %v6074 = vpop.f32.mrb[0].mxu0
        %v6075 = vadd.f32 0.0, %v6074
        %v6076 = vpop.f32.mrb[0].mxu0
        %v6077 = vpop.f32.mrb[0].mxu0
        %v6078 = vadd.f32 0.0, %v6077
        %v6079 = vpop.f32.mrb[0].mxu0
        %6080 = vmatprep.mubr.bf16.mxu0 0
        %6081 = vmatmul.mubr.bf16.gmra.mrb[0].mxu0 %v5988
        %v6082 = vpop.f32.mrb[0].mxu0
        %v6083 = vadd.f32 0.0, %v6082
        %v6084 = vpop.f32.mrb[0].mxu0
        %v6085 = vpop.f32.mrb[0].mxu0
        %v6086 = vadd.f32 0.0, %v6085
        %v6087 = vpop.f32.mrb[0].mxu0
        %6088 = vmatprep.mubr.bf16.mxu0 0
        %6089 = vmatmul.mubr.bf16.gmra.mrb[0].mxu0 %v5991
        %v6090 = vpop.f32.mrb[0].mxu0
        %v6091 = vadd.f32 0.0, %v6090
        %v6092 = vpop.f32.mrb[0].mxu0
        %v6093 = vpop.f32.mrb[0].mxu0
        %v6094 = vadd.f32 0.0, %v6093
        %v6095 = vpop.f32.mrb[0].mxu0
        %6096 = vmatprep.mubr.bf16.mxu0 0
        %6097 = vmatmul.mubr.bf16.gmra.mrb[0].mxu0 %v5994
        %v6098 = vpop.f32.mrb[0].mxu0
        %v6099 = vadd.f32 0.0, %v6098
        %v6100 = vpop.f32.mrb[0].mxu0
        %v6101 = vpop.f32.mrb[0].mxu0
        %v6102 = vadd.f32 0.0, %v6101
        %v6103 = vpop.f32.mrb[0].mxu0
        %6104 = vmatprep.mubr.bf16.mxu0 0
        %6105 = vmatmul.mubr.bf16.gmra.mrb[0].mxu0 %v5997
        %v6106 = vpop.f32.mrb[0].mxu0
        %v6107 = vadd.f32 0.0, %v6106
        %v6108 = vpop.f32.mrb[0].mxu0
        %v6109 = vpop.f32.mrb[0].mxu0
        %v6110 = vadd.f32 0.0, %v6109
        %v6111 = vpop.f32.mrb[0].mxu0
        %6112 = vmatprep.mubr.bf16.mxu0 0
        %6113 = vmatmul.mubr.bf16.gmra.mrb[0].mxu0 %v6000
        %v6114 = vpop.f32.mrb[0].mxu0
        %v6115 = vadd.f32 0.0, %v6114
        %v6116 = vpop.f32.mrb[0].mxu0
        %v6117 = vpop.f32.mrb[0].mxu0
        %v6118 = vadd.f32 0.0, %v6117
        %v6119 = vpop.f32.mrb[0].mxu0
        %6120 = vmatprep.mubr.bf16.mxu0 0
        %6121 = vmatmul.mubr.bf16.gmra.mrb[0].mxu0 %v6003
        %v6122 = vpop.f32.mrb[0].mxu0
        %v6123 = vadd.f32 0.0, %v6122
        %v6124 = vpop.f32.mrb[0].mxu0
        %v6125 = vpop.f32.mrb[0].mxu0
        %v6126 = vadd.f32 0.0, %v6125
        %v6127 = vpop.f32.mrb[0].mxu0
        %6128 = vmatprep.mubr.bf16.mxu0 0
        %6129 = vmatmul.mubr.bf16.gmra.mrb[0].mxu0 %v6006
        %v6130 = vpop.f32.mrb[0].mxu0
        %v6131 = vadd.f32 0.0, %v6130
        %v6132 = vpop.f32.mrb[0].mxu0
        %v6133 = vpop.f32.mrb[0].mxu0
        %v6134 = vadd.f32 0.0, %v6133
        %v6135 = vpop.f32.mrb[0].mxu0
        %6136 = vmatprep.mubr.bf16.mxu0 0
        %6137 = vmatmul.mubr.bf16.gmra.mrb[0].mxu0 %v6009
        %v6138 = vpop.f32.mrb[0].mxu0
        %v6139 = vadd.f32 0.0, %v6138
        %v6140 = vpop.f32.mrb[0].mxu0
        %v6141 = vpop.f32.mrb[0].mxu0
        %v6142 = vadd.f32 0.0, %v6141
        %v6143 = vpop.f32.mrb[0].mxu0
        %6144 = vmatprep.mubr.bf16.mxu0 0
        %6145 = vmatmul.mubr.bf16.gmra.mrb[0].mxu0 %v6012
        %v6146 = vpop.f32.mrb[0].mxu0
        %v6147 = vadd.f32 0.0, %v6146
        %v6148 = vpop.f32.mrb[0].mxu0
        %v6149 = vpop.f32.mrb[0].mxu0
        %v6150 = vadd.f32 0.0, %v6149
        %v6151 = vpop.f32.mrb[0].mxu0
        %6152 = vmatprep.mubr.bf16.mxu0 0
        %6153 = vmatmul.mubr.bf16.gmra.mrb[0].mxu0 %v6015
        %v6154 = vpop.f32.mrb[0].mxu0
        %v6155 = vadd.f32 0.0, %v6154
        %v6156 = vpop.f32.mrb[0].mxu0
        %v6157 = vpop.f32.mrb[0].mxu0
        %v6158 = vadd.f32 0.0, %v6157
        %v6159 = vpop.f32.mrb[0].mxu0
        %6160 = vmatprep.mubr.bf16.mxu0 0
        %6161 = vmatmul.mubr.bf16.gmra.mrb[0].mxu0 %v6018
        %v6162 = vpop.f32.mrb[0].mxu0
        %v6163 = vadd.f32 0.0, %v6162
        %v6164 = vpop.f32.mrb[0].mxu0
        %v6165 = vpop.f32.mrb[0].mxu0
        %v6166 = vadd.f32 0.0, %v6165
        %v6167 = vpop.f32.mrb[0].mxu0
        %6168 = vmatprep.mubr.bf16.mxu0 0
        %6169 = vmatmul.mubr.bf16.gmra.mrb[0].mxu0 %v6021
        %v6170 = vpop.f32.mrb[0].mxu0
        %v6171 = vadd.f32 0.0, %v6170
        %v6172 = vpop.f32.mrb[0].mxu0
        %v6173 = vpop.f32.mrb[0].mxu0
        %v6174 = vadd.f32 0.0, %v6173
        %v6175 = vpop.f32.mrb[0].mxu0
        %6176 = vmatprep.mubr.bf16.mxu0 0
        %6177 = vmatmul.mubr.bf16.gmra.mrb[0].mxu0 %v6024
        %v6178 = vpop.f32.mrb[0].mxu0
        %v6179 = vadd.f32 0.0, %v6178
        %v6180 = vpop.f32.mrb[0].mxu0
        %v6181 = vpop.f32.mrb[0].mxu0
        %v6182 = vadd.f32 0.0, %v6181
        %v6183 = vpop.f32.mrb[0].mxu0
        %6184 = vmatprep.mubr.bf16.mxu0 0
        %6185 = vmatmul.mubr.bf16.gmra.mrb[0].mxu0 %v6027
        %v6186 = vpop.f32.mrb[0].mxu0
        %v6187 = vadd.f32 0.0, %v6186
        %v6188 = vpop.f32.mrb[0].mxu0
        %v6189 = vpop.f32.mrb[0].mxu0
        %v6190 = vadd.f32 0.0, %v6189
        %v6191 = vpop.f32.mrb[0].mxu0
        %6192 = vdwg.mxu0
        %v6193 = vadd.f32 %v5836, %v6067
        %v6194 = vadd.f32 %v5837, %v6070
        %v6195 = vadd.f32 %v5838, %v6075
        %v6196 = vadd.f32 %v5839, %v6078
        %v6197 = vadd.f32 %v5840, %v6083
        %v6198 = vadd.f32 %v5841, %v6086
        %v6199 = vadd.f32 %v5842, %v6091
        %v6200 = vadd.f32 %v5843, %v6094
        %v6201 = vadd.f32 %v5844, %v6099
        %v6202 = vadd.f32 %v5845, %v6102
        %v6203 = vadd.f32 %v5846, %v6107
        %v6204 = vadd.f32 %v5847, %v6110
        %v6205 = vadd.f32 %v5848, %v6115
        %v6206 = vadd.f32 %v5849, %v6118
        %v6207 = vadd.f32 %v5850, %v6123
        %v6208 = vadd.f32 %v5851, %v6126
        %v6209 = vadd.f32 %v5852, %v6131
        %v6210 = vadd.f32 %v5853, %v6134
        %v6211 = vadd.f32 %v5854, %v6139
        %v6212 = vadd.f32 %v5855, %v6142
        %v6213 = vadd.f32 %v5856, %v6147
        %v6214 = vadd.f32 %v5857, %v6150
        %v6215 = vadd.f32 %v5858, %v6155
        %v6216 = vadd.f32 %v5859, %v6158
        %v6217 = vadd.f32 %v5860, %v6163
        %v6218 = vadd.f32 %v5861, %v6166
        %v6219 = vadd.f32 %v5862, %v6171
        %v6220 = vadd.f32 %v5863, %v6174
        %v6221 = vadd.f32 %v5864, %v6179
        %v6222 = vadd.f32 %v5865, %v6182
        %v6223 = vadd.f32 %v5866, %v6187
        %v6224 = vadd.f32 %v5867, %v6190
        %v6225 = vld [vmem:[%s5 + $0x10] sm:$0xf]
        %v6227 = vsel %vm1045, %v6225, 0
        %6229 = vmatprep.subr.bf16.mxu0 0
        %6230 = vmatpush1.bf16.msra.mxu0 %v6227
        %6231 = vmatprep.subr.bf16.mxu0 0
        %6232 = vmatpush1.bf16.msra.mxu0 0
        %6233 = vmatprep.subr.bf16.mxu0 0
        %6234 = vmatpush1.bf16.msra.mxu0 0
        %6235 = vmatprep.subr.bf16.mxu0 0
        %6236 = vmatpush1.bf16.msra.mxu0 0
        %6237 = vmatprep.subr.bf16.mxu0 0
        %6238 = vmatpush1.bf16.msra.mxu0 0
        %6239 = vmatprep.subr.bf16.mxu0 0
        %6240 = vmatpush1.bf16.msra.mxu0 0
        %6241 = vmatprep.subr.bf16.mxu0 0
        %6242 = vmatpush1.bf16.msra.mxu0 0
        %6243 = vmatprep.subr.bf16.mxu0 0
        %6244 = vmatpush1.bf16.msra.mxu0 0
        %6245 = vmatprep.subr.bf16.mxu0 0
        %6246 = vmatpush1.bf16.msra.mxu0 0
        %6247 = vmatprep.subr.bf16.mxu0 0
        %6248 = vmatpush1.bf16.msra.mxu0 0
        %6249 = vmatprep.subr.bf16.mxu0 0
        %6250 = vmatpush1.bf16.msra.mxu0 0
        %6251 = vmatprep.subr.bf16.mxu0 0
        %6252 = vmatpush1.bf16.msra.mxu0 0
        %6253 = vmatprep.subr.bf16.mxu0 0
        %6254 = vmatpush1.bf16.msra.mxu0 0
        %6255 = vmatprep.subr.bf16.mxu0 0
        %6256 = vmatpush1.bf16.msra.mxu0 0
        %6257 = vmatprep.subr.bf16.mxu0 0
        %6258 = vmatpush1.bf16.msra.mxu0 0
        %6259 = vmatprep.subr.bf16.mxu0 0
        %6260 = vmatpush1.bf16.msra.mxu0 0
        %6261 = vmatprep.mubr.bf16.mxu0 0
        %6262 = vmatmul.mubr.bf16.gmra.mrb[0].mxu0 %v998
        %v6263 = vpop.f32.mrb[0].mxu0
        %v6264 = vadd.f32 0.0, %v6263
        %v6265 = vpop.f32.mrb[0].mxu0
        %v6266 = vpop.f32.mrb[0].mxu0
        %v6267 = vadd.f32 0.0, %v6266
        %v6268 = vpop.f32.mrb[0].mxu0
        %6269 = vmatprep.mubr.bf16.mxu0 0
        %6270 = vmatmul.mubr.bf16.gmra.mrb[0].mxu0 %v1001
        %v6271 = vpop.f32.mrb[0].mxu0
        %v6272 = vadd.f32 0.0, %v6271
        %v6273 = vpop.f32.mrb[0].mxu0
        %v6274 = vpop.f32.mrb[0].mxu0
        %v6275 = vadd.f32 0.0, %v6274
        %v6276 = vpop.f32.mrb[0].mxu0
        %6277 = vmatprep.mubr.bf16.mxu0 0
        %6278 = vmatmul.mubr.bf16.gmra.mrb[0].mxu0 %v1004
        %v6279 = vpop.f32.mrb[0].mxu0
        %v6280 = vadd.f32 0.0, %v6279
        %v6281 = vpop.f32.mrb[0].mxu0
        %v6282 = vpop.f32.mrb[0].mxu0
        %v6283 = vadd.f32 0.0, %v6282
        %v6284 = vpop.f32.mrb[0].mxu0
        %6285 = vmatprep.mubr.bf16.mxu0 0
        %6286 = vmatmul.mubr.bf16.gmra.mrb[0].mxu0 %v1007
        %v6287 = vpop.f32.mrb[0].mxu0
        %v6288 = vadd.f32 0.0, %v6287
        %v6289 = vpop.f32.mrb[0].mxu0
        %v6290 = vpop.f32.mrb[0].mxu0
        %v6291 = vadd.f32 0.0, %v6290
        %v6292 = vpop.f32.mrb[0].mxu0
        %6293 = vmatprep.mubr.bf16.mxu0 0
        %6294 = vmatmul.mubr.bf16.gmra.mrb[0].mxu0 %v1010
        %v6295 = vpop.f32.mrb[0].mxu0
        %v6296 = vadd.f32 0.0, %v6295
        %v6297 = vpop.f32.mrb[0].mxu0
        %v6298 = vpop.f32.mrb[0].mxu0
        %v6299 = vadd.f32 0.0, %v6298
        %v6300 = vpop.f32.mrb[0].mxu0
        %6301 = vmatprep.mubr.bf16.mxu0 0
        %6302 = vmatmul.mubr.bf16.gmra.mrb[0].mxu0 %v1013
        %v6303 = vpop.f32.mrb[0].mxu0
        %v6304 = vadd.f32 0.0, %v6303
        %v6305 = vpop.f32.mrb[0].mxu0
        %v6306 = vpop.f32.mrb[0].mxu0
        %v6307 = vadd.f32 0.0, %v6306
        %v6308 = vpop.f32.mrb[0].mxu0
        %6309 = vmatprep.mubr.bf16.mxu0 0
        %6310 = vmatmul.mubr.bf16.gmra.mrb[0].mxu0 %v1016
        %v6311 = vpop.f32.mrb[0].mxu0
        %v6312 = vadd.f32 0.0, %v6311
        %v6313 = vpop.f32.mrb[0].mxu0
        %v6314 = vpop.f32.mrb[0].mxu0
        %v6315 = vadd.f32 0.0, %v6314
        %v6316 = vpop.f32.mrb[0].mxu0
        %6317 = vmatprep.mubr.bf16.mxu0 0
        %6318 = vmatmul.mubr.bf16.gmra.mrb[0].mxu0 %v1019
        %v6319 = vpop.f32.mrb[0].mxu0
        %v6320 = vadd.f32 0.0, %v6319
        %v6321 = vpop.f32.mrb[0].mxu0
        %v6322 = vpop.f32.mrb[0].mxu0
        %v6323 = vadd.f32 0.0, %v6322
        %v6324 = vpop.f32.mrb[0].mxu0
        %6325 = vmatprep.mubr.bf16.mxu0 0
        %6326 = vmatmul.mubr.bf16.gmra.mrb[0].mxu0 %v1022
        %v6327 = vpop.f32.mrb[0].mxu0
        %v6328 = vadd.f32 0.0, %v6327
        %v6329 = vpop.f32.mrb[0].mxu0
        %v6330 = vpop.f32.mrb[0].mxu0
        %v6331 = vadd.f32 0.0, %v6330
        %v6332 = vpop.f32.mrb[0].mxu0
        %6333 = vmatprep.mubr.bf16.mxu0 0
        %6334 = vmatmul.mubr.bf16.gmra.mrb[0].mxu0 %v1025
        %v6335 = vpop.f32.mrb[0].mxu0
        %v6336 = vadd.f32 0.0, %v6335
        %v6337 = vpop.f32.mrb[0].mxu0
        %v6338 = vpop.f32.mrb[0].mxu0
        %v6339 = vadd.f32 0.0, %v6338
        %v6340 = vpop.f32.mrb[0].mxu0
        %6341 = vmatprep.mubr.bf16.mxu0 0
        %6342 = vmatmul.mubr.bf16.gmra.mrb[0].mxu0 %v1028
        %v6343 = vpop.f32.mrb[0].mxu0
        %v6344 = vadd.f32 0.0, %v6343
        %v6345 = vpop.f32.mrb[0].mxu0
        %v6346 = vpop.f32.mrb[0].mxu0
        %v6347 = vadd.f32 0.0, %v6346
        %v6348 = vpop.f32.mrb[0].mxu0
        %6349 = vmatprep.mubr.bf16.mxu0 0
        %6350 = vmatmul.mubr.bf16.gmra.mrb[0].mxu0 %v1031
        %v6351 = vpop.f32.mrb[0].mxu0
        %v6352 = vadd.f32 0.0, %v6351
        %v6353 = vpop.f32.mrb[0].mxu0
        %v6354 = vpop.f32.mrb[0].mxu0
        %v6355 = vadd.f32 0.0, %v6354
        %v6356 = vpop.f32.mrb[0].mxu0
        %6357 = vmatprep.mubr.bf16.mxu0 0
        %6358 = vmatmul.mubr.bf16.gmra.mrb[0].mxu0 %v1034
        %v6359 = vpop.f32.mrb[0].mxu0
        %v6360 = vadd.f32 0.0, %v6359
        %v6361 = vpop.f32.mrb[0].mxu0
        %v6362 = vpop.f32.mrb[0].mxu0
        %v6363 = vadd.f32 0.0, %v6362
        %v6364 = vpop.f32.mrb[0].mxu0
        %6365 = vmatprep.mubr.bf16.mxu0 0
        %6366 = vmatmul.mubr.bf16.gmra.mrb[0].mxu0 %v1037
        %v6367 = vpop.f32.mrb[0].mxu0
        %v6368 = vadd.f32 0.0, %v6367
        %v6369 = vpop.f32.mrb[0].mxu0
        %v6370 = vpop.f32.mrb[0].mxu0
        %v6371 = vadd.f32 0.0, %v6370
        %v6372 = vpop.f32.mrb[0].mxu0
        %6373 = vmatprep.mubr.bf16.mxu0 0
        %6374 = vmatmul.mubr.bf16.gmra.mrb[0].mxu0 %v1040
        %v6375 = vpop.f32.mrb[0].mxu0
        %v6376 = vadd.f32 0.0, %v6375
        %v6377 = vpop.f32.mrb[0].mxu0
        %v6378 = vpop.f32.mrb[0].mxu0
        %v6379 = vadd.f32 0.0, %v6378
        %v6380 = vpop.f32.mrb[0].mxu0
        %6381 = vmatprep.mubr.bf16.mxu0 0
        %6382 = vmatmul.mubr.bf16.gmra.mrb[0].mxu0 %v1043
        %v6383 = vpop.f32.mrb[0].mxu0
        %v6384 = vadd.f32 0.0, %v6383
        %v6385 = vpop.f32.mrb[0].mxu0
        %v6386 = vpop.f32.mrb[0].mxu0
        %v6387 = vadd.f32 0.0, %v6386
        %v6388 = vpop.f32.mrb[0].mxu0
        %6389 = vdwg.mxu0
        %v6390 = vadd.f32 %v6193, %v6264
        %v6391 = vadd.f32 %v6194, %v6267
        %v6392 = vadd.f32 %v6195, %v6272
        %v6393 = vadd.f32 %v6196, %v6275
        %v6394 = vadd.f32 %v6197, %v6280
        %v6395 = vadd.f32 %v6198, %v6283
        %v6396 = vadd.f32 %v6199, %v6288
        %v6397 = vadd.f32 %v6200, %v6291
        %v6398 = vadd.f32 %v6201, %v6296
        %v6399 = vadd.f32 %v6202, %v6299
        %v6400 = vadd.f32 %v6203, %v6304
        %v6401 = vadd.f32 %v6204, %v6307
        %v6402 = vadd.f32 %v6205, %v6312
        %v6403 = vadd.f32 %v6206, %v6315
        %v6404 = vadd.f32 %v6207, %v6320
        %v6405 = vadd.f32 %v6208, %v6323
        %v6406 = vadd.f32 %v6209, %v6328
        %v6407 = vadd.f32 %v6210, %v6331
        %v6408 = vadd.f32 %v6211, %v6336
        %v6409 = vadd.f32 %v6212, %v6339
        %v6410 = vadd.f32 %v6213, %v6344
        %v6411 = vadd.f32 %v6214, %v6347
        %v6412 = vadd.f32 %v6215, %v6352
        %v6413 = vadd.f32 %v6216, %v6355
        %v6414 = vadd.f32 %v6217, %v6360
        %v6415 = vadd.f32 %v6218, %v6363
        %v6416 = vadd.f32 %v6219, %v6368
        %v6417 = vadd.f32 %v6220, %v6371
        %v6418 = vadd.f32 %v6221, %v6376
        %v6419 = vadd.f32 %v6222, %v6379
        %v6420 = vadd.f32 %v6223, %v6384
        %v6421 = vadd.f32 %v6224, %v6387
        %v6422 = vld [vmem:[%s713 + $0x8] sm:$0xc0]
        %v6423 = vld [vmem:[%s713 + $0x10] sm:$0x3f]
        %v6424 = vld [vmem:[%s713 + $0x20] sm:$0xc0]
        %v6425 = vld [vmem:[%s713 + $0x28] sm:$0x3f]
        %v6426 = vld [vmem:[%s713 + $0x38] sm:$0xc0]
        %v6427 = vld [vmem:[%s713 + $0x40] sm:$0x3f]
        %v6428 = vld [vmem:[%s713 + $0x50] sm:$0xc0]
        %v6429 = vld [vmem:[%s713 + $0x58] sm:$0x3f]
        %v6430 = vld [vmem:[%s713 + $0x68] sm:$0xc0]
        %v6431 = vld [vmem:[%s713 + $0x70] sm:$0x3f]
        %v6432 = vld [vmem:[%s713 + $0x80] sm:$0xc0]
        %v6433 = vld [vmem:[%s713 + $0x88] sm:$0x3f]
        %v6434 = vld [vmem:[%s713 + $0x98] sm:$0xc0]
        %v6435 = vld [vmem:[%s713 + $0xa0] sm:$0x3f]
        %v6436 = vld [vmem:[%s713 + $0xb0] sm:$0xc0]
        %v6437 = vld [vmem:[%s713 + $0xb8] sm:$0x3f]
        %v6438 = vld [vmem:[%s713 + $0xc8] sm:$0xc0]
        %v6439 = vld [vmem:[%s713 + $0xd0] sm:$0x3f]
        %v6440 = vld [vmem:[%s713 + $0xe0] sm:$0xc0]
        %v6441 = vld [vmem:[%s713 + $0xe8] sm:$0x3f]
        %v6442 = vld [vmem:[%s713 + $0xf8] sm:$0xc0]
        %v6443 = vld [vmem:[%s713 + $0x100] sm:$0x3f]
        %v6444 = vld [vmem:[%s713 + $0x110] sm:$0xc0]
        %v6445 = vld [vmem:[%s713 + $0x118] sm:$0x3f]
        %v6446 = vld [vmem:[%s713 + $0x128] sm:$0xc0]
        %v6447 = vld [vmem:[%s713 + $0x130] sm:$0x3f]
        %v6448 = vld [vmem:[%s713 + $0x140] sm:$0xc0]
        %v6449 = vld [vmem:[%s713 + $0x148] sm:$0x3f]
        %v6450 = vld [vmem:[%s713 + $0x158] sm:$0xc0]
        %v6451 = vld [vmem:[%s713 + $0x160] sm:$0x3f]
        %v6452 = vld [vmem:[%s713 + $0x170] sm:$0xc0]
        %v6453 = vld [vmem:[%s713 + $0x178] sm:$0x3f]
        %v6486 = vrot.slane %v6422, 6
        %v6487 = vrot.slane %v6423, 6
        %v6488 = vsel %vm5574, %v6486, %v6487
        %v6489 = vrot.slane %v6424, 6
        %v6490 = vrot.slane %v6425, 6
        %v6491 = vsel %vm5574, %v6489, %v6490
        %v6492 = vrot.slane %v6426, 6
        %v6493 = vrot.slane %v6427, 6
        %v6494 = vsel %vm5574, %v6492, %v6493
        %v6495 = vrot.slane %v6428, 6
        %v6496 = vrot.slane %v6429, 6
        %v6497 = vsel %vm5574, %v6495, %v6496
        %v6498 = vrot.slane %v6430, 6
        %v6499 = vrot.slane %v6431, 6
        %v6500 = vsel %vm5574, %v6498, %v6499
        %v6501 = vrot.slane %v6432, 6
        %v6502 = vrot.slane %v6433, 6
        %v6503 = vsel %vm5574, %v6501, %v6502
        %v6504 = vrot.slane %v6434, 6
        %v6505 = vrot.slane %v6435, 6
        %v6506 = vsel %vm5574, %v6504, %v6505
        %v6507 = vrot.slane %v6436, 6
        %v6508 = vrot.slane %v6437, 6
        %v6509 = vsel %vm5574, %v6507, %v6508
        %v6510 = vrot.slane %v6438, 6
        %v6511 = vrot.slane %v6439, 6
        %v6512 = vsel %vm5574, %v6510, %v6511
        %v6513 = vrot.slane %v6440, 6
        %v6514 = vrot.slane %v6441, 6
        %v6515 = vsel %vm5574, %v6513, %v6514
        %v6516 = vrot.slane %v6442, 6
        %v6517 = vrot.slane %v6443, 6
        %v6518 = vsel %vm5574, %v6516, %v6517
        %v6519 = vrot.slane %v6444, 6
        %v6520 = vrot.slane %v6445, 6
        %v6521 = vsel %vm5574, %v6519, %v6520
        %v6522 = vrot.slane %v6446, 6
        %v6523 = vrot.slane %v6447, 6
        %v6524 = vsel %vm5574, %v6522, %v6523
        %v6525 = vrot.slane %v6448, 6
        %v6526 = vrot.slane %v6449, 6
        %v6527 = vsel %vm5574, %v6525, %v6526
        %v6528 = vrot.slane %v6450, 6
        %v6529 = vrot.slane %v6451, 6
        %v6530 = vsel %vm5574, %v6528, %v6529
        %v6531 = vrot.slane %v6452, 6
        %v6532 = vrot.slane %v6453, 6
        %v6533 = vsel %vm5574, %v6531, %v6532
        %v6534 = vld [vmem:[%s5 + $0x14] sm:$0xf]
        %v6536 = vsel %vm440, %v6488, 0
        %v6539 = vsel %vm440, %v6491, 0
        %v6542 = vsel %vm440, %v6494, 0
        %v6545 = vsel %vm440, %v6497, 0
        %v6548 = vsel %vm440, %v6500, 0
        %v6551 = vsel %vm440, %v6503, 0
        %v6554 = vsel %vm440, %v6506, 0
        %v6557 = vsel %vm440, %v6509, 0
        %v6560 = vsel %vm440, %v6512, 0
        %v6563 = vsel %vm440, %v6515, 0
        %v6566 = vsel %vm440, %v6518, 0
        %v6569 = vsel %vm440, %v6521, 0
        %v6572 = vsel %vm440, %v6524, 0
        %v6575 = vsel %vm440, %v6527, 0
        %v6578 = vsel %vm440, %v6530, 0
        %v6581 = vsel %vm440, %v6533, 0
        %v6584 = vsel %vm1045, %v6534, 0
        %6586 = vmatprep.subr.bf16.mxu0 0
        %6587 = vmatpush1.bf16.msra.mxu0 %v6584
        %6588 = vmatprep.subr.bf16.mxu0 0
        %6589 = vmatpush1.bf16.msra.mxu0 0
        %6590 = vmatprep.subr.bf16.mxu0 0
        %6591 = vmatpush1.bf16.msra.mxu0 0
        %6592 = vmatprep.subr.bf16.mxu0 0
        %6593 = vmatpush1.bf16.msra.mxu0 0
        %6594 = vmatprep.subr.bf16.mxu0 0
        %6595 = vmatpush1.bf16.msra.mxu0 0
        %6596 = vmatprep.subr.bf16.mxu0 0
        %6597 = vmatpush1.bf16.msra.mxu0 0
        %6598 = vmatprep.subr.bf16.mxu0 0
        %6599 = vmatpush1.bf16.msra.mxu0 0
        %6600 = vmatprep.subr.bf16.mxu0 0
        %6601 = vmatpush1.bf16.msra.mxu0 0
        %6602 = vmatprep.subr.bf16.mxu0 0
        %6603 = vmatpush1.bf16.msra.mxu0 0
        %6604 = vmatprep.subr.bf16.mxu0 0
        %6605 = vmatpush1.bf16.msra.mxu0 0
        %6606 = vmatprep.subr.bf16.mxu0 0
        %6607 = vmatpush1.bf16.msra.mxu0 0
        %6608 = vmatprep.subr.bf16.mxu0 0
        %6609 = vmatpush1.bf16.msra.mxu0 0
        %6610 = vmatprep.subr.bf16.mxu0 0
        %6611 = vmatpush1.bf16.msra.mxu0 0
        %6612 = vmatprep.subr.bf16.mxu0 0
        %6613 = vmatpush1.bf16.msra.mxu0 0
        %6614 = vmatprep.subr.bf16.mxu0 0
        %6615 = vmatpush1.bf16.msra.mxu0 0
        %6616 = vmatprep.subr.bf16.mxu0 0
        %6617 = vmatpush1.bf16.msra.mxu0 0
        %6618 = vmatprep.mubr.bf16.mxu0 0
        %6619 = vmatmul.mubr.bf16.gmra.mrb[0].mxu0 %v6536
        %v6620 = vpop.f32.mrb[0].mxu0
        %v6621 = vadd.f32 0.0, %v6620
        %v6622 = vpop.f32.mrb[0].mxu0
        %v6623 = vpop.f32.mrb[0].mxu0
        %v6624 = vadd.f32 0.0, %v6623
        %v6625 = vpop.f32.mrb[0].mxu0
        %6626 = vmatprep.mubr.bf16.mxu0 0
        %6627 = vmatmul.mubr.bf16.gmra.mrb[0].mxu0 %v6539
        %v6628 = vpop.f32.mrb[0].mxu0
        %v6629 = vadd.f32 0.0, %v6628
        %v6630 = vpop.f32.mrb[0].mxu0
        %v6631 = vpop.f32.mrb[0].mxu0
        %v6632 = vadd.f32 0.0, %v6631
        %v6633 = vpop.f32.mrb[0].mxu0
        %6634 = vmatprep.mubr.bf16.mxu0 0
        %6635 = vmatmul.mubr.bf16.gmra.mrb[0].mxu0 %v6542
        %v6636 = vpop.f32.mrb[0].mxu0
        %v6637 = vadd.f32 0.0, %v6636
        %v6638 = vpop.f32.mrb[0].mxu0
        %v6639 = vpop.f32.mrb[0].mxu0
        %v6640 = vadd.f32 0.0, %v6639
        %v6641 = vpop.f32.mrb[0].mxu0
        %6642 = vmatprep.mubr.bf16.mxu0 0
        %6643 = vmatmul.mubr.bf16.gmra.mrb[0].mxu0 %v6545
        %v6644 = vpop.f32.mrb[0].mxu0
        %v6645 = vadd.f32 0.0, %v6644
        %v6646 = vpop.f32.mrb[0].mxu0
        %v6647 = vpop.f32.mrb[0].mxu0
        %v6648 = vadd.f32 0.0, %v6647
        %v6649 = vpop.f32.mrb[0].mxu0
        %6650 = vmatprep.mubr.bf16.mxu0 0
        %6651 = vmatmul.mubr.bf16.gmra.mrb[0].mxu0 %v6548
        %v6652 = vpop.f32.mrb[0].mxu0
        %v6653 = vadd.f32 0.0, %v6652
        %v6654 = vpop.f32.mrb[0].mxu0
        %v6655 = vpop.f32.mrb[0].mxu0
        %v6656 = vadd.f32 0.0, %v6655
        %v6657 = vpop.f32.mrb[0].mxu0
        %6658 = vmatprep.mubr.bf16.mxu0 0
        %6659 = vmatmul.mubr.bf16.gmra.mrb[0].mxu0 %v6551
        %v6660 = vpop.f32.mrb[0].mxu0
        %v6661 = vadd.f32 0.0, %v6660
        %v6662 = vpop.f32.mrb[0].mxu0
        %v6663 = vpop.f32.mrb[0].mxu0
        %v6664 = vadd.f32 0.0, %v6663
        %v6665 = vpop.f32.mrb[0].mxu0
        %6666 = vmatprep.mubr.bf16.mxu0 0
        %6667 = vmatmul.mubr.bf16.gmra.mrb[0].mxu0 %v6554
        %v6668 = vpop.f32.mrb[0].mxu0
        %v6669 = vadd.f32 0.0, %v6668
        %v6670 = vpop.f32.mrb[0].mxu0
        %v6671 = vpop.f32.mrb[0].mxu0
        %v6672 = vadd.f32 0.0, %v6671
        %v6673 = vpop.f32.mrb[0].mxu0
        %6674 = vmatprep.mubr.bf16.mxu0 0
        %6675 = vmatmul.mubr.bf16.gmra.mrb[0].mxu0 %v6557
        %v6676 = vpop.f32.mrb[0].mxu0
        %v6677 = vadd.f32 0.0, %v6676
        %v6678 = vpop.f32.mrb[0].mxu0
        %v6679 = vpop.f32.mrb[0].mxu0
        %v6680 = vadd.f32 0.0, %v6679
        %v6681 = vpop.f32.mrb[0].mxu0
        %6682 = vmatprep.mubr.bf16.mxu0 0
        %6683 = vmatmul.mubr.bf16.gmra.mrb[0].mxu0 %v6560
        %v6684 = vpop.f32.mrb[0].mxu0
        %v6685 = vadd.f32 0.0, %v6684
        %v6686 = vpop.f32.mrb[0].mxu0
        %v6687 = vpop.f32.mrb[0].mxu0
        %v6688 = vadd.f32 0.0, %v6687
        %v6689 = vpop.f32.mrb[0].mxu0
        %6690 = vmatprep.mubr.bf16.mxu0 0
        %6691 = vmatmul.mubr.bf16.gmra.mrb[0].mxu0 %v6563
        %v6692 = vpop.f32.mrb[0].mxu0
        %v6693 = vadd.f32 0.0, %v6692
        %v6694 = vpop.f32.mrb[0].mxu0
        %v6695 = vpop.f32.mrb[0].mxu0
        %v6696 = vadd.f32 0.0, %v6695
        %v6697 = vpop.f32.mrb[0].mxu0
        %6698 = vmatprep.mubr.bf16.mxu0 0
        %6699 = vmatmul.mubr.bf16.gmra.mrb[0].mxu0 %v6566
        %v6700 = vpop.f32.mrb[0].mxu0
        %v6701 = vadd.f32 0.0, %v6700
        %v6702 = vpop.f32.mrb[0].mxu0
        %v6703 = vpop.f32.mrb[0].mxu0
        %v6704 = vadd.f32 0.0, %v6703
        %v6705 = vpop.f32.mrb[0].mxu0
        %6706 = vmatprep.mubr.bf16.mxu0 0
        %6707 = vmatmul.mubr.bf16.gmra.mrb[0].mxu0 %v6569
        %v6708 = vpop.f32.mrb[0].mxu0
        %v6709 = vadd.f32 0.0, %v6708
        %v6710 = vpop.f32.mrb[0].mxu0
        %v6711 = vpop.f32.mrb[0].mxu0
        %v6712 = vadd.f32 0.0, %v6711
        %v6713 = vpop.f32.mrb[0].mxu0
        %6714 = vmatprep.mubr.bf16.mxu0 0
        %6715 = vmatmul.mubr.bf16.gmra.mrb[0].mxu0 %v6572
        %v6716 = vpop.f32.mrb[0].mxu0
        %v6717 = vadd.f32 0.0, %v6716
        %v6718 = vpop.f32.mrb[0].mxu0
        %v6719 = vpop.f32.mrb[0].mxu0
        %v6720 = vadd.f32 0.0, %v6719
        %v6721 = vpop.f32.mrb[0].mxu0
        %6722 = vmatprep.mubr.bf16.mxu0 0
        %6723 = vmatmul.mubr.bf16.gmra.mrb[0].mxu0 %v6575
        %v6724 = vpop.f32.mrb[0].mxu0
        %v6725 = vadd.f32 0.0, %v6724
        %v6726 = vpop.f32.mrb[0].mxu0
        %v6727 = vpop.f32.mrb[0].mxu0
        %v6728 = vadd.f32 0.0, %v6727
        %v6729 = vpop.f32.mrb[0].mxu0
        %6730 = vmatprep.mubr.bf16.mxu0 0
        %6731 = vmatmul.mubr.bf16.gmra.mrb[0].mxu0 %v6578
        %v6732 = vpop.f32.mrb[0].mxu0
        %v6733 = vadd.f32 0.0, %v6732
        %v6734 = vpop.f32.mrb[0].mxu0
        %v6735 = vpop.f32.mrb[0].mxu0
        %v6736 = vadd.f32 0.0, %v6735
        %v6737 = vpop.f32.mrb[0].mxu0
        %6738 = vmatprep.mubr.bf16.mxu0 0
        %6739 = vmatmul.mubr.bf16.gmra.mrb[0].mxu0 %v6581
        %v6740 = vpop.f32.mrb[0].mxu0
        %v6741 = vadd.f32 0.0, %v6740
        %v6742 = vpop.f32.mrb[0].mxu0
        %v6743 = vpop.f32.mrb[0].mxu0
        %v6744 = vadd.f32 0.0, %v6743
        %v6745 = vpop.f32.mrb[0].mxu0
        %6746 = vdwg.mxu0
        %v6747 = vadd.f32 %v6390, %v6621
        %v6748 = vadd.f32 %v6391, %v6624
        %v6749 = vadd.f32 %v6392, %v6629
        %v6750 = vadd.f32 %v6393, %v6632
        %v6751 = vadd.f32 %v6394, %v6637
        %v6752 = vadd.f32 %v6395, %v6640
        %v6753 = vadd.f32 %v6396, %v6645
        %v6754 = vadd.f32 %v6397, %v6648
        %v6755 = vadd.f32 %v6398, %v6653
        %v6756 = vadd.f32 %v6399, %v6656
        %v6757 = vadd.f32 %v6400, %v6661
        %v6758 = vadd.f32 %v6401, %v6664
        %v6759 = vadd.f32 %v6402, %v6669
        %v6760 = vadd.f32 %v6403, %v6672
        %v6761 = vadd.f32 %v6404, %v6677
        %v6762 = vadd.f32 %v6405, %v6680
        %v6763 = vadd.f32 %v6406, %v6685
        %v6764 = vadd.f32 %v6407, %v6688
        %v6765 = vadd.f32 %v6408, %v6693
        %v6766 = vadd.f32 %v6409, %v6696
        %v6767 = vadd.f32 %v6410, %v6701
        %v6768 = vadd.f32 %v6411, %v6704
        %v6769 = vadd.f32 %v6412, %v6709
        %v6770 = vadd.f32 %v6413, %v6712
        %v6771 = vadd.f32 %v6414, %v6717
        %v6772 = vadd.f32 %v6415, %v6720
        %v6773 = vadd.f32 %v6416, %v6725
        %v6774 = vadd.f32 %v6417, %v6728
        %v6775 = vadd.f32 %v6418, %v6733
        %v6776 = vadd.f32 %v6419, %v6736
        %v6777 = vadd.f32 %v6420, %v6741
        %v6778 = vadd.f32 %v6421, %v6744
        %s6779 = scalar_lea.vmem [#allocation2], 672
        %v6780 = vld [vmem:[%s6779] sm:$0xfc]
        %v6781 = vld [vmem:[%s6779 + $0x8] sm:$0x3]
        %v6782 = vld [vmem:[%s6779 + $0x18] sm:$0xfc]
        %v6783 = vld [vmem:[%s6779 + $0x20] sm:$0x3]
        %v6784 = vld [vmem:[%s6779 + $0x30] sm:$0xfc]
        %v6785 = vld [vmem:[%s6779 + $0x38] sm:$0x3]
        %v6786 = vld [vmem:[%s6779 + $0x48] sm:$0xfc]
        %v6787 = vld [vmem:[%s6779 + $0x50] sm:$0x3]
        %v6788 = vld [vmem:[%s6779 + $0x60] sm:$0xfc]
        %v6789 = vld [vmem:[%s6779 + $0x68] sm:$0x3]
        %v6790 = vld [vmem:[%s6779 + $0x78] sm:$0xfc]
        %v6791 = vld [vmem:[%s6779 + $0x80] sm:$0x3]
        %v6792 = vld [vmem:[%s6779 + $0x90] sm:$0xfc]
        %v6793 = vld [vmem:[%s6779 + $0x98] sm:$0x3]
        %v6794 = vld [vmem:[%s6779 + $0xa8] sm:$0xfc]
        %v6795 = vld [vmem:[%s6779 + $0xb0] sm:$0x3]
        %v6796 = vld [vmem:[%s6779 + $0xc0] sm:$0xfc]
        %v6797 = vld [vmem:[%s6779 + $0xc8] sm:$0x3]
        %v6798 = vld [vmem:[%s6779 + $0xd8] sm:$0xfc]
        %v6799 = vld [vmem:[%s6779 + $0xe0] sm:$0x3]
        %v6800 = vld [vmem:[%s6779 + $0xf0] sm:$0xfc]
        %v6801 = vld [vmem:[%s6779 + $0xf8] sm:$0x3]
        %v6802 = vld [vmem:[%s6779 + $0x108] sm:$0xfc]
        %v6803 = vld [vmem:[%s6779 + $0x110] sm:$0x3]
        %v6804 = vld [vmem:[%s6779 + $0x120] sm:$0xfc]
        %v6805 = vld [vmem:[%s6779 + $0x128] sm:$0x3]
        %v6806 = vld [vmem:[%s6779 + $0x138] sm:$0xfc]
        %v6807 = vld [vmem:[%s6779 + $0x140] sm:$0x3]
        %v6808 = vld [vmem:[%s6779 + $0x150] sm:$0xfc]
        %v6809 = vld [vmem:[%s6779 + $0x158] sm:$0x3]
        %v6810 = vld [vmem:[%s6779 + $0x168] sm:$0xfc]
        %v6811 = vld [vmem:[%s6779 + $0x170] sm:$0x3]
        %v6844 = vrot.slane %v6780, 2
        %v6845 = vrot.slane %v6781, 2
        %v6846 = vsel %vm5019, %v6844, %v6845
        %v6847 = vrot.slane %v6782, 2
        %v6848 = vrot.slane %v6783, 2
        %v6849 = vsel %vm5019, %v6847, %v6848
        %v6850 = vrot.slane %v6784, 2
        %v6851 = vrot.slane %v6785, 2
        %v6852 = vsel %vm5019, %v6850, %v6851
        %v6853 = vrot.slane %v6786, 2
        %v6854 = vrot.slane %v6787, 2
        %v6855 = vsel %vm5019, %v6853, %v6854
        %v6856 = vrot.slane %v6788, 2
        %v6857 = vrot.slane %v6789, 2
        %v6858 = vsel %vm5019, %v6856, %v6857
        %v6859 = vrot.slane %v6790, 2
        %v6860 = vrot.slane %v6791, 2
        %v6861 = vsel %vm5019, %v6859, %v6860
        %v6862 = vrot.slane %v6792, 2
        %v6863 = vrot.slane %v6793, 2
        %v6864 = vsel %vm5019, %v6862, %v6863
        %v6865 = vrot.slane %v6794, 2
        %v6866 = vrot.slane %v6795, 2
        %v6867 = vsel %vm5019, %v6865, %v6866
        %v6868 = vrot.slane %v6796, 2
        %v6869 = vrot.slane %v6797, 2
        %v6870 = vsel %vm5019, %v6868, %v6869
        %v6871 = vrot.slane %v6798, 2
        %v6872 = vrot.slane %v6799, 2
        %v6873 = vsel %vm5019, %v6871, %v6872
        %v6874 = vrot.slane %v6800, 2
        %v6875 = vrot.slane %v6801, 2
        %v6876 = vsel %vm5019, %v6874, %v6875
        %v6877 = vrot.slane %v6802, 2
        %v6878 = vrot.slane %v6803, 2
        %v6879 = vsel %vm5019, %v6877, %v6878
        %v6880 = vrot.slane %v6804, 2
        %v6881 = vrot.slane %v6805, 2
        %v6882 = vsel %vm5019, %v6880, %v6881
        %v6883 = vrot.slane %v6806, 2
        %v6884 = vrot.slane %v6807, 2
        %v6885 = vsel %vm5019, %v6883, %v6884
        %v6886 = vrot.slane %v6808, 2
        %v6887 = vrot.slane %v6809, 2
        %v6888 = vsel %vm5019, %v6886, %v6887
        %v6889 = vrot.slane %v6810, 2
        %v6890 = vrot.slane %v6811, 2
        %v6891 = vsel %vm5019, %v6889, %v6890
        %v6892 = vld [vmem:[%s5 + $0x18] sm:$0xf]
        %v6894 = vsel %vm440, %v6846, 0
        %v6897 = vsel %vm440, %v6849, 0
        %v6900 = vsel %vm440, %v6852, 0
        %v6903 = vsel %vm440, %v6855, 0
        %v6906 = vsel %vm440, %v6858, 0
        %v6909 = vsel %vm440, %v6861, 0
        %v6912 = vsel %vm440, %v6864, 0
        %v6915 = vsel %vm440, %v6867, 0
        %v6918 = vsel %vm440, %v6870, 0
        %v6921 = vsel %vm440, %v6873, 0
        %v6924 = vsel %vm440, %v6876, 0
        %v6927 = vsel %vm440, %v6879, 0
        %v6930 = vsel %vm440, %v6882, 0
        %v6933 = vsel %vm440, %v6885, 0
        %v6936 = vsel %vm440, %v6888, 0
        %v6939 = vsel %vm440, %v6891, 0
        %v6942 = vsel %vm1045, %v6892, 0
        %6944 = vmatprep.subr.bf16.mxu0 0
        %6945 = vmatpush1.bf16.msra.mxu0 %v6942
        %6946 = vmatprep.subr.bf16.mxu0 0
        %6947 = vmatpush1.bf16.msra.mxu0 0
        %6948 = vmatprep.subr.bf16.mxu0 0
        %6949 = vmatpush1.bf16.msra.mxu0 0
        %6950 = vmatprep.subr.bf16.mxu0 0
        %6951 = vmatpush1.bf16.msra.mxu0 0
        %6952 = vmatprep.subr.bf16.mxu0 0
        %6953 = vmatpush1.bf16.msra.mxu0 0
        %6954 = vmatprep.subr.bf16.mxu0 0
        %6955 = vmatpush1.bf16.msra.mxu0 0
        %6956 = vmatprep.subr.bf16.mxu0 0
        %6957 = vmatpush1.bf16.msra.mxu0 0
        %6958 = vmatprep.subr.bf16.mxu0 0
        %6959 = vmatpush1.bf16.msra.mxu0 0
        %6960 = vmatprep.subr.bf16.mxu0 0
        %6961 = vmatpush1.bf16.msra.mxu0 0
        %6962 = vmatprep.subr.bf16.mxu0 0
        %6963 = vmatpush1.bf16.msra.mxu0 0
        %6964 = vmatprep.subr.bf16.mxu0 0
        %6965 = vmatpush1.bf16.msra.mxu0 0
        %6966 = vmatprep.subr.bf16.mxu0 0
        %6967 = vmatpush1.bf16.msra.mxu0 0
        %6968 = vmatprep.subr.bf16.mxu0 0
        %6969 = vmatpush1.bf16.msra.mxu0 0
        %6970 = vmatprep.subr.bf16.mxu0 0
        %6971 = vmatpush1.bf16.msra.mxu0 0
        %6972 = vmatprep.subr.bf16.mxu0 0
        %6973 = vmatpush1.bf16.msra.mxu0 0
        %6974 = vmatprep.subr.bf16.mxu0 0
        %6975 = vmatpush1.bf16.msra.mxu0 0
        %6976 = vmatprep.mubr.bf16.mxu0 0
        %6977 = vmatmul.mubr.bf16.gmra.mrb[0].mxu0 %v6894
        %v6978 = vpop.f32.mrb[0].mxu0
        %v6979 = vadd.f32 0.0, %v6978
        %v6980 = vpop.f32.mrb[0].mxu0
        %v6981 = vpop.f32.mrb[0].mxu0
        %v6982 = vadd.f32 0.0, %v6981
        %v6983 = vpop.f32.mrb[0].mxu0
        %6984 = vmatprep.mubr.bf16.mxu0 0
        %6985 = vmatmul.mubr.bf16.gmra.mrb[0].mxu0 %v6897
        %v6986 = vpop.f32.mrb[0].mxu0
        %v6987 = vadd.f32 0.0, %v6986
        %v6988 = vpop.f32.mrb[0].mxu0
        %v6989 = vpop.f32.mrb[0].mxu0
        %v6990 = vadd.f32 0.0, %v6989
        %v6991 = vpop.f32.mrb[0].mxu0
        %6992 = vmatprep.mubr.bf16.mxu0 0
        %6993 = vmatmul.mubr.bf16.gmra.mrb[0].mxu0 %v6900
        %v6994 = vpop.f32.mrb[0].mxu0
        %v6995 = vadd.f32 0.0, %v6994
        %v6996 = vpop.f32.mrb[0].mxu0
        %v6997 = vpop.f32.mrb[0].mxu0
        %v6998 = vadd.f32 0.0, %v6997
        %v6999 = vpop.f32.mrb[0].mxu0
        %7000 = vmatprep.mubr.bf16.mxu0 0
        %7001 = vmatmul.mubr.bf16.gmra.mrb[0].mxu0 %v6903
        %v7002 = vpop.f32.mrb[0].mxu0
        %v7003 = vadd.f32 0.0, %v7002
        %v7004 = vpop.f32.mrb[0].mxu0
        %v7005 = vpop.f32.mrb[0].mxu0
        %v7006 = vadd.f32 0.0, %v7005
        %v7007 = vpop.f32.mrb[0].mxu0
        %7008 = vmatprep.mubr.bf16.mxu0 0
        %7009 = vmatmul.mubr.bf16.gmra.mrb[0].mxu0 %v6906
        %v7010 = vpop.f32.mrb[0].mxu0
        %v7011 = vadd.f32 0.0, %v7010
        %v7012 = vpop.f32.mrb[0].mxu0
        %v7013 = vpop.f32.mrb[0].mxu0
        %v7014 = vadd.f32 0.0, %v7013
        %v7015 = vpop.f32.mrb[0].mxu0
        %7016 = vmatprep.mubr.bf16.mxu0 0
        %7017 = vmatmul.mubr.bf16.gmra.mrb[0].mxu0 %v6909
        %v7018 = vpop.f32.mrb[0].mxu0
        %v7019 = vadd.f32 0.0, %v7018
        %v7020 = vpop.f32.mrb[0].mxu0
        %v7021 = vpop.f32.mrb[0].mxu0
        %v7022 = vadd.f32 0.0, %v7021
        %v7023 = vpop.f32.mrb[0].mxu0
        %7024 = vmatprep.mubr.bf16.mxu0 0
        %7025 = vmatmul.mubr.bf16.gmra.mrb[0].mxu0 %v6912
        %v7026 = vpop.f32.mrb[0].mxu0
        %v7027 = vadd.f32 0.0, %v7026
        %v7028 = vpop.f32.mrb[0].mxu0
        %v7029 = vpop.f32.mrb[0].mxu0
        %v7030 = vadd.f32 0.0, %v7029
        %v7031 = vpop.f32.mrb[0].mxu0
        %7032 = vmatprep.mubr.bf16.mxu0 0
        %7033 = vmatmul.mubr.bf16.gmra.mrb[0].mxu0 %v6915
        %v7034 = vpop.f32.mrb[0].mxu0
        %v7035 = vadd.f32 0.0, %v7034
        %v7036 = vpop.f32.mrb[0].mxu0
        %v7037 = vpop.f32.mrb[0].mxu0
        %v7038 = vadd.f32 0.0, %v7037
        %v7039 = vpop.f32.mrb[0].mxu0
        %7040 = vmatprep.mubr.bf16.mxu0 0
        %7041 = vmatmul.mubr.bf16.gmra.mrb[0].mxu0 %v6918
        %v7042 = vpop.f32.mrb[0].mxu0
        %v7043 = vadd.f32 0.0, %v7042
        %v7044 = vpop.f32.mrb[0].mxu0
        %v7045 = vpop.f32.mrb[0].mxu0
        %v7046 = vadd.f32 0.0, %v7045
        %v7047 = vpop.f32.mrb[0].mxu0
        %7048 = vmatprep.mubr.bf16.mxu0 0
        %7049 = vmatmul.mubr.bf16.gmra.mrb[0].mxu0 %v6921
        %v7050 = vpop.f32.mrb[0].mxu0
        %v7051 = vadd.f32 0.0, %v7050
        %v7052 = vpop.f32.mrb[0].mxu0
        %v7053 = vpop.f32.mrb[0].mxu0
        %v7054 = vadd.f32 0.0, %v7053
        %v7055 = vpop.f32.mrb[0].mxu0
        %7056 = vmatprep.mubr.bf16.mxu0 0
        %7057 = vmatmul.mubr.bf16.gmra.mrb[0].mxu0 %v6924
        %v7058 = vpop.f32.mrb[0].mxu0
        %v7059 = vadd.f32 0.0, %v7058
        %v7060 = vpop.f32.mrb[0].mxu0
        %v7061 = vpop.f32.mrb[0].mxu0
        %v7062 = vadd.f32 0.0, %v7061
        %v7063 = vpop.f32.mrb[0].mxu0
        %7064 = vmatprep.mubr.bf16.mxu0 0
        %7065 = vmatmul.mubr.bf16.gmra.mrb[0].mxu0 %v6927
        %v7066 = vpop.f32.mrb[0].mxu0
        %v7067 = vadd.f32 0.0, %v7066
        %v7068 = vpop.f32.mrb[0].mxu0
        %v7069 = vpop.f32.mrb[0].mxu0
        %v7070 = vadd.f32 0.0, %v7069
        %v7071 = vpop.f32.mrb[0].mxu0
        %7072 = vmatprep.mubr.bf16.mxu0 0
        %7073 = vmatmul.mubr.bf16.gmra.mrb[0].mxu0 %v6930
        %v7074 = vpop.f32.mrb[0].mxu0
        %v7075 = vadd.f32 0.0, %v7074
        %v7076 = vpop.f32.mrb[0].mxu0
        %v7077 = vpop.f32.mrb[0].mxu0
        %v7078 = vadd.f32 0.0, %v7077
        %v7079 = vpop.f32.mrb[0].mxu0
        %7080 = vmatprep.mubr.bf16.mxu0 0
        %7081 = vmatmul.mubr.bf16.gmra.mrb[0].mxu0 %v6933
        %v7082 = vpop.f32.mrb[0].mxu0
        %v7083 = vadd.f32 0.0, %v7082
        %v7084 = vpop.f32.mrb[0].mxu0
        %v7085 = vpop.f32.mrb[0].mxu0
        %v7086 = vadd.f32 0.0, %v7085
        %v7087 = vpop.f32.mrb[0].mxu0
        %7088 = vmatprep.mubr.bf16.mxu0 0
        %7089 = vmatmul.mubr.bf16.gmra.mrb[0].mxu0 %v6936
        %v7090 = vpop.f32.mrb[0].mxu0
        %v7091 = vadd.f32 0.0, %v7090
        %v7092 = vpop.f32.mrb[0].mxu0
        %v7093 = vpop.f32.mrb[0].mxu0
        %v7094 = vadd.f32 0.0, %v7093
        %v7095 = vpop.f32.mrb[0].mxu0
        %7096 = vmatprep.mubr.bf16.mxu0 0
        %7097 = vmatmul.mubr.bf16.gmra.mrb[0].mxu0 %v6939
        %v7098 = vpop.f32.mrb[0].mxu0
        %v7099 = vadd.f32 0.0, %v7098
        %v7100 = vpop.f32.mrb[0].mxu0
        %v7101 = vpop.f32.mrb[0].mxu0
        %v7102 = vadd.f32 0.0, %v7101
        %v7103 = vpop.f32.mrb[0].mxu0
        %7104 = vdwg.mxu0
        %v7105 = vadd.f32 %v6747, %v6979
        %v7106 = vadd.f32 %v6748, %v6982
        %v7107 = vadd.f32 %v6749, %v6987
        %v7108 = vadd.f32 %v6750, %v6990
        %v7109 = vadd.f32 %v6751, %v6995
        %v7110 = vadd.f32 %v6752, %v6998
        %v7111 = vadd.f32 %v6753, %v7003
        %v7112 = vadd.f32 %v6754, %v7006
        %v7113 = vadd.f32 %v6755, %v7011
        %v7114 = vadd.f32 %v6756, %v7014
        %v7115 = vadd.f32 %v6757, %v7019
        %v7116 = vadd.f32 %v6758, %v7022
        %v7117 = vadd.f32 %v6759, %v7027
        %v7118 = vadd.f32 %v6760, %v7030
        %v7119 = vadd.f32 %v6761, %v7035
        %v7120 = vadd.f32 %v6762, %v7038
        %v7121 = vadd.f32 %v6763, %v7043
        %v7122 = vadd.f32 %v6764, %v7046
        %v7123 = vadd.f32 %v6765, %v7051
        %v7124 = vadd.f32 %v6766, %v7054
        %v7125 = vadd.f32 %v6767, %v7059
        %v7126 = vadd.f32 %v6768, %v7062
        %v7127 = vadd.f32 %v6769, %v7067
        %v7128 = vadd.f32 %v6770, %v7070
        %v7129 = vadd.f32 %v6771, %v7075
        %v7130 = vadd.f32 %v6772, %v7078
        %v7131 = vadd.f32 %v6773, %v7083
        %v7132 = vadd.f32 %v6774, %v7086
        %v7133 = vadd.f32 %v6775, %v7091
        %v7134 = vadd.f32 %v6776, %v7094
        %v7135 = vadd.f32 %v6777, %v7099
        %v7136 = vadd.f32 %v6778, %v7102
        %v7137 = vld [vmem:[%s6779 + $0x8] sm:$0xff]
        %v7138 = vld [vmem:[%s6779 + $0x20] sm:$0xff]
        %v7139 = vld [vmem:[%s6779 + $0x38] sm:$0xff]
        %v7140 = vld [vmem:[%s6779 + $0x50] sm:$0xff]
        %v7141 = vld [vmem:[%s6779 + $0x68] sm:$0xff]
        %v7142 = vld [vmem:[%s6779 + $0x80] sm:$0xff]
        %v7143 = vld [vmem:[%s6779 + $0x98] sm:$0xff]
        %v7144 = vld [vmem:[%s6779 + $0xb0] sm:$0xff]
        %v7145 = vld [vmem:[%s6779 + $0xc8] sm:$0xff]
        %v7146 = vld [vmem:[%s6779 + $0xe0] sm:$0xff]
        %v7147 = vld [vmem:[%s6779 + $0xf8] sm:$0xff]
        %v7148 = vld [vmem:[%s6779 + $0x110] sm:$0xff]
        %v7149 = vld [vmem:[%s6779 + $0x128] sm:$0xff]
        %v7150 = vld [vmem:[%s6779 + $0x140] sm:$0xff]
        %v7151 = vld [vmem:[%s6779 + $0x158] sm:$0xff]
        %v7152 = vld [vmem:[%s6779 + $0x170] sm:$0xff]
        %v7153 = vld [vmem:[%s5 + $0x1c] sm:$0xf]
        %v7155 = vsel %vm440, %v7137, 0
        %v7158 = vsel %vm440, %v7138, 0
        %v7161 = vsel %vm440, %v7139, 0
        %v7164 = vsel %vm440, %v7140, 0
        %v7167 = vsel %vm440, %v7141, 0
        %v7170 = vsel %vm440, %v7142, 0
        %v7173 = vsel %vm440, %v7143, 0
        %v7176 = vsel %vm440, %v7144, 0
        %v7179 = vsel %vm440, %v7145, 0
        %v7182 = vsel %vm440, %v7146, 0
        %v7185 = vsel %vm440, %v7147, 0
        %v7188 = vsel %vm440, %v7148, 0
        %v7191 = vsel %vm440, %v7149, 0
        %v7194 = vsel %vm440, %v7150, 0
        %v7197 = vsel %vm440, %v7151, 0
        %v7200 = vsel %vm440, %v7152, 0
        %v7203 = vsel %vm1045, %v7153, 0
        %7205 = vmatprep.subr.bf16.mxu0 0
        %7206 = vmatpush1.bf16.msra.mxu0 %v7203
        %7207 = vmatprep.subr.bf16.mxu0 0
        %7208 = vmatpush1.bf16.msra.mxu0 0
        %7209 = vmatprep.subr.bf16.mxu0 0
        %7210 = vmatpush1.bf16.msra.mxu0 0
        %7211 = vmatprep.subr.bf16.mxu0 0
        %7212 = vmatpush1.bf16.msra.mxu0 0
        %7213 = vmatprep.subr.bf16.mxu0 0
        %7214 = vmatpush1.bf16.msra.mxu0 0
        %7215 = vmatprep.subr.bf16.mxu0 0
        %7216 = vmatpush1.bf16.msra.mxu0 0
        %7217 = vmatprep.subr.bf16.mxu0 0
        %7218 = vmatpush1.bf16.msra.mxu0 0
        %7219 = vmatprep.subr.bf16.mxu0 0
        %7220 = vmatpush1.bf16.msra.mxu0 0
        %7221 = vmatprep.subr.bf16.mxu0 0
        %7222 = vmatpush1.bf16.msra.mxu0 0
        %7223 = vmatprep.subr.bf16.mxu0 0
        %7224 = vmatpush1.bf16.msra.mxu0 0
        %7225 = vmatprep.subr.bf16.mxu0 0
        %7226 = vmatpush1.bf16.msra.mxu0 0
        %7227 = vmatprep.subr.bf16.mxu0 0
        %7228 = vmatpush1.bf16.msra.mxu0 0
        %7229 = vmatprep.subr.bf16.mxu0 0
        %7230 = vmatpush1.bf16.msra.mxu0 0
        %7231 = vmatprep.subr.bf16.mxu0 0
        %7232 = vmatpush1.bf16.msra.mxu0 0
        %7233 = vmatprep.subr.bf16.mxu0 0
        %7234 = vmatpush1.bf16.msra.mxu0 0
        %7235 = vmatprep.subr.bf16.mxu0 0
        %7236 = vmatpush1.bf16.msra.mxu0 0
        %7237 = vmatprep.mubr.bf16.mxu0 0
        %7238 = vmatmul.mubr.bf16.gmra.mrb[0].mxu0 %v7155
        %v7239 = vpop.f32.mrb[0].mxu0
        %v7240 = vadd.f32 0.0, %v7239
        %v7241 = vpop.f32.mrb[0].mxu0
        %v7242 = vpop.f32.mrb[0].mxu0
        %v7243 = vadd.f32 0.0, %v7242
        %v7244 = vpop.f32.mrb[0].mxu0
        %7245 = vmatprep.mubr.bf16.mxu0 0
        %7246 = vmatmul.mubr.bf16.gmra.mrb[0].mxu0 %v7158
        %v7247 = vpop.f32.mrb[0].mxu0
        %v7248 = vadd.f32 0.0, %v7247
        %v7249 = vpop.f32.mrb[0].mxu0
        %v7250 = vpop.f32.mrb[0].mxu0
        %v7251 = vadd.f32 0.0, %v7250
        %v7252 = vpop.f32.mrb[0].mxu0
        %7253 = vmatprep.mubr.bf16.mxu0 0
        %7254 = vmatmul.mubr.bf16.gmra.mrb[0].mxu0 %v7161
        %v7255 = vpop.f32.mrb[0].mxu0
        %v7256 = vadd.f32 0.0, %v7255
        %v7257 = vpop.f32.mrb[0].mxu0
        %v7258 = vpop.f32.mrb[0].mxu0
        %v7259 = vadd.f32 0.0, %v7258
        %v7260 = vpop.f32.mrb[0].mxu0
        %7261 = vmatprep.mubr.bf16.mxu0 0
        %7262 = vmatmul.mubr.bf16.gmra.mrb[0].mxu0 %v7164
        %v7263 = vpop.f32.mrb[0].mxu0
        %v7264 = vadd.f32 0.0, %v7263
        %v7265 = vpop.f32.mrb[0].mxu0
        %v7266 = vpop.f32.mrb[0].mxu0
        %v7267 = vadd.f32 0.0, %v7266
        %v7268 = vpop.f32.mrb[0].mxu0
        %7269 = vmatprep.mubr.bf16.mxu0 0
        %7270 = vmatmul.mubr.bf16.gmra.mrb[0].mxu0 %v7167
        %v7271 = vpop.f32.mrb[0].mxu0
        %v7272 = vadd.f32 0.0, %v7271
        %v7273 = vpop.f32.mrb[0].mxu0
        %v7274 = vpop.f32.mrb[0].mxu0
        %v7275 = vadd.f32 0.0, %v7274
        %v7276 = vpop.f32.mrb[0].mxu0
        %7277 = vmatprep.mubr.bf16.mxu0 0
        %7278 = vmatmul.mubr.bf16.gmra.mrb[0].mxu0 %v7170
        %v7279 = vpop.f32.mrb[0].mxu0
        %v7280 = vadd.f32 0.0, %v7279
        %v7281 = vpop.f32.mrb[0].mxu0
        %v7282 = vpop.f32.mrb[0].mxu0
        %v7283 = vadd.f32 0.0, %v7282
        %v7284 = vpop.f32.mrb[0].mxu0
        %7285 = vmatprep.mubr.bf16.mxu0 0
        %7286 = vmatmul.mubr.bf16.gmra.mrb[0].mxu0 %v7173
        %v7287 = vpop.f32.mrb[0].mxu0
        %v7288 = vadd.f32 0.0, %v7287
        %v7289 = vpop.f32.mrb[0].mxu0
        %v7290 = vpop.f32.mrb[0].mxu0
        %v7291 = vadd.f32 0.0, %v7290
        %v7292 = vpop.f32.mrb[0].mxu0
        %7293 = vmatprep.mubr.bf16.mxu0 0
        %7294 = vmatmul.mubr.bf16.gmra.mrb[0].mxu0 %v7176
        %v7295 = vpop.f32.mrb[0].mxu0
        %v7296 = vadd.f32 0.0, %v7295
        %v7297 = vpop.f32.mrb[0].mxu0
        %v7298 = vpop.f32.mrb[0].mxu0
        %v7299 = vadd.f32 0.0, %v7298
        %v7300 = vpop.f32.mrb[0].mxu0
        %7301 = vmatprep.mubr.bf16.mxu0 0
        %7302 = vmatmul.mubr.bf16.gmra.mrb[0].mxu0 %v7179
        %v7303 = vpop.f32.mrb[0].mxu0
        %v7304 = vadd.f32 0.0, %v7303
        %v7305 = vpop.f32.mrb[0].mxu0
        %v7306 = vpop.f32.mrb[0].mxu0
        %v7307 = vadd.f32 0.0, %v7306
        %v7308 = vpop.f32.mrb[0].mxu0
        %7309 = vmatprep.mubr.bf16.mxu0 0
        %7310 = vmatmul.mubr.bf16.gmra.mrb[0].mxu0 %v7182
        %v7311 = vpop.f32.mrb[0].mxu0
        %v7312 = vadd.f32 0.0, %v7311
        %v7313 = vpop.f32.mrb[0].mxu0
        %v7314 = vpop.f32.mrb[0].mxu0
        %v7315 = vadd.f32 0.0, %v7314
        %v7316 = vpop.f32.mrb[0].mxu0
        %7317 = vmatprep.mubr.bf16.mxu0 0
        %7318 = vmatmul.mubr.bf16.gmra.mrb[0].mxu0 %v7185
        %v7319 = vpop.f32.mrb[0].mxu0
        %v7320 = vadd.f32 0.0, %v7319
        %v7321 = vpop.f32.mrb[0].mxu0
        %v7322 = vpop.f32.mrb[0].mxu0
        %v7323 = vadd.f32 0.0, %v7322
        %v7324 = vpop.f32.mrb[0].mxu0
        %7325 = vmatprep.mubr.bf16.mxu0 0
        %7326 = vmatmul.mubr.bf16.gmra.mrb[0].mxu0 %v7188
        %v7327 = vpop.f32.mrb[0].mxu0
        %v7328 = vadd.f32 0.0, %v7327
        %v7329 = vpop.f32.mrb[0].mxu0
        %v7330 = vpop.f32.mrb[0].mxu0
        %v7331 = vadd.f32 0.0, %v7330
        %v7332 = vpop.f32.mrb[0].mxu0
        %7333 = vmatprep.mubr.bf16.mxu0 0
        %7334 = vmatmul.mubr.bf16.gmra.mrb[0].mxu0 %v7191
        %v7335 = vpop.f32.mrb[0].mxu0
        %v7336 = vadd.f32 0.0, %v7335
        %v7337 = vpop.f32.mrb[0].mxu0
        %v7338 = vpop.f32.mrb[0].mxu0
        %v7339 = vadd.f32 0.0, %v7338
        %v7340 = vpop.f32.mrb[0].mxu0
        %7341 = vmatprep.mubr.bf16.mxu0 0
        %7342 = vmatmul.mubr.bf16.gmra.mrb[0].mxu0 %v7194
        %v7343 = vpop.f32.mrb[0].mxu0
        %v7344 = vadd.f32 0.0, %v7343
        %v7345 = vpop.f32.mrb[0].mxu0
        %v7346 = vpop.f32.mrb[0].mxu0
        %v7347 = vadd.f32 0.0, %v7346
        %v7348 = vpop.f32.mrb[0].mxu0
        %7349 = vmatprep.mubr.bf16.mxu0 0
        %7350 = vmatmul.mubr.bf16.gmra.mrb[0].mxu0 %v7197
        %v7351 = vpop.f32.mrb[0].mxu0
        %v7352 = vadd.f32 0.0, %v7351
        %v7353 = vpop.f32.mrb[0].mxu0
        %v7354 = vpop.f32.mrb[0].mxu0
        %v7355 = vadd.f32 0.0, %v7354
        %v7356 = vpop.f32.mrb[0].mxu0
        %7357 = vmatprep.mubr.bf16.mxu0 0
        %7358 = vmatmul.mubr.bf16.gmra.mrb[0].mxu0 %v7200
        %v7359 = vpop.f32.mrb[0].mxu0
        %v7360 = vadd.f32 0.0, %v7359
        %v7361 = vpop.f32.mrb[0].mxu0
        %v7362 = vpop.f32.mrb[0].mxu0
        %v7363 = vadd.f32 0.0, %v7362
        %v7364 = vpop.f32.mrb[0].mxu0
        %7365 = vdwg.mxu0
        %v7366 = vadd.f32 %v7105, %v7240
        %v7367 = vadd.f32 %v7106, %v7243
        %v7368 = vadd.f32 %v7107, %v7248
        %v7369 = vadd.f32 %v7108, %v7251
        %v7370 = vadd.f32 %v7109, %v7256
        %v7371 = vadd.f32 %v7110, %v7259
        %v7372 = vadd.f32 %v7111, %v7264
        %v7373 = vadd.f32 %v7112, %v7267
        %v7374 = vadd.f32 %v7113, %v7272
        %v7375 = vadd.f32 %v7114, %v7275
        %v7376 = vadd.f32 %v7115, %v7280
        %v7377 = vadd.f32 %v7116, %v7283
        %v7378 = vadd.f32 %v7117, %v7288
        %v7379 = vadd.f32 %v7118, %v7291
        %v7380 = vadd.f32 %v7119, %v7296
        %v7381 = vadd.f32 %v7120, %v7299
        %v7382 = vadd.f32 %v7121, %v7304
        %v7383 = vadd.f32 %v7122, %v7307
        %v7384 = vadd.f32 %v7123, %v7312
        %v7385 = vadd.f32 %v7124, %v7315
        %v7386 = vadd.f32 %v7125, %v7320
        %v7387 = vadd.f32 %v7126, %v7323
        %v7388 = vadd.f32 %v7127, %v7328
        %v7389 = vadd.f32 %v7128, %v7331
        %v7390 = vadd.f32 %v7129, %v7336
        %v7391 = vadd.f32 %v7130, %v7339
        %v7392 = vadd.f32 %v7131, %v7344
        %v7393 = vadd.f32 %v7132, %v7347
        %v7394 = vadd.f32 %v7133, %v7352
        %v7395 = vadd.f32 %v7134, %v7355
        %v7396 = vadd.f32 %v7135, %v7360
        %v7397 = vadd.f32 %v7136, %v7363
        %v7398 = vld [vmem:[%s6779 + $0x8] sm:$0xc0]
        %v7399 = vld [vmem:[%s6779 + $0x10] sm:$0x3f]
        %v7400 = vld [vmem:[%s6779 + $0x20] sm:$0xc0]
        %v7401 = vld [vmem:[%s6779 + $0x28] sm:$0x3f]
        %v7402 = vld [vmem:[%s6779 + $0x38] sm:$0xc0]
        %v7403 = vld [vmem:[%s6779 + $0x40] sm:$0x3f]
        %v7404 = vld [vmem:[%s6779 + $0x50] sm:$0xc0]
        %v7405 = vld [vmem:[%s6779 + $0x58] sm:$0x3f]
        %v7406 = vld [vmem:[%s6779 + $0x68] sm:$0xc0]
        %v7407 = vld [vmem:[%s6779 + $0x70] sm:$0x3f]
        %v7408 = vld [vmem:[%s6779 + $0x80] sm:$0xc0]
        %v7409 = vld [vmem:[%s6779 + $0x88] sm:$0x3f]
        %v7410 = vld [vmem:[%s6779 + $0x98] sm:$0xc0]
        %v7411 = vld [vmem:[%s6779 + $0xa0] sm:$0x3f]
        %v7412 = vld [vmem:[%s6779 + $0xb0] sm:$0xc0]
        %v7413 = vld [vmem:[%s6779 + $0xb8] sm:$0x3f]
        %v7414 = vld [vmem:[%s6779 + $0xc8] sm:$0xc0]
        %v7415 = vld [vmem:[%s6779 + $0xd0] sm:$0x3f]
        %v7416 = vld [vmem:[%s6779 + $0xe0] sm:$0xc0]
        %v7417 = vld [vmem:[%s6779 + $0xe8] sm:$0x3f]
        %v7418 = vld [vmem:[%s6779 + $0xf8] sm:$0xc0]
        %v7419 = vld [vmem:[%s6779 + $0x100] sm:$0x3f]
        %v7420 = vld [vmem:[%s6779 + $0x110] sm:$0xc0]
        %v7421 = vld [vmem:[%s6779 + $0x118] sm:$0x3f]
        %v7422 = vld [vmem:[%s6779 + $0x128] sm:$0xc0]
        %v7423 = vld [vmem:[%s6779 + $0x130] sm:$0x3f]
        %v7424 = vld [vmem:[%s6779 + $0x140] sm:$0xc0]
        %v7425 = vld [vmem:[%s6779 + $0x148] sm:$0x3f]
        %v7426 = vld [vmem:[%s6779 + $0x158] sm:$0xc0]
        %v7427 = vld [vmem:[%s6779 + $0x160] sm:$0x3f]
        %v7428 = vld [vmem:[%s6779 + $0x170] sm:$0xc0]
        %v7429 = vld [vmem:[%s6779 + $0x178] sm:$0x3f]
        %v7462 = vrot.slane %v7398, 6
        %v7463 = vrot.slane %v7399, 6
        %v7464 = vsel %vm5574, %v7462, %v7463
        %v7465 = vrot.slane %v7400, 6
        %v7466 = vrot.slane %v7401, 6
        %v7467 = vsel %vm5574, %v7465, %v7466
        %v7468 = vrot.slane %v7402, 6
        %v7469 = vrot.slane %v7403, 6
        %v7470 = vsel %vm5574, %v7468, %v7469
        %v7471 = vrot.slane %v7404, 6
        %v7472 = vrot.slane %v7405, 6
        %v7473 = vsel %vm5574, %v7471, %v7472
        %v7474 = vrot.slane %v7406, 6
        %v7475 = vrot.slane %v7407, 6
        %v7476 = vsel %vm5574, %v7474, %v7475
        %v7477 = vrot.slane %v7408, 6
        %v7478 = vrot.slane %v7409, 6
        %v7479 = vsel %vm5574, %v7477, %v7478
        %v7480 = vrot.slane %v7410, 6
        %v7481 = vrot.slane %v7411, 6
        %v7482 = vsel %vm5574, %v7480, %v7481
        %v7483 = vrot.slane %v7412, 6
        %v7484 = vrot.slane %v7413, 6
        %v7485 = vsel %vm5574, %v7483, %v7484
        %v7486 = vrot.slane %v7414, 6
        %v7487 = vrot.slane %v7415, 6
        %v7488 = vsel %vm5574, %v7486, %v7487
        %v7489 = vrot.slane %v7416, 6
        %v7490 = vrot.slane %v7417, 6
        %v7491 = vsel %vm5574, %v7489, %v7490
        %v7492 = vrot.slane %v7418, 6
        %v7493 = vrot.slane %v7419, 6
        %v7494 = vsel %vm5574, %v7492, %v7493
        %v7495 = vrot.slane %v7420, 6
        %v7496 = vrot.slane %v7421, 6
        %v7497 = vsel %vm5574, %v7495, %v7496
        %v7498 = vrot.slane %v7422, 6
        %v7499 = vrot.slane %v7423, 6
        %v7500 = vsel %vm5574, %v7498, %v7499
        %v7501 = vrot.slane %v7424, 6
        %v7502 = vrot.slane %v7425, 6
        %v7503 = vsel %vm5574, %v7501, %v7502
        %v7504 = vrot.slane %v7426, 6
        %v7505 = vrot.slane %v7427, 6
        %v7506 = vsel %vm5574, %v7504, %v7505
        %v7507 = vrot.slane %v7428, 6
        %v7508 = vrot.slane %v7429, 6
        %v7509 = vsel %vm5574, %v7507, %v7508
        %v7510 = vld [vmem:[%s5 + $0x20] sm:$0xf]
        %v7512 = vsel %vm440, %v7464, 0
        %v7515 = vsel %vm440, %v7467, 0
        %v7518 = vsel %vm440, %v7470, 0
        %v7521 = vsel %vm440, %v7473, 0
        %v7524 = vsel %vm440, %v7476, 0
        %v7527 = vsel %vm440, %v7479, 0
        %v7530 = vsel %vm440, %v7482, 0
        %v7533 = vsel %vm440, %v7485, 0
        %v7536 = vsel %vm440, %v7488, 0
        %v7539 = vsel %vm440, %v7491, 0
        %v7542 = vsel %vm440, %v7494, 0
        %v7545 = vsel %vm440, %v7497, 0
        %v7548 = vsel %vm440, %v7500, 0
        %v7551 = vsel %vm440, %v7503, 0
        %v7554 = vsel %vm440, %v7506, 0
        %v7557 = vsel %vm440, %v7509, 0
        %v7560 = vsel %vm1045, %v7510, 0
        %7562 = vmatprep.subr.bf16.mxu0 0
        %7563 = vmatpush1.bf16.msra.mxu0 %v7560
        %7564 = vmatprep.subr.bf16.mxu0 0
        %7565 = vmatpush1.bf16.msra.mxu0 0
        %7566 = vmatprep.subr.bf16.mxu0 0
        %7567 = vmatpush1.bf16.msra.mxu0 0
        %7568 = vmatprep.subr.bf16.mxu0 0
        %7569 = vmatpush1.bf16.msra.mxu0 0
        %7570 = vmatprep.subr.bf16.mxu0 0
        %7571 = vmatpush1.bf16.msra.mxu0 0
        %7572 = vmatprep.subr.bf16.mxu0 0
        %7573 = vmatpush1.bf16.msra.mxu0 0
        %7574 = vmatprep.subr.bf16.mxu0 0
        %7575 = vmatpush1.bf16.msra.mxu0 0
        %7576 = vmatprep.subr.bf16.mxu0 0
        %7577 = vmatpush1.bf16.msra.mxu0 0
        %7578 = vmatprep.subr.bf16.mxu0 0
        %7579 = vmatpush1.bf16.msra.mxu0 0
        %7580 = vmatprep.subr.bf16.mxu0 0
        %7581 = vmatpush1.bf16.msra.mxu0 0
        %7582 = vmatprep.subr.bf16.mxu0 0
        %7583 = vmatpush1.bf16.msra.mxu0 0
        %7584 = vmatprep.subr.bf16.mxu0 0
        %7585 = vmatpush1.bf16.msra.mxu0 0
        %7586 = vmatprep.subr.bf16.mxu0 0
        %7587 = vmatpush1.bf16.msra.mxu0 0
        %7588 = vmatprep.subr.bf16.mxu0 0
        %7589 = vmatpush1.bf16.msra.mxu0 0
        %7590 = vmatprep.subr.bf16.mxu0 0
        %7591 = vmatpush1.bf16.msra.mxu0 0
        %7592 = vmatprep.subr.bf16.mxu0 0
        %7593 = vmatpush1.bf16.msra.mxu0 0
        %7594 = vmatprep.mubr.bf16.mxu0 0
        %7595 = vmatmul.mubr.bf16.gmra.mrb[0].mxu0 %v7512
        %v7596 = vpop.f32.mrb[0].mxu0
        %v7597 = vadd.f32 0.0, %v7596
        %v7598 = vpop.f32.mrb[0].mxu0
        %v7599 = vpop.f32.mrb[0].mxu0
        %v7600 = vadd.f32 0.0, %v7599
        %v7601 = vpop.f32.mrb[0].mxu0
        %7602 = vmatprep.mubr.bf16.mxu0 0
        %7603 = vmatmul.mubr.bf16.gmra.mrb[0].mxu0 %v7515
        %v7604 = vpop.f32.mrb[0].mxu0
        %v7605 = vadd.f32 0.0, %v7604
        %v7606 = vpop.f32.mrb[0].mxu0
        %v7607 = vpop.f32.mrb[0].mxu0
        %v7608 = vadd.f32 0.0, %v7607
        %v7609 = vpop.f32.mrb[0].mxu0
        %7610 = vmatprep.mubr.bf16.mxu0 0
        %7611 = vmatmul.mubr.bf16.gmra.mrb[0].mxu0 %v7518
        %v7612 = vpop.f32.mrb[0].mxu0
        %v7613 = vadd.f32 0.0, %v7612
        %v7614 = vpop.f32.mrb[0].mxu0
        %v7615 = vpop.f32.mrb[0].mxu0
        %v7616 = vadd.f32 0.0, %v7615
        %v7617 = vpop.f32.mrb[0].mxu0
        %7618 = vmatprep.mubr.bf16.mxu0 0
        %7619 = vmatmul.mubr.bf16.gmra.mrb[0].mxu0 %v7521
        %v7620 = vpop.f32.mrb[0].mxu0
        %v7621 = vadd.f32 0.0, %v7620
        %v7622 = vpop.f32.mrb[0].mxu0
        %v7623 = vpop.f32.mrb[0].mxu0
        %v7624 = vadd.f32 0.0, %v7623
        %v7625 = vpop.f32.mrb[0].mxu0
        %7626 = vmatprep.mubr.bf16.mxu0 0
        %7627 = vmatmul.mubr.bf16.gmra.mrb[0].mxu0 %v7524
        %v7628 = vpop.f32.mrb[0].mxu0
        %v7629 = vadd.f32 0.0, %v7628
        %v7630 = vpop.f32.mrb[0].mxu0
        %v7631 = vpop.f32.mrb[0].mxu0
        %v7632 = vadd.f32 0.0, %v7631
        %v7633 = vpop.f32.mrb[0].mxu0
        %7634 = vmatprep.mubr.bf16.mxu0 0
        %7635 = vmatmul.mubr.bf16.gmra.mrb[0].mxu0 %v7527
        %v7636 = vpop.f32.mrb[0].mxu0
        %v7637 = vadd.f32 0.0, %v7636
        %v7638 = vpop.f32.mrb[0].mxu0
        %v7639 = vpop.f32.mrb[0].mxu0
        %v7640 = vadd.f32 0.0, %v7639
        %v7641 = vpop.f32.mrb[0].mxu0
        %7642 = vmatprep.mubr.bf16.mxu0 0
        %7643 = vmatmul.mubr.bf16.gmra.mrb[0].mxu0 %v7530
        %v7644 = vpop.f32.mrb[0].mxu0
        %v7645 = vadd.f32 0.0, %v7644
        %v7646 = vpop.f32.mrb[0].mxu0
        %v7647 = vpop.f32.mrb[0].mxu0
        %v7648 = vadd.f32 0.0, %v7647
        %v7649 = vpop.f32.mrb[0].mxu0
        %7650 = vmatprep.mubr.bf16.mxu0 0
        %7651 = vmatmul.mubr.bf16.gmra.mrb[0].mxu0 %v7533
        %v7652 = vpop.f32.mrb[0].mxu0
        %v7653 = vadd.f32 0.0, %v7652
        %v7654 = vpop.f32.mrb[0].mxu0
        %v7655 = vpop.f32.mrb[0].mxu0
        %v7656 = vadd.f32 0.0, %v7655
        %v7657 = vpop.f32.mrb[0].mxu0
        %7658 = vmatprep.mubr.bf16.mxu0 0
        %7659 = vmatmul.mubr.bf16.gmra.mrb[0].mxu0 %v7536
        %v7660 = vpop.f32.mrb[0].mxu0
        %v7661 = vadd.f32 0.0, %v7660
        %v7662 = vpop.f32.mrb[0].mxu0
        %v7663 = vpop.f32.mrb[0].mxu0
        %v7664 = vadd.f32 0.0, %v7663
        %v7665 = vpop.f32.mrb[0].mxu0
        %7666 = vmatprep.mubr.bf16.mxu0 0
        %7667 = vmatmul.mubr.bf16.gmra.mrb[0].mxu0 %v7539
        %v7668 = vpop.f32.mrb[0].mxu0
        %v7669 = vadd.f32 0.0, %v7668
        %v7670 = vpop.f32.mrb[0].mxu0
        %v7671 = vpop.f32.mrb[0].mxu0
        %v7672 = vadd.f32 0.0, %v7671
        %v7673 = vpop.f32.mrb[0].mxu0
        %7674 = vmatprep.mubr.bf16.mxu0 0
        %7675 = vmatmul.mubr.bf16.gmra.mrb[0].mxu0 %v7542
        %v7676 = vpop.f32.mrb[0].mxu0
        %v7677 = vadd.f32 0.0, %v7676
        %v7678 = vpop.f32.mrb[0].mxu0
        %v7679 = vpop.f32.mrb[0].mxu0
        %v7680 = vadd.f32 0.0, %v7679
        %v7681 = vpop.f32.mrb[0].mxu0
        %7682 = vmatprep.mubr.bf16.mxu0 0
        %7683 = vmatmul.mubr.bf16.gmra.mrb[0].mxu0 %v7545
        %v7684 = vpop.f32.mrb[0].mxu0
        %v7685 = vadd.f32 0.0, %v7684
        %v7686 = vpop.f32.mrb[0].mxu0
        %v7687 = vpop.f32.mrb[0].mxu0
        %v7688 = vadd.f32 0.0, %v7687
        %v7689 = vpop.f32.mrb[0].mxu0
        %7690 = vmatprep.mubr.bf16.mxu0 0
        %7691 = vmatmul.mubr.bf16.gmra.mrb[0].mxu0 %v7548
        %v7692 = vpop.f32.mrb[0].mxu0
        %v7693 = vadd.f32 0.0, %v7692
        %v7694 = vpop.f32.mrb[0].mxu0
        %v7695 = vpop.f32.mrb[0].mxu0
        %v7696 = vadd.f32 0.0, %v7695
        %v7697 = vpop.f32.mrb[0].mxu0
        %7698 = vmatprep.mubr.bf16.mxu0 0
        %7699 = vmatmul.mubr.bf16.gmra.mrb[0].mxu0 %v7551
        %v7700 = vpop.f32.mrb[0].mxu0
        %v7701 = vadd.f32 0.0, %v7700
        %v7702 = vpop.f32.mrb[0].mxu0
        %v7703 = vpop.f32.mrb[0].mxu0
        %v7704 = vadd.f32 0.0, %v7703
        %v7705 = vpop.f32.mrb[0].mxu0
        %7706 = vmatprep.mubr.bf16.mxu0 0
        %7707 = vmatmul.mubr.bf16.gmra.mrb[0].mxu0 %v7554
        %v7708 = vpop.f32.mrb[0].mxu0
        %v7709 = vadd.f32 0.0, %v7708
        %v7710 = vpop.f32.mrb[0].mxu0
        %v7711 = vpop.f32.mrb[0].mxu0
        %v7712 = vadd.f32 0.0, %v7711
        %v7713 = vpop.f32.mrb[0].mxu0
        %7714 = vmatprep.mubr.bf16.mxu0 0
        %7715 = vmatmul.mubr.bf16.gmra.mrb[0].mxu0 %v7557
        %v7716 = vpop.f32.mrb[0].mxu0
        %v7717 = vadd.f32 0.0, %v7716
        %v7718 = vpop.f32.mrb[0].mxu0
        %v7719 = vpop.f32.mrb[0].mxu0
        %v7720 = vadd.f32 0.0, %v7719
        %v7721 = vpop.f32.mrb[0].mxu0
        %7722 = vdwg.mxu0
        %v7723 = vadd.f32 %v7366, %v7597
        %v7724 = vadd.f32 %v7367, %v7600
        %v7725 = vadd.f32 %v7368, %v7605
        %v7726 = vadd.f32 %v7369, %v7608
        %v7727 = vadd.f32 %v7370, %v7613
        %v7728 = vadd.f32 %v7371, %v7616
        %v7729 = vadd.f32 %v7372, %v7621
        %v7730 = vadd.f32 %v7373, %v7624
        %v7731 = vadd.f32 %v7374, %v7629
        %v7732 = vadd.f32 %v7375, %v7632
        %v7733 = vadd.f32 %v7376, %v7637
        %v7734 = vadd.f32 %v7377, %v7640
        %v7735 = vadd.f32 %v7378, %v7645
        %v7736 = vadd.f32 %v7379, %v7648
        %v7737 = vadd.f32 %v7380, %v7653
        %v7738 = vadd.f32 %v7381, %v7656
        %v7739 = vadd.f32 %v7382, %v7661
        %v7740 = vadd.f32 %v7383, %v7664
        %v7741 = vadd.f32 %v7384, %v7669
        %v7742 = vadd.f32 %v7385, %v7672
        %v7743 = vadd.f32 %v7386, %v7677
        %v7744 = vadd.f32 %v7387, %v7680
        %v7745 = vadd.f32 %v7388, %v7685
        %v7746 = vadd.f32 %v7389, %v7688
        %v7747 = vadd.f32 %v7390, %v7693
        %v7748 = vadd.f32 %v7391, %v7696
        %v7749 = vadd.f32 %v7392, %v7701
        %v7750 = vadd.f32 %v7393, %v7704
        %v7751 = vadd.f32 %v7394, %v7709
        %v7752 = vadd.f32 %v7395, %v7712
        %v7753 = vadd.f32 %v7396, %v7717
        %v7754 = vadd.f32 %v7397, %v7720
        %v7755 = vld [vmem:[%s6] sm:$0x1]
        %v7757 = vlaneseq
        %v7758 = vshrl.u32 %v7757, 7
        %v7759 = vsub.s32 0, %v7758
        %v7760 = vrot.slane %v7755, %v7759
        %v7762 = vadd.f32 %v7723, %v7760
        %v7763 = vadd.f32 %v7724, %v7760
        %v7764 = vadd.f32 %v7725, %v7760
        %v7765 = vadd.f32 %v7726, %v7760
        %v7766 = vadd.f32 %v7727, %v7760
        %v7767 = vadd.f32 %v7728, %v7760
        %v7768 = vadd.f32 %v7729, %v7760
        %v7769 = vadd.f32 %v7730, %v7760
        %v7770 = vadd.f32 %v7731, %v7760
        %v7771 = vadd.f32 %v7732, %v7760
        %v7772 = vadd.f32 %v7733, %v7760
        %v7773 = vadd.f32 %v7734, %v7760
        %v7774 = vadd.f32 %v7735, %v7760
        %v7775 = vadd.f32 %v7736, %v7760
        %v7776 = vadd.f32 %v7737, %v7760
        %v7777 = vadd.f32 %v7738, %v7760
        %v7778 = vadd.f32 %v7739, %v7760
        %v7779 = vadd.f32 %v7740, %v7760
        %v7780 = vadd.f32 %v7741, %v7760
        %v7781 = vadd.f32 %v7742, %v7760
        %v7782 = vadd.f32 %v7743, %v7760
        %v7783 = vadd.f32 %v7744, %v7760
        %v7784 = vadd.f32 %v7745, %v7760
        %v7785 = vadd.f32 %v7746, %v7760
        %v7786 = vadd.f32 %v7747, %v7760
        %v7787 = vadd.f32 %v7748, %v7760
        %v7788 = vadd.f32 %v7749, %v7760
        %v7789 = vadd.f32 %v7750, %v7760
        %v7790 = vadd.f32 %v7751, %v7760
        %v7791 = vadd.f32 %v7752, %v7760
        %v7792 = vadd.f32 %v7753, %v7760
        %v7793 = vadd.f32 %v7754, %v7760
        %v7794 = vmax.f32 %v7762, 0.0
        %v7795 = vmax.f32 %v7763, 0.0
        %v7796 = vmax.f32 %v7764, 0.0
        %v7797 = vmax.f32 %v7765, 0.0
        %v7798 = vmax.f32 %v7766, 0.0
        %v7799 = vmax.f32 %v7767, 0.0
        %v7800 = vmax.f32 %v7768, 0.0
        %v7801 = vmax.f32 %v7769, 0.0
        %v7802 = vmax.f32 %v7770, 0.0
        %v7803 = vmax.f32 %v7771, 0.0
        %v7804 = vmax.f32 %v7772, 0.0
        %v7805 = vmax.f32 %v7773, 0.0
        %v7806 = vmax.f32 %v7774, 0.0
        %v7807 = vmax.f32 %v7775, 0.0
        %v7808 = vmax.f32 %v7776, 0.0
        %v7809 = vmax.f32 %v7777, 0.0
        %v7810 = vmax.f32 %v7778, 0.0
        %v7811 = vmax.f32 %v7779, 0.0
        %v7812 = vmax.f32 %v7780, 0.0
        %v7813 = vmax.f32 %v7781, 0.0
        %v7814 = vmax.f32 %v7782, 0.0
        %v7815 = vmax.f32 %v7783, 0.0
        %v7816 = vmax.f32 %v7784, 0.0
        %v7817 = vmax.f32 %v7785, 0.0
        %v7818 = vmax.f32 %v7786, 0.0
        %v7819 = vmax.f32 %v7787, 0.0
        %v7820 = vmax.f32 %v7788, 0.0
        %v7821 = vmax.f32 %v7789, 0.0
        %v7822 = vmax.f32 %v7790, 0.0
        %v7823 = vmax.f32 %v7791, 0.0
        %v7824 = vmax.f32 %v7792, 0.0
        %v7825 = vmax.f32 %v7793, 0.0
        %v7827 = vsel %vm440, %v7794, 0
        %v7830 = vsel %vm440, %v7795, 0
        %v7833 = vsel %vm440, %v7796, 0
        %v7836 = vsel %vm440, %v7797, 0
        %v7839 = vsel %vm440, %v7798, 0
        %v7842 = vsel %vm440, %v7799, 0
        %v7845 = vsel %vm440, %v7800, 0
        %v7848 = vsel %vm440, %v7801, 0
        %v7851 = vsel %vm440, %v7802, 0
        %v7854 = vsel %vm440, %v7803, 0
        %v7857 = vsel %vm440, %v7804, 0
        %v7860 = vsel %vm440, %v7805, 0
        %v7863 = vsel %vm440, %v7806, 0
        %v7866 = vsel %vm440, %v7807, 0
        %v7869 = vsel %vm440, %v7808, 0
        %v7872 = vsel %vm440, %v7809, 0
        %v7875 = vsel %vm440, %v7810, 0
        %v7878 = vsel %vm440, %v7811, 0
        %v7881 = vsel %vm440, %v7812, 0
        %v7884 = vsel %vm440, %v7813, 0
        %v7887 = vsel %vm440, %v7814, 0
        %v7890 = vsel %vm440, %v7815, 0
        %v7893 = vsel %vm440, %v7816, 0
        %v7896 = vsel %vm440, %v7817, 0
        %v7899 = vsel %vm440, %v7818, 0
        %v7902 = vsel %vm440, %v7819, 0
        %v7905 = vsel %vm440, %v7820, 0
        %v7908 = vsel %vm440, %v7821, 0
        %v7911 = vsel %vm440, %v7822, 0
        %v7914 = vsel %vm440, %v7823, 0
        %v7917 = vsel %vm440, %v7824, 0
        %v7920 = vsel %vm440, %v7825, 0
        %7922 = vmatprep.subr.mxu0 0.0
        %7923 = vmatpush1.msra.mxu0 %v732
        %7924 = vmatprep.subr.mxu0 0.0
        %7925 = vmatpush1.msra.mxu0 0.0
        %7926 = vmatprep.subr.mxu0 0.0
        %7927 = vmatpush1.msra.mxu0 0.0
        %7928 = vmatprep.subr.mxu0 0.0
        %7929 = vmatpush1.msra.mxu0 0.0
        %7930 = vmatprep.subr.mxu0 0.0
        %7931 = vmatpush1.msra.mxu0 0.0
        %7932 = vmatprep.subr.mxu0 0.0
        %7933 = vmatpush1.msra.mxu0 0.0
        %7934 = vmatprep.subr.mxu0 0.0
        %7935 = vmatpush1.msra.mxu0 0.0
        %7936 = vmatprep.subr.mxu0 0.0
        %7937 = vmatpush1.msra.mxu0 0.0
        %7938 = vmatprep.subr.mxu0 0.0
        %7939 = vmatpush1.msra.mxu0 0.0
        %7940 = vmatprep.subr.mxu0 0.0
        %7941 = vmatpush1.msra.mxu0 0.0
        %7942 = vmatprep.subr.mxu0 0.0
        %7943 = vmatpush1.msra.mxu0 0.0
        %7944 = vmatprep.subr.mxu0 0.0
        %7945 = vmatpush1.msra.mxu0 0.0
        %7946 = vmatprep.subr.mxu0 0.0
        %7947 = vmatpush1.msra.mxu0 0.0
        %7948 = vmatprep.subr.mxu0 0.0
        %7949 = vmatpush1.msra.mxu0 0.0
        %7950 = vmatprep.subr.mxu0 0.0
        %7951 = vmatpush1.msra.mxu0 0.0
        %7952 = vmatprep.subr.mxu0 0.0
        %7953 = vmatpush1.msra.mxu0 0.0
        %7954 = vmatprep.subr.mxu0 0.0
        %7955 = vmatpush1.msra.mxu0 0.0
        %7956 = vmatprep.subr.mxu0 0.0
        %7957 = vmatpush1.msra.mxu0 0.0
        %7958 = vmatprep.subr.mxu0 0.0
        %7959 = vmatpush1.msra.mxu0 0.0
        %7960 = vmatprep.subr.mxu0 0.0
        %7961 = vmatpush1.msra.mxu0 0.0
        %7962 = vmatprep.subr.mxu0 0.0
        %7963 = vmatpush1.msra.mxu0 0.0
        %7964 = vmatprep.subr.mxu0 0.0
        %7965 = vmatpush1.msra.mxu0 0.0
        %7966 = vmatprep.subr.mxu0 0.0
        %7967 = vmatpush1.msra.mxu0 0.0
        %7968 = vmatprep.subr.mxu0 0.0
        %7969 = vmatpush1.msra.mxu0 0.0
        %7970 = vmatprep.subr.mxu0 0.0
        %7971 = vmatpush1.msra.mxu0 0.0
        %7972 = vmatprep.subr.mxu0 0.0
        %7973 = vmatpush1.msra.mxu0 0.0
        %7974 = vmatprep.subr.mxu0 0.0
        %7975 = vmatpush1.msra.mxu0 0.0
        %7976 = vmatprep.subr.mxu0 0.0
        %7977 = vmatpush1.msra.mxu0 0.0
        %7978 = vmatprep.subr.mxu0 0.0
        %7979 = vmatpush1.msra.mxu0 0.0
        %7980 = vmatprep.subr.mxu0 0.0
        %7981 = vmatpush1.msra.mxu0 0.0
        %7982 = vmatprep.subr.mxu0 0.0
        %7983 = vmatpush1.msra.mxu0 0.0
        %7984 = vmatprep.subr.mxu0 0.0
        %7985 = vmatpush1.msra.mxu0 0.0
        %7986 = vmatprep.mubr.f32.mxu0 0.0
        %7987 = vmatmul.mubr.f32.gmra.mrb[0].mxu0 %v7827
        %v7988 = vpop.f32.mrb[0].mxu0
        %v7989 = vadd.f32 0.0, %v7988
        %v7990 = vpop.f32.mrb[0].mxu0
        %7991 = vmatprep.mubr.f32.mxu0 0.0
        %7992 = vmatmul.mubr.f32.gmra.mrb[0].mxu0 %v7830
        %v7993 = vpop.f32.mrb[0].mxu0
        %v7994 = vadd.f32 0.0, %v7993
        %v7995 = vpop.f32.mrb[0].mxu0
        %7996 = vmatprep.mubr.f32.mxu0 0.0
        %7997 = vmatmul.mubr.f32.gmra.mrb[0].mxu0 %v7833
        %v7998 = vpop.f32.mrb[0].mxu0
        %v7999 = vadd.f32 0.0, %v7998
        %v8000 = vpop.f32.mrb[0].mxu0
        %8001 = vmatprep.mubr.f32.mxu0 0.0
        %8002 = vmatmul.mubr.f32.gmra.mrb[0].mxu0 %v7836
        %v8003 = vpop.f32.mrb[0].mxu0
        %v8004 = vadd.f32 0.0, %v8003
        %v8005 = vpop.f32.mrb[0].mxu0
        %8006 = vmatprep.mubr.f32.mxu0 0.0
        %8007 = vmatmul.mubr.f32.gmra.mrb[0].mxu0 %v7839
        %v8008 = vpop.f32.mrb[0].mxu0
        %v8009 = vadd.f32 0.0, %v8008
        %v8010 = vpop.f32.mrb[0].mxu0
        %8011 = vmatprep.mubr.f32.mxu0 0.0
        %8012 = vmatmul.mubr.f32.gmra.mrb[0].mxu0 %v7842
        %v8013 = vpop.f32.mrb[0].mxu0
        %v8014 = vadd.f32 0.0, %v8013
        %v8015 = vpop.f32.mrb[0].mxu0
        %8016 = vmatprep.mubr.f32.mxu0 0.0
        %8017 = vmatmul.mubr.f32.gmra.mrb[0].mxu0 %v7845
        %v8018 = vpop.f32.mrb[0].mxu0
        %v8019 = vadd.f32 0.0, %v8018
        %v8020 = vpop.f32.mrb[0].mxu0
        %8021 = vmatprep.mubr.f32.mxu0 0.0
        %8022 = vmatmul.mubr.f32.gmra.mrb[0].mxu0 %v7848
        %v8023 = vpop.f32.mrb[0].mxu0
        %v8024 = vadd.f32 0.0, %v8023
        %v8025 = vpop.f32.mrb[0].mxu0
        %8026 = vmatprep.mubr.f32.mxu0 0.0
        %8027 = vmatmul.mubr.f32.gmra.mrb[0].mxu0 %v7851
        %v8028 = vpop.f32.mrb[0].mxu0
        %v8029 = vadd.f32 0.0, %v8028
        %v8030 = vpop.f32.mrb[0].mxu0
        %8031 = vmatprep.mubr.f32.mxu0 0.0
        %8032 = vmatmul.mubr.f32.gmra.mrb[0].mxu0 %v7854
        %v8033 = vpop.f32.mrb[0].mxu0
        %v8034 = vadd.f32 0.0, %v8033
        %v8035 = vpop.f32.mrb[0].mxu0
        %8036 = vmatprep.mubr.f32.mxu0 0.0
        %8037 = vmatmul.mubr.f32.gmra.mrb[0].mxu0 %v7857
        %v8038 = vpop.f32.mrb[0].mxu0
        %v8039 = vadd.f32 0.0, %v8038
        %v8040 = vpop.f32.mrb[0].mxu0
        %8041 = vmatprep.mubr.f32.mxu0 0.0
        %8042 = vmatmul.mubr.f32.gmra.mrb[0].mxu0 %v7860
        %v8043 = vpop.f32.mrb[0].mxu0
        %v8044 = vadd.f32 0.0, %v8043
        %v8045 = vpop.f32.mrb[0].mxu0
        %8046 = vmatprep.mubr.f32.mxu0 0.0
        %8047 = vmatmul.mubr.f32.gmra.mrb[0].mxu0 %v7863
        %v8048 = vpop.f32.mrb[0].mxu0
        %v8049 = vadd.f32 0.0, %v8048
        %v8050 = vpop.f32.mrb[0].mxu0
        %8051 = vmatprep.mubr.f32.mxu0 0.0
        %8052 = vmatmul.mubr.f32.gmra.mrb[0].mxu0 %v7866
        %v8053 = vpop.f32.mrb[0].mxu0
        %v8054 = vadd.f32 0.0, %v8053
        %v8055 = vpop.f32.mrb[0].mxu0
        %8056 = vmatprep.mubr.f32.mxu0 0.0
        %8057 = vmatmul.mubr.f32.gmra.mrb[0].mxu0 %v7869
        %v8058 = vpop.f32.mrb[0].mxu0
        %v8059 = vadd.f32 0.0, %v8058
        %v8060 = vpop.f32.mrb[0].mxu0
        %8061 = vmatprep.mubr.f32.mxu0 0.0
        %8062 = vmatmul.mubr.f32.gmra.mrb[0].mxu0 %v7872
        %v8063 = vpop.f32.mrb[0].mxu0
        %v8064 = vadd.f32 0.0, %v8063
        %v8065 = vpop.f32.mrb[0].mxu0
        %8066 = vmatprep.mubr.f32.mxu0 0.0
        %8067 = vmatmul.mubr.f32.gmra.mrb[0].mxu0 %v7875
        %v8068 = vpop.f32.mrb[0].mxu0
        %v8069 = vadd.f32 0.0, %v8068
        %v8070 = vpop.f32.mrb[0].mxu0
        %8071 = vmatprep.mubr.f32.mxu0 0.0
        %8072 = vmatmul.mubr.f32.gmra.mrb[0].mxu0 %v7878
        %v8073 = vpop.f32.mrb[0].mxu0
        %v8074 = vadd.f32 0.0, %v8073
        %v8075 = vpop.f32.mrb[0].mxu0
        %8076 = vmatprep.mubr.f32.mxu0 0.0
        %8077 = vmatmul.mubr.f32.gmra.mrb[0].mxu0 %v7881
        %v8078 = vpop.f32.mrb[0].mxu0
        %v8079 = vadd.f32 0.0, %v8078
        %v8080 = vpop.f32.mrb[0].mxu0
        %8081 = vmatprep.mubr.f32.mxu0 0.0
        %8082 = vmatmul.mubr.f32.gmra.mrb[0].mxu0 %v7884
        %v8083 = vpop.f32.mrb[0].mxu0
        %v8084 = vadd.f32 0.0, %v8083
        %v8085 = vpop.f32.mrb[0].mxu0
        %8086 = vmatprep.mubr.f32.mxu0 0.0
        %8087 = vmatmul.mubr.f32.gmra.mrb[0].mxu0 %v7887
        %v8088 = vpop.f32.mrb[0].mxu0
        %v8089 = vadd.f32 0.0, %v8088
        %v8090 = vpop.f32.mrb[0].mxu0
        %8091 = vmatprep.mubr.f32.mxu0 0.0
        %8092 = vmatmul.mubr.f32.gmra.mrb[0].mxu0 %v7890
        %v8093 = vpop.f32.mrb[0].mxu0
        %v8094 = vadd.f32 0.0, %v8093
        %v8095 = vpop.f32.mrb[0].mxu0
        %8096 = vmatprep.mubr.f32.mxu0 0.0
        %8097 = vmatmul.mubr.f32.gmra.mrb[0].mxu0 %v7893
        %v8098 = vpop.f32.mrb[0].mxu0
        %v8099 = vadd.f32 0.0, %v8098
        %v8100 = vpop.f32.mrb[0].mxu0
        %8101 = vmatprep.mubr.f32.mxu0 0.0
        %8102 = vmatmul.mubr.f32.gmra.mrb[0].mxu0 %v7896
        %v8103 = vpop.f32.mrb[0].mxu0
        %v8104 = vadd.f32 0.0, %v8103
        %v8105 = vpop.f32.mrb[0].mxu0
        %8106 = vmatprep.mubr.f32.mxu0 0.0
        %8107 = vmatmul.mubr.f32.gmra.mrb[0].mxu0 %v7899
        %v8108 = vpop.f32.mrb[0].mxu0
        %v8109 = vadd.f32 0.0, %v8108
        %v8110 = vpop.f32.mrb[0].mxu0
        %8111 = vmatprep.mubr.f32.mxu0 0.0
        %8112 = vmatmul.mubr.f32.gmra.mrb[0].mxu0 %v7902
        %v8113 = vpop.f32.mrb[0].mxu0
        %v8114 = vadd.f32 0.0, %v8113
        %v8115 = vpop.f32.mrb[0].mxu0
        %8116 = vmatprep.mubr.f32.mxu0 0.0
        %8117 = vmatmul.mubr.f32.gmra.mrb[0].mxu0 %v7905
        %v8118 = vpop.f32.mrb[0].mxu0
        %v8119 = vadd.f32 0.0, %v8118
        %v8120 = vpop.f32.mrb[0].mxu0
        %8121 = vmatprep.mubr.f32.mxu0 0.0
        %8122 = vmatmul.mubr.f32.gmra.mrb[0].mxu0 %v7908
        %v8123 = vpop.f32.mrb[0].mxu0
        %v8124 = vadd.f32 0.0, %v8123
        %v8125 = vpop.f32.mrb[0].mxu0
        %8126 = vmatprep.mubr.f32.mxu0 0.0
        %8127 = vmatmul.mubr.f32.gmra.mrb[0].mxu0 %v7911
        %v8128 = vpop.f32.mrb[0].mxu0
        %v8129 = vadd.f32 0.0, %v8128
        %v8130 = vpop.f32.mrb[0].mxu0
        %8131 = vmatprep.mubr.f32.mxu0 0.0
        %8132 = vmatmul.mubr.f32.gmra.mrb[0].mxu0 %v7914
        %v8133 = vpop.f32.mrb[0].mxu0
        %v8134 = vadd.f32 0.0, %v8133
        %v8135 = vpop.f32.mrb[0].mxu0
        %8136 = vmatprep.mubr.f32.mxu0 0.0
        %8137 = vmatmul.mubr.f32.gmra.mrb[0].mxu0 %v7917
        %v8138 = vpop.f32.mrb[0].mxu0
        %v8139 = vadd.f32 0.0, %v8138
        %v8140 = vpop.f32.mrb[0].mxu0
        %8141 = vmatprep.mubr.f32.mxu0 0.0
        %8142 = vmatmul.mubr.f32.gmra.mrb[0].mxu0 %v7920
        %v8143 = vpop.f32.mrb[0].mxu0
        %v8144 = vadd.f32 0.0, %v8143
        %v8145 = vpop.f32.mrb[0].mxu0
        %8146 = vdwg.mxu0
        %v8147 = vadd.f32 %v4922, %v7989
        %v8148 = vadd.f32 %v4923, %v7994
        %v8149 = vadd.f32 %v4924, %v7999
        %v8150 = vadd.f32 %v4925, %v8004
        %v8151 = vadd.f32 %v4926, %v8009
        %v8152 = vadd.f32 %v4927, %v8014
        %v8153 = vadd.f32 %v4928, %v8019
        %v8154 = vadd.f32 %v4929, %v8024
        %v8155 = vadd.f32 %v4930, %v8029
        %v8156 = vadd.f32 %v4931, %v8034
        %v8157 = vadd.f32 %v4932, %v8039
        %v8158 = vadd.f32 %v4933, %v8044
        %v8159 = vadd.f32 %v4934, %v8049
        %v8160 = vadd.f32 %v4935, %v8054
        %v8161 = vadd.f32 %v4936, %v8059
        %v8162 = vadd.f32 %v4937, %v8064
        %v8163 = vadd.f32 %v4938, %v8069
        %v8164 = vadd.f32 %v4939, %v8074
        %v8165 = vadd.f32 %v4940, %v8079
        %v8166 = vadd.f32 %v4941, %v8084
        %v8167 = vadd.f32 %v4942, %v8089
        %v8168 = vadd.f32 %v4943, %v8094
        %v8169 = vadd.f32 %v4944, %v8099
        %v8170 = vadd.f32 %v4945, %v8104
        %v8171 = vadd.f32 %v4946, %v8109
        %v8172 = vadd.f32 %v4947, %v8114
        %v8173 = vadd.f32 %v4948, %v8119
        %v8174 = vadd.f32 %v4949, %v8124
        %v8175 = vadd.f32 %v4950, %v8129
        %v8176 = vadd.f32 %v4951, %v8134
        %v8177 = vadd.f32 %v4952, %v8139
        %v8178 = vadd.f32 %v4953, %v8144
        %8179 = vst [vmem:[%s433] sm:$0xff] %v8147
        %8180 = vst [vmem:[%s433 + $0x8] sm:$0xff] %v8148
        %8181 = vst [vmem:[%s433 + $0x10] sm:$0xff] %v8149
        %8182 = vst [vmem:[%s433 + $0x18] sm:$0xff] %v8150
        %8183 = vst [vmem:[%s433 + $0x20] sm:$0xff] %v8151
        %8184 = vst [vmem:[%s433 + $0x28] sm:$0xff] %v8152
        %8185 = vst [vmem:[%s433 + $0x30] sm:$0xff] %v8153
        %8186 = vst [vmem:[%s433 + $0x38] sm:$0xff] %v8154
        %8187 = vst [vmem:[%s433 + $0x40] sm:$0xff] %v8155
        %8188 = vst [vmem:[%s433 + $0x48] sm:$0xff] %v8156
        %8189 = vst [vmem:[%s433 + $0x50] sm:$0xff] %v8157
        %8190 = vst [vmem:[%s433 + $0x58] sm:$0xff] %v8158
        %8191 = vst [vmem:[%s433 + $0x60] sm:$0xff] %v8159
        %8192 = vst [vmem:[%s433 + $0x68] sm:$0xff] %v8160
        %8193 = vst [vmem:[%s433 + $0x70] sm:$0xff] %v8161
        %8194 = vst [vmem:[%s433 + $0x78] sm:$0xff] %v8162
        %8195 = vst [vmem:[%s433 + $0x80] sm:$0xff] %v8163
        %8196 = vst [vmem:[%s433 + $0x88] sm:$0xff] %v8164
        %8197 = vst [vmem:[%s433 + $0x90] sm:$0xff] %v8165
        %8198 = vst [vmem:[%s433 + $0x98] sm:$0xff] %v8166
        %8199 = vst [vmem:[%s433 + $0xa0] sm:$0xff] %v8167
        %8200 = vst [vmem:[%s433 + $0xa8] sm:$0xff] %v8168
        %8201 = vst [vmem:[%s433 + $0xb0] sm:$0xff] %v8169
        %8202 = vst [vmem:[%s433 + $0xb8] sm:$0xff] %v8170
        %8203 = vst [vmem:[%s433 + $0xc0] sm:$0xff] %v8171
        %8204 = vst [vmem:[%s433 + $0xc8] sm:$0xff] %v8172
        %8205 = vst [vmem:[%s433 + $0xd0] sm:$0xff] %v8173
        %8206 = vst [vmem:[%s433 + $0xd8] sm:$0xff] %v8174
        %8207 = vst [vmem:[%s433 + $0xe0] sm:$0xff] %v8175
        %8208 = vst [vmem:[%s433 + $0xe8] sm:$0xff] %v8176
        %8209 = vst [vmem:[%s433 + $0xf0] sm:$0xff] %v8177
        %8210 = vst [vmem:[%s433 + $0xf8] sm:$0xff] %v8178
        %v8211 = vld [vmem:[%s433] sm:$0xff]
        %v8212 = vld [vmem:[%s433 + $0x8] sm:$0xff]
        %v8213 = vld [vmem:[%s433 + $0x10] sm:$0xff]
        %v8214 = vld [vmem:[%s433 + $0x18] sm:$0xff]
        %v8215 = vld [vmem:[%s433 + $0x20] sm:$0xff]
        %v8216 = vld [vmem:[%s433 + $0x28] sm:$0xff]
        %v8217 = vld [vmem:[%s433 + $0x30] sm:$0xff]
        %v8218 = vld [vmem:[%s433 + $0x38] sm:$0xff]
        %v8219 = vld [vmem:[%s433 + $0x40] sm:$0xff]
        %v8220 = vld [vmem:[%s433 + $0x48] sm:$0xff]
        %v8221 = vld [vmem:[%s433 + $0x50] sm:$0xff]
        %v8222 = vld [vmem:[%s433 + $0x58] sm:$0xff]
        %v8223 = vld [vmem:[%s433 + $0x60] sm:$0xff]
        %v8224 = vld [vmem:[%s433 + $0x68] sm:$0xff]
        %v8225 = vld [vmem:[%s433 + $0x70] sm:$0xff]
        %v8226 = vld [vmem:[%s433 + $0x78] sm:$0xff]
        %v8227 = vld [vmem:[%s433 + $0x80] sm:$0xff]
        %v8228 = vld [vmem:[%s433 + $0x88] sm:$0xff]
        %v8229 = vld [vmem:[%s433 + $0x90] sm:$0xff]
        %v8230 = vld [vmem:[%s433 + $0x98] sm:$0xff]
        %v8231 = vld [vmem:[%s433 + $0xa0] sm:$0xff]
        %v8232 = vld [vmem:[%s433 + $0xa8] sm:$0xff]
        %v8233 = vld [vmem:[%s433 + $0xb0] sm:$0xff]
        %v8234 = vld [vmem:[%s433 + $0xb8] sm:$0xff]
        %v8235 = vld [vmem:[%s433 + $0xc0] sm:$0xff]
        %v8236 = vld [vmem:[%s433 + $0xc8] sm:$0xff]
        %v8237 = vld [vmem:[%s433 + $0xd0] sm:$0xff]
        %v8238 = vld [vmem:[%s433 + $0xd8] sm:$0xff]
        %v8239 = vld [vmem:[%s433 + $0xe0] sm:$0xff]
        %v8240 = vld [vmem:[%s433 + $0xe8] sm:$0xff]
        %v8241 = vld [vmem:[%s433 + $0xf0] sm:$0xff]
        %v8242 = vld [vmem:[%s433 + $0xf8] sm:$0xff]
        %v8243 = vld [vmem:[%s7] sm:$0xf]
        %v8244 = vld [vmem:[%s8] sm:$0x1]
        %v8246 = vlaneseq
        %v8247 = vshrl.u32 %v8246, 7
        %v8248 = vsub.s32 0, %v8247
        %v8249 = vrot.slane %v8244, %v8248
        %v8252 = vsel %vm1045, %v8243, 0
        %8254 = vmatprep.subr.bf16.mxu0 0
        %8255 = vmatpush1.bf16.msra.mxu0 %v8252
        %8256 = vmatprep.subr.bf16.mxu0 0
        %8257 = vmatpush1.bf16.msra.mxu0 0
        %8258 = vmatprep.subr.bf16.mxu0 0
        %8259 = vmatpush1.bf16.msra.mxu0 0
        %8260 = vmatprep.subr.bf16.mxu0 0
        %8261 = vmatpush1.bf16.msra.mxu0 0
        %8262 = vmatprep.subr.bf16.mxu0 0
        %8263 = vmatpush1.bf16.msra.mxu0 0
        %8264 = vmatprep.subr.bf16.mxu0 0
        %8265 = vmatpush1.bf16.msra.mxu0 0
        %8266 = vmatprep.subr.bf16.mxu0 0
        %8267 = vmatpush1.bf16.msra.mxu0 0
        %8268 = vmatprep.subr.bf16.mxu0 0
        %8269 = vmatpush1.bf16.msra.mxu0 0
        %8270 = vmatprep.subr.bf16.mxu0 0
        %8271 = vmatpush1.bf16.msra.mxu0 0
        %8272 = vmatprep.subr.bf16.mxu0 0
        %8273 = vmatpush1.bf16.msra.mxu0 0
        %8274 = vmatprep.subr.bf16.mxu0 0
        %8275 = vmatpush1.bf16.msra.mxu0 0
        %8276 = vmatprep.subr.bf16.mxu0 0
        %8277 = vmatpush1.bf16.msra.mxu0 0
        %8278 = vmatprep.subr.bf16.mxu0 0
        %8279 = vmatpush1.bf16.msra.mxu0 0
        %8280 = vmatprep.subr.bf16.mxu0 0
        %8281 = vmatpush1.bf16.msra.mxu0 0
        %8282 = vmatprep.subr.bf16.mxu0 0
        %8283 = vmatpush1.bf16.msra.mxu0 0
        %8284 = vmatprep.subr.bf16.mxu0 0
        %8285 = vmatpush1.bf16.msra.mxu0 0
        %8286 = vmatprep.mubr.bf16.mxu0 0
        %8287 = vmatmul.mubr.bf16.gmra.mrb[0].mxu0 %v998
        %v8288 = vpop.f32.mrb[0].mxu0
        %v8289 = vadd.f32 %v8249, %v8288
        %v8290 = vpop.f32.mrb[0].mxu0
        %v8291 = vpop.f32.mrb[0].mxu0
        %v8292 = vadd.f32 %v8249, %v8291
        %v8293 = vpop.f32.mrb[0].mxu0
        %8294 = vmatprep.mubr.bf16.mxu0 0
        %8295 = vmatmul.mubr.bf16.gmra.mrb[0].mxu0 %v1001
        %v8296 = vpop.f32.mrb[0].mxu0
        %v8297 = vadd.f32 %v8249, %v8296
        %v8298 = vpop.f32.mrb[0].mxu0
        %v8299 = vpop.f32.mrb[0].mxu0
        %v8300 = vadd.f32 %v8249, %v8299
        %v8301 = vpop.f32.mrb[0].mxu0
        %8302 = vmatprep.mubr.bf16.mxu0 0
        %8303 = vmatmul.mubr.bf16.gmra.mrb[0].mxu0 %v1004
        %v8304 = vpop.f32.mrb[0].mxu0
        %v8305 = vadd.f32 %v8249, %v8304
        %v8306 = vpop.f32.mrb[0].mxu0
        %v8307 = vpop.f32.mrb[0].mxu0
        %v8308 = vadd.f32 %v8249, %v8307
        %v8309 = vpop.f32.mrb[0].mxu0
        %8310 = vmatprep.mubr.bf16.mxu0 0
        %8311 = vmatmul.mubr.bf16.gmra.mrb[0].mxu0 %v1007
        %v8312 = vpop.f32.mrb[0].mxu0
        %v8313 = vadd.f32 %v8249, %v8312
        %v8314 = vpop.f32.mrb[0].mxu0
        %v8315 = vpop.f32.mrb[0].mxu0
        %v8316 = vadd.f32 %v8249, %v8315
        %v8317 = vpop.f32.mrb[0].mxu0
        %8318 = vmatprep.mubr.bf16.mxu0 0
        %8319 = vmatmul.mubr.bf16.gmra.mrb[0].mxu0 %v1010
        %v8320 = vpop.f32.mrb[0].mxu0
        %v8321 = vadd.f32 %v8249, %v8320
        %v8322 = vpop.f32.mrb[0].mxu0
        %v8323 = vpop.f32.mrb[0].mxu0
        %v8324 = vadd.f32 %v8249, %v8323
        %v8325 = vpop.f32.mrb[0].mxu0
        %8326 = vmatprep.mubr.bf16.mxu0 0
        %8327 = vmatmul.mubr.bf16.gmra.mrb[0].mxu0 %v1013
        %v8328 = vpop.f32.mrb[0].mxu0
        %v8329 = vadd.f32 %v8249, %v8328
        %v8330 = vpop.f32.mrb[0].mxu0
        %v8331 = vpop.f32.mrb[0].mxu0
        %v8332 = vadd.f32 %v8249, %v8331
        %v8333 = vpop.f32.mrb[0].mxu0
        %8334 = vmatprep.mubr.bf16.mxu0 0
        %8335 = vmatmul.mubr.bf16.gmra.mrb[0].mxu0 %v1016
        %v8336 = vpop.f32.mrb[0].mxu0
        %v8337 = vadd.f32 %v8249, %v8336
        %v8338 = vpop.f32.mrb[0].mxu0
        %v8339 = vpop.f32.mrb[0].mxu0
        %v8340 = vadd.f32 %v8249, %v8339
        %v8341 = vpop.f32.mrb[0].mxu0
        %8342 = vmatprep.mubr.bf16.mxu0 0
        %8343 = vmatmul.mubr.bf16.gmra.mrb[0].mxu0 %v1019
        %v8344 = vpop.f32.mrb[0].mxu0
        %v8345 = vadd.f32 %v8249, %v8344
        %v8346 = vpop.f32.mrb[0].mxu0
        %v8347 = vpop.f32.mrb[0].mxu0
        %v8348 = vadd.f32 %v8249, %v8347
        %v8349 = vpop.f32.mrb[0].mxu0
        %8350 = vmatprep.mubr.bf16.mxu0 0
        %8351 = vmatmul.mubr.bf16.gmra.mrb[0].mxu0 %v1022
        %v8352 = vpop.f32.mrb[0].mxu0
        %v8353 = vadd.f32 %v8249, %v8352
        %v8354 = vpop.f32.mrb[0].mxu0
        %v8355 = vpop.f32.mrb[0].mxu0
        %v8356 = vadd.f32 %v8249, %v8355
        %v8357 = vpop.f32.mrb[0].mxu0
        %8358 = vmatprep.mubr.bf16.mxu0 0
        %8359 = vmatmul.mubr.bf16.gmra.mrb[0].mxu0 %v1025
        %v8360 = vpop.f32.mrb[0].mxu0
        %v8361 = vadd.f32 %v8249, %v8360
        %v8362 = vpop.f32.mrb[0].mxu0
        %v8363 = vpop.f32.mrb[0].mxu0
        %v8364 = vadd.f32 %v8249, %v8363
        %v8365 = vpop.f32.mrb[0].mxu0
        %8366 = vmatprep.mubr.bf16.mxu0 0
        %8367 = vmatmul.mubr.bf16.gmra.mrb[0].mxu0 %v1028
        %v8368 = vpop.f32.mrb[0].mxu0
        %v8369 = vadd.f32 %v8249, %v8368
        %v8370 = vpop.f32.mrb[0].mxu0
        %v8371 = vpop.f32.mrb[0].mxu0
        %v8372 = vadd.f32 %v8249, %v8371
        %v8373 = vpop.f32.mrb[0].mxu0
        %8374 = vmatprep.mubr.bf16.mxu0 0
        %8375 = vmatmul.mubr.bf16.gmra.mrb[0].mxu0 %v1031
        %v8376 = vpop.f32.mrb[0].mxu0
        %v8377 = vadd.f32 %v8249, %v8376
        %v8378 = vpop.f32.mrb[0].mxu0
        %v8379 = vpop.f32.mrb[0].mxu0
        %v8380 = vadd.f32 %v8249, %v8379
        %v8381 = vpop.f32.mrb[0].mxu0
        %8382 = vmatprep.mubr.bf16.mxu0 0
        %8383 = vmatmul.mubr.bf16.gmra.mrb[0].mxu0 %v1034
        %v8384 = vpop.f32.mrb[0].mxu0
        %v8385 = vadd.f32 %v8249, %v8384
        %v8386 = vpop.f32.mrb[0].mxu0
        %v8387 = vpop.f32.mrb[0].mxu0
        %v8388 = vadd.f32 %v8249, %v8387
        %v8389 = vpop.f32.mrb[0].mxu0
        %8390 = vmatprep.mubr.bf16.mxu0 0
        %8391 = vmatmul.mubr.bf16.gmra.mrb[0].mxu0 %v1037
        %v8392 = vpop.f32.mrb[0].mxu0
        %v8393 = vadd.f32 %v8249, %v8392
        %v8394 = vpop.f32.mrb[0].mxu0
        %v8395 = vpop.f32.mrb[0].mxu0
        %v8396 = vadd.f32 %v8249, %v8395
        %v8397 = vpop.f32.mrb[0].mxu0
        %8398 = vmatprep.mubr.bf16.mxu0 0
        %8399 = vmatmul.mubr.bf16.gmra.mrb[0].mxu0 %v1040
        %v8400 = vpop.f32.mrb[0].mxu0
        %v8401 = vadd.f32 %v8249, %v8400
        %v8402 = vpop.f32.mrb[0].mxu0
        %v8403 = vpop.f32.mrb[0].mxu0
        %v8404 = vadd.f32 %v8249, %v8403
        %v8405 = vpop.f32.mrb[0].mxu0
        %8406 = vmatprep.mubr.bf16.mxu0 0
        %8407 = vmatmul.mubr.bf16.gmra.mrb[0].mxu0 %v1043
        %v8408 = vpop.f32.mrb[0].mxu0
        %v8409 = vadd.f32 %v8249, %v8408
        %v8410 = vpop.f32.mrb[0].mxu0
        %v8411 = vpop.f32.mrb[0].mxu0
        %v8412 = vadd.f32 %v8249, %v8411
        %v8413 = vpop.f32.mrb[0].mxu0
        %8414 = vdwg.mxu0
        %v8415 = vmax.f32 %v8289, 0.0
        %v8416 = vmax.f32 %v8292, 0.0
        %v8417 = vmax.f32 %v8297, 0.0
        %v8418 = vmax.f32 %v8300, 0.0
        %v8419 = vmax.f32 %v8305, 0.0
        %v8420 = vmax.f32 %v8308, 0.0
        %v8421 = vmax.f32 %v8313, 0.0
        %v8422 = vmax.f32 %v8316, 0.0
        %v8423 = vmax.f32 %v8321, 0.0
        %v8424 = vmax.f32 %v8324, 0.0
        %v8425 = vmax.f32 %v8329, 0.0
        %v8426 = vmax.f32 %v8332, 0.0
        %v8427 = vmax.f32 %v8337, 0.0
        %v8428 = vmax.f32 %v8340, 0.0
        %v8429 = vmax.f32 %v8345, 0.0
        %v8430 = vmax.f32 %v8348, 0.0
        %v8431 = vmax.f32 %v8353, 0.0
        %v8432 = vmax.f32 %v8356, 0.0
        %v8433 = vmax.f32 %v8361, 0.0
        %v8434 = vmax.f32 %v8364, 0.0
        %v8435 = vmax.f32 %v8369, 0.0
        %v8436 = vmax.f32 %v8372, 0.0
        %v8437 = vmax.f32 %v8377, 0.0
        %v8438 = vmax.f32 %v8380, 0.0
        %v8439 = vmax.f32 %v8385, 0.0
        %v8440 = vmax.f32 %v8388, 0.0
        %v8441 = vmax.f32 %v8393, 0.0
        %v8442 = vmax.f32 %v8396, 0.0
        %v8443 = vmax.f32 %v8401, 0.0
        %v8444 = vmax.f32 %v8404, 0.0
        %v8445 = vmax.f32 %v8409, 0.0
        %v8446 = vmax.f32 %v8412, 0.0
        %v8448 = vsel %vm440, %v8415, 0
        %v8451 = vsel %vm440, %v8416, 0
        %v8454 = vsel %vm440, %v8417, 0
        %v8457 = vsel %vm440, %v8418, 0
        %v8460 = vsel %vm440, %v8419, 0
        %v8463 = vsel %vm440, %v8420, 0
        %v8466 = vsel %vm440, %v8421, 0
        %v8469 = vsel %vm440, %v8422, 0
        %v8472 = vsel %vm440, %v8423, 0
        %v8475 = vsel %vm440, %v8424, 0
        %v8478 = vsel %vm440, %v8425, 0
        %v8481 = vsel %vm440, %v8426, 0
        %v8484 = vsel %vm440, %v8427, 0
        %v8487 = vsel %vm440, %v8428, 0
        %v8490 = vsel %vm440, %v8429, 0
        %v8493 = vsel %vm440, %v8430, 0
        %v8496 = vsel %vm440, %v8431, 0
        %v8499 = vsel %vm440, %v8432, 0
        %v8502 = vsel %vm440, %v8433, 0
        %v8505 = vsel %vm440, %v8434, 0
        %v8508 = vsel %vm440, %v8435, 0
        %v8511 = vsel %vm440, %v8436, 0
        %v8514 = vsel %vm440, %v8437, 0
        %v8517 = vsel %vm440, %v8438, 0
        %v8520 = vsel %vm440, %v8439, 0
        %v8523 = vsel %vm440, %v8440, 0
        %v8526 = vsel %vm440, %v8441, 0
        %v8529 = vsel %vm440, %v8442, 0
        %v8532 = vsel %vm440, %v8443, 0
        %v8535 = vsel %vm440, %v8444, 0
        %v8538 = vsel %vm440, %v8445, 0
        %v8541 = vsel %vm440, %v8446, 0
        %8543 = vmatprep.subr.mxu0 0.0
        %8544 = vmatpush1.msra.mxu0 %v733
        %8545 = vmatprep.subr.mxu0 0.0
        %8546 = vmatpush1.msra.mxu0 0.0
        %8547 = vmatprep.subr.mxu0 0.0
        %8548 = vmatpush1.msra.mxu0 0.0
        %8549 = vmatprep.subr.mxu0 0.0
        %8550 = vmatpush1.msra.mxu0 0.0
        %8551 = vmatprep.subr.mxu0 0.0
        %8552 = vmatpush1.msra.mxu0 0.0
        %8553 = vmatprep.subr.mxu0 0.0
        %8554 = vmatpush1.msra.mxu0 0.0
        %8555 = vmatprep.subr.mxu0 0.0
        %8556 = vmatpush1.msra.mxu0 0.0
        %8557 = vmatprep.subr.mxu0 0.0
        %8558 = vmatpush1.msra.mxu0 0.0
        %8559 = vmatprep.subr.mxu0 0.0
        %8560 = vmatpush1.msra.mxu0 0.0
        %8561 = vmatprep.subr.mxu0 0.0
        %8562 = vmatpush1.msra.mxu0 0.0
        %8563 = vmatprep.subr.mxu0 0.0
        %8564 = vmatpush1.msra.mxu0 0.0
        %8565 = vmatprep.subr.mxu0 0.0
        %8566 = vmatpush1.msra.mxu0 0.0
        %8567 = vmatprep.subr.mxu0 0.0
        %8568 = vmatpush1.msra.mxu0 0.0
        %8569 = vmatprep.subr.mxu0 0.0
        %8570 = vmatpush1.msra.mxu0 0.0
        %8571 = vmatprep.subr.mxu0 0.0
        %8572 = vmatpush1.msra.mxu0 0.0
        %8573 = vmatprep.subr.mxu0 0.0
        %8574 = vmatpush1.msra.mxu0 0.0
        %8575 = vmatprep.subr.mxu0 0.0
        %8576 = vmatpush1.msra.mxu0 0.0
        %8577 = vmatprep.subr.mxu0 0.0
        %8578 = vmatpush1.msra.mxu0 0.0
        %8579 = vmatprep.subr.mxu0 0.0
        %8580 = vmatpush1.msra.mxu0 0.0
        %8581 = vmatprep.subr.mxu0 0.0
        %8582 = vmatpush1.msra.mxu0 0.0
        %8583 = vmatprep.subr.mxu0 0.0
        %8584 = vmatpush1.msra.mxu0 0.0
        %8585 = vmatprep.subr.mxu0 0.0
        %8586 = vmatpush1.msra.mxu0 0.0
        %8587 = vmatprep.subr.mxu0 0.0
        %8588 = vmatpush1.msra.mxu0 0.0
        %8589 = vmatprep.subr.mxu0 0.0
        %8590 = vmatpush1.msra.mxu0 0.0
        %8591 = vmatprep.subr.mxu0 0.0
        %8592 = vmatpush1.msra.mxu0 0.0
        %8593 = vmatprep.subr.mxu0 0.0
        %8594 = vmatpush1.msra.mxu0 0.0
        %8595 = vmatprep.subr.mxu0 0.0
        %8596 = vmatpush1.msra.mxu0 0.0
        %8597 = vmatprep.subr.mxu0 0.0
        %8598 = vmatpush1.msra.mxu0 0.0
        %8599 = vmatprep.subr.mxu0 0.0
        %8600 = vmatpush1.msra.mxu0 0.0
        %8601 = vmatprep.subr.mxu0 0.0
        %8602 = vmatpush1.msra.mxu0 0.0
        %8603 = vmatprep.subr.mxu0 0.0
        %8604 = vmatpush1.msra.mxu0 0.0
        %8605 = vmatprep.subr.mxu0 0.0
        %8606 = vmatpush1.msra.mxu0 0.0
        %8607 = vmatprep.mubr.f32.mxu0 0.0
        %8608 = vmatmul.mubr.f32.gmra.mrb[0].mxu0 %v8448
        %v8609 = vpop.f32.mrb[0].mxu0
        %v8610 = vadd.f32 0.0, %v8609
        %v8611 = vpop.f32.mrb[0].mxu0
        %8612 = vmatprep.mubr.f32.mxu0 0.0
        %8613 = vmatmul.mubr.f32.gmra.mrb[0].mxu0 %v8451
        %v8614 = vpop.f32.mrb[0].mxu0
        %v8615 = vadd.f32 0.0, %v8614
        %v8616 = vpop.f32.mrb[0].mxu0
        %8617 = vmatprep.mubr.f32.mxu0 0.0
        %8618 = vmatmul.mubr.f32.gmra.mrb[0].mxu0 %v8454
        %v8619 = vpop.f32.mrb[0].mxu0
        %v8620 = vadd.f32 0.0, %v8619
        %v8621 = vpop.f32.mrb[0].mxu0
        %8622 = vmatprep.mubr.f32.mxu0 0.0
        %8623 = vmatmul.mubr.f32.gmra.mrb[0].mxu0 %v8457
        %v8624 = vpop.f32.mrb[0].mxu0
        %v8625 = vadd.f32 0.0, %v8624
        %v8626 = vpop.f32.mrb[0].mxu0
        %8627 = vmatprep.mubr.f32.mxu0 0.0
        %8628 = vmatmul.mubr.f32.gmra.mrb[0].mxu0 %v8460
        %v8629 = vpop.f32.mrb[0].mxu0
        %v8630 = vadd.f32 0.0, %v8629
        %v8631 = vpop.f32.mrb[0].mxu0
        %8632 = vmatprep.mubr.f32.mxu0 0.0
        %8633 = vmatmul.mubr.f32.gmra.mrb[0].mxu0 %v8463
        %v8634 = vpop.f32.mrb[0].mxu0
        %v8635 = vadd.f32 0.0, %v8634
        %v8636 = vpop.f32.mrb[0].mxu0
        %8637 = vmatprep.mubr.f32.mxu0 0.0
        %8638 = vmatmul.mubr.f32.gmra.mrb[0].mxu0 %v8466
        %v8639 = vpop.f32.mrb[0].mxu0
        %v8640 = vadd.f32 0.0, %v8639
        %v8641 = vpop.f32.mrb[0].mxu0
        %8642 = vmatprep.mubr.f32.mxu0 0.0
        %8643 = vmatmul.mubr.f32.gmra.mrb[0].mxu0 %v8469
        %v8644 = vpop.f32.mrb[0].mxu0
        %v8645 = vadd.f32 0.0, %v8644
        %v8646 = vpop.f32.mrb[0].mxu0
        %8647 = vmatprep.mubr.f32.mxu0 0.0
        %8648 = vmatmul.mubr.f32.gmra.mrb[0].mxu0 %v8472
        %v8649 = vpop.f32.mrb[0].mxu0
        %v8650 = vadd.f32 0.0, %v8649
        %v8651 = vpop.f32.mrb[0].mxu0
        %8652 = vmatprep.mubr.f32.mxu0 0.0
        %8653 = vmatmul.mubr.f32.gmra.mrb[0].mxu0 %v8475
        %v8654 = vpop.f32.mrb[0].mxu0
        %v8655 = vadd.f32 0.0, %v8654
        %v8656 = vpop.f32.mrb[0].mxu0
        %8657 = vmatprep.mubr.f32.mxu0 0.0
        %8658 = vmatmul.mubr.f32.gmra.mrb[0].mxu0 %v8478
        %v8659 = vpop.f32.mrb[0].mxu0
        %v8660 = vadd.f32 0.0, %v8659
        %v8661 = vpop.f32.mrb[0].mxu0
        %8662 = vmatprep.mubr.f32.mxu0 0.0
        %8663 = vmatmul.mubr.f32.gmra.mrb[0].mxu0 %v8481
        %v8664 = vpop.f32.mrb[0].mxu0
        %v8665 = vadd.f32 0.0, %v8664
        %v8666 = vpop.f32.mrb[0].mxu0
        %8667 = vmatprep.mubr.f32.mxu0 0.0
        %8668 = vmatmul.mubr.f32.gmra.mrb[0].mxu0 %v8484
        %v8669 = vpop.f32.mrb[0].mxu0
        %v8670 = vadd.f32 0.0, %v8669
        %v8671 = vpop.f32.mrb[0].mxu0
        %8672 = vmatprep.mubr.f32.mxu0 0.0
        %8673 = vmatmul.mubr.f32.gmra.mrb[0].mxu0 %v8487
        %v8674 = vpop.f32.mrb[0].mxu0
        %v8675 = vadd.f32 0.0, %v8674
        %v8676 = vpop.f32.mrb[0].mxu0
        %8677 = vmatprep.mubr.f32.mxu0 0.0
        %8678 = vmatmul.mubr.f32.gmra.mrb[0].mxu0 %v8490
        %v8679 = vpop.f32.mrb[0].mxu0
        %v8680 = vadd.f32 0.0, %v8679
        %v8681 = vpop.f32.mrb[0].mxu0
        %8682 = vmatprep.mubr.f32.mxu0 0.0
        %8683 = vmatmul.mubr.f32.gmra.mrb[0].mxu0 %v8493
        %v8684 = vpop.f32.mrb[0].mxu0
        %v8685 = vadd.f32 0.0, %v8684
        %v8686 = vpop.f32.mrb[0].mxu0
        %8687 = vmatprep.mubr.f32.mxu0 0.0
        %8688 = vmatmul.mubr.f32.gmra.mrb[0].mxu0 %v8496
        %v8689 = vpop.f32.mrb[0].mxu0
        %v8690 = vadd.f32 0.0, %v8689
        %v8691 = vpop.f32.mrb[0].mxu0
        %8692 = vmatprep.mubr.f32.mxu0 0.0
        %8693 = vmatmul.mubr.f32.gmra.mrb[0].mxu0 %v8499
        %v8694 = vpop.f32.mrb[0].mxu0
        %v8695 = vadd.f32 0.0, %v8694
        %v8696 = vpop.f32.mrb[0].mxu0
        %8697 = vmatprep.mubr.f32.mxu0 0.0
        %8698 = vmatmul.mubr.f32.gmra.mrb[0].mxu0 %v8502
        %v8699 = vpop.f32.mrb[0].mxu0
        %v8700 = vadd.f32 0.0, %v8699
        %v8701 = vpop.f32.mrb[0].mxu0
        %8702 = vmatprep.mubr.f32.mxu0 0.0
        %8703 = vmatmul.mubr.f32.gmra.mrb[0].mxu0 %v8505
        %v8704 = vpop.f32.mrb[0].mxu0
        %v8705 = vadd.f32 0.0, %v8704
        %v8706 = vpop.f32.mrb[0].mxu0
        %8707 = vmatprep.mubr.f32.mxu0 0.0
        %8708 = vmatmul.mubr.f32.gmra.mrb[0].mxu0 %v8508
        %v8709 = vpop.f32.mrb[0].mxu0
        %v8710 = vadd.f32 0.0, %v8709
        %v8711 = vpop.f32.mrb[0].mxu0
        %8712 = vmatprep.mubr.f32.mxu0 0.0
        %8713 = vmatmul.mubr.f32.gmra.mrb[0].mxu0 %v8511
        %v8714 = vpop.f32.mrb[0].mxu0
        %v8715 = vadd.f32 0.0, %v8714
        %v8716 = vpop.f32.mrb[0].mxu0
        %8717 = vmatprep.mubr.f32.mxu0 0.0
        %8718 = vmatmul.mubr.f32.gmra.mrb[0].mxu0 %v8514
        %v8719 = vpop.f32.mrb[0].mxu0
        %v8720 = vadd.f32 0.0, %v8719
        %v8721 = vpop.f32.mrb[0].mxu0
        %8722 = vmatprep.mubr.f32.mxu0 0.0
        %8723 = vmatmul.mubr.f32.gmra.mrb[0].mxu0 %v8517
        %v8724 = vpop.f32.mrb[0].mxu0
        %v8725 = vadd.f32 0.0, %v8724
        %v8726 = vpop.f32.mrb[0].mxu0
        %8727 = vmatprep.mubr.f32.mxu0 0.0
        %8728 = vmatmul.mubr.f32.gmra.mrb[0].mxu0 %v8520
        %v8729 = vpop.f32.mrb[0].mxu0
        %v8730 = vadd.f32 0.0, %v8729
        %v8731 = vpop.f32.mrb[0].mxu0
        %8732 = vmatprep.mubr.f32.mxu0 0.0
        %8733 = vmatmul.mubr.f32.gmra.mrb[0].mxu0 %v8523
        %v8734 = vpop.f32.mrb[0].mxu0
        %v8735 = vadd.f32 0.0, %v8734
        %v8736 = vpop.f32.mrb[0].mxu0
        %8737 = vmatprep.mubr.f32.mxu0 0.0
        %8738 = vmatmul.mubr.f32.gmra.mrb[0].mxu0 %v8526
        %v8739 = vpop.f32.mrb[0].mxu0
        %v8740 = vadd.f32 0.0, %v8739
        %v8741 = vpop.f32.mrb[0].mxu0
        %8742 = vmatprep.mubr.f32.mxu0 0.0
        %8743 = vmatmul.mubr.f32.gmra.mrb[0].mxu0 %v8529
        %v8744 = vpop.f32.mrb[0].mxu0
        %v8745 = vadd.f32 0.0, %v8744
        %v8746 = vpop.f32.mrb[0].mxu0
        %8747 = vmatprep.mubr.f32.mxu0 0.0
        %8748 = vmatmul.mubr.f32.gmra.mrb[0].mxu0 %v8532
        %v8749 = vpop.f32.mrb[0].mxu0
        %v8750 = vadd.f32 0.0, %v8749
        %v8751 = vpop.f32.mrb[0].mxu0
        %8752 = vmatprep.mubr.f32.mxu0 0.0
        %8753 = vmatmul.mubr.f32.gmra.mrb[0].mxu0 %v8535
        %v8754 = vpop.f32.mrb[0].mxu0
        %v8755 = vadd.f32 0.0, %v8754
        %v8756 = vpop.f32.mrb[0].mxu0
        %8757 = vmatprep.mubr.f32.mxu0 0.0
        %8758 = vmatmul.mubr.f32.gmra.mrb[0].mxu0 %v8538
        %v8759 = vpop.f32.mrb[0].mxu0
        %v8760 = vadd.f32 0.0, %v8759
        %v8761 = vpop.f32.mrb[0].mxu0
        %8762 = vmatprep.mubr.f32.mxu0 0.0
        %8763 = vmatmul.mubr.f32.gmra.mrb[0].mxu0 %v8541
        %v8764 = vpop.f32.mrb[0].mxu0
        %v8765 = vadd.f32 0.0, %v8764
        %v8766 = vpop.f32.mrb[0].mxu0
        %8767 = vdwg.mxu0
        %v8768 = vadd.f32 %v8211, %v8610
        %v8769 = vadd.f32 %v8212, %v8615
        %v8770 = vadd.f32 %v8213, %v8620
        %v8771 = vadd.f32 %v8214, %v8625
        %v8772 = vadd.f32 %v8215, %v8630
        %v8773 = vadd.f32 %v8216, %v8635
        %v8774 = vadd.f32 %v8217, %v8640
        %v8775 = vadd.f32 %v8218, %v8645
        %v8776 = vadd.f32 %v8219, %v8650
        %v8777 = vadd.f32 %v8220, %v8655
        %v8778 = vadd.f32 %v8221, %v8660
        %v8779 = vadd.f32 %v8222, %v8665
        %v8780 = vadd.f32 %v8223, %v8670
        %v8781 = vadd.f32 %v8224, %v8675
        %v8782 = vadd.f32 %v8225, %v8680
        %v8783 = vadd.f32 %v8226, %v8685
        %v8784 = vadd.f32 %v8227, %v8690
        %v8785 = vadd.f32 %v8228, %v8695
        %v8786 = vadd.f32 %v8229, %v8700
        %v8787 = vadd.f32 %v8230, %v8705
        %v8788 = vadd.f32 %v8231, %v8710
        %v8789 = vadd.f32 %v8232, %v8715
        %v8790 = vadd.f32 %v8233, %v8720
        %v8791 = vadd.f32 %v8234, %v8725
        %v8792 = vadd.f32 %v8235, %v8730
        %v8793 = vadd.f32 %v8236, %v8735
        %v8794 = vadd.f32 %v8237, %v8740
        %v8795 = vadd.f32 %v8238, %v8745
        %v8796 = vadd.f32 %v8239, %v8750
        %v8797 = vadd.f32 %v8240, %v8755
        %v8798 = vadd.f32 %v8241, %v8760
        %v8799 = vadd.f32 %v8242, %v8765
        %8800 = vst [vmem:[%s433] sm:$0xff] %v8768
        %8801 = vst [vmem:[%s433 + $0x8] sm:$0xff] %v8769
        %8802 = vst [vmem:[%s433 + $0x10] sm:$0xff] %v8770
        %8803 = vst [vmem:[%s433 + $0x18] sm:$0xff] %v8771
        %8804 = vst [vmem:[%s433 + $0x20] sm:$0xff] %v8772
        %8805 = vst [vmem:[%s433 + $0x28] sm:$0xff] %v8773
        %8806 = vst [vmem:[%s433 + $0x30] sm:$0xff] %v8774
        %8807 = vst [vmem:[%s433 + $0x38] sm:$0xff] %v8775
        %8808 = vst [vmem:[%s433 + $0x40] sm:$0xff] %v8776
        %8809 = vst [vmem:[%s433 + $0x48] sm:$0xff] %v8777
        %8810 = vst [vmem:[%s433 + $0x50] sm:$0xff] %v8778
        %8811 = vst [vmem:[%s433 + $0x58] sm:$0xff] %v8779
        %8812 = vst [vmem:[%s433 + $0x60] sm:$0xff] %v8780
        %8813 = vst [vmem:[%s433 + $0x68] sm:$0xff] %v8781
        %8814 = vst [vmem:[%s433 + $0x70] sm:$0xff] %v8782
        %8815 = vst [vmem:[%s433 + $0x78] sm:$0xff] %v8783
        %8816 = vst [vmem:[%s433 + $0x80] sm:$0xff] %v8784
        %8817 = vst [vmem:[%s433 + $0x88] sm:$0xff] %v8785
        %8818 = vst [vmem:[%s433 + $0x90] sm:$0xff] %v8786
        %8819 = vst [vmem:[%s433 + $0x98] sm:$0xff] %v8787
        %8820 = vst [vmem:[%s433 + $0xa0] sm:$0xff] %v8788
        %8821 = vst [vmem:[%s433 + $0xa8] sm:$0xff] %v8789
        %8822 = vst [vmem:[%s433 + $0xb0] sm:$0xff] %v8790
        %8823 = vst [vmem:[%s433 + $0xb8] sm:$0xff] %v8791
        %8824 = vst [vmem:[%s433 + $0xc0] sm:$0xff] %v8792
        %8825 = vst [vmem:[%s433 + $0xc8] sm:$0xff] %v8793
        %8826 = vst [vmem:[%s433 + $0xd0] sm:$0xff] %v8794
        %8827 = vst [vmem:[%s433 + $0xd8] sm:$0xff] %v8795
        %8828 = vst [vmem:[%s433 + $0xe0] sm:$0xff] %v8796
        %8829 = vst [vmem:[%s433 + $0xe8] sm:$0xff] %v8797
        %8830 = vst [vmem:[%s433 + $0xf0] sm:$0xff] %v8798
        %8831 = vst [vmem:[%s433 + $0xf8] sm:$0xff] %v8799
        %v8832 = vld [vmem:[%s433] sm:$0xff]
        %v8833 = vld [vmem:[%s433 + $0x8] sm:$0xff]
        %v8834 = vld [vmem:[%s433 + $0x10] sm:$0xff]
        %v8835 = vld [vmem:[%s433 + $0x18] sm:$0xff]
        %v8836 = vld [vmem:[%s433 + $0x20] sm:$0xff]
        %v8837 = vld [vmem:[%s433 + $0x28] sm:$0xff]
        %v8838 = vld [vmem:[%s433 + $0x30] sm:$0xff]
        %v8839 = vld [vmem:[%s433 + $0x38] sm:$0xff]
        %v8840 = vld [vmem:[%s433 + $0x40] sm:$0xff]
        %v8841 = vld [vmem:[%s433 + $0x48] sm:$0xff]
        %v8842 = vld [vmem:[%s433 + $0x50] sm:$0xff]
        %v8843 = vld [vmem:[%s433 + $0x58] sm:$0xff]
        %v8844 = vld [vmem:[%s433 + $0x60] sm:$0xff]
        %v8845 = vld [vmem:[%s433 + $0x68] sm:$0xff]
        %v8846 = vld [vmem:[%s433 + $0x70] sm:$0xff]
        %v8847 = vld [vmem:[%s433 + $0x78] sm:$0xff]
        %v8848 = vld [vmem:[%s433 + $0x80] sm:$0xff]
        %v8849 = vld [vmem:[%s433 + $0x88] sm:$0xff]
        %v8850 = vld [vmem:[%s433 + $0x90] sm:$0xff]
        %v8851 = vld [vmem:[%s433 + $0x98] sm:$0xff]
        %v8852 = vld [vmem:[%s433 + $0xa0] sm:$0xff]
        %v8853 = vld [vmem:[%s433 + $0xa8] sm:$0xff]
        %v8854 = vld [vmem:[%s433 + $0xb0] sm:$0xff]
        %v8855 = vld [vmem:[%s433 + $0xb8] sm:$0xff]
        %v8856 = vld [vmem:[%s433 + $0xc0] sm:$0xff]
        %v8857 = vld [vmem:[%s433 + $0xc8] sm:$0xff]
        %v8858 = vld [vmem:[%s433 + $0xd0] sm:$0xff]
        %v8859 = vld [vmem:[%s433 + $0xd8] sm:$0xff]
        %v8860 = vld [vmem:[%s433 + $0xe0] sm:$0xff]
        %v8861 = vld [vmem:[%s433 + $0xe8] sm:$0xff]
        %v8862 = vld [vmem:[%s433 + $0xf0] sm:$0xff]
        %v8863 = vld [vmem:[%s433 + $0xf8] sm:$0xff]
        %v8864 = vmax.f32 %v8832, 0.0
        %v8865 = vmax.f32 %v8833, 0.0
        %v8866 = vmax.f32 %v8834, 0.0
        %v8867 = vmax.f32 %v8835, 0.0
        %v8868 = vmax.f32 %v8836, 0.0
        %v8869 = vmax.f32 %v8837, 0.0
        %v8870 = vmax.f32 %v8838, 0.0
        %v8871 = vmax.f32 %v8839, 0.0
        %v8872 = vmax.f32 %v8840, 0.0
        %v8873 = vmax.f32 %v8841, 0.0
        %v8874 = vmax.f32 %v8842, 0.0
        %v8875 = vmax.f32 %v8843, 0.0
        %v8876 = vmax.f32 %v8844, 0.0
        %v8877 = vmax.f32 %v8845, 0.0
        %v8878 = vmax.f32 %v8846, 0.0
        %v8879 = vmax.f32 %v8847, 0.0
        %v8880 = vmax.f32 %v8848, 0.0
        %v8881 = vmax.f32 %v8849, 0.0
        %v8882 = vmax.f32 %v8850, 0.0
        %v8883 = vmax.f32 %v8851, 0.0
        %v8884 = vmax.f32 %v8852, 0.0
        %v8885 = vmax.f32 %v8853, 0.0
        %v8886 = vmax.f32 %v8854, 0.0
        %v8887 = vmax.f32 %v8855, 0.0
        %v8888 = vmax.f32 %v8856, 0.0
        %v8889 = vmax.f32 %v8857, 0.0
        %v8890 = vmax.f32 %v8858, 0.0
        %v8891 = vmax.f32 %v8859, 0.0
        %v8892 = vmax.f32 %v8860, 0.0
        %v8893 = vmax.f32 %v8861, 0.0
        %v8894 = vmax.f32 %v8862, 0.0
        %v8895 = vmax.f32 %v8863, 0.0
        %8896 = vst [vmem:[%s433] sm:$0xff] %v8864
        %8897 = vst [vmem:[%s433 + $0x8] sm:$0xff] %v8865
        %8898 = vst [vmem:[%s433 + $0x10] sm:$0xff] %v8866
        %8899 = vst [vmem:[%s433 + $0x18] sm:$0xff] %v8867
        %8900 = vst [vmem:[%s433 + $0x20] sm:$0xff] %v8868
        %8901 = vst [vmem:[%s433 + $0x28] sm:$0xff] %v8869
        %8902 = vst [vmem:[%s433 + $0x30] sm:$0xff] %v8870
        %8903 = vst [vmem:[%s433 + $0x38] sm:$0xff] %v8871
        %8904 = vst [vmem:[%s433 + $0x40] sm:$0xff] %v8872
        %8905 = vst [vmem:[%s433 + $0x48] sm:$0xff] %v8873
        %8906 = vst [vmem:[%s433 + $0x50] sm:$0xff] %v8874
        %8907 = vst [vmem:[%s433 + $0x58] sm:$0xff] %v8875
        %8908 = vst [vmem:[%s433 + $0x60] sm:$0xff] %v8876
        %8909 = vst [vmem:[%s433 + $0x68] sm:$0xff] %v8877
        %8910 = vst [vmem:[%s433 + $0x70] sm:$0xff] %v8878
        %8911 = vst [vmem:[%s433 + $0x78] sm:$0xff] %v8879
        %8912 = vst [vmem:[%s433 + $0x80] sm:$0xff] %v8880
        %8913 = vst [vmem:[%s433 + $0x88] sm:$0xff] %v8881
        %8914 = vst [vmem:[%s433 + $0x90] sm:$0xff] %v8882
        %8915 = vst [vmem:[%s433 + $0x98] sm:$0xff] %v8883
        %8916 = vst [vmem:[%s433 + $0xa0] sm:$0xff] %v8884
        %8917 = vst [vmem:[%s433 + $0xa8] sm:$0xff] %v8885
        %8918 = vst [vmem:[%s433 + $0xb0] sm:$0xff] %v8886
        %8919 = vst [vmem:[%s433 + $0xb8] sm:$0xff] %v8887
        %8920 = vst [vmem:[%s433 + $0xc0] sm:$0xff] %v8888
        %8921 = vst [vmem:[%s433 + $0xc8] sm:$0xff] %v8889
        %8922 = vst [vmem:[%s433 + $0xd0] sm:$0xff] %v8890
        %8923 = vst [vmem:[%s433 + $0xd8] sm:$0xff] %v8891
        %8924 = vst [vmem:[%s433 + $0xe0] sm:$0xff] %v8892
        %8925 = vst [vmem:[%s433 + $0xe8] sm:$0xff] %v8893
        %8926 = vst [vmem:[%s433 + $0xf0] sm:$0xff] %v8894
        %8927 = vst [vmem:[%s433 + $0xf8] sm:$0xff] %v8895
        %s8928 = sand.u32 %s313, 1
        %s8929 = scalar_lea.sflag [#allocation4], %s8928
        %s8930 = sand.u32 %s313, 1
        %s8931 = smul.addr %s8930, 256
        %s8932 = scalar_lea.vmem [#allocation3], %s8931
        // Predicated region
        $region73: #{tpu_custom_call.1} parent=71 // pred_check
          %p8933 = pneg %p323
        $region74: #{tpu_custom_call.1} parent=71 // pred_check_branch
          %8935 = sbr.rel (%p8933) target = $region76
        $region75: #{tpu_custom_call.1} parent=71 // pred_region
          %s8937 = ssub.s32 4096, 4096
          %8938 = vsyncadd %s8929, %s8937
          %s8939 = smul.addr %s27, 32
          %s8940 = smul.addr %s8939, 128
          %s8941 = scalar_lea.hbm %s13, %s8940
          %s8942 = sshll.u32 %s8932, 4
          %s8943 = int_to_ptr.vmem [resolvable:$true] %s8942
          %8948 = dma.vmem_to_hbm [thread:$0]  %s8943, 4096, %s8941, %s8929, 128, 128, 8
        $region76: #{tpu_custom_call.1} parent=71 // pred_fallthru
          _
      $region72: #{tpu_custom_call.1} parent=5 // pred_fallthru
        _
      %p8949 = scmp.le.s32.totalorder 2, %s22
      // Predicated region
      $region77: #{tpu_custom_call.1} parent=5 // pred_check
        %p8950 = pneg %p8949
      $region78: #{tpu_custom_call.1} parent=5 // pred_check_branch
        %8952 = sbr.rel (%p8950) target = $region80
      $region79: #{tpu_custom_call.1} parent=5 // pred_region
        %s8953 = ssub.s32 %s22, 2
        // Predicated region
        $region81: #{tpu_custom_call.1} parent=79 // pred_check
          %p8954 = pneg %p329
        $region82: #{tpu_custom_call.1} parent=79 // pred_check_branch
          %8956 = sbr.rel (%p8954) target = $region84
        $region83: #{tpu_custom_call.1} parent=79 // pred_region
          %s8957 = sand.u32 %s314, 1
          %s8958 = scalar_lea.sflag [#allocation4], %s8957
          %s8959 = sand.u32 %s314, 1
          %s8960 = smul.addr %s8959, 256
          %s8961 = scalar_lea.vmem [#allocation3], %s8960
          %8962 = dma.done %s8958, 4096
        $region84: #{tpu_custom_call.1} parent=79 // pred_fallthru
          _
      $region80: #{tpu_custom_call.1} parent=5 // pred_fallthru
        _
    $region6: #{tpu_custom_call.1} parent=1 // loop_footer
      %s26 = sadd.s32 1, %s22
    $region7: #{tpu_custom_call.1} parent=1 // loop_footer_branch
      %21 = sbr.rel target = $region3
    $region8: #{tpu_custom_call.1} parent=1 // loop_exit
      _
    %8963 = vsyncpa [#allocation4], 1
    %s8964 = scalar_lea.sflag [#allocation4], 1
    %8965 = vsyncpa %s8964, 1

</llo_original>
